<compile_context>
chip_gen: v7x
topology: tpu7x:2x2x1
jax: 0.10.0
libtpu: 0.0.40
codegen_flags: <defaults>
</compile_context>

<pallas_src>
import jax
import jax.numpy as jnp
from jax.experimental import pallas as pl
from jax.experimental.pallas import tpu as pltpu

EXPANSION = 4           # BottleNeck.expansion
BN_EPS = 1e-5
LANE = 128


def _round_up(x, m):
    return (x + m - 1) // m * m


# ---------------------------------------------------------------------------
# In-kernel helpers
# ---------------------------------------------------------------------------
def _bn(y, gamma, beta, relu):
    """Train-mode BatchNorm over rows; one-pass stats (E[x^2] - E[x]^2)."""
    m = y.shape[0]
    s = jnp.sum(y, axis=0, keepdims=True)                    # (1, C)
    ss = jnp.sum(y * y, axis=0, keepdims=True)               # (1, C)
    mean = s * (1.0 / m)
    var = ss * (1.0 / m) - mean * mean                       # biased variance
    scale = gamma * jax.lax.rsqrt(var + BN_EPS)
    shift = beta - mean * scale
    y = y * scale + shift
    return jnp.maximum(y, 0.0) if relu else y


def _make_bottleneck_kernel(*, N, H, W, Ho, Wo, P, S, GUARD, stride,
                            has_proj, cmid_p):
    """Fused bottleneck kernel. All refs are full VMEM blocks (grid=(1,))."""
    f32, bf16 = jnp.float32, jnp.bfloat16
    Macc = N * S            # conv2 is evaluated over the whole halo span
    c = cmid_p

    def body(x_ref, xs_ref, w1_ref, w2_ref, w3_ref, ws_ref,
             g1, b1, g2, b2, g3, b3, gs, bs, out_ref, halo_ref, acc_ref):
        # ---- conv1 (1x1) + BN1 + ReLU ------------------------------------
        x = x_ref[...]
        y1 = jnp.dot(x.astype(bf16), w1_ref[...], preferred_element_type=f32)
        y1 = _bn(y1, g1[...], b1[...], relu=True).astype(bf16)     # (M, cmid)

        # ---- build bf16 2D halo with kw-concatenated lane blocks ----------
        # halo row r = GUARD + n*S + (h+1)*P + (w+1) holds, in lane blocks:
        #   [0:c]   = y1[n, h, w-1]   (kw=0 tap)
        #   [c:2c]  = y1[n, h, w  ]   (kw=1 tap)
        #   [2c:3c] = y1[n, h, w+1]   (kw=2 tap)
        # All spatial out-of-bounds cells stay zero (zero-init + pitch/guard).
        halo_ref[...] = jnp.zeros_like(halo_ref)
        for n in range(N):
            for h in range(H):
                blk = y1[(n * H + h) * W:(n * H + h) * W + W, :]    # (W, c)
                base = GUARD + n * S + (h + 1) * P
                halo_ref[pl.ds(base + 1, W), pl.ds(c, c)] = blk      # center
                halo_ref[pl.ds(base + 2, W), pl.ds(0, c)] = blk      # left nbr
                halo_ref[pl.ds(base, W), pl.ds(2 * c, c)] = blk      # right nbr

        # ---- conv2 (3x3, pad=1): 3 matmuls with K = 3*cmid_p ---------------
        # acc row j corresponds to halo row GUARD + j.
        acc_ref[...] = jnp.dot(halo_ref[pl.ds(GUARD - P, Macc), :], w2_ref[0],
                               preferred_element_type=f32)
        acc_ref[...] += jnp.dot(halo_ref[pl.ds(GUARD, Macc), :], w2_ref[1],
                                preferred_element_type=f32)
        acc_ref[...] += jnp.dot(halo_ref[pl.ds(GUARD + P, Macc), :], w2_ref[2],
                                preferred_element_type=f32)

        # ---- strided extraction of the Mo valid output rows -----------------
        pieces = []
        for n in range(N):
            for ho in range(Ho):
                start = n * S + (ho * stride + 1) * P + 1
                sl = pl.ds(start, Wo) if stride == 1 else pl.ds(start, Wo, stride)
                pieces.append(acc_ref[sl, :])                       # (Wo, c)
        y2 = pieces[0] if len(pieces) == 1 else jnp.concatenate(pieces, axis=0)
        y2 = _bn(y2, g2[...], b2[...], relu=True)                   # (Mo, cmid)

        # ---- conv3 (1x1) + BN3 ----------------------------------------------
        y3 = jnp.dot(y2.astype(bf16), w3_ref[...], preferred_element_type=f32)
        y3 = _bn(y3, g3[...], b3[...], relu=False)                  # (Mo, cexp)

        # ---- shortcut branch --------------------------------------------------
        if has_proj:
            sc = jnp.dot(xs_ref[...], ws_ref[...], preferred_element_type=f32)
            sc = _bn(sc, gs[...], bs[...], relu=False)
        else:
            sc = x                                  # exact f32 identity residual

        # ---- residual add + ReLU (lane-dense 128-wide store) -----------------
        out_ref[...] = jnp.maximum(y3 + sc, 0.0)

    if has_proj:
        def kernel(x_ref, xs_ref, w1_ref, w2_ref, w3_ref, ws_ref,
                   g1, b1, g2, b2, g3, b3, gs, bs, out_ref, halo_ref, acc_ref):
            body(x_ref, xs_ref, w1_ref, w2_ref, w3_ref, ws_ref,
                 g1, b1, g2, b2, g3, b3, gs, bs, out_ref, halo_ref, acc_ref)
    else:
        def kernel(x_ref, w1_ref, w2_ref, w3_ref,
                   g1, b1, g2, b2, g3, b3, out_ref, halo_ref, acc_ref):
            body(x_ref, None, w1_ref, w2_ref, w3_ref, None,
                 g1, b1, g2, b2, g3, b3, None, None, out_ref, halo_ref, acc_ref)
    return kernel


# ---------------------------------------------------------------------------
# Wrapper: layout plumbing + pallas_call
# ---------------------------------------------------------------------------
def bottleneck_forward(x_nchw, params, stride):
    """Pallas-backed BottleNeck forward. Input/output NCHW (PyTorch layout)."""
    N, Cin, H, W = x_nchw.shape
    Cout = params["w1"].shape[0]
    Cexp = Cout * EXPANSION
    has_proj = (stride != 1) or (Cin != Cexp)
    Ho = (H + 2 - 3) // stride + 1
    Wo = (W + 2 - 3) // stride + 1
    M, Mo = N * H * W, N * Ho * Wo

    cin_p = _round_up(Cin, LANE)
    cmid_p = _round_up(Cout, LANE)
    cexp_p = _round_up(Cexp, LANE)

    # Halo geometry: pitch per image row, per-image top/bottom guard row,
    # plus outer guard so every shifted tap window stays in bounds.
    P = W + 2
    S = (H + 2) * P
    GUARD = _round_up(P, 8)
    Mh = N * S + 2 * GUARD
    Macc = N * S

    f32, bf16 = jnp.float32, jnp.bfloat16
    x_nhwc = jnp.transpose(x_nchw, (0, 2, 3, 1)).astype(f32)

    def pad2(a, rows, cols):
        return jnp.pad(a, ((0, rows - a.shape[0]), (0, cols - a.shape[1])))

    def row(vec, cols):
        return jnp.pad(vec, (0, cols - vec.shape[0])).reshape(1, cols).astype(f32)

    # ---- activations (lane-dense) -------------------------------------------
    x2d_f32 = pad2(x_nhwc.reshape(M, Cin), M, cin_p)
    if has_proj:
        x2d = x2d_f32.astype(bf16)
        xs = x_nhwc[:, ::stride, ::stride, :].reshape(Mo, Cin)
        xs2d = pad2(xs, Mo, cin_p).astype(bf16)
    else:
        x2d = x2d_f32                      # single f32 copy; reused as identity
        xs2d = None

    # ---- weights -> lane-dense (K, Cout) slabs, bf16 -------------------------
    w1 = pad2(params["w1"][:, :, 0, 0].T, cin_p, cmid_p).astype(bf16)
    w2t = jnp.transpose(params["w2"], (2, 3, 1, 0))               # (Kh,Kw,I,O)
    w2p = jnp.zeros((3, 3, cmid_p, cmid_p), f32).at[:, :, :Cout, :Cout].set(w2t)
    w2cat = w2p.reshape(3, 3 * cmid_p, cmid_p).astype(bf16)       # kw along K
    w3 = pad2(params["w3"][:, :, 0, 0].T, cmid_p, cexp_p).astype(bf16)

    g1, b1 = row(params["g1"], cmid_p), row(params["b1"], cmid_p)
    g2, b2 = row(params["g2"], cmid_p), row(params["b2"], cmid_p)
    g3, b3 = row(params["g3"], cexp_p), row(params["b3"], cexp_p)

    inputs = [x2d]
    if has_proj:
        inputs.append(xs2d)
    inputs += [w1, w2cat, w3]
    if has_proj:
        ws = pad2(params["ws"][:, :, 0, 0].T, cin_p, cexp_p).astype(bf16)
        inputs.append(ws)
    inputs += [g1, b1, g2, b2, g3, b3]
    if has_proj:
        inputs += [row(params["gs"], cexp_p), row(params["bs"], cexp_p)]

    kernel = _make_bottleneck_kernel(N=N, H=H, W=W, Ho=Ho, Wo=Wo, P=P, S=S,
                                     GUARD=GUARD, stride=stride,
                                     has_proj=has_proj, cmid_p=cmid_p)

    def full_spec(a):
        nd = a.ndim
        return pl.BlockSpec(a.shape, lambda i, nd=nd: (0,) * nd)

    # VMEM budget: actual footprint + headroom, capped well below a v7x core.
    bytes_in = sum(int(a.size) * a.dtype.itemsize for a in inputs)
    bytes_out = Mo * cexp_p * 4
    bytes_scratch = Mh * (3 * cmid_p) * 2 + Macc * cmid_p * 4
    vmem_bytes = 2 * (bytes_in + bytes_out) + bytes_scratch + (4 << 20)
    vmem_bytes = int(min(32 << 20, _round_up(vmem_bytes, 1 << 20)))

    out2d = pl.pallas_call(
        kernel,
        out_shape=jax.ShapeDtypeStruct((Mo, cexp_p), f32),
        grid=(1,),
        in_specs=[full_spec(a) for a in inputs],
        out_specs=pl.BlockSpec((Mo, cexp_p), lambda i: (0, 0)),
        scratch_shapes=[
            pltpu.VMEM((Mh, 3 * cmid_p), bf16),     # kw-concatenated halo of y1
            pltpu.VMEM((Macc, cmid_p), f32),        # conv2 accumulator
        ],
        compiler_params=pltpu.CompilerParams(
            dimension_semantics=("arbitrary",),
            vmem_limit_bytes=vmem_bytes,
        ),
    )(*inputs)

    out = out2d[:, :Cexp].reshape(N, Ho, Wo, Cexp)
    return jnp.transpose(out, (0, 3, 1, 2))                        # back to NCHW


# ---------------------------------------------------------------------------
# Deterministic parameter init (PyTorch OIHW weight layout)
# ---------------------------------------------------------------------------
def init_params(key, cin, cout, stride):
    cexp = cout * EXPANSION
    ks = jax.random.split(key, 12)
    p = {
        "w1": 0.3 * jax.random.normal(ks[0], (cout, cin, 1, 1), jnp.float32),
        "g1": 1.0 + 0.1 * jax.random.normal(ks[1], (cout,), jnp.float32),
        "b1": 0.1 * jax.random.normal(ks[2], (cout,), jnp.float32),
        "w2": 0.3 * jax.random.normal(ks[3], (cout, cout, 3, 3), jnp.float32),
        "g2": 1.0 + 0.1 * jax.random.normal(ks[4], (cout,), jnp.float32),
        "b2": 0.1 * jax.random.normal(ks[5], (cout,), jnp.float32),
        "w3": 0.3 * jax.random.normal(ks[6], (cexp, cout, 1, 1), jnp.float32),
        "g3": 1.0 + 0.1 * jax.random.normal(ks[7], (cexp,), jnp.float32),
        "b3": 0.1 * jax.random.normal(ks[8], (cexp,), jnp.float32),
    }
    if stride != 1 or cin != cexp:
        p["ws"] = 0.3 * jax.random.normal(ks[9], (cexp, cin, 1, 1), jnp.float32)
        p["gs"] = 1.0 + 0.1 * jax.random.normal(ks[10], (cexp,), jnp.float32)
        p["bs"] = 0.1 * jax.random.normal(ks[11], (cexp,), jnp.float32)
    return p


# ---------------------------------------------------------------------------
# Pure-JAX f32 reference mirroring the PyTorch forward (train-mode BN)
# ---------------------------------------------------------------------------
def reference_forward(x_nchw, params, stride):
    def conv(x, w, s, p):
        return jax.lax.conv_general_dilated(
            x, w, (s, s), [(p, p), (p, p)],
            dimension_numbers=("NCHW", "OIHW", "NCHW"))

    def bn(x, gamma, beta):
        mean = jnp.mean(x, axis=(0, 2, 3), keepdims=True)
        var = jnp.mean(jnp.square(x - mean), axis=(0, 2, 3), keepdims=True)
        return ((x - mean) * jax.lax.rsqrt(var + BN_EPS)
                * gamma[None, :, None, None] + beta[None, :, None, None])

    relu = lambda t: jnp.maximum(t, 0.0)
    cin = x_nchw.shape[1]
    cexp = params["w3"].shape[0]

    y = relu(bn(conv(x_nchw, params["w1"], 1, 0), params["g1"], params["b1"]))
    y = relu(bn(conv(y, params["w2"], stride, 1), params["g2"], params["b2"]))
    y = bn(conv(y, params["w3"], 1, 0), params["g3"], params["b3"])

    if stride != 1 or cin != cexp:
        sc = bn(conv(x_nchw, params["ws"], stride, 0), params["gs"], params["bs"])
    else:
        sc = x_nchw
    return relu(y + sc)


if __name__ == "__main__":
    key = jax.random.PRNGKey(0)
    kx, kp = jax.random.split(key)
    fwd = jax.jit(bottleneck_forward, static_argnums=2)

    # (in_channels, out_channels, stride): projection (s=1, s=2) and identity.
    configs = [(4, 4, 1), (4, 4, 2), (16, 4, 1)]
    for cin, cout, stride in configs:
        x = jax.random.normal(kx, (2, cin, 16, 16), jnp.float32)      # NCHW
        params = init_params(kp, cin, cout, stride)
        out = jax.block_until_ready(fwd(x, params, stride))
        ref = jax.block_until_ready(reference_forward(x, params, stride))
        assert out.shape == ref.shape, (out.shape, ref.shape)
        # bf16 MXU operands (f32 accumulation / BN math) -> loosened tolerance.
        rel = float(jnp.linalg.norm(out - ref) / (jnp.linalg.norm(ref) + 1e-12))
        mx = float(jnp.max(jnp.abs(out - ref)))
        assert rel < 5e-2 and mx < 3e-1, (cin, cout, stride, rel, mx)

    print("KERNEL_OK")
</pallas_src>

<mosaic_0001>
module attributes {stable_mosaic.version = 11 : i64} {
  func.func @kernel(%arg0: i32, %arg1: memref<512x128xbf16, #tpu.memory_space<vmem>>, %arg2: memref<512x128xbf16, #tpu.memory_space<vmem>>, %arg3: memref<128x128xbf16, #tpu.memory_space<vmem>>, %arg4: memref<3x384x128xbf16, #tpu.memory_space<vmem>>, %arg5: memref<128x128xbf16, #tpu.memory_space<vmem>>, %arg6: memref<128x128xbf16, #tpu.memory_space<vmem>>, %arg7: memref<1x128xf32, #tpu.memory_space<vmem>>, %arg8: memref<1x128xf32, #tpu.memory_space<vmem>>, %arg9: memref<1x128xf32, #tpu.memory_space<vmem>>, %arg10: memref<1x128xf32, #tpu.memory_space<vmem>>, %arg11: memref<1x128xf32, #tpu.memory_space<vmem>>, %arg12: memref<1x128xf32, #tpu.memory_space<vmem>>, %arg13: memref<1x128xf32, #tpu.memory_space<vmem>>, %arg14: memref<1x128xf32, #tpu.memory_space<vmem>>, %arg15: memref<512x128xf32, #tpu.memory_space<vmem>>, %arg16: memref<696x384xbf16, #tpu.memory_space<vmem>>, %arg17: memref<648x128xf32, #tpu.memory_space<vmem>>) attributes {dimension_semantics = [#tpu.dimension_semantics<arbitrary>], iteration_bounds = array<i64: 1>, scalar_prefetch = 0 : i64, scratch_operands = 2 : i64, tpu.core_type = #tpu.core_type<tc>, window_params = [{pipeline_mode = #tpu.pipeline_mode<synchronous>, transform_indices = @transform_0, window_bounds = array<i64: 512, 128>}, {pipeline_mode = #tpu.pipeline_mode<synchronous>, transform_indices = @transform_1, window_bounds = array<i64: 512, 128>}, {pipeline_mode = #tpu.pipeline_mode<synchronous>, transform_indices = @transform_2, window_bounds = array<i64: 128, 128>}, {pipeline_mode = #tpu.pipeline_mode<synchronous>, transform_indices = @transform_3, window_bounds = array<i64: 3, 384, 128>}, {pipeline_mode = #tpu.pipeline_mode<synchronous>, transform_indices = @transform_4, window_bounds = array<i64: 128, 128>}, {pipeline_mode = #tpu.pipeline_mode<synchronous>, transform_indices = @transform_5, window_bounds = array<i64: 128, 128>}, {pipeline_mode = #tpu.pipeline_mode<synchronous>, transform_indices = @transform_6, window_bounds = array<i64: 1, 128>}, {pipeline_mode = #tpu.pipeline_mode<synchronous>, transform_indices = @transform_7, window_bounds = array<i64: 1, 128>}, {pipeline_mode = #tpu.pipeline_mode<synchronous>, transform_indices = @transform_8, window_bounds = array<i64: 1, 128>}, {pipeline_mode = #tpu.pipeline_mode<synchronous>, transform_indices = @transform_9, window_bounds = array<i64: 1, 128>}, {pipeline_mode = #tpu.pipeline_mode<synchronous>, transform_indices = @transform_10, window_bounds = array<i64: 1, 128>}, {pipeline_mode = #tpu.pipeline_mode<synchronous>, transform_indices = @transform_11, window_bounds = array<i64: 1, 128>}, {pipeline_mode = #tpu.pipeline_mode<synchronous>, transform_indices = @transform_12, window_bounds = array<i64: 1, 128>}, {pipeline_mode = #tpu.pipeline_mode<synchronous>, transform_indices = @transform_13, window_bounds = array<i64: 1, 128>}, {pipeline_mode = #tpu.pipeline_mode<synchronous>, transform_indices = @transform_14, window_bounds = array<i64: 512, 128>}]} {
    %c0 = arith.constant 0 : index
    %c0_0 = arith.constant 0 : index
    %0 = vector.load %arg1[%c0, %c0_0] : memref<512x128xbf16, #tpu.memory_space<vmem>>, vector<512x128xbf16>
    %c0_1 = arith.constant 0 : index
    %c0_2 = arith.constant 0 : index
    %1 = vector.load %arg3[%c0_1, %c0_2] : memref<128x128xbf16, #tpu.memory_space<vmem>>, vector<128x128xbf16>
    %cst = arith.constant dense<0.000000e+00> : vector<512x128xf32>
    %2 = tpu.matmul %0, %1, %cst {dimension_numbers = #tpu.dot_dimension_numbers<[1], [0], [0], [1], [0, 0, 1, 1], [], []>} : vector<512x128xbf16>, vector<128x128xbf16>, vector<512x128xf32> -> vector<512x128xf32>
    %c0_3 = arith.constant 0 : index
    %c0_4 = arith.constant 0 : index
    %3 = vector.load %arg7[%c0_3, %c0_4] : memref<1x128xf32, #tpu.memory_space<vmem>>, vector<1x128xf32>
    %c0_5 = arith.constant 0 : index
    %c0_6 = arith.constant 0 : index
    %4 = vector.load %arg8[%c0_5, %c0_6] : memref<1x128xf32, #tpu.memory_space<vmem>>, vector<1x128xf32>
    %cst_7 = arith.constant dense<0.000000e+00> : vector<128xf32>
    %5 = vector.multi_reduction <add>, %2, %cst_7 [0] : vector<512x128xf32> to vector<128xf32>
    %6 = vector.shape_cast %5 : vector<128xf32> to vector<1x128xf32>
    %7 = arith.mulf %2, %2 : vector<512x128xf32>
    %cst_8 = arith.constant dense<0.000000e+00> : vector<128xf32>
    %8 = vector.multi_reduction <add>, %7, %cst_8 [0] : vector<512x128xf32> to vector<128xf32>
    %9 = vector.shape_cast %8 : vector<128xf32> to vector<1x128xf32>
    %cst_9 = arith.constant 0.001953125 : f32
    %10 = vector.broadcast %cst_9 : f32 to vector<1x128xf32>
    %11 = arith.mulf %6, %10 : vector<1x128xf32>
    %cst_10 = arith.constant 0.001953125 : f32
    %12 = vector.broadcast %cst_10 : f32 to vector<1x128xf32>
    %13 = arith.mulf %9, %12 : vector<1x128xf32>
    %14 = arith.mulf %11, %11 : vector<1x128xf32>
    %15 = arith.subf %13, %14 : vector<1x128xf32>
    %cst_11 = arith.constant 9.99999974E-6 : f32
    %16 = vector.broadcast %cst_11 : f32 to vector<1x128xf32>
    %17 = arith.addf %15, %16 : vector<1x128xf32>
    %18 = math.rsqrt %17 : vector<1x128xf32>
    %19 = arith.mulf %3, %18 : vector<1x128xf32>
    %20 = arith.mulf %11, %19 : vector<1x128xf32>
    %21 = arith.subf %4, %20 : vector<1x128xf32>
    %22 = vector.broadcast %19 : vector<1x128xf32> to vector<512x128xf32>
    %23 = arith.mulf %2, %22 : vector<512x128xf32>
    %24 = vector.broadcast %21 : vector<1x128xf32> to vector<512x128xf32>
    %25 = arith.addf %23, %24 : vector<512x128xf32>
    %cst_12 = arith.constant 0.000000e+00 : f32
    %26 = vector.broadcast %cst_12 : f32 to vector<512x128xf32>
    %27 = arith.maximumf %25, %26 : vector<512x128xf32>
    %28 = arith.truncf %27 : vector<512x128xf32> to vector<512x128xbf16>
    %cst_13 = arith.constant 0.000000e+00 : bf16
    %29 = vector.broadcast %cst_13 : bf16 to vector<696x384xbf16>
    %c0_14 = arith.constant 0 : index
    %c0_15 = arith.constant 0 : index
    %30 = vector.load %arg16[%c0_14, %c0_15] : memref<696x384xbf16, #tpu.memory_space<vmem>>, vector<696x384xbf16>
    tpu.vector_store %arg16[%c0_14, %c0_15], %29 {strides = array<i32>} : memref<696x384xbf16, #tpu.memory_space<vmem>>, vector<696x384xbf16>,
    %31 = vector.extract_strided_slice %28 {offsets = [0, 0], sizes = [16, 128], strides = [1, 1]} : vector<512x128xbf16> to vector<16x128xbf16>
    %c43 = arith.constant 43 : index
    %c128 = arith.constant 128 : index
    %32 = vector.load %arg16[%c43, %c128] : memref<696x384xbf16, #tpu.memory_space<vmem>>, vector<16x128xbf16>
    tpu.vector_store %arg16[%c43, %c128], %31 {strides = array<i32>} : memref<696x384xbf16, #tpu.memory_space<vmem>>, vector<16x128xbf16>,
    %c44 = arith.constant 44 : index
    %c0_16 = arith.constant 0 : index
    %33 = vector.load %arg16[%c44, %c0_16] : memref<696x384xbf16, #tpu.memory_space<vmem>>, vector<16x128xbf16>
    tpu.vector_store %arg16[%c44, %c0_16], %31 {strides = array<i32>} : memref<696x384xbf16, #tpu.memory_space<vmem>>, vector<16x128xbf16>,
    %c42 = arith.constant 42 : index
    %c256 = arith.constant 256 : index
    %34 = vector.load %arg16[%c42, %c256] : memref<696x384xbf16, #tpu.memory_space<vmem>>, vector<16x128xbf16>
    tpu.vector_store %arg16[%c42, %c256], %31 {strides = array<i32>} : memref<696x384xbf16, #tpu.memory_space<vmem>>, vector<16x128xbf16>,
    %35 = vector.extract_strided_slice %28 {offsets = [16, 0], sizes = [16, 128], strides = [1, 1]} : vector<512x128xbf16> to vector<16x128xbf16>
    %c61 = arith.constant 61 : index
    %c128_17 = arith.constant 128 : index
    %36 = vector.load %arg16[%c61, %c128_17] : memref<696x384xbf16, #tpu.memory_space<vmem>>, vector<16x128xbf16>
    tpu.vector_store %arg16[%c61, %c128_17], %35 {strides = array<i32>} : memref<696x384xbf16, #tpu.memory_space<vmem>>, vector<16x128xbf16>,
    %c62 = arith.constant 62 : index
    %c0_18 = arith.constant 0 : index
    %37 = vector.load %arg16[%c62, %c0_18] : memref<696x384xbf16, #tpu.memory_space<vmem>>, vector<16x128xbf16>
    tpu.vector_store %arg16[%c62, %c0_18], %35 {strides = array<i32>} : memref<696x384xbf16, #tpu.memory_space<vmem>>, vector<16x128xbf16>,
    %c60 = arith.constant 60 : index
    %c256_19 = arith.constant 256 : index
    %38 = vector.load %arg16[%c60, %c256_19] : memref<696x384xbf16, #tpu.memory_space<vmem>>, vector<16x128xbf16>
    tpu.vector_store %arg16[%c60, %c256_19], %35 {strides = array<i32>} : memref<696x384xbf16, #tpu.memory_space<vmem>>, vector<16x128xbf16>,
    %39 = vector.extract_strided_slice %28 {offsets = [32, 0], sizes = [16, 128], strides = [1, 1]} : vector<512x128xbf16> to vector<16x128xbf16>
    %c79 = arith.constant 79 : index
    %c128_20 = arith.constant 128 : index
    %40 = vector.load %arg16[%c79, %c128_20] : memref<696x384xbf16, #tpu.memory_space<vmem>>, vector<16x128xbf16>
    tpu.vector_store %arg16[%c79, %c128_20], %39 {strides = array<i32>} : memref<696x384xbf16, #tpu.memory_space<vmem>>, vector<16x128xbf16>,
    %c80 = arith.constant 80 : index
    %c0_21 = arith.constant 0 : index
    %41 = vector.load %arg16[%c80, %c0_21] : memref<696x384xbf16, #tpu.memory_space<vmem>>, vector<16x128xbf16>
    tpu.vector_store %arg16[%c80, %c0_21], %39 {strides = array<i32>} : memref<696x384xbf16, #tpu.memory_space<vmem>>, vector<16x128xbf16>,
    %c78 = arith.constant 78 : index
    %c256_22 = arith.constant 256 : index
    %42 = vector.load %arg16[%c78, %c256_22] : memref<696x384xbf16, #tpu.memory_space<vmem>>, vector<16x128xbf16>
    tpu.vector_store %arg16[%c78, %c256_22], %39 {strides = array<i32>} : memref<696x384xbf16, #tpu.memory_space<vmem>>, vector<16x128xbf16>,
    %43 = vector.extract_strided_slice %28 {offsets = [48, 0], sizes = [16, 128], strides = [1, 1]} : vector<512x128xbf16> to vector<16x128xbf16>
    %c97 = arith.constant 97 : index
    %c128_23 = arith.constant 128 : index
    %44 = vector.load %arg16[%c97, %c128_23] : memref<696x384xbf16, #tpu.memory_space<vmem>>, vector<16x128xbf16>
    tpu.vector_store %arg16[%c97, %c128_23], %43 {strides = array<i32>} : memref<696x384xbf16, #tpu.memory_space<vmem>>, vector<16x128xbf16>,
    %c98 = arith.constant 98 : index
    %c0_24 = arith.constant 0 : index
    %45 = vector.load %arg16[%c98, %c0_24] : memref<696x384xbf16, #tpu.memory_space<vmem>>, vector<16x128xbf16>
    tpu.vector_store %arg16[%c98, %c0_24], %43 {strides = array<i32>} : memref<696x384xbf16, #tpu.memory_space<vmem>>, vector<16x128xbf16>,
    %c96 = arith.constant 96 : index
    %c256_25 = arith.constant 256 : index
    %46 = vector.load %arg16[%c96, %c256_25] : memref<696x384xbf16, #tpu.memory_space<vmem>>, vector<16x128xbf16>
    tpu.vector_store %arg16[%c96, %c256_25], %43 {strides = array<i32>} : memref<696x384xbf16, #tpu.memory_space<vmem>>, vector<16x128xbf16>,
    %47 = vector.extract_strided_slice %28 {offsets = [64, 0], sizes = [16, 128], strides = [1, 1]} : vector<512x128xbf16> to vector<16x128xbf16>
    %c115 = arith.constant 115 : index
    %c128_26 = arith.constant 128 : index
    %48 = vector.load %arg16[%c115, %c128_26] : memref<696x384xbf16, #tpu.memory_space<vmem>>, vector<16x128xbf16>
    tpu.vector_store %arg16[%c115, %c128_26], %47 {strides = array<i32>} : memref<696x384xbf16, #tpu.memory_space<vmem>>, vector<16x128xbf16>,
    %c116 = arith.constant 116 : index
    %c0_27 = arith.constant 0 : index
    %49 = vector.load %arg16[%c116, %c0_27] : memref<696x384xbf16, #tpu.memory_space<vmem>>, vector<16x128xbf16>
    tpu.vector_store %arg16[%c116, %c0_27], %47 {strides = array<i32>} : memref<696x384xbf16, #tpu.memory_space<vmem>>, vector<16x128xbf16>,
    %c114 = arith.constant 114 : index
    %c256_28 = arith.constant 256 : index
    %50 = vector.load %arg16[%c114, %c256_28] : memref<696x384xbf16, #tpu.memory_space<vmem>>, vector<16x128xbf16>
    tpu.vector_store %arg16[%c114, %c256_28], %47 {strides = array<i32>} : memref<696x384xbf16, #tpu.memory_space<vmem>>, vector<16x128xbf16>,
    %51 = vector.extract_strided_slice %28 {offsets = [80, 0], sizes = [16, 128], strides = [1, 1]} : vector<512x128xbf16> to vector<16x128xbf16>
    %c133 = arith.constant 133 : index
    %c128_29 = arith.constant 128 : index
    %52 = vector.load %arg16[%c133, %c128_29] : memref<696x384xbf16, #tpu.memory_space<vmem>>, vector<16x128xbf16>
    tpu.vector_store %arg16[%c133, %c128_29], %51 {strides = array<i32>} : memref<696x384xbf16, #tpu.memory_space<vmem>>, vector<16x128xbf16>,
    %c134 = arith.constant 134 : index
    %c0_30 = arith.constant 0 : index
    %53 = vector.load %arg16[%c134, %c0_30] : memref<696x384xbf16, #tpu.memory_space<vmem>>, vector<16x128xbf16>
    tpu.vector_store %arg16[%c134, %c0_30], %51 {strides = array<i32>} : memref<696x384xbf16, #tpu.memory_space<vmem>>, vector<16x128xbf16>,
    %c132 = arith.constant 132 : index
    %c256_31 = arith.constant 256 : index
    %54 = vector.load %arg16[%c132, %c256_31] : memref<696x384xbf16, #tpu.memory_space<vmem>>, vector<16x128xbf16>
    tpu.vector_store %arg16[%c132, %c256_31], %51 {strides = array<i32>} : memref<696x384xbf16, #tpu.memory_space<vmem>>, vector<16x128xbf16>,
    %55 = vector.extract_strided_slice %28 {offsets = [96, 0], sizes = [16, 128], strides = [1, 1]} : vector<512x128xbf16> to vector<16x128xbf16>
    %c151 = arith.constant 151 : index
    %c128_32 = arith.constant 128 : index
    %56 = vector.load %arg16[%c151, %c128_32] : memref<696x384xbf16, #tpu.memory_space<vmem>>, vector<16x128xbf16>
    tpu.vector_store %arg16[%c151, %c128_32], %55 {strides = array<i32>} : memref<696x384xbf16, #tpu.memory_space<vmem>>, vector<16x128xbf16>,
    %c152 = arith.constant 152 : index
    %c0_33 = arith.constant 0 : index
    %57 = vector.load %arg16[%c152, %c0_33] : memref<696x384xbf16, #tpu.memory_space<vmem>>, vector<16x128xbf16>
    tpu.vector_store %arg16[%c152, %c0_33], %55 {strides = array<i32>} : memref<696x384xbf16, #tpu.memory_space<vmem>>, vector<16x128xbf16>,
    %c150 = arith.constant 150 : index
    %c256_34 = arith.constant 256 : index
    %58 = vector.load %arg16[%c150, %c256_34] : memref<696x384xbf16, #tpu.memory_space<vmem>>, vector<16x128xbf16>
    tpu.vector_store %arg16[%c150, %c256_34], %55 {strides = array<i32>} : memref<696x384xbf16, #tpu.memory_space<vmem>>, vector<16x128xbf16>,
    %59 = vector.extract_strided_slice %28 {offsets = [112, 0], sizes = [16, 128], strides = [1, 1]} : vector<512x128xbf16> to vector<16x128xbf16>
    %c169 = arith.constant 169 : index
    %c128_35 = arith.constant 128 : index
    %60 = vector.load %arg16[%c169, %c128_35] : memref<696x384xbf16, #tpu.memory_space<vmem>>, vector<16x128xbf16>
    tpu.vector_store %arg16[%c169, %c128_35], %59 {strides = array<i32>} : memref<696x384xbf16, #tpu.memory_space<vmem>>, vector<16x128xbf16>,
    %c170 = arith.constant 170 : index
    %c0_36 = arith.constant 0 : index
    %61 = vector.load %arg16[%c170, %c0_36] : memref<696x384xbf16, #tpu.memory_space<vmem>>, vector<16x128xbf16>
    tpu.vector_store %arg16[%c170, %c0_36], %59 {strides = array<i32>} : memref<696x384xbf16, #tpu.memory_space<vmem>>, vector<16x128xbf16>,
    %c168 = arith.constant 168 : index
    %c256_37 = arith.constant 256 : index
    %62 = vector.load %arg16[%c168, %c256_37] : memref<696x384xbf16, #tpu.memory_space<vmem>>, vector<16x128xbf16>
    tpu.vector_store %arg16[%c168, %c256_37], %59 {strides = array<i32>} : memref<696x384xbf16, #tpu.memory_space<vmem>>, vector<16x128xbf16>,
    %63 = vector.extract_strided_slice %28 {offsets = [128, 0], sizes = [16, 128], strides = [1, 1]} : vector<512x128xbf16> to vector<16x128xbf16>
    %c187 = arith.constant 187 : index
    %c128_38 = arith.constant 128 : index
    %64 = vector.load %arg16[%c187, %c128_38] : memref<696x384xbf16, #tpu.memory_space<vmem>>, vector<16x128xbf16>
    tpu.vector_store %arg16[%c187, %c128_38], %63 {strides = array<i32>} : memref<696x384xbf16, #tpu.memory_space<vmem>>, vector<16x128xbf16>,
    %c188 = arith.constant 188 : index
    %c0_39 = arith.constant 0 : index
    %65 = vector.load %arg16[%c188, %c0_39] : memref<696x384xbf16, #tpu.memory_space<vmem>>, vector<16x128xbf16>
    tpu.vector_store %arg16[%c188, %c0_39], %63 {strides = array<i32>} : memref<696x384xbf16, #tpu.memory_space<vmem>>, vector<16x128xbf16>,
    %c186 = arith.constant 186 : index
    %c256_40 = arith.constant 256 : index
    %66 = vector.load %arg16[%c186, %c256_40] : memref<696x384xbf16, #tpu.memory_space<vmem>>, vector<16x128xbf16>
    tpu.vector_store %arg16[%c186, %c256_40], %63 {strides = array<i32>} : memref<696x384xbf16, #tpu.memory_space<vmem>>, vector<16x128xbf16>,
    %67 = vector.extract_strided_slice %28 {offsets = [144, 0], sizes = [16, 128], strides = [1, 1]} : vector<512x128xbf16> to vector<16x128xbf16>
    %c205 = arith.constant 205 : index
    %c128_41 = arith.constant 128 : index
    %68 = vector.load %arg16[%c205, %c128_41] : memref<696x384xbf16, #tpu.memory_space<vmem>>, vector<16x128xbf16>
    tpu.vector_store %arg16[%c205, %c128_41], %67 {strides = array<i32>} : memref<696x384xbf16, #tpu.memory_space<vmem>>, vector<16x128xbf16>,
    %c206 = arith.constant 206 : index
    %c0_42 = arith.constant 0 : index
    %69 = vector.load %arg16[%c206, %c0_42] : memref<696x384xbf16, #tpu.memory_space<vmem>>, vector<16x128xbf16>
    tpu.vector_store %arg16[%c206, %c0_42], %67 {strides = array<i32>} : memref<696x384xbf16, #tpu.memory_space<vmem>>, vector<16x128xbf16>,
    %c204 = arith.constant 204 : index
    %c256_43 = arith.constant 256 : index
    %70 = vector.load %arg16[%c204, %c256_43] : memref<696x384xbf16, #tpu.memory_space<vmem>>, vector<16x128xbf16>
    tpu.vector_store %arg16[%c204, %c256_43], %67 {strides = array<i32>} : memref<696x384xbf16, #tpu.memory_space<vmem>>, vector<16x128xbf16>,
    %71 = vector.extract_strided_slice %28 {offsets = [160, 0], sizes = [16, 128], strides = [1, 1]} : vector<512x128xbf16> to vector<16x128xbf16>
    %c223 = arith.constant 223 : index
    %c128_44 = arith.constant 128 : index
    %72 = vector.load %arg16[%c223, %c128_44] : memref<696x384xbf16, #tpu.memory_space<vmem>>, vector<16x128xbf16>
    tpu.vector_store %arg16[%c223, %c128_44], %71 {strides = array<i32>} : memref<696x384xbf16, #tpu.memory_space<vmem>>, vector<16x128xbf16>,
    %c224 = arith.constant 224 : index
    %c0_45 = arith.constant 0 : index
    %73 = vector.load %arg16[%c224, %c0_45] : memref<696x384xbf16, #tpu.memory_space<vmem>>, vector<16x128xbf16>
    tpu.vector_store %arg16[%c224, %c0_45], %71 {strides = array<i32>} : memref<696x384xbf16, #tpu.memory_space<vmem>>, vector<16x128xbf16>,
    %c222 = arith.constant 222 : index
    %c256_46 = arith.constant 256 : index
    %74 = vector.load %arg16[%c222, %c256_46] : memref<696x384xbf16, #tpu.memory_space<vmem>>, vector<16x128xbf16>
    tpu.vector_store %arg16[%c222, %c256_46], %71 {strides = array<i32>} : memref<696x384xbf16, #tpu.memory_space<vmem>>, vector<16x128xbf16>,
    %75 = vector.extract_strided_slice %28 {offsets = [176, 0], sizes = [16, 128], strides = [1, 1]} : vector<512x128xbf16> to vector<16x128xbf16>
    %c241 = arith.constant 241 : index
    %c128_47 = arith.constant 128 : index
    %76 = vector.load %arg16[%c241, %c128_47] : memref<696x384xbf16, #tpu.memory_space<vmem>>, vector<16x128xbf16>
    tpu.vector_store %arg16[%c241, %c128_47], %75 {strides = array<i32>} : memref<696x384xbf16, #tpu.memory_space<vmem>>, vector<16x128xbf16>,
    %c242 = arith.constant 242 : index
    %c0_48 = arith.constant 0 : index
    %77 = vector.load %arg16[%c242, %c0_48] : memref<696x384xbf16, #tpu.memory_space<vmem>>, vector<16x128xbf16>
    tpu.vector_store %arg16[%c242, %c0_48], %75 {strides = array<i32>} : memref<696x384xbf16, #tpu.memory_space<vmem>>, vector<16x128xbf16>,
    %c240 = arith.constant 240 : index
    %c256_49 = arith.constant 256 : index
    %78 = vector.load %arg16[%c240, %c256_49] : memref<696x384xbf16, #tpu.memory_space<vmem>>, vector<16x128xbf16>
    tpu.vector_store %arg16[%c240, %c256_49], %75 {strides = array<i32>} : memref<696x384xbf16, #tpu.memory_space<vmem>>, vector<16x128xbf16>,
    %79 = vector.extract_strided_slice %28 {offsets = [192, 0], sizes = [16, 128], strides = [1, 1]} : vector<512x128xbf16> to vector<16x128xbf16>
    %c259 = arith.constant 259 : index
    %c128_50 = arith.constant 128 : index
    %80 = vector.load %arg16[%c259, %c128_50] : memref<696x384xbf16, #tpu.memory_space<vmem>>, vector<16x128xbf16>
    tpu.vector_store %arg16[%c259, %c128_50], %79 {strides = array<i32>} : memref<696x384xbf16, #tpu.memory_space<vmem>>, vector<16x128xbf16>,
    %c260 = arith.constant 260 : index
    %c0_51 = arith.constant 0 : index
    %81 = vector.load %arg16[%c260, %c0_51] : memref<696x384xbf16, #tpu.memory_space<vmem>>, vector<16x128xbf16>
    tpu.vector_store %arg16[%c260, %c0_51], %79 {strides = array<i32>} : memref<696x384xbf16, #tpu.memory_space<vmem>>, vector<16x128xbf16>,
    %c258 = arith.constant 258 : index
    %c256_52 = arith.constant 256 : index
    %82 = vector.load %arg16[%c258, %c256_52] : memref<696x384xbf16, #tpu.memory_space<vmem>>, vector<16x128xbf16>
    tpu.vector_store %arg16[%c258, %c256_52], %79 {strides = array<i32>} : memref<696x384xbf16, #tpu.memory_space<vmem>>, vector<16x128xbf16>,
    %83 = vector.extract_strided_slice %28 {offsets = [208, 0], sizes = [16, 128], strides = [1, 1]} : vector<512x128xbf16> to vector<16x128xbf16>
    %c277 = arith.constant 277 : index
    %c128_53 = arith.constant 128 : index
    %84 = vector.load %arg16[%c277, %c128_53] : memref<696x384xbf16, #tpu.memory_space<vmem>>, vector<16x128xbf16>
    tpu.vector_store %arg16[%c277, %c128_53], %83 {strides = array<i32>} : memref<696x384xbf16, #tpu.memory_space<vmem>>, vector<16x128xbf16>,
    %c278 = arith.constant 278 : index
    %c0_54 = arith.constant 0 : index
    %85 = vector.load %arg16[%c278, %c0_54] : memref<696x384xbf16, #tpu.memory_space<vmem>>, vector<16x128xbf16>
    tpu.vector_store %arg16[%c278, %c0_54], %83 {strides = array<i32>} : memref<696x384xbf16, #tpu.memory_space<vmem>>, vector<16x128xbf16>,
    %c276 = arith.constant 276 : index
    %c256_55 = arith.constant 256 : index
    %86 = vector.load %arg16[%c276, %c256_55] : memref<696x384xbf16, #tpu.memory_space<vmem>>, vector<16x128xbf16>
    tpu.vector_store %arg16[%c276, %c256_55], %83 {strides = array<i32>} : memref<696x384xbf16, #tpu.memory_space<vmem>>, vector<16x128xbf16>,
    %87 = vector.extract_strided_slice %28 {offsets = [224, 0], sizes = [16, 128], strides = [1, 1]} : vector<512x128xbf16> to vector<16x128xbf16>
    %c295 = arith.constant 295 : index
    %c128_56 = arith.constant 128 : index
    %88 = vector.load %arg16[%c295, %c128_56] : memref<696x384xbf16, #tpu.memory_space<vmem>>, vector<16x128xbf16>
    tpu.vector_store %arg16[%c295, %c128_56], %87 {strides = array<i32>} : memref<696x384xbf16, #tpu.memory_space<vmem>>, vector<16x128xbf16>,
    %c296 = arith.constant 296 : index
    %c0_57 = arith.constant 0 : index
    %89 = vector.load %arg16[%c296, %c0_57] : memref<696x384xbf16, #tpu.memory_space<vmem>>, vector<16x128xbf16>
    tpu.vector_store %arg16[%c296, %c0_57], %87 {strides = array<i32>} : memref<696x384xbf16, #tpu.memory_space<vmem>>, vector<16x128xbf16>,
    %c294 = arith.constant 294 : index
    %c256_58 = arith.constant 256 : index
    %90 = vector.load %arg16[%c294, %c256_58] : memref<696x384xbf16, #tpu.memory_space<vmem>>, vector<16x128xbf16>
    tpu.vector_store %arg16[%c294, %c256_58], %87 {strides = array<i32>} : memref<696x384xbf16, #tpu.memory_space<vmem>>, vector<16x128xbf16>,
    %91 = vector.extract_strided_slice %28 {offsets = [240, 0], sizes = [16, 128], strides = [1, 1]} : vector<512x128xbf16> to vector<16x128xbf16>
    %c313 = arith.constant 313 : index
    %c128_59 = arith.constant 128 : index
    %92 = vector.load %arg16[%c313, %c128_59] : memref<696x384xbf16, #tpu.memory_space<vmem>>, vector<16x128xbf16>
    tpu.vector_store %arg16[%c313, %c128_59], %91 {strides = array<i32>} : memref<696x384xbf16, #tpu.memory_space<vmem>>, vector<16x128xbf16>,
    %c314 = arith.constant 314 : index
    %c0_60 = arith.constant 0 : index
    %93 = vector.load %arg16[%c314, %c0_60] : memref<696x384xbf16, #tpu.memory_space<vmem>>, vector<16x128xbf16>
    tpu.vector_store %arg16[%c314, %c0_60], %91 {strides = array<i32>} : memref<696x384xbf16, #tpu.memory_space<vmem>>, vector<16x128xbf16>,
    %c312 = arith.constant 312 : index
    %c256_61 = arith.constant 256 : index
    %94 = vector.load %arg16[%c312, %c256_61] : memref<696x384xbf16, #tpu.memory_space<vmem>>, vector<16x128xbf16>
    tpu.vector_store %arg16[%c312, %c256_61], %91 {strides = array<i32>} : memref<696x384xbf16, #tpu.memory_space<vmem>>, vector<16x128xbf16>,
    %95 = vector.extract_strided_slice %28 {offsets = [256, 0], sizes = [16, 128], strides = [1, 1]} : vector<512x128xbf16> to vector<16x128xbf16>
    %c367 = arith.constant 367 : index
    %c128_62 = arith.constant 128 : index
    %96 = vector.load %arg16[%c367, %c128_62] : memref<696x384xbf16, #tpu.memory_space<vmem>>, vector<16x128xbf16>
    tpu.vector_store %arg16[%c367, %c128_62], %95 {strides = array<i32>} : memref<696x384xbf16, #tpu.memory_space<vmem>>, vector<16x128xbf16>,
    %c368 = arith.constant 368 : index
    %c0_63 = arith.constant 0 : index
    %97 = vector.load %arg16[%c368, %c0_63] : memref<696x384xbf16, #tpu.memory_space<vmem>>, vector<16x128xbf16>
    tpu.vector_store %arg16[%c368, %c0_63], %95 {strides = array<i32>} : memref<696x384xbf16, #tpu.memory_space<vmem>>, vector<16x128xbf16>,
    %c366 = arith.constant 366 : index
    %c256_64 = arith.constant 256 : index
    %98 = vector.load %arg16[%c366, %c256_64] : memref<696x384xbf16, #tpu.memory_space<vmem>>, vector<16x128xbf16>
    tpu.vector_store %arg16[%c366, %c256_64], %95 {strides = array<i32>} : memref<696x384xbf16, #tpu.memory_space<vmem>>, vector<16x128xbf16>,
    %99 = vector.extract_strided_slice %28 {offsets = [272, 0], sizes = [16, 128], strides = [1, 1]} : vector<512x128xbf16> to vector<16x128xbf16>
    %c385 = arith.constant 385 : index
    %c128_65 = arith.constant 128 : index
    %100 = vector.load %arg16[%c385, %c128_65] : memref<696x384xbf16, #tpu.memory_space<vmem>>, vector<16x128xbf16>
    tpu.vector_store %arg16[%c385, %c128_65], %99 {strides = array<i32>} : memref<696x384xbf16, #tpu.memory_space<vmem>>, vector<16x128xbf16>,
    %c386 = arith.constant 386 : index
    %c0_66 = arith.constant 0 : index
    %101 = vector.load %arg16[%c386, %c0_66] : memref<696x384xbf16, #tpu.memory_space<vmem>>, vector<16x128xbf16>
    tpu.vector_store %arg16[%c386, %c0_66], %99 {strides = array<i32>} : memref<696x384xbf16, #tpu.memory_space<vmem>>, vector<16x128xbf16>,
    %c384 = arith.constant 384 : index
    %c256_67 = arith.constant 256 : index
    %102 = vector.load %arg16[%c384, %c256_67] : memref<696x384xbf16, #tpu.memory_space<vmem>>, vector<16x128xbf16>
    tpu.vector_store %arg16[%c384, %c256_67], %99 {strides = array<i32>} : memref<696x384xbf16, #tpu.memory_space<vmem>>, vector<16x128xbf16>,
    %103 = vector.extract_strided_slice %28 {offsets = [288, 0], sizes = [16, 128], strides = [1, 1]} : vector<512x128xbf16> to vector<16x128xbf16>
    %c403 = arith.constant 403 : index
    %c128_68 = arith.constant 128 : index
    %104 = vector.load %arg16[%c403, %c128_68] : memref<696x384xbf16, #tpu.memory_space<vmem>>, vector<16x128xbf16>
    tpu.vector_store %arg16[%c403, %c128_68], %103 {strides = array<i32>} : memref<696x384xbf16, #tpu.memory_space<vmem>>, vector<16x128xbf16>,
    %c404 = arith.constant 404 : index
    %c0_69 = arith.constant 0 : index
    %105 = vector.load %arg16[%c404, %c0_69] : memref<696x384xbf16, #tpu.memory_space<vmem>>, vector<16x128xbf16>
    tpu.vector_store %arg16[%c404, %c0_69], %103 {strides = array<i32>} : memref<696x384xbf16, #tpu.memory_space<vmem>>, vector<16x128xbf16>,
    %c402 = arith.constant 402 : index
    %c256_70 = arith.constant 256 : index
    %106 = vector.load %arg16[%c402, %c256_70] : memref<696x384xbf16, #tpu.memory_space<vmem>>, vector<16x128xbf16>
    tpu.vector_store %arg16[%c402, %c256_70], %103 {strides = array<i32>} : memref<696x384xbf16, #tpu.memory_space<vmem>>, vector<16x128xbf16>,
    %107 = vector.extract_strided_slice %28 {offsets = [304, 0], sizes = [16, 128], strides = [1, 1]} : vector<512x128xbf16> to vector<16x128xbf16>
    %c421 = arith.constant 421 : index
    %c128_71 = arith.constant 128 : index
    %108 = vector.load %arg16[%c421, %c128_71] : memref<696x384xbf16, #tpu.memory_space<vmem>>, vector<16x128xbf16>
    tpu.vector_store %arg16[%c421, %c128_71], %107 {strides = array<i32>} : memref<696x384xbf16, #tpu.memory_space<vmem>>, vector<16x128xbf16>,
    %c422 = arith.constant 422 : index
    %c0_72 = arith.constant 0 : index
    %109 = vector.load %arg16[%c422, %c0_72] : memref<696x384xbf16, #tpu.memory_space<vmem>>, vector<16x128xbf16>
    tpu.vector_store %arg16[%c422, %c0_72], %107 {strides = array<i32>} : memref<696x384xbf16, #tpu.memory_space<vmem>>, vector<16x128xbf16>,
    %c420 = arith.constant 420 : index
    %c256_73 = arith.constant 256 : index
    %110 = vector.load %arg16[%c420, %c256_73] : memref<696x384xbf16, #tpu.memory_space<vmem>>, vector<16x128xbf16>
    tpu.vector_store %arg16[%c420, %c256_73], %107 {strides = array<i32>} : memref<696x384xbf16, #tpu.memory_space<vmem>>, vector<16x128xbf16>,
    %111 = vector.extract_strided_slice %28 {offsets = [320, 0], sizes = [16, 128], strides = [1, 1]} : vector<512x128xbf16> to vector<16x128xbf16>
    %c439 = arith.constant 439 : index
    %c128_74 = arith.constant 128 : index
    %112 = vector.load %arg16[%c439, %c128_74] : memref<696x384xbf16, #tpu.memory_space<vmem>>, vector<16x128xbf16>
    tpu.vector_store %arg16[%c439, %c128_74], %111 {strides = array<i32>} : memref<696x384xbf16, #tpu.memory_space<vmem>>, vector<16x128xbf16>,
    %c440 = arith.constant 440 : index
    %c0_75 = arith.constant 0 : index
    %113 = vector.load %arg16[%c440, %c0_75] : memref<696x384xbf16, #tpu.memory_space<vmem>>, vector<16x128xbf16>
    tpu.vector_store %arg16[%c440, %c0_75], %111 {strides = array<i32>} : memref<696x384xbf16, #tpu.memory_space<vmem>>, vector<16x128xbf16>,
    %c438 = arith.constant 438 : index
    %c256_76 = arith.constant 256 : index
    %114 = vector.load %arg16[%c438, %c256_76] : memref<696x384xbf16, #tpu.memory_space<vmem>>, vector<16x128xbf16>
    tpu.vector_store %arg16[%c438, %c256_76], %111 {strides = array<i32>} : memref<696x384xbf16, #tpu.memory_space<vmem>>, vector<16x128xbf16>,
    %115 = vector.extract_strided_slice %28 {offsets = [336, 0], sizes = [16, 128], strides = [1, 1]} : vector<512x128xbf16> to vector<16x128xbf16>
    %c457 = arith.constant 457 : index
    %c128_77 = arith.constant 128 : index
    %116 = vector.load %arg16[%c457, %c128_77] : memref<696x384xbf16, #tpu.memory_space<vmem>>, vector<16x128xbf16>
    tpu.vector_store %arg16[%c457, %c128_77], %115 {strides = array<i32>} : memref<696x384xbf16, #tpu.memory_space<vmem>>, vector<16x128xbf16>,
    %c458 = arith.constant 458 : index
    %c0_78 = arith.constant 0 : index
    %117 = vector.load %arg16[%c458, %c0_78] : memref<696x384xbf16, #tpu.memory_space<vmem>>, vector<16x128xbf16>
    tpu.vector_store %arg16[%c458, %c0_78], %115 {strides = array<i32>} : memref<696x384xbf16, #tpu.memory_space<vmem>>, vector<16x128xbf16>,
    %c456 = arith.constant 456 : index
    %c256_79 = arith.constant 256 : index
    %118 = vector.load %arg16[%c456, %c256_79] : memref<696x384xbf16, #tpu.memory_space<vmem>>, vector<16x128xbf16>
    tpu.vector_store %arg16[%c456, %c256_79], %115 {strides = array<i32>} : memref<696x384xbf16, #tpu.memory_space<vmem>>, vector<16x128xbf16>,
    %119 = vector.extract_strided_slice %28 {offsets = [352, 0], sizes = [16, 128], strides = [1, 1]} : vector<512x128xbf16> to vector<16x128xbf16>
    %c475 = arith.constant 475 : index
    %c128_80 = arith.constant 128 : index
    %120 = vector.load %arg16[%c475, %c128_80] : memref<696x384xbf16, #tpu.memory_space<vmem>>, vector<16x128xbf16>
    tpu.vector_store %arg16[%c475, %c128_80], %119 {strides = array<i32>} : memref<696x384xbf16, #tpu.memory_space<vmem>>, vector<16x128xbf16>,
    %c476 = arith.constant 476 : index
    %c0_81 = arith.constant 0 : index
    %121 = vector.load %arg16[%c476, %c0_81] : memref<696x384xbf16, #tpu.memory_space<vmem>>, vector<16x128xbf16>
    tpu.vector_store %arg16[%c476, %c0_81], %119 {strides = array<i32>} : memref<696x384xbf16, #tpu.memory_space<vmem>>, vector<16x128xbf16>,
    %c474 = arith.constant 474 : index
    %c256_82 = arith.constant 256 : index
    %122 = vector.load %arg16[%c474, %c256_82] : memref<696x384xbf16, #tpu.memory_space<vmem>>, vector<16x128xbf16>
    tpu.vector_store %arg16[%c474, %c256_82], %119 {strides = array<i32>} : memref<696x384xbf16, #tpu.memory_space<vmem>>, vector<16x128xbf16>,
    %123 = vector.extract_strided_slice %28 {offsets = [368, 0], sizes = [16, 128], strides = [1, 1]} : vector<512x128xbf16> to vector<16x128xbf16>
    %c493 = arith.constant 493 : index
    %c128_83 = arith.constant 128 : index
    %124 = vector.load %arg16[%c493, %c128_83] : memref<696x384xbf16, #tpu.memory_space<vmem>>, vector<16x128xbf16>
    tpu.vector_store %arg16[%c493, %c128_83], %123 {strides = array<i32>} : memref<696x384xbf16, #tpu.memory_space<vmem>>, vector<16x128xbf16>,
    %c494 = arith.constant 494 : index
    %c0_84 = arith.constant 0 : index
    %125 = vector.load %arg16[%c494, %c0_84] : memref<696x384xbf16, #tpu.memory_space<vmem>>, vector<16x128xbf16>
    tpu.vector_store %arg16[%c494, %c0_84], %123 {strides = array<i32>} : memref<696x384xbf16, #tpu.memory_space<vmem>>, vector<16x128xbf16>,
    %c492 = arith.constant 492 : index
    %c256_85 = arith.constant 256 : index
    %126 = vector.load %arg16[%c492, %c256_85] : memref<696x384xbf16, #tpu.memory_space<vmem>>, vector<16x128xbf16>
    tpu.vector_store %arg16[%c492, %c256_85], %123 {strides = array<i32>} : memref<696x384xbf16, #tpu.memory_space<vmem>>, vector<16x128xbf16>,
    %127 = vector.extract_strided_slice %28 {offsets = [384, 0], sizes = [16, 128], strides = [1, 1]} : vector<512x128xbf16> to vector<16x128xbf16>
    %c511 = arith.constant 511 : index
    %c128_86 = arith.constant 128 : index
    %128 = vector.load %arg16[%c511, %c128_86] : memref<696x384xbf16, #tpu.memory_space<vmem>>, vector<16x128xbf16>
    tpu.vector_store %arg16[%c511, %c128_86], %127 {strides = array<i32>} : memref<696x384xbf16, #tpu.memory_space<vmem>>, vector<16x128xbf16>,
    %c512 = arith.constant 512 : index
    %c0_87 = arith.constant 0 : index
    %129 = vector.load %arg16[%c512, %c0_87] : memref<696x384xbf16, #tpu.memory_space<vmem>>, vector<16x128xbf16>
    tpu.vector_store %arg16[%c512, %c0_87], %127 {strides = array<i32>} : memref<696x384xbf16, #tpu.memory_space<vmem>>, vector<16x128xbf16>,
    %c510 = arith.constant 510 : index
    %c256_88 = arith.constant 256 : index
    %130 = vector.load %arg16[%c510, %c256_88] : memref<696x384xbf16, #tpu.memory_space<vmem>>, vector<16x128xbf16>
    tpu.vector_store %arg16[%c510, %c256_88], %127 {strides = array<i32>} : memref<696x384xbf16, #tpu.memory_space<vmem>>, vector<16x128xbf16>,
    %131 = vector.extract_strided_slice %28 {offsets = [400, 0], sizes = [16, 128], strides = [1, 1]} : vector<512x128xbf16> to vector<16x128xbf16>
    %c529 = arith.constant 529 : index
    %c128_89 = arith.constant 128 : index
    %132 = vector.load %arg16[%c529, %c128_89] : memref<696x384xbf16, #tpu.memory_space<vmem>>, vector<16x128xbf16>
    tpu.vector_store %arg16[%c529, %c128_89], %131 {strides = array<i32>} : memref<696x384xbf16, #tpu.memory_space<vmem>>, vector<16x128xbf16>,
    %c530 = arith.constant 530 : index
    %c0_90 = arith.constant 0 : index
    %133 = vector.load %arg16[%c530, %c0_90] : memref<696x384xbf16, #tpu.memory_space<vmem>>, vector<16x128xbf16>
    tpu.vector_store %arg16[%c530, %c0_90], %131 {strides = array<i32>} : memref<696x384xbf16, #tpu.memory_space<vmem>>, vector<16x128xbf16>,
    %c528 = arith.constant 528 : index
    %c256_91 = arith.constant 256 : index
    %134 = vector.load %arg16[%c528, %c256_91] : memref<696x384xbf16, #tpu.memory_space<vmem>>, vector<16x128xbf16>
    tpu.vector_store %arg16[%c528, %c256_91], %131 {strides = array<i32>} : memref<696x384xbf16, #tpu.memory_space<vmem>>, vector<16x128xbf16>,
    %135 = vector.extract_strided_slice %28 {offsets = [416, 0], sizes = [16, 128], strides = [1, 1]} : vector<512x128xbf16> to vector<16x128xbf16>
    %c547 = arith.constant 547 : index
    %c128_92 = arith.constant 128 : index
    %136 = vector.load %arg16[%c547, %c128_92] : memref<696x384xbf16, #tpu.memory_space<vmem>>, vector<16x128xbf16>
    tpu.vector_store %arg16[%c547, %c128_92], %135 {strides = array<i32>} : memref<696x384xbf16, #tpu.memory_space<vmem>>, vector<16x128xbf16>,
    %c548 = arith.constant 548 : index
    %c0_93 = arith.constant 0 : index
    %137 = vector.load %arg16[%c548, %c0_93] : memref<696x384xbf16, #tpu.memory_space<vmem>>, vector<16x128xbf16>
    tpu.vector_store %arg16[%c548, %c0_93], %135 {strides = array<i32>} : memref<696x384xbf16, #tpu.memory_space<vmem>>, vector<16x128xbf16>,
    %c546 = arith.constant 546 : index
    %c256_94 = arith.constant 256 : index
    %138 = vector.load %arg16[%c546, %c256_94] : memref<696x384xbf16, #tpu.memory_space<vmem>>, vector<16x128xbf16>
    tpu.vector_store %arg16[%c546, %c256_94], %135 {strides = array<i32>} : memref<696x384xbf16, #tpu.memory_space<vmem>>, vector<16x128xbf16>,
    %139 = vector.extract_strided_slice %28 {offsets = [432, 0], sizes = [16, 128], strides = [1, 1]} : vector<512x128xbf16> to vector<16x128xbf16>
    %c565 = arith.constant 565 : index
    %c128_95 = arith.constant 128 : index
    %140 = vector.load %arg16[%c565, %c128_95] : memref<696x384xbf16, #tpu.memory_space<vmem>>, vector<16x128xbf16>
    tpu.vector_store %arg16[%c565, %c128_95], %139 {strides = array<i32>} : memref<696x384xbf16, #tpu.memory_space<vmem>>, vector<16x128xbf16>,
    %c566 = arith.constant 566 : index
    %c0_96 = arith.constant 0 : index
    %141 = vector.load %arg16[%c566, %c0_96] : memref<696x384xbf16, #tpu.memory_space<vmem>>, vector<16x128xbf16>
    tpu.vector_store %arg16[%c566, %c0_96], %139 {strides = array<i32>} : memref<696x384xbf16, #tpu.memory_space<vmem>>, vector<16x128xbf16>,
    %c564 = arith.constant 564 : index
    %c256_97 = arith.constant 256 : index
    %142 = vector.load %arg16[%c564, %c256_97] : memref<696x384xbf16, #tpu.memory_space<vmem>>, vector<16x128xbf16>
    tpu.vector_store %arg16[%c564, %c256_97], %139 {strides = array<i32>} : memref<696x384xbf16, #tpu.memory_space<vmem>>, vector<16x128xbf16>,
    %143 = vector.extract_strided_slice %28 {offsets = [448, 0], sizes = [16, 128], strides = [1, 1]} : vector<512x128xbf16> to vector<16x128xbf16>
    %c583 = arith.constant 583 : index
    %c128_98 = arith.constant 128 : index
    %144 = vector.load %arg16[%c583, %c128_98] : memref<696x384xbf16, #tpu.memory_space<vmem>>, vector<16x128xbf16>
    tpu.vector_store %arg16[%c583, %c128_98], %143 {strides = array<i32>} : memref<696x384xbf16, #tpu.memory_space<vmem>>, vector<16x128xbf16>,
    %c584 = arith.constant 584 : index
    %c0_99 = arith.constant 0 : index
    %145 = vector.load %arg16[%c584, %c0_99] : memref<696x384xbf16, #tpu.memory_space<vmem>>, vector<16x128xbf16>
    tpu.vector_store %arg16[%c584, %c0_99], %143 {strides = array<i32>} : memref<696x384xbf16, #tpu.memory_space<vmem>>, vector<16x128xbf16>,
    %c582 = arith.constant 582 : index
    %c256_100 = arith.constant 256 : index
    %146 = vector.load %arg16[%c582, %c256_100] : memref<696x384xbf16, #tpu.memory_space<vmem>>, vector<16x128xbf16>
    tpu.vector_store %arg16[%c582, %c256_100], %143 {strides = array<i32>} : memref<696x384xbf16, #tpu.memory_space<vmem>>, vector<16x128xbf16>,
    %147 = vector.extract_strided_slice %28 {offsets = [464, 0], sizes = [16, 128], strides = [1, 1]} : vector<512x128xbf16> to vector<16x128xbf16>
    %c601 = arith.constant 601 : index
    %c128_101 = arith.constant 128 : index
    %148 = vector.load %arg16[%c601, %c128_101] : memref<696x384xbf16, #tpu.memory_space<vmem>>, vector<16x128xbf16>
    tpu.vector_store %arg16[%c601, %c128_101], %147 {strides = array<i32>} : memref<696x384xbf16, #tpu.memory_space<vmem>>, vector<16x128xbf16>,
    %c602 = arith.constant 602 : index
    %c0_102 = arith.constant 0 : index
    %149 = vector.load %arg16[%c602, %c0_102] : memref<696x384xbf16, #tpu.memory_space<vmem>>, vector<16x128xbf16>
    tpu.vector_store %arg16[%c602, %c0_102], %147 {strides = array<i32>} : memref<696x384xbf16, #tpu.memory_space<vmem>>, vector<16x128xbf16>,
    %c600 = arith.constant 600 : index
    %c256_103 = arith.constant 256 : index
    %150 = vector.load %arg16[%c600, %c256_103] : memref<696x384xbf16, #tpu.memory_space<vmem>>, vector<16x128xbf16>
    tpu.vector_store %arg16[%c600, %c256_103], %147 {strides = array<i32>} : memref<696x384xbf16, #tpu.memory_space<vmem>>, vector<16x128xbf16>,
    %151 = vector.extract_strided_slice %28 {offsets = [480, 0], sizes = [16, 128], strides = [1, 1]} : vector<512x128xbf16> to vector<16x128xbf16>
    %c619 = arith.constant 619 : index
    %c128_104 = arith.constant 128 : index
    %152 = vector.load %arg16[%c619, %c128_104] : memref<696x384xbf16, #tpu.memory_space<vmem>>, vector<16x128xbf16>
    tpu.vector_store %arg16[%c619, %c128_104], %151 {strides = array<i32>} : memref<696x384xbf16, #tpu.memory_space<vmem>>, vector<16x128xbf16>,
    %c620 = arith.constant 620 : index
    %c0_105 = arith.constant 0 : index
    %153 = vector.load %arg16[%c620, %c0_105] : memref<696x384xbf16, #tpu.memory_space<vmem>>, vector<16x128xbf16>
    tpu.vector_store %arg16[%c620, %c0_105], %151 {strides = array<i32>} : memref<696x384xbf16, #tpu.memory_space<vmem>>, vector<16x128xbf16>,
    %c618 = arith.constant 618 : index
    %c256_106 = arith.constant 256 : index
    %154 = vector.load %arg16[%c618, %c256_106] : memref<696x384xbf16, #tpu.memory_space<vmem>>, vector<16x128xbf16>
    tpu.vector_store %arg16[%c618, %c256_106], %151 {strides = array<i32>} : memref<696x384xbf16, #tpu.memory_space<vmem>>, vector<16x128xbf16>,
    %155 = vector.extract_strided_slice %28 {offsets = [496, 0], sizes = [16, 128], strides = [1, 1]} : vector<512x128xbf16> to vector<16x128xbf16>
    %c637 = arith.constant 637 : index
    %c128_107 = arith.constant 128 : index
    %156 = vector.load %arg16[%c637, %c128_107] : memref<696x384xbf16, #tpu.memory_space<vmem>>, vector<16x128xbf16>
    tpu.vector_store %arg16[%c637, %c128_107], %155 {strides = array<i32>} : memref<696x384xbf16, #tpu.memory_space<vmem>>, vector<16x128xbf16>,
    %c638 = arith.constant 638 : index
    %c0_108 = arith.constant 0 : index
    %157 = vector.load %arg16[%c638, %c0_108] : memref<696x384xbf16, #tpu.memory_space<vmem>>, vector<16x128xbf16>
    tpu.vector_store %arg16[%c638, %c0_108], %155 {strides = array<i32>} : memref<696x384xbf16, #tpu.memory_space<vmem>>, vector<16x128xbf16>,
    %c636 = arith.constant 636 : index
    %c256_109 = arith.constant 256 : index
    %158 = vector.load %arg16[%c636, %c256_109] : memref<696x384xbf16, #tpu.memory_space<vmem>>, vector<16x128xbf16>
    tpu.vector_store %arg16[%c636, %c256_109], %155 {strides = array<i32>} : memref<696x384xbf16, #tpu.memory_space<vmem>>, vector<16x128xbf16>,
    %c6 = arith.constant 6 : index
    %c0_110 = arith.constant 0 : index
    %159 = vector.load %arg16[%c6, %c0_110] : memref<696x384xbf16, #tpu.memory_space<vmem>>, vector<648x384xbf16>
    %c0_111 = arith.constant 0 : index
    %c0_112 = arith.constant 0 : index
    %c0_113 = arith.constant 0 : index
    %160 = vector.load %arg4[%c0_111, %c0_112, %c0_113] : memref<3x384x128xbf16, #tpu.memory_space<vmem>>, vector<1x384x128xbf16>
    %161 = vector.shape_cast %160 : vector<1x384x128xbf16> to vector<384x128xbf16>
    %cst_114 = arith.constant dense<0.000000e+00> : vector<648x128xf32>
    %162 = tpu.matmul %159, %161, %cst_114 {dimension_numbers = #tpu.dot_dimension_numbers<[1], [0], [0], [1], [0, 0, 1, 1], [], []>} : vector<648x384xbf16>, vector<384x128xbf16>, vector<648x128xf32> -> vector<648x128xf32>
    %c0_115 = arith.constant 0 : index
    %c0_116 = arith.constant 0 : index
    %163 = vector.load %arg17[%c0_115, %c0_116] : memref<648x128xf32, #tpu.memory_space<vmem>>, vector<648x128xf32>
    tpu.vector_store %arg17[%c0_115, %c0_116], %162 {strides = array<i32>} : memref<648x128xf32, #tpu.memory_space<vmem>>, vector<648x128xf32>,
    %c0_117 = arith.constant 0 : index
    %c0_118 = arith.constant 0 : index
    %164 = vector.load %arg17[%c0_117, %c0_118] : memref<648x128xf32, #tpu.memory_space<vmem>>, vector<648x128xf32>
    %c24 = arith.constant 24 : index
    %c0_119 = arith.constant 0 : index
    %165 = vector.load %arg16[%c24, %c0_119] : memref<696x384xbf16, #tpu.memory_space<vmem>>, vector<648x384xbf16>
    %c1 = arith.constant 1 : index
    %c0_120 = arith.constant 0 : index
    %c0_121 = arith.constant 0 : index
    %166 = vector.load %arg4[%c1, %c0_120, %c0_121] : memref<3x384x128xbf16, #tpu.memory_space<vmem>>, vector<1x384x128xbf16>
    %167 = vector.shape_cast %166 : vector<1x384x128xbf16> to vector<384x128xbf16>
    %cst_122 = arith.constant dense<0.000000e+00> : vector<648x128xf32>
    %168 = tpu.matmul %165, %167, %cst_122 {dimension_numbers = #tpu.dot_dimension_numbers<[1], [0], [0], [1], [0, 0, 1, 1], [], []>} : vector<648x384xbf16>, vector<384x128xbf16>, vector<648x128xf32> -> vector<648x128xf32>
    %169 = arith.addf %164, %168 : vector<648x128xf32>
    %c0_123 = arith.constant 0 : index
    %c0_124 = arith.constant 0 : index
    %170 = vector.load %arg17[%c0_123, %c0_124] : memref<648x128xf32, #tpu.memory_space<vmem>>, vector<648x128xf32>
    tpu.vector_store %arg17[%c0_123, %c0_124], %169 {strides = array<i32>} : memref<648x128xf32, #tpu.memory_space<vmem>>, vector<648x128xf32>,
    %c0_125 = arith.constant 0 : index
    %c0_126 = arith.constant 0 : index
    %171 = vector.load %arg17[%c0_125, %c0_126] : memref<648x128xf32, #tpu.memory_space<vmem>>, vector<648x128xf32>
    %c42_127 = arith.constant 42 : index
    %c0_128 = arith.constant 0 : index
    %172 = vector.load %arg16[%c42_127, %c0_128] : memref<696x384xbf16, #tpu.memory_space<vmem>>, vector<648x384xbf16>
    %c2 = arith.constant 2 : index
    %c0_129 = arith.constant 0 : index
    %c0_130 = arith.constant 0 : index
    %173 = vector.load %arg4[%c2, %c0_129, %c0_130] : memref<3x384x128xbf16, #tpu.memory_space<vmem>>, vector<1x384x128xbf16>
    %174 = vector.shape_cast %173 : vector<1x384x128xbf16> to vector<384x128xbf16>
    %cst_131 = arith.constant dense<0.000000e+00> : vector<648x128xf32>
    %175 = tpu.matmul %172, %174, %cst_131 {dimension_numbers = #tpu.dot_dimension_numbers<[1], [0], [0], [1], [0, 0, 1, 1], [], []>} : vector<648x384xbf16>, vector<384x128xbf16>, vector<648x128xf32> -> vector<648x128xf32>
    %176 = arith.addf %171, %175 : vector<648x128xf32>
    %c0_132 = arith.constant 0 : index
    %c0_133 = arith.constant 0 : index
    %177 = vector.load %arg17[%c0_132, %c0_133] : memref<648x128xf32, #tpu.memory_space<vmem>>, vector<648x128xf32>
    tpu.vector_store %arg17[%c0_132, %c0_133], %176 {strides = array<i32>} : memref<648x128xf32, #tpu.memory_space<vmem>>, vector<648x128xf32>,
    %c19 = arith.constant 19 : index
    %c0_134 = arith.constant 0 : index
    %178 = vector.load %arg17[%c19, %c0_134] : memref<648x128xf32, #tpu.memory_space<vmem>>, vector<16x128xf32>
    %c37 = arith.constant 37 : index
    %c0_135 = arith.constant 0 : index
    %179 = vector.load %arg17[%c37, %c0_135] : memref<648x128xf32, #tpu.memory_space<vmem>>, vector<16x128xf32>
    %c55 = arith.constant 55 : index
    %c0_136 = arith.constant 0 : index
    %180 = vector.load %arg17[%c55, %c0_136] : memref<648x128xf32, #tpu.memory_space<vmem>>, vector<16x128xf32>
    %c73 = arith.constant 73 : index
    %c0_137 = arith.constant 0 : index
    %181 = vector.load %arg17[%c73, %c0_137] : memref<648x128xf32, #tpu.memory_space<vmem>>, vector<16x128xf32>
    %c91 = arith.constant 91 : index
    %c0_138 = arith.constant 0 : index
    %182 = vector.load %arg17[%c91, %c0_138] : memref<648x128xf32, #tpu.memory_space<vmem>>, vector<16x128xf32>
    %c109 = arith.constant 109 : index
    %c0_139 = arith.constant 0 : index
    %183 = vector.load %arg17[%c109, %c0_139] : memref<648x128xf32, #tpu.memory_space<vmem>>, vector<16x128xf32>
    %c127 = arith.constant 127 : index
    %c0_140 = arith.constant 0 : index
    %184 = vector.load %arg17[%c127, %c0_140] : memref<648x128xf32, #tpu.memory_space<vmem>>, vector<16x128xf32>
    %c145 = arith.constant 145 : index
    %c0_141 = arith.constant 0 : index
    %185 = vector.load %arg17[%c145, %c0_141] : memref<648x128xf32, #tpu.memory_space<vmem>>, vector<16x128xf32>
    %c163 = arith.constant 163 : index
    %c0_142 = arith.constant 0 : index
    %186 = vector.load %arg17[%c163, %c0_142] : memref<648x128xf32, #tpu.memory_space<vmem>>, vector<16x128xf32>
    %c181 = arith.constant 181 : index
    %c0_143 = arith.constant 0 : index
    %187 = vector.load %arg17[%c181, %c0_143] : memref<648x128xf32, #tpu.memory_space<vmem>>, vector<16x128xf32>
    %c199 = arith.constant 199 : index
    %c0_144 = arith.constant 0 : index
    %188 = vector.load %arg17[%c199, %c0_144] : memref<648x128xf32, #tpu.memory_space<vmem>>, vector<16x128xf32>
    %c217 = arith.constant 217 : index
    %c0_145 = arith.constant 0 : index
    %189 = vector.load %arg17[%c217, %c0_145] : memref<648x128xf32, #tpu.memory_space<vmem>>, vector<16x128xf32>
    %c235 = arith.constant 235 : index
    %c0_146 = arith.constant 0 : index
    %190 = vector.load %arg17[%c235, %c0_146] : memref<648x128xf32, #tpu.memory_space<vmem>>, vector<16x128xf32>
    %c253 = arith.constant 253 : index
    %c0_147 = arith.constant 0 : index
    %191 = vector.load %arg17[%c253, %c0_147] : memref<648x128xf32, #tpu.memory_space<vmem>>, vector<16x128xf32>
    %c271 = arith.constant 271 : index
    %c0_148 = arith.constant 0 : index
    %192 = vector.load %arg17[%c271, %c0_148] : memref<648x128xf32, #tpu.memory_space<vmem>>, vector<16x128xf32>
    %c289 = arith.constant 289 : index
    %c0_149 = arith.constant 0 : index
    %193 = vector.load %arg17[%c289, %c0_149] : memref<648x128xf32, #tpu.memory_space<vmem>>, vector<16x128xf32>
    %c343 = arith.constant 343 : index
    %c0_150 = arith.constant 0 : index
    %194 = vector.load %arg17[%c343, %c0_150] : memref<648x128xf32, #tpu.memory_space<vmem>>, vector<16x128xf32>
    %c361 = arith.constant 361 : index
    %c0_151 = arith.constant 0 : index
    %195 = vector.load %arg17[%c361, %c0_151] : memref<648x128xf32, #tpu.memory_space<vmem>>, vector<16x128xf32>
    %c379 = arith.constant 379 : index
    %c0_152 = arith.constant 0 : index
    %196 = vector.load %arg17[%c379, %c0_152] : memref<648x128xf32, #tpu.memory_space<vmem>>, vector<16x128xf32>
    %c397 = arith.constant 397 : index
    %c0_153 = arith.constant 0 : index
    %197 = vector.load %arg17[%c397, %c0_153] : memref<648x128xf32, #tpu.memory_space<vmem>>, vector<16x128xf32>
    %c415 = arith.constant 415 : index
    %c0_154 = arith.constant 0 : index
    %198 = vector.load %arg17[%c415, %c0_154] : memref<648x128xf32, #tpu.memory_space<vmem>>, vector<16x128xf32>
    %c433 = arith.constant 433 : index
    %c0_155 = arith.constant 0 : index
    %199 = vector.load %arg17[%c433, %c0_155] : memref<648x128xf32, #tpu.memory_space<vmem>>, vector<16x128xf32>
    %c451 = arith.constant 451 : index
    %c0_156 = arith.constant 0 : index
    %200 = vector.load %arg17[%c451, %c0_156] : memref<648x128xf32, #tpu.memory_space<vmem>>, vector<16x128xf32>
    %c469 = arith.constant 469 : index
    %c0_157 = arith.constant 0 : index
    %201 = vector.load %arg17[%c469, %c0_157] : memref<648x128xf32, #tpu.memory_space<vmem>>, vector<16x128xf32>
    %c487 = arith.constant 487 : index
    %c0_158 = arith.constant 0 : index
    %202 = vector.load %arg17[%c487, %c0_158] : memref<648x128xf32, #tpu.memory_space<vmem>>, vector<16x128xf32>
    %c505 = arith.constant 505 : index
    %c0_159 = arith.constant 0 : index
    %203 = vector.load %arg17[%c505, %c0_159] : memref<648x128xf32, #tpu.memory_space<vmem>>, vector<16x128xf32>
    %c523 = arith.constant 523 : index
    %c0_160 = arith.constant 0 : index
    %204 = vector.load %arg17[%c523, %c0_160] : memref<648x128xf32, #tpu.memory_space<vmem>>, vector<16x128xf32>
    %c541 = arith.constant 541 : index
    %c0_161 = arith.constant 0 : index
    %205 = vector.load %arg17[%c541, %c0_161] : memref<648x128xf32, #tpu.memory_space<vmem>>, vector<16x128xf32>
    %c559 = arith.constant 559 : index
    %c0_162 = arith.constant 0 : index
    %206 = vector.load %arg17[%c559, %c0_162] : memref<648x128xf32, #tpu.memory_space<vmem>>, vector<16x128xf32>
    %c577 = arith.constant 577 : index
    %c0_163 = arith.constant 0 : index
    %207 = vector.load %arg17[%c577, %c0_163] : memref<648x128xf32, #tpu.memory_space<vmem>>, vector<16x128xf32>
    %c595 = arith.constant 595 : index
    %c0_164 = arith.constant 0 : index
    %208 = vector.load %arg17[%c595, %c0_164] : memref<648x128xf32, #tpu.memory_space<vmem>>, vector<16x128xf32>
    %c613 = arith.constant 613 : index
    %c0_165 = arith.constant 0 : index
    %209 = vector.load %arg17[%c613, %c0_165] : memref<648x128xf32, #tpu.memory_space<vmem>>, vector<16x128xf32>
    %210 = tpu.concatenate %178, %179, %180, %181, %182, %183, %184, %185, %186, %187, %188, %189, %190, %191, %192, %193 in 0 : vector<16x128xf32>, vector<16x128xf32>, vector<16x128xf32>, vector<16x128xf32>, vector<16x128xf32>, vector<16x128xf32>, vector<16x128xf32>, vector<16x128xf32>, vector<16x128xf32>, vector<16x128xf32>, vector<16x128xf32>, vector<16x128xf32>, vector<16x128xf32>, vector<16x128xf32>, vector<16x128xf32>, vector<16x128xf32> -> vector<256x128xf32>
    %211 = tpu.concatenate %194, %195, %196, %197, %198, %199, %200, %201, %202, %203, %204, %205, %206, %207, %208, %209 in 0 : vector<16x128xf32>, vector<16x128xf32>, vector<16x128xf32>, vector<16x128xf32>, vector<16x128xf32>, vector<16x128xf32>, vector<16x128xf32>, vector<16x128xf32>, vector<16x128xf32>, vector<16x128xf32>, vector<16x128xf32>, vector<16x128xf32>, vector<16x128xf32>, vector<16x128xf32>, vector<16x128xf32>, vector<16x128xf32> -> vector<256x128xf32>
    %212 = tpu.concatenate %210, %211 in 0 : vector<256x128xf32>, vector<256x128xf32> -> vector<512x128xf32>
    %c0_166 = arith.constant 0 : index
    %c0_167 = arith.constant 0 : index
    %213 = vector.load %arg9[%c0_166, %c0_167] : memref<1x128xf32, #tpu.memory_space<vmem>>, vector<1x128xf32>
    %c0_168 = arith.constant 0 : index
    %c0_169 = arith.constant 0 : index
    %214 = vector.load %arg10[%c0_168, %c0_169] : memref<1x128xf32, #tpu.memory_space<vmem>>, vector<1x128xf32>
    %cst_170 = arith.constant dense<0.000000e+00> : vector<128xf32>
    %215 = vector.multi_reduction <add>, %212, %cst_170 [0] : vector<512x128xf32> to vector<128xf32>
    %216 = vector.shape_cast %215 : vector<128xf32> to vector<1x128xf32>
    %217 = arith.mulf %212, %212 : vector<512x128xf32>
    %cst_171 = arith.constant dense<0.000000e+00> : vector<128xf32>
    %218 = vector.multi_reduction <add>, %217, %cst_171 [0] : vector<512x128xf32> to vector<128xf32>
    %219 = vector.shape_cast %218 : vector<128xf32> to vector<1x128xf32>
    %cst_172 = arith.constant 0.001953125 : f32
    %220 = vector.broadcast %cst_172 : f32 to vector<1x128xf32>
    %221 = arith.mulf %216, %220 : vector<1x128xf32>
    %cst_173 = arith.constant 0.001953125 : f32
    %222 = vector.broadcast %cst_173 : f32 to vector<1x128xf32>
    %223 = arith.mulf %219, %222 : vector<1x128xf32>
    %224 = arith.mulf %221, %221 : vector<1x128xf32>
    %225 = arith.subf %223, %224 : vector<1x128xf32>
    %cst_174 = arith.constant 9.99999974E-6 : f32
    %226 = vector.broadcast %cst_174 : f32 to vector<1x128xf32>
    %227 = arith.addf %225, %226 : vector<1x128xf32>
    %228 = math.rsqrt %227 : vector<1x128xf32>
    %229 = arith.mulf %213, %228 : vector<1x128xf32>
    %230 = arith.mulf %221, %229 : vector<1x128xf32>
    %231 = arith.subf %214, %230 : vector<1x128xf32>
    %232 = vector.broadcast %229 : vector<1x128xf32> to vector<512x128xf32>
    %233 = arith.mulf %212, %232 : vector<512x128xf32>
    %234 = vector.broadcast %231 : vector<1x128xf32> to vector<512x128xf32>
    %235 = arith.addf %233, %234 : vector<512x128xf32>
    %cst_175 = arith.constant 0.000000e+00 : f32
    %236 = vector.broadcast %cst_175 : f32 to vector<512x128xf32>
    %237 = arith.maximumf %235, %236 : vector<512x128xf32>
    %238 = arith.truncf %237 : vector<512x128xf32> to vector<512x128xbf16>
    %c0_176 = arith.constant 0 : index
    %c0_177 = arith.constant 0 : index
    %239 = vector.load %arg5[%c0_176, %c0_177] : memref<128x128xbf16, #tpu.memory_space<vmem>>, vector<128x128xbf16>
    %cst_178 = arith.constant dense<0.000000e+00> : vector<512x128xf32>
    %240 = tpu.matmul %238, %239, %cst_178 {dimension_numbers = #tpu.dot_dimension_numbers<[1], [0], [0], [1], [0, 0, 1, 1], [], []>} : vector<512x128xbf16>, vector<128x128xbf16>, vector<512x128xf32> -> vector<512x128xf32>
    %c0_179 = arith.constant 0 : index
    %c0_180 = arith.constant 0 : index
    %241 = vector.load %arg11[%c0_179, %c0_180] : memref<1x128xf32, #tpu.memory_space<vmem>>, vector<1x128xf32>
    %c0_181 = arith.constant 0 : index
    %c0_182 = arith.constant 0 : index
    %242 = vector.load %arg12[%c0_181, %c0_182] : memref<1x128xf32, #tpu.memory_space<vmem>>, vector<1x128xf32>
    %cst_183 = arith.constant dense<0.000000e+00> : vector<128xf32>
    %243 = vector.multi_reduction <add>, %240, %cst_183 [0] : vector<512x128xf32> to vector<128xf32>
    %244 = vector.shape_cast %243 : vector<128xf32> to vector<1x128xf32>
    %245 = arith.mulf %240, %240 : vector<512x128xf32>
    %cst_184 = arith.constant dense<0.000000e+00> : vector<128xf32>
    %246 = vector.multi_reduction <add>, %245, %cst_184 [0] : vector<512x128xf32> to vector<128xf32>
    %247 = vector.shape_cast %246 : vector<128xf32> to vector<1x128xf32>
    %cst_185 = arith.constant 0.001953125 : f32
    %248 = vector.broadcast %cst_185 : f32 to vector<1x128xf32>
    %249 = arith.mulf %244, %248 : vector<1x128xf32>
    %cst_186 = arith.constant 0.001953125 : f32
    %250 = vector.broadcast %cst_186 : f32 to vector<1x128xf32>
    %251 = arith.mulf %247, %250 : vector<1x128xf32>
    %252 = arith.mulf %249, %249 : vector<1x128xf32>
    %253 = arith.subf %251, %252 : vector<1x128xf32>
    %cst_187 = arith.constant 9.99999974E-6 : f32
    %254 = vector.broadcast %cst_187 : f32 to vector<1x128xf32>
    %255 = arith.addf %253, %254 : vector<1x128xf32>
    %256 = math.rsqrt %255 : vector<1x128xf32>
    %257 = arith.mulf %241, %256 : vector<1x128xf32>
    %258 = arith.mulf %249, %257 : vector<1x128xf32>
    %259 = arith.subf %242, %258 : vector<1x128xf32>
    %260 = vector.broadcast %257 : vector<1x128xf32> to vector<512x128xf32>
    %261 = arith.mulf %240, %260 : vector<512x128xf32>
    %262 = vector.broadcast %259 : vector<1x128xf32> to vector<512x128xf32>
    %263 = arith.addf %261, %262 : vector<512x128xf32>
    %c0_188 = arith.constant 0 : index
    %c0_189 = arith.constant 0 : index
    %264 = vector.load %arg2[%c0_188, %c0_189] : memref<512x128xbf16, #tpu.memory_space<vmem>>, vector<512x128xbf16>
    %c0_190 = arith.constant 0 : index
    %c0_191 = arith.constant 0 : index
    %265 = vector.load %arg6[%c0_190, %c0_191] : memref<128x128xbf16, #tpu.memory_space<vmem>>, vector<128x128xbf16>
    %cst_192 = arith.constant dense<0.000000e+00> : vector<512x128xf32>
    %266 = tpu.matmul %264, %265, %cst_192 {dimension_numbers = #tpu.dot_dimension_numbers<[1], [0], [0], [1], [0, 0, 1, 1], [], []>} : vector<512x128xbf16>, vector<128x128xbf16>, vector<512x128xf32> -> vector<512x128xf32>
    %c0_193 = arith.constant 0 : index
    %c0_194 = arith.constant 0 : index
    %267 = vector.load %arg13[%c0_193, %c0_194] : memref<1x128xf32, #tpu.memory_space<vmem>>, vector<1x128xf32>
    %c0_195 = arith.constant 0 : index
    %c0_196 = arith.constant 0 : index
    %268 = vector.load %arg14[%c0_195, %c0_196] : memref<1x128xf32, #tpu.memory_space<vmem>>, vector<1x128xf32>
    %cst_197 = arith.constant dense<0.000000e+00> : vector<128xf32>
    %269 = vector.multi_reduction <add>, %266, %cst_197 [0] : vector<512x128xf32> to vector<128xf32>
    %270 = vector.shape_cast %269 : vector<128xf32> to vector<1x128xf32>
    %271 = arith.mulf %266, %266 : vector<512x128xf32>
    %cst_198 = arith.constant dense<0.000000e+00> : vector<128xf32>
    %272 = vector.multi_reduction <add>, %271, %cst_198 [0] : vector<512x128xf32> to vector<128xf32>
    %273 = vector.shape_cast %272 : vector<128xf32> to vector<1x128xf32>
    %cst_199 = arith.constant 0.001953125 : f32
    %274 = vector.broadcast %cst_199 : f32 to vector<1x128xf32>
    %275 = arith.mulf %270, %274 : vector<1x128xf32>
    %cst_200 = arith.constant 0.001953125 : f32
    %276 = vector.broadcast %cst_200 : f32 to vector<1x128xf32>
    %277 = arith.mulf %273, %276 : vector<1x128xf32>
    %278 = arith.mulf %275, %275 : vector<1x128xf32>
    %279 = arith.subf %277, %278 : vector<1x128xf32>
    %cst_201 = arith.constant 9.99999974E-6 : f32
    %280 = vector.broadcast %cst_201 : f32 to vector<1x128xf32>
    %281 = arith.addf %279, %280 : vector<1x128xf32>
    %282 = math.rsqrt %281 : vector<1x128xf32>
    %283 = arith.mulf %267, %282 : vector<1x128xf32>
    %284 = arith.mulf %275, %283 : vector<1x128xf32>
    %285 = arith.subf %268, %284 : vector<1x128xf32>
    %286 = vector.broadcast %283 : vector<1x128xf32> to vector<512x128xf32>
    %287 = arith.mulf %266, %286 : vector<512x128xf32>
    %288 = vector.broadcast %285 : vector<1x128xf32> to vector<512x128xf32>
    %289 = arith.addf %287, %288 : vector<512x128xf32>
    %290 = arith.addf %263, %289 : vector<512x128xf32>
    %cst_202 = arith.constant 0.000000e+00 : f32
    %291 = vector.broadcast %cst_202 : f32 to vector<512x128xf32>
    %292 = arith.maximumf %290, %291 : vector<512x128xf32>
    %c0_203 = arith.constant 0 : index
    %c0_204 = arith.constant 0 : index
    %293 = vector.load %arg15[%c0_203, %c0_204] : memref<512x128xf32, #tpu.memory_space<vmem>>, vector<512x128xf32>
    tpu.vector_store %arg15[%c0_203, %c0_204], %292 {strides = array<i32>} : memref<512x128xf32, #tpu.memory_space<vmem>>, vector<512x128xf32>,
    return
  }
  func.func @transform_0(%arg0: i32) -> (i32, i32) {
    %c0_i32 = arith.constant 0 : i32
    %c0_i32_0 = arith.constant 0 : i32
    %c0_i32_1 = arith.constant 0 : i32
    return %c0_i32, %c0_i32_0 : i32, i32
  }
  func.func @transform_1(%arg0: i32) -> (i32, i32) {
    %c0_i32 = arith.constant 0 : i32
    %c0_i32_0 = arith.constant 0 : i32
    %c0_i32_1 = arith.constant 0 : i32
    return %c0_i32, %c0_i32_0 : i32, i32
  }
  func.func @transform_2(%arg0: i32) -> (i32, i32) {
    %c0_i32 = arith.constant 0 : i32
    %c0_i32_0 = arith.constant 0 : i32
    %c0_i32_1 = arith.constant 0 : i32
    return %c0_i32, %c0_i32_0 : i32, i32
  }
  func.func @transform_3(%arg0: i32) -> (i32, i32, i32) {
    %c0_i32 = arith.constant 0 : i32
    %c0_i32_0 = arith.constant 0 : i32
    %c0_i32_1 = arith.constant 0 : i32
    %c0_i32_2 = arith.constant 0 : i32
    return %c0_i32, %c0_i32_0, %c0_i32_1 : i32, i32, i32
  }
  func.func @transform_4(%arg0: i32) -> (i32, i32) {
    %c0_i32 = arith.constant 0 : i32
    %c0_i32_0 = arith.constant 0 : i32
    %c0_i32_1 = arith.constant 0 : i32
    return %c0_i32, %c0_i32_0 : i32, i32
  }
  func.func @transform_5(%arg0: i32) -> (i32, i32) {
    %c0_i32 = arith.constant 0 : i32
    %c0_i32_0 = arith.constant 0 : i32
    %c0_i32_1 = arith.constant 0 : i32
    return %c0_i32, %c0_i32_0 : i32, i32
  }
  func.func @transform_6(%arg0: i32) -> (i32, i32) {
    %c0_i32 = arith.constant 0 : i32
    %c0_i32_0 = arith.constant 0 : i32
    %c0_i32_1 = arith.constant 0 : i32
    return %c0_i32, %c0_i32_0 : i32, i32
  }
  func.func @transform_7(%arg0: i32) -> (i32, i32) {
    %c0_i32 = arith.constant 0 : i32
    %c0_i32_0 = arith.constant 0 : i32
    %c0_i32_1 = arith.constant 0 : i32
    return %c0_i32, %c0_i32_0 : i32, i32
  }
  func.func @transform_8(%arg0: i32) -> (i32, i32) {
    %c0_i32 = arith.constant 0 : i32
    %c0_i32_0 = arith.constant 0 : i32
    %c0_i32_1 = arith.constant 0 : i32
    return %c0_i32, %c0_i32_0 : i32, i32
  }
  func.func @transform_9(%arg0: i32) -> (i32, i32) {
    %c0_i32 = arith.constant 0 : i32
    %c0_i32_0 = arith.constant 0 : i32
    %c0_i32_1 = arith.constant 0 : i32
    return %c0_i32, %c0_i32_0 : i32, i32
  }
  func.func @transform_10(%arg0: i32) -> (i32, i32) {
    %c0_i32 = arith.constant 0 : i32
    %c0_i32_0 = arith.constant 0 : i32
    %c0_i32_1 = arith.constant 0 : i32
    return %c0_i32, %c0_i32_0 : i32, i32
  }
  func.func @transform_11(%arg0: i32) -> (i32, i32) {
    %c0_i32 = arith.constant 0 : i32
    %c0_i32_0 = arith.constant 0 : i32
    %c0_i32_1 = arith.constant 0 : i32
    return %c0_i32, %c0_i32_0 : i32, i32
  }
  func.func @transform_12(%arg0: i32) -> (i32, i32) {
    %c0_i32 = arith.constant 0 : i32
    %c0_i32_0 = arith.constant 0 : i32
    %c0_i32_1 = arith.constant 0 : i32
    return %c0_i32, %c0_i32_0 : i32, i32
  }
  func.func @transform_13(%arg0: i32) -> (i32, i32) {
    %c0_i32 = arith.constant 0 : i32
    %c0_i32_0 = arith.constant 0 : i32
    %c0_i32_1 = arith.constant 0 : i32
    return %c0_i32, %c0_i32_0 : i32, i32
  }
  func.func @transform_14(%arg0: i32) -> (i32, i32) {
    %c0_i32 = arith.constant 0 : i32
    %c0_i32_0 = arith.constant 0 : i32
    %c0_i32_1 = arith.constant 0 : i32
    return %c0_i32, %c0_i32_0 : i32, i32
  }
}

</mosaic_0001>

<llo_original>
// kernel: bottleneck_forward.1
$region0: #{bottleneck_forward.1}
  #allocation0 [shape = 'u32[]', space=smem, size = 0x4, offset = 0x4, fixed_abs, tag = 'smem constant byte address 0x4 - core index']
  #allocation1 [shape = 'u32[144,128]{1,0:T(1,128)}', space=vmem, size = 0x12000, scoped, tag = 'internal scratch']
  #allocation2 [shape = 'bf16[696,384]{1,0:T(8,128)(2,1)}', space=vmem, size = 0x82800, scoped, tag = 'scratch operand']
  #allocation3 [shape = 'f32[648,128]{1,0:T(8,128)}', space=vmem, size = 0x51000, scoped, tag = 'scratch operand']
  %s0 = inlined_call_operand.vmem [shape: bf16[512,128], index: 0, kind: input, shape index: {}, may-alias: {0,1}]
  %s1 = inlined_call_operand.vmem [shape: bf16[512,128], index: 1, kind: input, shape index: {}, may-alias: {0,1}]
  %s2 = inlined_call_operand.vmem [shape: bf16[128,128], index: 2, kind: input, shape index: {}]
  %s3 = inlined_call_operand.vmem [shape: bf16[3,384,128], index: 3, kind: input, shape index: {}]
  %s4 = inlined_call_operand.vmem [shape: bf16[128,128], index: 4, kind: input, shape index: {}]
  %s5 = inlined_call_operand.vmem [shape: bf16[128,128], index: 5, kind: input, shape index: {}]
  %s6 = inlined_call_operand.vmem [shape: f32[1,128], index: 6, kind: input, shape index: {}]
  %s7 = inlined_call_operand.vmem [shape: f32[1,128], index: 7, kind: input, shape index: {}]
  %s8 = inlined_call_operand.vmem [shape: f32[1,128], index: 8, kind: input, shape index: {}]
  %s9 = inlined_call_operand.vmem [shape: f32[1,128], index: 9, kind: input, shape index: {}]
  %s10 = inlined_call_operand.vmem [shape: f32[1,128], index: 10, kind: input, shape index: {}]
  %s11 = inlined_call_operand.vmem [shape: f32[1,128], index: 11, kind: input, shape index: {}]
  %s12 = inlined_call_operand.vmem [shape: f32[1,128], index: 12, kind: input, shape index: {}]
  %s13 = inlined_call_operand.vmem [shape: f32[1,128], index: 13, kind: input, shape index: {}]
  %s14 = inlined_call_operand.vmem [shape: f32[512,128], index: 14, kind: output, shape index: {}]
  %s15 = sld [smem:[#allocation0]]
  $region66: #{bottleneck_forward.1} parent=0
    _
  %s17 = ssub.s32 1, %s15
  %s18 = scalar_select 0, %s17, %s15
  // Predicated region
  $region2: #{bottleneck_forward.1} parent=0 // pred_check
    _
  $region3: #{bottleneck_forward.1} parent=0 // pred_check_branch
    %20 = sbr.rel (0) target = $region5
  $region4: #{bottleneck_forward.1} parent=0 // pred_region
    _
  $region5: #{bottleneck_forward.1} parent=0 // pred_fallthru
    _
  // Predicated region
  $region6: #{bottleneck_forward.1} parent=0 // pred_check
    _
  $region7: #{bottleneck_forward.1} parent=0 // pred_check_branch
    %22 = sbr.rel (0) target = $region9
  $region8: #{bottleneck_forward.1} parent=0 // pred_region
    _
  $region9: #{bottleneck_forward.1} parent=0 // pred_fallthru
    _
  // Predicated region
  $region10: #{bottleneck_forward.1} parent=0 // pred_check
    _
  $region11: #{bottleneck_forward.1} parent=0 // pred_check_branch
    %24 = sbr.rel (0) target = $region13
  $region12: #{bottleneck_forward.1} parent=0 // pred_region
    _
  $region13: #{bottleneck_forward.1} parent=0 // pred_fallthru
    _
  // Predicated region
  $region14: #{bottleneck_forward.1} parent=0 // pred_check
    _
  $region15: #{bottleneck_forward.1} parent=0 // pred_check_branch
    %26 = sbr.rel (0) target = $region17
  $region16: #{bottleneck_forward.1} parent=0 // pred_region
    _
  $region17: #{bottleneck_forward.1} parent=0 // pred_fallthru
    _
  // Predicated region
  $region18: #{bottleneck_forward.1} parent=0 // pred_check
    _
  $region19: #{bottleneck_forward.1} parent=0 // pred_check_branch
    %28 = sbr.rel (0) target = $region21
  $region20: #{bottleneck_forward.1} parent=0 // pred_region
    _
  $region21: #{bottleneck_forward.1} parent=0 // pred_fallthru
    _
  // Predicated region
  $region22: #{bottleneck_forward.1} parent=0 // pred_check
    _
  $region23: #{bottleneck_forward.1} parent=0 // pred_check_branch
    %30 = sbr.rel (0) target = $region25
  $region24: #{bottleneck_forward.1} parent=0 // pred_region
    _
  $region25: #{bottleneck_forward.1} parent=0 // pred_fallthru
    _
  // Predicated region
  $region26: #{bottleneck_forward.1} parent=0 // pred_check
    _
  $region27: #{bottleneck_forward.1} parent=0 // pred_check_branch
    %32 = sbr.rel (0) target = $region29
  $region28: #{bottleneck_forward.1} parent=0 // pred_region
    _
  $region29: #{bottleneck_forward.1} parent=0 // pred_fallthru
    _
  // Predicated region
  $region30: #{bottleneck_forward.1} parent=0 // pred_check
    _
  $region31: #{bottleneck_forward.1} parent=0 // pred_check_branch
    %34 = sbr.rel (0) target = $region33
  $region32: #{bottleneck_forward.1} parent=0 // pred_region
    _
  $region33: #{bottleneck_forward.1} parent=0 // pred_fallthru
    _
  // Predicated region
  $region34: #{bottleneck_forward.1} parent=0 // pred_check
    _
  $region35: #{bottleneck_forward.1} parent=0 // pred_check_branch
    %36 = sbr.rel (0) target = $region37
  $region36: #{bottleneck_forward.1} parent=0 // pred_region
    _
  $region37: #{bottleneck_forward.1} parent=0 // pred_fallthru
    _
  // Predicated region
  $region38: #{bottleneck_forward.1} parent=0 // pred_check
    _
  $region39: #{bottleneck_forward.1} parent=0 // pred_check_branch
    %38 = sbr.rel (0) target = $region41
  $region40: #{bottleneck_forward.1} parent=0 // pred_region
    _
  $region41: #{bottleneck_forward.1} parent=0 // pred_fallthru
    _
  // Predicated region
  $region42: #{bottleneck_forward.1} parent=0 // pred_check
    _
  $region43: #{bottleneck_forward.1} parent=0 // pred_check_branch
    %40 = sbr.rel (0) target = $region45
  $region44: #{bottleneck_forward.1} parent=0 // pred_region
    _
  $region45: #{bottleneck_forward.1} parent=0 // pred_fallthru
    _
  // Predicated region
  $region46: #{bottleneck_forward.1} parent=0 // pred_check
    _
  $region47: #{bottleneck_forward.1} parent=0 // pred_check_branch
    %42 = sbr.rel (0) target = $region49
  $region48: #{bottleneck_forward.1} parent=0 // pred_region
    _
  $region49: #{bottleneck_forward.1} parent=0 // pred_fallthru
    _
  // Predicated region
  $region50: #{bottleneck_forward.1} parent=0 // pred_check
    _
  $region51: #{bottleneck_forward.1} parent=0 // pred_check_branch
    %44 = sbr.rel (0) target = $region53
  $region52: #{bottleneck_forward.1} parent=0 // pred_region
    _
  $region53: #{bottleneck_forward.1} parent=0 // pred_fallthru
    _
  // Predicated region
  $region54: #{bottleneck_forward.1} parent=0 // pred_check
    _
  $region55: #{bottleneck_forward.1} parent=0 // pred_check_branch
    %46 = sbr.rel (0) target = $region57
  $region56: #{bottleneck_forward.1} parent=0 // pred_region
    _
  $region57: #{bottleneck_forward.1} parent=0 // pred_fallthru
    _
  %v48 = vld [vmem:[%s0] sm:$0xf]
  %v49 = vld [vmem:[%s0 + $0x4] sm:$0xf]
  %v50 = vld [vmem:[%s0 + $0x8] sm:$0xf]
  %v51 = vld [vmem:[%s0 + $0xc] sm:$0xf]
  %v52 = vld [vmem:[%s0 + $0x10] sm:$0xf]
  %v53 = vld [vmem:[%s0 + $0x14] sm:$0xf]
  %v54 = vld [vmem:[%s0 + $0x18] sm:$0xf]
  %v55 = vld [vmem:[%s0 + $0x1c] sm:$0xf]
  %v56 = vld [vmem:[%s0 + $0x20] sm:$0xf]
  %v57 = vld [vmem:[%s0 + $0x24] sm:$0xf]
  %v58 = vld [vmem:[%s0 + $0x28] sm:$0xf]
  %v59 = vld [vmem:[%s0 + $0x2c] sm:$0xf]
  %v60 = vld [vmem:[%s0 + $0x30] sm:$0xf]
  %v61 = vld [vmem:[%s0 + $0x34] sm:$0xf]
  %v62 = vld [vmem:[%s0 + $0x38] sm:$0xf]
  %v63 = vld [vmem:[%s0 + $0x3c] sm:$0xf]
  %v64 = vld [vmem:[%s0 + $0x40] sm:$0xf]
  %v65 = vld [vmem:[%s0 + $0x44] sm:$0xf]
  %v66 = vld [vmem:[%s0 + $0x48] sm:$0xf]
  %v67 = vld [vmem:[%s0 + $0x4c] sm:$0xf]
  %v68 = vld [vmem:[%s0 + $0x50] sm:$0xf]
  %v69 = vld [vmem:[%s0 + $0x54] sm:$0xf]
  %v70 = vld [vmem:[%s0 + $0x58] sm:$0xf]
  %v71 = vld [vmem:[%s0 + $0x5c] sm:$0xf]
  %v72 = vld [vmem:[%s0 + $0x60] sm:$0xf]
  %v73 = vld [vmem:[%s0 + $0x64] sm:$0xf]
  %v74 = vld [vmem:[%s0 + $0x68] sm:$0xf]
  %v75 = vld [vmem:[%s0 + $0x6c] sm:$0xf]
  %v76 = vld [vmem:[%s0 + $0x70] sm:$0xf]
  %v77 = vld [vmem:[%s0 + $0x74] sm:$0xf]
  %v78 = vld [vmem:[%s0 + $0x78] sm:$0xf]
  %v79 = vld [vmem:[%s0 + $0x7c] sm:$0xf]
  %v80 = vld [vmem:[%s0 + $0x80] sm:$0xf]
  %v81 = vld [vmem:[%s0 + $0x84] sm:$0xf]
  %v82 = vld [vmem:[%s0 + $0x88] sm:$0xf]
  %v83 = vld [vmem:[%s0 + $0x8c] sm:$0xf]
  %v84 = vld [vmem:[%s0 + $0x90] sm:$0xf]
  %v85 = vld [vmem:[%s0 + $0x94] sm:$0xf]
  %v86 = vld [vmem:[%s0 + $0x98] sm:$0xf]
  %v87 = vld [vmem:[%s0 + $0x9c] sm:$0xf]
  %v88 = vld [vmem:[%s0 + $0xa0] sm:$0xf]
  %v89 = vld [vmem:[%s0 + $0xa4] sm:$0xf]
  %v90 = vld [vmem:[%s0 + $0xa8] sm:$0xf]
  %v91 = vld [vmem:[%s0 + $0xac] sm:$0xf]
  %v92 = vld [vmem:[%s0 + $0xb0] sm:$0xf]
  %v93 = vld [vmem:[%s0 + $0xb4] sm:$0xf]
  %v94 = vld [vmem:[%s0 + $0xb8] sm:$0xf]
  %v95 = vld [vmem:[%s0 + $0xbc] sm:$0xf]
  %v96 = vld [vmem:[%s0 + $0xc0] sm:$0xf]
  %v97 = vld [vmem:[%s0 + $0xc4] sm:$0xf]
  %v98 = vld [vmem:[%s0 + $0xc8] sm:$0xf]
  %v99 = vld [vmem:[%s0 + $0xcc] sm:$0xf]
  %v100 = vld [vmem:[%s0 + $0xd0] sm:$0xf]
  %v101 = vld [vmem:[%s0 + $0xd4] sm:$0xf]
  %v102 = vld [vmem:[%s0 + $0xd8] sm:$0xf]
  %v103 = vld [vmem:[%s0 + $0xdc] sm:$0xf]
  %v104 = vld [vmem:[%s0 + $0xe0] sm:$0xf]
  %v105 = vld [vmem:[%s0 + $0xe4] sm:$0xf]
  %v106 = vld [vmem:[%s0 + $0xe8] sm:$0xf]
  %v107 = vld [vmem:[%s0 + $0xec] sm:$0xf]
  %v108 = vld [vmem:[%s0 + $0xf0] sm:$0xf]
  %v109 = vld [vmem:[%s0 + $0xf4] sm:$0xf]
  %v110 = vld [vmem:[%s0 + $0xf8] sm:$0xf]
  %v111 = vld [vmem:[%s0 + $0xfc] sm:$0xf]
  %v112 = vld [vmem:[%s2] sm:$0xf]
  %v113 = vld [vmem:[%s2 + $0x4] sm:$0xf]
  %v114 = vld [vmem:[%s2 + $0x8] sm:$0xf]
  %v115 = vld [vmem:[%s2 + $0xc] sm:$0xf]
  %v116 = vld [vmem:[%s2 + $0x10] sm:$0xf]
  %v117 = vld [vmem:[%s2 + $0x14] sm:$0xf]
  %v118 = vld [vmem:[%s2 + $0x18] sm:$0xf]
  %v119 = vld [vmem:[%s2 + $0x1c] sm:$0xf]
  %v120 = vld [vmem:[%s2 + $0x20] sm:$0xf]
  %v121 = vld [vmem:[%s2 + $0x24] sm:$0xf]
  %v122 = vld [vmem:[%s2 + $0x28] sm:$0xf]
  %v123 = vld [vmem:[%s2 + $0x2c] sm:$0xf]
  %v124 = vld [vmem:[%s2 + $0x30] sm:$0xf]
  %v125 = vld [vmem:[%s2 + $0x34] sm:$0xf]
  %v126 = vld [vmem:[%s2 + $0x38] sm:$0xf]
  %v127 = vld [vmem:[%s2 + $0x3c] sm:$0xf]
  %v192 = vunpack.c.l.b16 %v48
  %v193 = vunpack.c.l.b16 %v49
  %v194 = vunpack.c.l.b16 %v50
  %v195 = vunpack.c.l.b16 %v51
  %v196 = vunpack.c.l.b16 %v52
  %v197 = vunpack.c.l.b16 %v53
  %v198 = vunpack.c.l.b16 %v54
  %v199 = vunpack.c.l.b16 %v55
  %v200 = vunpack.c.l.b16 %v56
  %v201 = vunpack.c.l.b16 %v57
  %v202 = vunpack.c.l.b16 %v58
  %v203 = vunpack.c.l.b16 %v59
  %v204 = vunpack.c.l.b16 %v60
  %v205 = vunpack.c.l.b16 %v61
  %v206 = vunpack.c.l.b16 %v62
  %v207 = vunpack.c.l.b16 %v63
  %v208 = vunpack.c.l.b16 %v64
  %v209 = vunpack.c.l.b16 %v65
  %v210 = vunpack.c.l.b16 %v66
  %v211 = vunpack.c.l.b16 %v67
  %v212 = vunpack.c.l.b16 %v68
  %v213 = vunpack.c.l.b16 %v69
  %v214 = vunpack.c.l.b16 %v70
  %v215 = vunpack.c.l.b16 %v71
  %v216 = vunpack.c.l.b16 %v72
  %v217 = vunpack.c.l.b16 %v73
  %v218 = vunpack.c.l.b16 %v74
  %v219 = vunpack.c.l.b16 %v75
  %v220 = vunpack.c.l.b16 %v76
  %v221 = vunpack.c.l.b16 %v77
  %v222 = vunpack.c.l.b16 %v78
  %v223 = vunpack.c.l.b16 %v79
  %v224 = vunpack.c.l.b16 %v80
  %v225 = vunpack.c.l.b16 %v81
  %v226 = vunpack.c.l.b16 %v82
  %v227 = vunpack.c.l.b16 %v83
  %v228 = vunpack.c.l.b16 %v84
  %v229 = vunpack.c.l.b16 %v85
  %v230 = vunpack.c.l.b16 %v86
  %v231 = vunpack.c.l.b16 %v87
  %v232 = vunpack.c.l.b16 %v88
  %v233 = vunpack.c.l.b16 %v89
  %v234 = vunpack.c.l.b16 %v90
  %v235 = vunpack.c.l.b16 %v91
  %v236 = vunpack.c.l.b16 %v92
  %v237 = vunpack.c.l.b16 %v93
  %v238 = vunpack.c.l.b16 %v94
  %v239 = vunpack.c.l.b16 %v95
  %v240 = vunpack.c.l.b16 %v96
  %v241 = vunpack.c.l.b16 %v97
  %v242 = vunpack.c.l.b16 %v98
  %v243 = vunpack.c.l.b16 %v99
  %v244 = vunpack.c.l.b16 %v100
  %v245 = vunpack.c.l.b16 %v101
  %v246 = vunpack.c.l.b16 %v102
  %v247 = vunpack.c.l.b16 %v103
  %v248 = vunpack.c.l.b16 %v104
  %v249 = vunpack.c.l.b16 %v105
  %v250 = vunpack.c.l.b16 %v106
  %v251 = vunpack.c.l.b16 %v107
  %v252 = vunpack.c.l.b16 %v108
  %v253 = vunpack.c.l.b16 %v109
  %v254 = vunpack.c.l.b16 %v110
  %v255 = vunpack.c.l.b16 %v111
  %v256 = vpack.c.b16 %v193, %v192
  %v257 = vpack.c.b16 %v195, %v194
  %v258 = vpack.c.b16 %v197, %v196
  %v259 = vpack.c.b16 %v199, %v198
  %v260 = vpack.c.b16 %v201, %v200
  %v261 = vpack.c.b16 %v203, %v202
  %v262 = vpack.c.b16 %v205, %v204
  %v263 = vpack.c.b16 %v207, %v206
  %v264 = vpack.c.b16 %v209, %v208
  %v265 = vpack.c.b16 %v211, %v210
  %v266 = vpack.c.b16 %v213, %v212
  %v267 = vpack.c.b16 %v215, %v214
  %v268 = vpack.c.b16 %v217, %v216
  %v269 = vpack.c.b16 %v219, %v218
  %v270 = vpack.c.b16 %v221, %v220
  %v271 = vpack.c.b16 %v223, %v222
  %v272 = vpack.c.b16 %v225, %v224
  %v273 = vpack.c.b16 %v227, %v226
  %v274 = vpack.c.b16 %v229, %v228
  %v275 = vpack.c.b16 %v231, %v230
  %v276 = vpack.c.b16 %v233, %v232
  %v277 = vpack.c.b16 %v235, %v234
  %v278 = vpack.c.b16 %v237, %v236
  %v279 = vpack.c.b16 %v239, %v238
  %v280 = vpack.c.b16 %v241, %v240
  %v281 = vpack.c.b16 %v243, %v242
  %v282 = vpack.c.b16 %v245, %v244
  %v283 = vpack.c.b16 %v247, %v246
  %v284 = vpack.c.b16 %v249, %v248
  %v285 = vpack.c.b16 %v251, %v250
  %v286 = vpack.c.b16 %v253, %v252
  %v287 = vpack.c.b16 %v255, %v254
  %v336 = vunpack.c.l.b16 %v112
  %v337 = vunpack.c.l.b16 %v113
  %v338 = vunpack.c.l.b16 %v114
  %v339 = vunpack.c.l.b16 %v115
  %v340 = vunpack.c.l.b16 %v116
  %v341 = vunpack.c.l.b16 %v117
  %v342 = vunpack.c.l.b16 %v118
  %v343 = vunpack.c.l.b16 %v119
  %v344 = vunpack.c.l.b16 %v120
  %v345 = vunpack.c.l.b16 %v121
  %v346 = vunpack.c.l.b16 %v122
  %v347 = vunpack.c.l.b16 %v123
  %v348 = vunpack.c.l.b16 %v124
  %v349 = vunpack.c.l.b16 %v125
  %v350 = vunpack.c.l.b16 %v126
  %v351 = vunpack.c.l.b16 %v127
  %v352 = vpack.c.b16 %v337, %v336
  %v353 = vpack.c.b16 %v339, %v338
  %v354 = vpack.c.b16 %v341, %v340
  %v355 = vpack.c.b16 %v343, %v342
  %v356 = vpack.c.b16 %v345, %v344
  %v357 = vpack.c.b16 %v347, %v346
  %v358 = vpack.c.b16 %v349, %v348
  %v359 = vpack.c.b16 %v351, %v350
  %368 = vmatprep.subr.bf16.mxu0 0
  %369 = vmatpush1.bf16.msra.mxu0 %v352
  %370 = vmatprep.subr.bf16.mxu0 0
  %371 = vmatpush1.bf16.msra.mxu0 %v353
  %372 = vmatprep.subr.bf16.mxu0 0
  %373 = vmatpush1.bf16.msra.mxu0 %v354
  %374 = vmatprep.subr.bf16.mxu0 0
  %375 = vmatpush1.bf16.msra.mxu0 %v355
  %376 = vmatprep.subr.bf16.mxu0 0
  %377 = vmatpush1.bf16.msra.mxu0 %v356
  %378 = vmatprep.subr.bf16.mxu0 0
  %379 = vmatpush1.bf16.msra.mxu0 %v357
  %380 = vmatprep.subr.bf16.mxu0 0
  %381 = vmatpush1.bf16.msra.mxu0 %v358
  %382 = vmatprep.subr.bf16.mxu0 0
  %383 = vmatpush1.bf16.msra.mxu0 %v359
  %384 = vmatprep.subr.bf16.mxu0 0
  %385 = vmatpush1.bf16.msra.mxu0 0
  %386 = vmatprep.subr.bf16.mxu0 0
  %387 = vmatpush1.bf16.msra.mxu0 0
  %388 = vmatprep.subr.bf16.mxu0 0
  %389 = vmatpush1.bf16.msra.mxu0 0
  %390 = vmatprep.subr.bf16.mxu0 0
  %391 = vmatpush1.bf16.msra.mxu0 0
  %392 = vmatprep.subr.bf16.mxu0 0
  %393 = vmatpush1.bf16.msra.mxu0 0
  %394 = vmatprep.subr.bf16.mxu0 0
  %395 = vmatpush1.bf16.msra.mxu0 0
  %396 = vmatprep.subr.bf16.mxu0 0
  %397 = vmatpush1.bf16.msra.mxu0 0
  %398 = vmatprep.subr.bf16.mxu0 0
  %399 = vmatpush1.bf16.msra.mxu0 0
  %400 = vmatprep.mubr.bf16.mxu0 0
  %401 = vmatmul.mubr.bf16.gmra.mrb[0].mxu0 %v256
  %v402 = vpop.f32.mrb[0].mxu0
  %v403 = vadd.f32 0.0, %v402
  %v404 = vpop.f32.mrb[0].mxu0
  %v405 = vpop.f32.mrb[0].mxu0
  %v406 = vadd.f32 0.0, %v405
  %v407 = vpop.f32.mrb[0].mxu0
  %408 = vmatprep.mubr.bf16.mxu0 0
  %409 = vmatmul.mubr.bf16.gmra.mrb[0].mxu0 %v257
  %v410 = vpop.f32.mrb[0].mxu0
  %v411 = vadd.f32 0.0, %v410
  %v412 = vpop.f32.mrb[0].mxu0
  %v413 = vpop.f32.mrb[0].mxu0
  %v414 = vadd.f32 0.0, %v413
  %v415 = vpop.f32.mrb[0].mxu0
  %416 = vmatprep.mubr.bf16.mxu0 0
  %417 = vmatmul.mubr.bf16.gmra.mrb[0].mxu0 %v258
  %v418 = vpop.f32.mrb[0].mxu0
  %v419 = vadd.f32 0.0, %v418
  %v420 = vpop.f32.mrb[0].mxu0
  %v421 = vpop.f32.mrb[0].mxu0
  %v422 = vadd.f32 0.0, %v421
  %v423 = vpop.f32.mrb[0].mxu0
  %424 = vmatprep.mubr.bf16.mxu0 0
  %425 = vmatmul.mubr.bf16.gmra.mrb[0].mxu0 %v259
  %v426 = vpop.f32.mrb[0].mxu0
  %v427 = vadd.f32 0.0, %v426
  %v428 = vpop.f32.mrb[0].mxu0
  %v429 = vpop.f32.mrb[0].mxu0
  %v430 = vadd.f32 0.0, %v429
  %v431 = vpop.f32.mrb[0].mxu0
  %432 = vmatprep.mubr.bf16.mxu0 0
  %433 = vmatmul.mubr.bf16.gmra.mrb[0].mxu0 %v260
  %v434 = vpop.f32.mrb[0].mxu0
  %v435 = vadd.f32 0.0, %v434
  %v436 = vpop.f32.mrb[0].mxu0
  %v437 = vpop.f32.mrb[0].mxu0
  %v438 = vadd.f32 0.0, %v437
  %v439 = vpop.f32.mrb[0].mxu0
  %440 = vmatprep.mubr.bf16.mxu0 0
  %441 = vmatmul.mubr.bf16.gmra.mrb[0].mxu0 %v261
  %v442 = vpop.f32.mrb[0].mxu0
  %v443 = vadd.f32 0.0, %v442
  %v444 = vpop.f32.mrb[0].mxu0
  %v445 = vpop.f32.mrb[0].mxu0
  %v446 = vadd.f32 0.0, %v445
  %v447 = vpop.f32.mrb[0].mxu0
  %448 = vmatprep.mubr.bf16.mxu0 0
  %449 = vmatmul.mubr.bf16.gmra.mrb[0].mxu0 %v262
  %v450 = vpop.f32.mrb[0].mxu0
  %v451 = vadd.f32 0.0, %v450
  %v452 = vpop.f32.mrb[0].mxu0
  %v453 = vpop.f32.mrb[0].mxu0
  %v454 = vadd.f32 0.0, %v453
  %v455 = vpop.f32.mrb[0].mxu0
  %456 = vmatprep.mubr.bf16.mxu0 0
  %457 = vmatmul.mubr.bf16.gmra.mrb[0].mxu0 %v263
  %v458 = vpop.f32.mrb[0].mxu0
  %v459 = vadd.f32 0.0, %v458
  %v460 = vpop.f32.mrb[0].mxu0
  %v461 = vpop.f32.mrb[0].mxu0
  %v462 = vadd.f32 0.0, %v461
  %v463 = vpop.f32.mrb[0].mxu0
  %464 = vmatprep.mubr.bf16.mxu0 0
  %465 = vmatmul.mubr.bf16.gmra.mrb[0].mxu0 %v264
  %v466 = vpop.f32.mrb[0].mxu0
  %v467 = vadd.f32 0.0, %v466
  %v468 = vpop.f32.mrb[0].mxu0
  %v469 = vpop.f32.mrb[0].mxu0
  %v470 = vadd.f32 0.0, %v469
  %v471 = vpop.f32.mrb[0].mxu0
  %472 = vmatprep.mubr.bf16.mxu0 0
  %473 = vmatmul.mubr.bf16.gmra.mrb[0].mxu0 %v265
  %v474 = vpop.f32.mrb[0].mxu0
  %v475 = vadd.f32 0.0, %v474
  %v476 = vpop.f32.mrb[0].mxu0
  %v477 = vpop.f32.mrb[0].mxu0
  %v478 = vadd.f32 0.0, %v477
  %v479 = vpop.f32.mrb[0].mxu0
  %480 = vmatprep.mubr.bf16.mxu0 0
  %481 = vmatmul.mubr.bf16.gmra.mrb[0].mxu0 %v266
  %v482 = vpop.f32.mrb[0].mxu0
  %v483 = vadd.f32 0.0, %v482
  %v484 = vpop.f32.mrb[0].mxu0
  %v485 = vpop.f32.mrb[0].mxu0
  %v486 = vadd.f32 0.0, %v485
  %v487 = vpop.f32.mrb[0].mxu0
  %488 = vmatprep.mubr.bf16.mxu0 0
  %489 = vmatmul.mubr.bf16.gmra.mrb[0].mxu0 %v267
  %v490 = vpop.f32.mrb[0].mxu0
  %v491 = vadd.f32 0.0, %v490
  %v492 = vpop.f32.mrb[0].mxu0
  %v493 = vpop.f32.mrb[0].mxu0
  %v494 = vadd.f32 0.0, %v493
  %v495 = vpop.f32.mrb[0].mxu0
  %496 = vmatprep.mubr.bf16.mxu0 0
  %497 = vmatmul.mubr.bf16.gmra.mrb[0].mxu0 %v268
  %v498 = vpop.f32.mrb[0].mxu0
  %v499 = vadd.f32 0.0, %v498
  %v500 = vpop.f32.mrb[0].mxu0
  %v501 = vpop.f32.mrb[0].mxu0
  %v502 = vadd.f32 0.0, %v501
  %v503 = vpop.f32.mrb[0].mxu0
  %504 = vmatprep.mubr.bf16.mxu0 0
  %505 = vmatmul.mubr.bf16.gmra.mrb[0].mxu0 %v269
  %v506 = vpop.f32.mrb[0].mxu0
  %v507 = vadd.f32 0.0, %v506
  %v508 = vpop.f32.mrb[0].mxu0
  %v509 = vpop.f32.mrb[0].mxu0
  %v510 = vadd.f32 0.0, %v509
  %v511 = vpop.f32.mrb[0].mxu0
  %512 = vmatprep.mubr.bf16.mxu0 0
  %513 = vmatmul.mubr.bf16.gmra.mrb[0].mxu0 %v270
  %v514 = vpop.f32.mrb[0].mxu0
  %v515 = vadd.f32 0.0, %v514
  %v516 = vpop.f32.mrb[0].mxu0
  %v517 = vpop.f32.mrb[0].mxu0
  %v518 = vadd.f32 0.0, %v517
  %v519 = vpop.f32.mrb[0].mxu0
  %520 = vmatprep.mubr.bf16.mxu0 0
  %521 = vmatmul.mubr.bf16.gmra.mrb[0].mxu0 %v271
  %v522 = vpop.f32.mrb[0].mxu0
  %v523 = vadd.f32 0.0, %v522
  %v524 = vpop.f32.mrb[0].mxu0
  %v525 = vpop.f32.mrb[0].mxu0
  %v526 = vadd.f32 0.0, %v525
  %v527 = vpop.f32.mrb[0].mxu0
  %528 = vmatprep.mubr.bf16.mxu0 0
  %529 = vmatmul.mubr.bf16.gmra.mrb[0].mxu0 %v272
  %v530 = vpop.f32.mrb[0].mxu0
  %v531 = vadd.f32 0.0, %v530
  %v532 = vpop.f32.mrb[0].mxu0
  %v533 = vpop.f32.mrb[0].mxu0
  %v534 = vadd.f32 0.0, %v533
  %v535 = vpop.f32.mrb[0].mxu0
  %536 = vmatprep.mubr.bf16.mxu0 0
  %537 = vmatmul.mubr.bf16.gmra.mrb[0].mxu0 %v273
  %v538 = vpop.f32.mrb[0].mxu0
  %v539 = vadd.f32 0.0, %v538
  %v540 = vpop.f32.mrb[0].mxu0
  %v541 = vpop.f32.mrb[0].mxu0
  %v542 = vadd.f32 0.0, %v541
  %v543 = vpop.f32.mrb[0].mxu0
  %544 = vmatprep.mubr.bf16.mxu0 0
  %545 = vmatmul.mubr.bf16.gmra.mrb[0].mxu0 %v274
  %v546 = vpop.f32.mrb[0].mxu0
  %v547 = vadd.f32 0.0, %v546
  %v548 = vpop.f32.mrb[0].mxu0
  %v549 = vpop.f32.mrb[0].mxu0
  %v550 = vadd.f32 0.0, %v549
  %v551 = vpop.f32.mrb[0].mxu0
  %552 = vmatprep.mubr.bf16.mxu0 0
  %553 = vmatmul.mubr.bf16.gmra.mrb[0].mxu0 %v275
  %v554 = vpop.f32.mrb[0].mxu0
  %v555 = vadd.f32 0.0, %v554
  %v556 = vpop.f32.mrb[0].mxu0
  %v557 = vpop.f32.mrb[0].mxu0
  %v558 = vadd.f32 0.0, %v557
  %v559 = vpop.f32.mrb[0].mxu0
  %560 = vmatprep.mubr.bf16.mxu0 0
  %561 = vmatmul.mubr.bf16.gmra.mrb[0].mxu0 %v276
  %v562 = vpop.f32.mrb[0].mxu0
  %v563 = vadd.f32 0.0, %v562
  %v564 = vpop.f32.mrb[0].mxu0
  %v565 = vpop.f32.mrb[0].mxu0
  %v566 = vadd.f32 0.0, %v565
  %v567 = vpop.f32.mrb[0].mxu0
  %568 = vmatprep.mubr.bf16.mxu0 0
  %569 = vmatmul.mubr.bf16.gmra.mrb[0].mxu0 %v277
  %v570 = vpop.f32.mrb[0].mxu0
  %v571 = vadd.f32 0.0, %v570
  %v572 = vpop.f32.mrb[0].mxu0
  %v573 = vpop.f32.mrb[0].mxu0
  %v574 = vadd.f32 0.0, %v573
  %v575 = vpop.f32.mrb[0].mxu0
  %576 = vmatprep.mubr.bf16.mxu0 0
  %577 = vmatmul.mubr.bf16.gmra.mrb[0].mxu0 %v278
  %v578 = vpop.f32.mrb[0].mxu0
  %v579 = vadd.f32 0.0, %v578
  %v580 = vpop.f32.mrb[0].mxu0
  %v581 = vpop.f32.mrb[0].mxu0
  %v582 = vadd.f32 0.0, %v581
  %v583 = vpop.f32.mrb[0].mxu0
  %584 = vmatprep.mubr.bf16.mxu0 0
  %585 = vmatmul.mubr.bf16.gmra.mrb[0].mxu0 %v279
  %v586 = vpop.f32.mrb[0].mxu0
  %v587 = vadd.f32 0.0, %v586
  %v588 = vpop.f32.mrb[0].mxu0
  %v589 = vpop.f32.mrb[0].mxu0
  %v590 = vadd.f32 0.0, %v589
  %v591 = vpop.f32.mrb[0].mxu0
  %592 = vmatprep.mubr.bf16.mxu0 0
  %593 = vmatmul.mubr.bf16.gmra.mrb[0].mxu0 %v280
  %v594 = vpop.f32.mrb[0].mxu0
  %v595 = vadd.f32 0.0, %v594
  %v596 = vpop.f32.mrb[0].mxu0
  %v597 = vpop.f32.mrb[0].mxu0
  %v598 = vadd.f32 0.0, %v597
  %v599 = vpop.f32.mrb[0].mxu0
  %600 = vmatprep.mubr.bf16.mxu0 0
  %601 = vmatmul.mubr.bf16.gmra.mrb[0].mxu0 %v281
  %v602 = vpop.f32.mrb[0].mxu0
  %v603 = vadd.f32 0.0, %v602
  %v604 = vpop.f32.mrb[0].mxu0
  %v605 = vpop.f32.mrb[0].mxu0
  %v606 = vadd.f32 0.0, %v605
  %v607 = vpop.f32.mrb[0].mxu0
  %608 = vmatprep.mubr.bf16.mxu0 0
  %609 = vmatmul.mubr.bf16.gmra.mrb[0].mxu0 %v282
  %v610 = vpop.f32.mrb[0].mxu0
  %v611 = vadd.f32 0.0, %v610
  %v612 = vpop.f32.mrb[0].mxu0
  %v613 = vpop.f32.mrb[0].mxu0
  %v614 = vadd.f32 0.0, %v613
  %v615 = vpop.f32.mrb[0].mxu0
  %616 = vmatprep.mubr.bf16.mxu0 0
  %617 = vmatmul.mubr.bf16.gmra.mrb[0].mxu0 %v283
  %v618 = vpop.f32.mrb[0].mxu0
  %v619 = vadd.f32 0.0, %v618
  %v620 = vpop.f32.mrb[0].mxu0
  %v621 = vpop.f32.mrb[0].mxu0
  %v622 = vadd.f32 0.0, %v621
  %v623 = vpop.f32.mrb[0].mxu0
  %624 = vmatprep.mubr.bf16.mxu0 0
  %625 = vmatmul.mubr.bf16.gmra.mrb[0].mxu0 %v284
  %v626 = vpop.f32.mrb[0].mxu0
  %v627 = vadd.f32 0.0, %v626
  %v628 = vpop.f32.mrb[0].mxu0
  %v629 = vpop.f32.mrb[0].mxu0
  %v630 = vadd.f32 0.0, %v629
  %v631 = vpop.f32.mrb[0].mxu0
  %632 = vmatprep.mubr.bf16.mxu0 0
  %633 = vmatmul.mubr.bf16.gmra.mrb[0].mxu0 %v285
  %v634 = vpop.f32.mrb[0].mxu0
  %v635 = vadd.f32 0.0, %v634
  %v636 = vpop.f32.mrb[0].mxu0
  %v637 = vpop.f32.mrb[0].mxu0
  %v638 = vadd.f32 0.0, %v637
  %v639 = vpop.f32.mrb[0].mxu0
  %640 = vmatprep.mubr.bf16.mxu0 0
  %641 = vmatmul.mubr.bf16.gmra.mrb[0].mxu0 %v286
  %v642 = vpop.f32.mrb[0].mxu0
  %v643 = vadd.f32 0.0, %v642
  %v644 = vpop.f32.mrb[0].mxu0
  %v645 = vpop.f32.mrb[0].mxu0
  %v646 = vadd.f32 0.0, %v645
  %v647 = vpop.f32.mrb[0].mxu0
  %648 = vmatprep.mubr.bf16.mxu0 0
  %649 = vmatmul.mubr.bf16.gmra.mrb[0].mxu0 %v287
  %v650 = vpop.f32.mrb[0].mxu0
  %v651 = vadd.f32 0.0, %v650
  %v652 = vpop.f32.mrb[0].mxu0
  %v653 = vpop.f32.mrb[0].mxu0
  %v654 = vadd.f32 0.0, %v653
  %v655 = vpop.f32.mrb[0].mxu0
  %656 = vdwg.mxu0
  %v657 = vld [vmem:[%s6] sm:$0x1]
  %v658 = vld [vmem:[%s7] sm:$0x1]
  %v659 = vadd.f32 %v403, %v406
  %v660 = vadd.f32 %v659, %v411
  %v661 = vadd.f32 %v660, %v414
  %v662 = vadd.f32 %v661, %v419
  %v663 = vadd.f32 %v662, %v422
  %v664 = vadd.f32 %v663, %v427
  %v665 = vadd.f32 %v664, %v430
  %v666 = vadd.f32 %v665, %v435
  %v667 = vadd.f32 %v666, %v438
  %v668 = vadd.f32 %v667, %v443
  %v669 = vadd.f32 %v668, %v446
  %v670 = vadd.f32 %v669, %v451
  %v671 = vadd.f32 %v670, %v454
  %v672 = vadd.f32 %v671, %v459
  %v673 = vadd.f32 %v672, %v462
  %v674 = vadd.f32 %v673, %v467
  %v675 = vadd.f32 %v674, %v470
  %v676 = vadd.f32 %v675, %v475
  %v677 = vadd.f32 %v676, %v478
  %v678 = vadd.f32 %v677, %v483
  %v679 = vadd.f32 %v678, %v486
  %v680 = vadd.f32 %v679, %v491
  %v681 = vadd.f32 %v680, %v494
  %v682 = vadd.f32 %v681, %v499
  %v683 = vadd.f32 %v682, %v502
  %v684 = vadd.f32 %v683, %v507
  %v685 = vadd.f32 %v684, %v510
  %v686 = vadd.f32 %v685, %v515
  %v687 = vadd.f32 %v686, %v518
  %v688 = vadd.f32 %v687, %v523
  %v689 = vadd.f32 %v688, %v526
  %v690 = vadd.f32 %v689, %v531
  %v691 = vadd.f32 %v690, %v534
  %v692 = vadd.f32 %v691, %v539
  %v693 = vadd.f32 %v692, %v542
  %v694 = vadd.f32 %v693, %v547
  %v695 = vadd.f32 %v694, %v550
  %v696 = vadd.f32 %v695, %v555
  %v697 = vadd.f32 %v696, %v558
  %v698 = vadd.f32 %v697, %v563
  %v699 = vadd.f32 %v698, %v566
  %v700 = vadd.f32 %v699, %v571
  %v701 = vadd.f32 %v700, %v574
  %v702 = vadd.f32 %v701, %v579
  %v703 = vadd.f32 %v702, %v582
  %v704 = vadd.f32 %v703, %v587
  %v705 = vadd.f32 %v704, %v590
  %v706 = vadd.f32 %v705, %v595
  %v707 = vadd.f32 %v706, %v598
  %v708 = vadd.f32 %v707, %v603
  %v709 = vadd.f32 %v708, %v606
  %v710 = vadd.f32 %v709, %v611
  %v711 = vadd.f32 %v710, %v614
  %v712 = vadd.f32 %v711, %v619
  %v713 = vadd.f32 %v712, %v622
  %v714 = vadd.f32 %v713, %v627
  %v715 = vadd.f32 %v714, %v630
  %v716 = vadd.f32 %v715, %v635
  %v717 = vadd.f32 %v716, %v638
  %v718 = vadd.f32 %v717, %v643
  %v719 = vadd.f32 %v718, %v646
  %v720 = vadd.f32 %v719, %v651
  %v721 = vadd.f32 %v720, %v654
  %v722 = vrot.slane %v721, 4
  %v723 = vadd.f32 %v721, %v722
  %v724 = vrot.slane %v723, 2
  %v725 = vadd.f32 %v723, %v724
  %v726 = vrot.slane %v725, 1
  %v727 = vadd.f32 %v725, %v726
  %v728 = vmul.f32 %v403, %v403
  %v729 = vmul.f32 %v406, %v406
  %v730 = vmul.f32 %v411, %v411
  %v731 = vmul.f32 %v414, %v414
  %v732 = vmul.f32 %v419, %v419
  %v733 = vmul.f32 %v422, %v422
  %v734 = vmul.f32 %v427, %v427
  %v735 = vmul.f32 %v430, %v430
  %v736 = vmul.f32 %v435, %v435
  %v737 = vmul.f32 %v438, %v438
  %v738 = vmul.f32 %v443, %v443
  %v739 = vmul.f32 %v446, %v446
  %v740 = vmul.f32 %v451, %v451
  %v741 = vmul.f32 %v454, %v454
  %v742 = vmul.f32 %v459, %v459
  %v743 = vmul.f32 %v462, %v462
  %v744 = vmul.f32 %v467, %v467
  %v745 = vmul.f32 %v470, %v470
  %v746 = vmul.f32 %v475, %v475
  %v747 = vmul.f32 %v478, %v478
  %v748 = vmul.f32 %v483, %v483
  %v749 = vmul.f32 %v486, %v486
  %v750 = vmul.f32 %v491, %v491
  %v751 = vmul.f32 %v494, %v494
  %v752 = vmul.f32 %v499, %v499
  %v753 = vmul.f32 %v502, %v502
  %v754 = vmul.f32 %v507, %v507
  %v755 = vmul.f32 %v510, %v510
  %v756 = vmul.f32 %v515, %v515
  %v757 = vmul.f32 %v518, %v518
  %v758 = vmul.f32 %v523, %v523
  %v759 = vmul.f32 %v526, %v526
  %v760 = vmul.f32 %v531, %v531
  %v761 = vmul.f32 %v534, %v534
  %v762 = vmul.f32 %v539, %v539
  %v763 = vmul.f32 %v542, %v542
  %v764 = vmul.f32 %v547, %v547
  %v765 = vmul.f32 %v550, %v550
  %v766 = vmul.f32 %v555, %v555
  %v767 = vmul.f32 %v558, %v558
  %v768 = vmul.f32 %v563, %v563
  %v769 = vmul.f32 %v566, %v566
  %v770 = vmul.f32 %v571, %v571
  %v771 = vmul.f32 %v574, %v574
  %v772 = vmul.f32 %v579, %v579
  %v773 = vmul.f32 %v582, %v582
  %v774 = vmul.f32 %v587, %v587
  %v775 = vmul.f32 %v590, %v590
  %v776 = vmul.f32 %v595, %v595
  %v777 = vmul.f32 %v598, %v598
  %v778 = vmul.f32 %v603, %v603
  %v779 = vmul.f32 %v606, %v606
  %v780 = vmul.f32 %v611, %v611
  %v781 = vmul.f32 %v614, %v614
  %v782 = vmul.f32 %v619, %v619
  %v783 = vmul.f32 %v622, %v622
  %v784 = vmul.f32 %v627, %v627
  %v785 = vmul.f32 %v630, %v630
  %v786 = vmul.f32 %v635, %v635
  %v787 = vmul.f32 %v638, %v638
  %v788 = vmul.f32 %v643, %v643
  %v789 = vmul.f32 %v646, %v646
  %v790 = vmul.f32 %v651, %v651
  %v791 = vmul.f32 %v654, %v654
  %v792 = vadd.f32 %v728, %v729
  %v793 = vadd.f32 %v792, %v730
  %v794 = vadd.f32 %v793, %v731
  %v795 = vadd.f32 %v794, %v732
  %v796 = vadd.f32 %v795, %v733
  %v797 = vadd.f32 %v796, %v734
  %v798 = vadd.f32 %v797, %v735
  %v799 = vadd.f32 %v798, %v736
  %v800 = vadd.f32 %v799, %v737
  %v801 = vadd.f32 %v800, %v738
  %v802 = vadd.f32 %v801, %v739
  %v803 = vadd.f32 %v802, %v740
  %v804 = vadd.f32 %v803, %v741
  %v805 = vadd.f32 %v804, %v742
  %v806 = vadd.f32 %v805, %v743
  %v807 = vadd.f32 %v806, %v744
  %v808 = vadd.f32 %v807, %v745
  %v809 = vadd.f32 %v808, %v746
  %v810 = vadd.f32 %v809, %v747
  %v811 = vadd.f32 %v810, %v748
  %v812 = vadd.f32 %v811, %v749
  %v813 = vadd.f32 %v812, %v750
  %v814 = vadd.f32 %v813, %v751
  %v815 = vadd.f32 %v814, %v752
  %v816 = vadd.f32 %v815, %v753
  %v817 = vadd.f32 %v816, %v754
  %v818 = vadd.f32 %v817, %v755
  %v819 = vadd.f32 %v818, %v756
  %v820 = vadd.f32 %v819, %v757
  %v821 = vadd.f32 %v820, %v758
  %v822 = vadd.f32 %v821, %v759
  %v823 = vadd.f32 %v822, %v760
  %v824 = vadd.f32 %v823, %v761
  %v825 = vadd.f32 %v824, %v762
  %v826 = vadd.f32 %v825, %v763
  %v827 = vadd.f32 %v826, %v764
  %v828 = vadd.f32 %v827, %v765
  %v829 = vadd.f32 %v828, %v766
  %v830 = vadd.f32 %v829, %v767
  %v831 = vadd.f32 %v830, %v768
  %v832 = vadd.f32 %v831, %v769
  %v833 = vadd.f32 %v832, %v770
  %v834 = vadd.f32 %v833, %v771
  %v835 = vadd.f32 %v834, %v772
  %v836 = vadd.f32 %v835, %v773
  %v837 = vadd.f32 %v836, %v774
  %v838 = vadd.f32 %v837, %v775
  %v839 = vadd.f32 %v838, %v776
  %v840 = vadd.f32 %v839, %v777
  %v841 = vadd.f32 %v840, %v778
  %v842 = vadd.f32 %v841, %v779
  %v843 = vadd.f32 %v842, %v780
  %v844 = vadd.f32 %v843, %v781
  %v845 = vadd.f32 %v844, %v782
  %v846 = vadd.f32 %v845, %v783
  %v847 = vadd.f32 %v846, %v784
  %v848 = vadd.f32 %v847, %v785
  %v849 = vadd.f32 %v848, %v786
  %v850 = vadd.f32 %v849, %v787
  %v851 = vadd.f32 %v850, %v788
  %v852 = vadd.f32 %v851, %v789
  %v853 = vadd.f32 %v852, %v790
  %v854 = vadd.f32 %v853, %v791
  %v855 = vrot.slane %v854, 4
  %v856 = vadd.f32 %v854, %v855
  %v857 = vrot.slane %v856, 2
  %v858 = vadd.f32 %v856, %v857
  %v859 = vrot.slane %v858, 1
  %v860 = vadd.f32 %v858, %v859
  %v861 = vmul.f32 %v727, 0.001953125
  %v862 = vmul.f32 %v860, 0.001953125
  %v863 = vmul.f32 %v861, %v861
  %v864 = vsub.f32 %v862, %v863
  %v865 = vadd.f32 %v864, 1e-05
  %v866 = vrsqrt.pop %v865
  %v867 = vmul.f32 %v657, %v866
  %v868 = vmul.f32 %v861, %v867
  %v869 = vsub.f32 %v658, %v868
  %v871 = vlaneseq
  %v872 = vshrl.u32 %v871, 7
  %v873 = vsub.s32 0, %v872
  %v874 = vrot.slane %v867, %v873
  %v876 = vmul.f32 %v403, %v874
  %v877 = vmul.f32 %v406, %v874
  %v878 = vmul.f32 %v411, %v874
  %v879 = vmul.f32 %v414, %v874
  %v880 = vmul.f32 %v419, %v874
  %v881 = vmul.f32 %v422, %v874
  %v882 = vmul.f32 %v427, %v874
  %v883 = vmul.f32 %v430, %v874
  %v884 = vmul.f32 %v435, %v874
  %v885 = vmul.f32 %v438, %v874
  %v886 = vmul.f32 %v443, %v874
  %v887 = vmul.f32 %v446, %v874
  %v888 = vmul.f32 %v451, %v874
  %v889 = vmul.f32 %v454, %v874
  %v890 = vmul.f32 %v459, %v874
  %v891 = vmul.f32 %v462, %v874
  %v892 = vmul.f32 %v467, %v874
  %v893 = vmul.f32 %v470, %v874
  %v894 = vmul.f32 %v475, %v874
  %v895 = vmul.f32 %v478, %v874
  %v896 = vmul.f32 %v483, %v874
  %v897 = vmul.f32 %v486, %v874
  %v898 = vmul.f32 %v491, %v874
  %v899 = vmul.f32 %v494, %v874
  %v900 = vmul.f32 %v499, %v874
  %v901 = vmul.f32 %v502, %v874
  %v902 = vmul.f32 %v507, %v874
  %v903 = vmul.f32 %v510, %v874
  %v904 = vmul.f32 %v515, %v874
  %v905 = vmul.f32 %v518, %v874
  %v906 = vmul.f32 %v523, %v874
  %v907 = vmul.f32 %v526, %v874
  %v908 = vmul.f32 %v531, %v874
  %v909 = vmul.f32 %v534, %v874
  %v910 = vmul.f32 %v539, %v874
  %v911 = vmul.f32 %v542, %v874
  %v912 = vmul.f32 %v547, %v874
  %v913 = vmul.f32 %v550, %v874
  %v914 = vmul.f32 %v555, %v874
  %v915 = vmul.f32 %v558, %v874
  %v916 = vmul.f32 %v563, %v874
  %v917 = vmul.f32 %v566, %v874
  %v918 = vmul.f32 %v571, %v874
  %v919 = vmul.f32 %v574, %v874
  %v920 = vmul.f32 %v579, %v874
  %v921 = vmul.f32 %v582, %v874
  %v922 = vmul.f32 %v587, %v874
  %v923 = vmul.f32 %v590, %v874
  %v924 = vmul.f32 %v595, %v874
  %v925 = vmul.f32 %v598, %v874
  %v926 = vmul.f32 %v603, %v874
  %v927 = vmul.f32 %v606, %v874
  %v928 = vmul.f32 %v611, %v874
  %v929 = vmul.f32 %v614, %v874
  %v930 = vmul.f32 %v619, %v874
  %v931 = vmul.f32 %v622, %v874
  %v932 = vmul.f32 %v627, %v874
  %v933 = vmul.f32 %v630, %v874
  %v934 = vmul.f32 %v635, %v874
  %v935 = vmul.f32 %v638, %v874
  %v936 = vmul.f32 %v643, %v874
  %v937 = vmul.f32 %v646, %v874
  %v938 = vmul.f32 %v651, %v874
  %v939 = vmul.f32 %v654, %v874
  %v941 = vlaneseq
  %v942 = vshrl.u32 %v941, 7
  %v943 = vsub.s32 0, %v942
  %v944 = vrot.slane %v869, %v943
  %v946 = vadd.f32 %v876, %v944
  %v947 = vadd.f32 %v877, %v944
  %v948 = vadd.f32 %v878, %v944
  %v949 = vadd.f32 %v879, %v944
  %v950 = vadd.f32 %v880, %v944
  %v951 = vadd.f32 %v881, %v944
  %v952 = vadd.f32 %v882, %v944
  %v953 = vadd.f32 %v883, %v944
  %v954 = vadd.f32 %v884, %v944
  %v955 = vadd.f32 %v885, %v944
  %v956 = vadd.f32 %v886, %v944
  %v957 = vadd.f32 %v887, %v944
  %v958 = vadd.f32 %v888, %v944
  %v959 = vadd.f32 %v889, %v944
  %v960 = vadd.f32 %v890, %v944
  %v961 = vadd.f32 %v891, %v944
  %v962 = vadd.f32 %v892, %v944
  %v963 = vadd.f32 %v893, %v944
  %v964 = vadd.f32 %v894, %v944
  %v965 = vadd.f32 %v895, %v944
  %v966 = vadd.f32 %v896, %v944
  %v967 = vadd.f32 %v897, %v944
  %v968 = vadd.f32 %v898, %v944
  %v969 = vadd.f32 %v899, %v944
  %v970 = vadd.f32 %v900, %v944
  %v971 = vadd.f32 %v901, %v944
  %v972 = vadd.f32 %v902, %v944
  %v973 = vadd.f32 %v903, %v944
  %v974 = vadd.f32 %v904, %v944
  %v975 = vadd.f32 %v905, %v944
  %v976 = vadd.f32 %v906, %v944
  %v977 = vadd.f32 %v907, %v944
  %v978 = vadd.f32 %v908, %v944
  %v979 = vadd.f32 %v909, %v944
  %v980 = vadd.f32 %v910, %v944
  %v981 = vadd.f32 %v911, %v944
  %v982 = vadd.f32 %v912, %v944
  %v983 = vadd.f32 %v913, %v944
  %v984 = vadd.f32 %v914, %v944
  %v985 = vadd.f32 %v915, %v944
  %v986 = vadd.f32 %v916, %v944
  %v987 = vadd.f32 %v917, %v944
  %v988 = vadd.f32 %v918, %v944
  %v989 = vadd.f32 %v919, %v944
  %v990 = vadd.f32 %v920, %v944
  %v991 = vadd.f32 %v921, %v944
  %v992 = vadd.f32 %v922, %v944
  %v993 = vadd.f32 %v923, %v944
  %v994 = vadd.f32 %v924, %v944
  %v995 = vadd.f32 %v925, %v944
  %v996 = vadd.f32 %v926, %v944
  %v997 = vadd.f32 %v927, %v944
  %v998 = vadd.f32 %v928, %v944
  %v999 = vadd.f32 %v929, %v944
  %v1000 = vadd.f32 %v930, %v944
  %v1001 = vadd.f32 %v931, %v944
  %v1002 = vadd.f32 %v932, %v944
  %v1003 = vadd.f32 %v933, %v944
  %v1004 = vadd.f32 %v934, %v944
  %v1005 = vadd.f32 %v935, %v944
  %v1006 = vadd.f32 %v936, %v944
  %v1007 = vadd.f32 %v937, %v944
  %v1008 = vadd.f32 %v938, %v944
  %v1009 = vadd.f32 %v939, %v944
  %v1010 = vmax.f32 %v946, 0.0
  %v1011 = vmax.f32 %v947, 0.0
  %v1012 = vmax.f32 %v948, 0.0
  %v1013 = vmax.f32 %v949, 0.0
  %v1014 = vmax.f32 %v950, 0.0
  %v1015 = vmax.f32 %v951, 0.0
  %v1016 = vmax.f32 %v952, 0.0
  %v1017 = vmax.f32 %v953, 0.0
  %v1018 = vmax.f32 %v954, 0.0
  %v1019 = vmax.f32 %v955, 0.0
  %v1020 = vmax.f32 %v956, 0.0
  %v1021 = vmax.f32 %v957, 0.0
  %v1022 = vmax.f32 %v958, 0.0
  %v1023 = vmax.f32 %v959, 0.0
  %v1024 = vmax.f32 %v960, 0.0
  %v1025 = vmax.f32 %v961, 0.0
  %v1026 = vmax.f32 %v962, 0.0
  %v1027 = vmax.f32 %v963, 0.0
  %v1028 = vmax.f32 %v964, 0.0
  %v1029 = vmax.f32 %v965, 0.0
  %v1030 = vmax.f32 %v966, 0.0
  %v1031 = vmax.f32 %v967, 0.0
  %v1032 = vmax.f32 %v968, 0.0
  %v1033 = vmax.f32 %v969, 0.0
  %v1034 = vmax.f32 %v970, 0.0
  %v1035 = vmax.f32 %v971, 0.0
  %v1036 = vmax.f32 %v972, 0.0
  %v1037 = vmax.f32 %v973, 0.0
  %v1038 = vmax.f32 %v974, 0.0
  %v1039 = vmax.f32 %v975, 0.0
  %v1040 = vmax.f32 %v976, 0.0
  %v1041 = vmax.f32 %v977, 0.0
  %v1042 = vmax.f32 %v978, 0.0
  %v1043 = vmax.f32 %v979, 0.0
  %v1044 = vmax.f32 %v980, 0.0
  %v1045 = vmax.f32 %v981, 0.0
  %v1046 = vmax.f32 %v982, 0.0
  %v1047 = vmax.f32 %v983, 0.0
  %v1048 = vmax.f32 %v984, 0.0
  %v1049 = vmax.f32 %v985, 0.0
  %v1050 = vmax.f32 %v986, 0.0
  %v1051 = vmax.f32 %v987, 0.0
  %v1052 = vmax.f32 %v988, 0.0
  %v1053 = vmax.f32 %v989, 0.0
  %v1054 = vmax.f32 %v990, 0.0
  %v1055 = vmax.f32 %v991, 0.0
  %v1056 = vmax.f32 %v992, 0.0
  %v1057 = vmax.f32 %v993, 0.0
  %v1058 = vmax.f32 %v994, 0.0
  %v1059 = vmax.f32 %v995, 0.0
  %v1060 = vmax.f32 %v996, 0.0
  %v1061 = vmax.f32 %v997, 0.0
  %v1062 = vmax.f32 %v998, 0.0
  %v1063 = vmax.f32 %v999, 0.0
  %v1064 = vmax.f32 %v1000, 0.0
  %v1065 = vmax.f32 %v1001, 0.0
  %v1066 = vmax.f32 %v1002, 0.0
  %v1067 = vmax.f32 %v1003, 0.0
  %v1068 = vmax.f32 %v1004, 0.0
  %v1069 = vmax.f32 %v1005, 0.0
  %v1070 = vmax.f32 %v1006, 0.0
  %v1071 = vmax.f32 %v1007, 0.0
  %v1072 = vmax.f32 %v1008, 0.0
  %v1073 = vmax.f32 %v1009, 0.0
  %v1074 = vpack.c.bf16 %v1011, %v1010
  %v1075 = vpack.c.bf16 %v1013, %v1012
  %v1076 = vpack.c.bf16 %v1015, %v1014
  %v1077 = vpack.c.bf16 %v1017, %v1016
  %v1078 = vpack.c.bf16 %v1019, %v1018
  %v1079 = vpack.c.bf16 %v1021, %v1020
  %v1080 = vpack.c.bf16 %v1023, %v1022
  %v1081 = vpack.c.bf16 %v1025, %v1024
  %v1082 = vpack.c.bf16 %v1027, %v1026
  %v1083 = vpack.c.bf16 %v1029, %v1028
  %v1084 = vpack.c.bf16 %v1031, %v1030
  %v1085 = vpack.c.bf16 %v1033, %v1032
  %v1086 = vpack.c.bf16 %v1035, %v1034
  %v1087 = vpack.c.bf16 %v1037, %v1036
  %v1088 = vpack.c.bf16 %v1039, %v1038
  %v1089 = vpack.c.bf16 %v1041, %v1040
  %v1090 = vpack.c.bf16 %v1043, %v1042
  %v1091 = vpack.c.bf16 %v1045, %v1044
  %v1092 = vpack.c.bf16 %v1047, %v1046
  %v1093 = vpack.c.bf16 %v1049, %v1048
  %v1094 = vpack.c.bf16 %v1051, %v1050
  %v1095 = vpack.c.bf16 %v1053, %v1052
  %v1096 = vpack.c.bf16 %v1055, %v1054
  %v1097 = vpack.c.bf16 %v1057, %v1056
  %v1098 = vpack.c.bf16 %v1059, %v1058
  %v1099 = vpack.c.bf16 %v1061, %v1060
  %v1100 = vpack.c.bf16 %v1063, %v1062
  %v1101 = vpack.c.bf16 %v1065, %v1064
  %v1102 = vpack.c.bf16 %v1067, %v1066
  %v1103 = vpack.c.bf16 %v1069, %v1068
  %v1104 = vpack.c.bf16 %v1071, %v1070
  %v1105 = vpack.c.bf16 %v1073, %v1072
  %1106 = vst [vmem:[#allocation2] sm:$0xff] 0
  %1107 = vst [vmem:[#allocation2 + $0x8] sm:$0xf] 0
  %1108 = vst [vmem:[#allocation2 + $0xc] sm:$0xff] 0
  %1109 = vst [vmem:[#allocation2 + $0x14] sm:$0xf] 0
  %1110 = vst [vmem:[#allocation2 + $0x18] sm:$0xff] 0
  %1111 = vst [vmem:[#allocation2 + $0x20] sm:$0xf] 0
  %1112 = vst [vmem:[#allocation2 + $0x24] sm:$0xff] 0
  %1113 = vst [vmem:[#allocation2 + $0x2c] sm:$0xf] 0
  %1114 = vst [vmem:[#allocation2 + $0x30] sm:$0xff] 0
  %1115 = vst [vmem:[#allocation2 + $0x38] sm:$0xf] 0
  %1116 = vst [vmem:[#allocation2 + $0x3c] sm:$0xff] 0
  %1117 = vst [vmem:[#allocation2 + $0x44] sm:$0xf] 0
  %1118 = vst [vmem:[#allocation2 + $0x48] sm:$0xff] 0
  %1119 = vst [vmem:[#allocation2 + $0x50] sm:$0xf] 0
  %1120 = vst [vmem:[#allocation2 + $0x54] sm:$0xff] 0
  %1121 = vst [vmem:[#allocation2 + $0x5c] sm:$0xf] 0
  %1122 = vst [vmem:[#allocation2 + $0x60] sm:$0xff] 0
  %1123 = vst [vmem:[#allocation2 + $0x68] sm:$0xf] 0
  %1124 = vst [vmem:[#allocation2 + $0x6c] sm:$0xff] 0
  %1125 = vst [vmem:[#allocation2 + $0x74] sm:$0xf] 0
  %1126 = vst [vmem:[#allocation2 + $0x78] sm:$0xff] 0
  %1127 = vst [vmem:[#allocation2 + $0x80] sm:$0xf] 0
  %1128 = vst [vmem:[#allocation2 + $0x84] sm:$0xff] 0
  %1129 = vst [vmem:[#allocation2 + $0x8c] sm:$0xf] 0
  %1130 = vst [vmem:[#allocation2 + $0x90] sm:$0xff] 0
  %1131 = vst [vmem:[#allocation2 + $0x98] sm:$0xf] 0
  %1132 = vst [vmem:[#allocation2 + $0x9c] sm:$0xff] 0
  %1133 = vst [vmem:[#allocation2 + $0xa4] sm:$0xf] 0
  %1134 = vst [vmem:[#allocation2 + $0xa8] sm:$0xff] 0
  %1135 = vst [vmem:[#allocation2 + $0xb0] sm:$0xf] 0
  %1136 = vst [vmem:[#allocation2 + $0xb4] sm:$0xff] 0
  %1137 = vst [vmem:[#allocation2 + $0xbc] sm:$0xf] 0
  %1138 = vst [vmem:[#allocation2 + $0xc0] sm:$0xff] 0
  %1139 = vst [vmem:[#allocation2 + $0xc8] sm:$0xf] 0
  %1140 = vst [vmem:[#allocation2 + $0xcc] sm:$0xff] 0
  %1141 = vst [vmem:[#allocation2 + $0xd4] sm:$0xf] 0
  %1142 = vst [vmem:[#allocation2 + $0xd8] sm:$0xff] 0
  %1143 = vst [vmem:[#allocation2 + $0xe0] sm:$0xf] 0
  %1144 = vst [vmem:[#allocation2 + $0xe4] sm:$0xff] 0
  %1145 = vst [vmem:[#allocation2 + $0xec] sm:$0xf] 0
  %1146 = vst [vmem:[#allocation2 + $0xf0] sm:$0xff] 0
  %1147 = vst [vmem:[#allocation2 + $0xf8] sm:$0xf] 0
  %1148 = vst [vmem:[#allocation2 + $0xfc] sm:$0xff] 0
  %1149 = vst [vmem:[#allocation2 + $0x104] sm:$0xf] 0
  %1150 = vst [vmem:[#allocation2 + $0x108] sm:$0xff] 0
  %1151 = vst [vmem:[#allocation2 + $0x110] sm:$0xf] 0
  %1152 = vst [vmem:[#allocation2 + $0x114] sm:$0xff] 0
  %1153 = vst [vmem:[#allocation2 + $0x11c] sm:$0xf] 0
  %1154 = vst [vmem:[#allocation2 + $0x120] sm:$0xff] 0
  %1155 = vst [vmem:[#allocation2 + $0x128] sm:$0xf] 0
  %1156 = vst [vmem:[#allocation2 + $0x12c] sm:$0xff] 0
  %1157 = vst [vmem:[#allocation2 + $0x134] sm:$0xf] 0
  %1158 = vst [vmem:[#allocation2 + $0x138] sm:$0xff] 0
  %1159 = vst [vmem:[#allocation2 + $0x140] sm:$0xf] 0
  %1160 = vst [vmem:[#allocation2 + $0x144] sm:$0xff] 0
  %1161 = vst [vmem:[#allocation2 + $0x14c] sm:$0xf] 0
  %1162 = vst [vmem:[#allocation2 + $0x150] sm:$0xff] 0
  %1163 = vst [vmem:[#allocation2 + $0x158] sm:$0xf] 0
  %1164 = vst [vmem:[#allocation2 + $0x15c] sm:$0xff] 0
  %1165 = vst [vmem:[#allocation2 + $0x164] sm:$0xf] 0
  %1166 = vst [vmem:[#allocation2 + $0x168] sm:$0xff] 0
  %1167 = vst [vmem:[#allocation2 + $0x170] sm:$0xf] 0
  %1168 = vst [vmem:[#allocation2 + $0x174] sm:$0xff] 0
  %1169 = vst [vmem:[#allocation2 + $0x17c] sm:$0xf] 0
  %1170 = vst [vmem:[#allocation2 + $0x180] sm:$0xff] 0
  %1171 = vst [vmem:[#allocation2 + $0x188] sm:$0xf] 0
  %1172 = vst [vmem:[#allocation2 + $0x18c] sm:$0xff] 0
  %1173 = vst [vmem:[#allocation2 + $0x194] sm:$0xf] 0
  %1174 = vst [vmem:[#allocation2 + $0x198] sm:$0xff] 0
  %1175 = vst [vmem:[#allocation2 + $0x1a0] sm:$0xf] 0
  %1176 = vst [vmem:[#allocation2 + $0x1a4] sm:$0xff] 0
  %1177 = vst [vmem:[#allocation2 + $0x1ac] sm:$0xf] 0
  %1178 = vst [vmem:[#allocation2 + $0x1b0] sm:$0xff] 0
  %1179 = vst [vmem:[#allocation2 + $0x1b8] sm:$0xf] 0
  %1180 = vst [vmem:[#allocation2 + $0x1bc] sm:$0xff] 0
  %1181 = vst [vmem:[#allocation2 + $0x1c4] sm:$0xf] 0
  %1182 = vst [vmem:[#allocation2 + $0x1c8] sm:$0xff] 0
  %1183 = vst [vmem:[#allocation2 + $0x1d0] sm:$0xf] 0
  %1184 = vst [vmem:[#allocation2 + $0x1d4] sm:$0xff] 0
  %1185 = vst [vmem:[#allocation2 + $0x1dc] sm:$0xf] 0
  %1186 = vst [vmem:[#allocation2 + $0x1e0] sm:$0xff] 0
  %1187 = vst [vmem:[#allocation2 + $0x1e8] sm:$0xf] 0
  %1188 = vst [vmem:[#allocation2 + $0x1ec] sm:$0xff] 0
  %1189 = vst [vmem:[#allocation2 + $0x1f4] sm:$0xf] 0
  %1190 = vst [vmem:[#allocation2 + $0x1f8] sm:$0xff] 0
  %1191 = vst [vmem:[#allocation2 + $0x200] sm:$0xf] 0
  %1192 = vst [vmem:[#allocation2 + $0x204] sm:$0xff] 0
  %1193 = vst [vmem:[#allocation2 + $0x20c] sm:$0xf] 0
  %1194 = vst [vmem:[#allocation2 + $0x210] sm:$0xff] 0
  %1195 = vst [vmem:[#allocation2 + $0x218] sm:$0xf] 0
  %1196 = vst [vmem:[#allocation2 + $0x21c] sm:$0xff] 0
  %1197 = vst [vmem:[#allocation2 + $0x224] sm:$0xf] 0
  %1198 = vst [vmem:[#allocation2 + $0x228] sm:$0xff] 0
  %1199 = vst [vmem:[#allocation2 + $0x230] sm:$0xf] 0
  %1200 = vst [vmem:[#allocation2 + $0x234] sm:$0xff] 0
  %1201 = vst [vmem:[#allocation2 + $0x23c] sm:$0xf] 0
  %1202 = vst [vmem:[#allocation2 + $0x240] sm:$0xff] 0
  %1203 = vst [vmem:[#allocation2 + $0x248] sm:$0xf] 0
  %1204 = vst [vmem:[#allocation2 + $0x24c] sm:$0xff] 0
  %1205 = vst [vmem:[#allocation2 + $0x254] sm:$0xf] 0
  %1206 = vst [vmem:[#allocation2 + $0x258] sm:$0xff] 0
  %1207 = vst [vmem:[#allocation2 + $0x260] sm:$0xf] 0
  %1208 = vst [vmem:[#allocation2 + $0x264] sm:$0xff] 0
  %1209 = vst [vmem:[#allocation2 + $0x26c] sm:$0xf] 0
  %1210 = vst [vmem:[#allocation2 + $0x270] sm:$0xff] 0
  %1211 = vst [vmem:[#allocation2 + $0x278] sm:$0xf] 0
  %1212 = vst [vmem:[#allocation2 + $0x27c] sm:$0xff] 0
  %1213 = vst [vmem:[#allocation2 + $0x284] sm:$0xf] 0
  %1214 = vst [vmem:[#allocation2 + $0x288] sm:$0xff] 0
  %1215 = vst [vmem:[#allocation2 + $0x290] sm:$0xf] 0
  %1216 = vst [vmem:[#allocation2 + $0x294] sm:$0xff] 0
  %1217 = vst [vmem:[#allocation2 + $0x29c] sm:$0xf] 0
  %1218 = vst [vmem:[#allocation2 + $0x2a0] sm:$0xff] 0
  %1219 = vst [vmem:[#allocation2 + $0x2a8] sm:$0xf] 0
  %1220 = vst [vmem:[#allocation2 + $0x2ac] sm:$0xff] 0
  %1221 = vst [vmem:[#allocation2 + $0x2b4] sm:$0xf] 0
  %1222 = vst [vmem:[#allocation2 + $0x2b8] sm:$0xff] 0
  %1223 = vst [vmem:[#allocation2 + $0x2c0] sm:$0xf] 0
  %1224 = vst [vmem:[#allocation2 + $0x2c4] sm:$0xff] 0
  %1225 = vst [vmem:[#allocation2 + $0x2cc] sm:$0xf] 0
  %1226 = vst [vmem:[#allocation2 + $0x2d0] sm:$0xff] 0
  %1227 = vst [vmem:[#allocation2 + $0x2d8] sm:$0xf] 0
  %1228 = vst [vmem:[#allocation2 + $0x2dc] sm:$0xff] 0
  %1229 = vst [vmem:[#allocation2 + $0x2e4] sm:$0xf] 0
  %1230 = vst [vmem:[#allocation2 + $0x2e8] sm:$0xff] 0
  %1231 = vst [vmem:[#allocation2 + $0x2f0] sm:$0xf] 0
  %1232 = vst [vmem:[#allocation2 + $0x2f4] sm:$0xff] 0
  %1233 = vst [vmem:[#allocation2 + $0x2fc] sm:$0xf] 0
  %1234 = vst [vmem:[#allocation2 + $0x300] sm:$0xff] 0
  %1235 = vst [vmem:[#allocation2 + $0x308] sm:$0xf] 0
  %1236 = vst [vmem:[#allocation2 + $0x30c] sm:$0xff] 0
  %1237 = vst [vmem:[#allocation2 + $0x314] sm:$0xf] 0
  %1238 = vst [vmem:[#allocation2 + $0x318] sm:$0xff] 0
  %1239 = vst [vmem:[#allocation2 + $0x320] sm:$0xf] 0
  %1240 = vst [vmem:[#allocation2 + $0x324] sm:$0xff] 0
  %1241 = vst [vmem:[#allocation2 + $0x32c] sm:$0xf] 0
  %1242 = vst [vmem:[#allocation2 + $0x330] sm:$0xff] 0
  %1243 = vst [vmem:[#allocation2 + $0x338] sm:$0xf] 0
  %1244 = vst [vmem:[#allocation2 + $0x33c] sm:$0xff] 0
  %1245 = vst [vmem:[#allocation2 + $0x344] sm:$0xf] 0
  %1246 = vst [vmem:[#allocation2 + $0x348] sm:$0xff] 0
  %1247 = vst [vmem:[#allocation2 + $0x350] sm:$0xf] 0
  %1248 = vst [vmem:[#allocation2 + $0x354] sm:$0xff] 0
  %1249 = vst [vmem:[#allocation2 + $0x35c] sm:$0xf] 0
  %1250 = vst [vmem:[#allocation2 + $0x360] sm:$0xff] 0
  %1251 = vst [vmem:[#allocation2 + $0x368] sm:$0xf] 0
  %1252 = vst [vmem:[#allocation2 + $0x36c] sm:$0xff] 0
  %1253 = vst [vmem:[#allocation2 + $0x374] sm:$0xf] 0
  %1254 = vst [vmem:[#allocation2 + $0x378] sm:$0xff] 0
  %1255 = vst [vmem:[#allocation2 + $0x380] sm:$0xf] 0
  %1256 = vst [vmem:[#allocation2 + $0x384] sm:$0xff] 0
  %1257 = vst [vmem:[#allocation2 + $0x38c] sm:$0xf] 0
  %1258 = vst [vmem:[#allocation2 + $0x390] sm:$0xff] 0
  %1259 = vst [vmem:[#allocation2 + $0x398] sm:$0xf] 0
  %1260 = vst [vmem:[#allocation2 + $0x39c] sm:$0xff] 0
  %1261 = vst [vmem:[#allocation2 + $0x3a4] sm:$0xf] 0
  %1262 = vst [vmem:[#allocation2 + $0x3a8] sm:$0xff] 0
  %1263 = vst [vmem:[#allocation2 + $0x3b0] sm:$0xf] 0
  %1264 = vst [vmem:[#allocation2 + $0x3b4] sm:$0xff] 0
  %1265 = vst [vmem:[#allocation2 + $0x3bc] sm:$0xf] 0
  %1266 = vst [vmem:[#allocation2 + $0x3c0] sm:$0xff] 0
  %1267 = vst [vmem:[#allocation2 + $0x3c8] sm:$0xf] 0
  %1268 = vst [vmem:[#allocation2 + $0x3cc] sm:$0xff] 0
  %1269 = vst [vmem:[#allocation2 + $0x3d4] sm:$0xf] 0
  %1270 = vst [vmem:[#allocation2 + $0x3d8] sm:$0xff] 0
  %1271 = vst [vmem:[#allocation2 + $0x3e0] sm:$0xf] 0
  %1272 = vst [vmem:[#allocation2 + $0x3e4] sm:$0xff] 0
  %1273 = vst [vmem:[#allocation2 + $0x3ec] sm:$0xf] 0
  %1274 = vst [vmem:[#allocation2 + $0x3f0] sm:$0xff] 0
  %1275 = vst [vmem:[#allocation2 + $0x3f8] sm:$0xf] 0
  %1276 = vst [vmem:[#allocation2 + $0x3fc] sm:$0xff] 0
  %1277 = vst [vmem:[#allocation2 + $0x404] sm:$0xf] 0
  %1278 = vst [vmem:[#allocation2 + $0x408] sm:$0xff] 0
  %1279 = vst [vmem:[#allocation2 + $0x410] sm:$0xf] 0
  %v1281 = vunpack.c.l.b16 %v1074
  %v1282 = vunpack.c.h.b16 %v1074
  %v1283 = vpack.c.b16 %v1281, %v1281
  %v1284 = vpack.c.b16 %v1282, %v1282
  %vm1285 = vsmask.f32 1280
  %vm1286 = vsmask.f32 5392
  %vm1287 = vmor %vm1285, %vm1286
  %v1289 = vshrl.u32 %v1283, 16
  %v1291 = vrot.slane %v1289, 6
  %v1292 = vshll.u32 %v1283, 16
  %v1294 = vrot.slane %v1292, 7
  %v1295 = vor.u32 %v1291, %v1294
  %v1296 = vrot.slane %v1295, 4
  %v1298 = vshrl.u32 %v1284, 16
  %v1300 = vrot.slane %v1298, 6
  %v1301 = vshll.u32 %v1284, 16
  %v1303 = vrot.slane %v1301, 7
  %v1304 = vor.u32 %v1300, %v1303
  %v1305 = vsel %vm1287, %v1296, %v1304
  %v1306 = vrot.slane %v1304, 4
  %vm1310 = vcmask 1043457
  %vm1311 = vsmask.f32 7942
  %vm1312 = vmand %vm1310, %vm1311
  %v1313 = vld [vmem:[#allocation2 + $0x40] sm:$0xe]
  %v1314 = vsel %vm1312, %v1295, %v1313
  %1315 = vst [vmem:[#allocation2 + $0x40] sm:$0xe] %v1314
  %1316 = vst [vmem:[#allocation2 + $0x4c] sm:$0xf] %v1305
  %vm1317 = vcmask 1041408
  %vm1318 = vmand %vm1317, %vm1285
  %v1319 = vld [vmem:[#allocation2 + $0x58] sm:$0x3]
  %v1320 = vsel %vm1318, %v1306, %v1319
  %1321 = vst [vmem:[#allocation2 + $0x58] sm:$0x3] %v1320
  %vm1322 = vcmask 1045508
  %vm1323 = vmor %vm1317, %vm1322
  %v1324 = vrot.slane %v1283, 6
  %v1325 = vrot.slane %v1324, 4
  %v1326 = vrot.slane %v1284, 6
  %v1327 = vsel %vm1323, %v1325, %v1326
  %v1328 = vrot.slane %v1326, 4
  %1332 = vst [vmem:[#allocation2 + $0x3c] sm:$0xc] %v1324
  %1333 = vst [vmem:[#allocation2 + $0x48] sm:$0xf] %v1327
  %1334 = vst [vmem:[#allocation2 + $0x54] sm:$0x3] %v1328
  %vm1335 = vcmask 1040384
  %vm1336 = vcmask 1044484
  %vm1337 = vmor %vm1335, %vm1336
  %v1338 = vrot.slane %v1283, 7
  %v1339 = vrot.slane %v1338, 4
  %v1340 = vrot.slane %v1284, 7
  %v1341 = vsel %vm1337, %v1339, %v1340
  %v1342 = vrot.slane %v1340, 4
  %1346 = vst [vmem:[#allocation2 + $0x44] sm:$0xe] %v1338
  %1347 = vst [vmem:[#allocation2 + $0x50] sm:$0xf] %v1341
  %1348 = vst [vmem:[#allocation2 + $0x5c] sm:$0x1] %v1342
  %v1350 = vunpack.c.l.b16 %v1075
  %v1351 = vunpack.c.h.b16 %v1075
  %v1352 = vpack.c.b16 %v1350, %v1350
  %v1353 = vpack.c.b16 %v1351, %v1351
  %vm1354 = vsmask.f32 2304
  %vm1355 = vsmask.f32 6416
  %vm1356 = vmor %vm1354, %vm1355
  %v1358 = vshrl.u32 %v1352, 16
  %v1360 = vrot.slane %v1358, 5
  %v1361 = vshll.u32 %v1352, 16
  %v1363 = vrot.slane %v1361, 6
  %v1364 = vor.u32 %v1360, %v1363
  %v1365 = vrot.slane %v1364, 4
  %v1367 = vshrl.u32 %v1353, 16
  %v1369 = vrot.slane %v1367, 5
  %v1370 = vshll.u32 %v1353, 16
  %v1372 = vrot.slane %v1370, 6
  %v1373 = vor.u32 %v1369, %v1372
  %v1374 = vsel %vm1356, %v1365, %v1373
  %v1375 = vrot.slane %v1373, 4
  %vm1379 = vcmask 1043458
  %vm1380 = vsmask.f32 7946
  %vm1381 = vmand %vm1379, %vm1380
  %v1382 = vld [vmem:[#allocation2 + $0x58] sm:$0xc]
  %v1383 = vsel %vm1381, %v1364, %v1382
  %1384 = vst [vmem:[#allocation2 + $0x58] sm:$0xc] %v1383
  %1385 = vst [vmem:[#allocation2 + $0x64] sm:$0xf] %v1374
  %vm1386 = vcmask 1042432
  %vm1387 = vmand %vm1386, %vm1354
  %v1388 = vld [vmem:[#allocation2 + $0x70] sm:$0x7]
  %v1389 = vsel %vm1387, %v1375, %v1388
  %1390 = vst [vmem:[#allocation2 + $0x70] sm:$0x7] %v1389
  %vm1391 = vcmask 1046532
  %vm1392 = vmor %vm1386, %vm1391
  %v1393 = vrot.slane %v1352, 5
  %v1394 = vrot.slane %v1393, 4
  %v1395 = vrot.slane %v1353, 5
  %v1396 = vsel %vm1392, %v1394, %v1395
  %v1397 = vrot.slane %v1395, 4
  %1401 = vst [vmem:[#allocation2 + $0x54] sm:$0x8] %v1393
  %1402 = vst [vmem:[#allocation2 + $0x60] sm:$0xf] %v1396
  %1403 = vst [vmem:[#allocation2 + $0x6c] sm:$0x7] %v1397
  %v1404 = vrot.slane %v1352, 6
  %v1405 = vrot.slane %v1404, 4
  %v1406 = vrot.slane %v1353, 6
  %v1407 = vsel %vm1323, %v1405, %v1406
  %v1408 = vrot.slane %v1406, 4
  %1412 = vst [vmem:[#allocation2 + $0x5c] sm:$0xc] %v1404
  %1413 = vst [vmem:[#allocation2 + $0x68] sm:$0xf] %v1407
  %1414 = vst [vmem:[#allocation2 + $0x74] sm:$0x3] %v1408
  %v1416 = vunpack.c.l.b16 %v1076
  %v1417 = vunpack.c.h.b16 %v1076
  %v1418 = vpack.c.b16 %v1416, %v1416
  %v1419 = vpack.c.b16 %v1417, %v1417
  %vm1420 = vsmask.f32 3328
  %vm1421 = vsmask.f32 7440
  %vm1422 = vmor %vm1420, %vm1421
  %v1424 = vshll.u32 %v1418, 16
  %v1426 = vrot.slane %v1424, 5
  %v1427 = vshrl.u32 %v1418, 16
  %v1429 = vrot.slane %v1427, 4
  %v1430 = vor.u32 %v1429, %v1426
  %v1431 = vrot.slane %v1430, 4
  %v1433 = vshll.u32 %v1419, 16
  %v1435 = vrot.slane %v1433, 5
  %v1436 = vsel %vm1422, %v1431, %v1435
  %v1437 = vshrl.u32 %v1419, 16
  %v1439 = vrot.slane %v1437, 4
  %v1440 = vor.u32 %v1439, %v1435
  %v1441 = vrot.slane %v1440, 4
  %vm1445 = vcmask 1043459
  %vm1446 = vsmask.f32 7950
  %vm1447 = vmand %vm1445, %vm1446
  %v1448 = vld [vmem:[#allocation2 + $0x70] sm:$0x8]
  %v1449 = vsel %vm1447, %v1426, %v1448
  %1450 = vst [vmem:[#allocation2 + $0x70] sm:$0x8] %v1449
  %1451 = vst [vmem:[#allocation2 + $0x7c] sm:$0xf] %v1436
  %vm1452 = vcmask 1043456
  %vm1453 = vmand %vm1452, %vm1420
  %v1454 = vld [vmem:[#allocation2 + $0x88] sm:$0xf]
  %v1455 = vsel %vm1453, %v1441, %v1454
  %1456 = vst [vmem:[#allocation2 + $0x88] sm:$0xf] %v1455
  %1459 = vst [vmem:[#allocation2 + $0x78] sm:$0xf] %v1418
  %1460 = vst [vmem:[#allocation2 + $0x84] sm:$0xf] %v1419
  %v1461 = vrot.slane %v1418, 5
  %v1462 = vrot.slane %v1461, 4
  %v1463 = vrot.slane %v1419, 5
  %v1464 = vsel %vm1392, %v1462, %v1463
  %v1465 = vrot.slane %v1463, 4
  %1469 = vst [vmem:[#allocation2 + $0x74] sm:$0x8] %v1461
  %1470 = vst [vmem:[#allocation2 + $0x80] sm:$0xf] %v1464
  %1471 = vst [vmem:[#allocation2 + $0x8c] sm:$0x7] %v1465
  %v1473 = vunpack.c.l.b16 %v1077
  %v1474 = vunpack.c.h.b16 %v1077
  %v1475 = vpack.c.b16 %v1473, %v1473
  %v1476 = vpack.c.b16 %v1474, %v1474
  %vm1477 = vsmask.f32 256
  %vm1478 = vsmask.f32 4368
  %vm1479 = vmor %vm1477, %vm1478
  %v1481 = vshrl.u32 %v1475, 16
  %v1483 = vrot.slane %v1481, 7
  %v1484 = vshll.u32 %v1475, 16
  %v1486 = vor.u32 %v1483, %v1484
  %v1487 = vrot.slane %v1483, 4
  %v1489 = vshrl.u32 %v1476, 16
  %v1491 = vrot.slane %v1489, 7
  %v1492 = vshll.u32 %v1476, 16
  %v1494 = vor.u32 %v1491, %v1492
  %v1495 = vsel %vm1479, %v1487, %v1494
  %v1496 = vrot.slane %v1491, 4
  %vm1500 = vsmask.f32 7938
  %vm1501 = vmand %vm1452, %vm1500
  %v1502 = vld [vmem:[#allocation2 + $0x94] sm:$0xf]
  %v1503 = vsel %vm1501, %v1486, %v1502
  %1504 = vst [vmem:[#allocation2 + $0x94] sm:$0xf] %v1503
  %1505 = vst [vmem:[#allocation2 + $0xa0] sm:$0xf] %v1495
  %vm1506 = vmand %vm1335, %vm1477
  %v1507 = vld [vmem:[#allocation2 + $0xac] sm:$0x1]
  %v1508 = vsel %vm1506, %v1496, %v1507
  %1509 = vst [vmem:[#allocation2 + $0xac] sm:$0x1] %v1508
  %v1510 = vrot.slane %v1475, 7
  %v1511 = vrot.slane %v1510, 4
  %v1512 = vrot.slane %v1476, 7
  %v1513 = vsel %vm1337, %v1511, %v1512
  %v1514 = vrot.slane %v1512, 4
  %1518 = vst [vmem:[#allocation2 + $0x90] sm:$0xe] %v1510
  %1519 = vst [vmem:[#allocation2 + $0x9c] sm:$0xf] %v1513
  %1520 = vst [vmem:[#allocation2 + $0xa8] sm:$0x1] %v1514
  %1523 = vst [vmem:[#allocation2 + $0x98] sm:$0xf] %v1475
  %1524 = vst [vmem:[#allocation2 + $0xa4] sm:$0xf] %v1476
  %v1526 = vunpack.c.l.b16 %v1078
  %v1527 = vunpack.c.h.b16 %v1078
  %v1528 = vpack.c.b16 %v1526, %v1526
  %v1529 = vpack.c.b16 %v1527, %v1527
  %v1531 = vshrl.u32 %v1528, 16
  %v1533 = vrot.slane %v1531, 6
  %v1534 = vshll.u32 %v1528, 16
  %v1536 = vrot.slane %v1534, 7
  %v1537 = vor.u32 %v1533, %v1536
  %v1538 = vrot.slane %v1537, 4
  %v1540 = vshrl.u32 %v1529, 16
  %v1542 = vrot.slane %v1540, 6
  %v1543 = vshll.u32 %v1529, 16
  %v1545 = vrot.slane %v1543, 7
  %v1546 = vor.u32 %v1542, %v1545
  %v1547 = vsel %vm1287, %v1538, %v1546
  %v1548 = vrot.slane %v1546, 4
  %v1552 = vld [vmem:[#allocation2 + $0xac] sm:$0xe]
  %v1553 = vsel %vm1312, %v1537, %v1552
  %1554 = vst [vmem:[#allocation2 + $0xac] sm:$0xe] %v1553
  %1555 = vst [vmem:[#allocation2 + $0xb8] sm:$0xf] %v1547
  %v1556 = vld [vmem:[#allocation2 + $0xc4] sm:$0x3]
  %v1557 = vsel %vm1318, %v1548, %v1556
  %1558 = vst [vmem:[#allocation2 + $0xc4] sm:$0x3] %v1557
  %v1559 = vrot.slane %v1528, 6
  %v1560 = vrot.slane %v1559, 4
  %v1561 = vrot.slane %v1529, 6
  %v1562 = vsel %vm1323, %v1560, %v1561
  %v1563 = vrot.slane %v1561, 4
  %1567 = vst [vmem:[#allocation2 + $0xa8] sm:$0xc] %v1559
  %1568 = vst [vmem:[#allocation2 + $0xb4] sm:$0xf] %v1562
  %1569 = vst [vmem:[#allocation2 + $0xc0] sm:$0x3] %v1563
  %v1570 = vrot.slane %v1528, 7
  %v1571 = vrot.slane %v1570, 4
  %v1572 = vrot.slane %v1529, 7
  %v1573 = vsel %vm1337, %v1571, %v1572
  %v1574 = vrot.slane %v1572, 4
  %1578 = vst [vmem:[#allocation2 + $0xb0] sm:$0xe] %v1570
  %1579 = vst [vmem:[#allocation2 + $0xbc] sm:$0xf] %v1573
  %1580 = vst [vmem:[#allocation2 + $0xc8] sm:$0x1] %v1574
  %v1582 = vunpack.c.l.b16 %v1079
  %v1583 = vunpack.c.h.b16 %v1079
  %v1584 = vpack.c.b16 %v1582, %v1582
  %v1585 = vpack.c.b16 %v1583, %v1583
  %v1587 = vshrl.u32 %v1584, 16
  %v1589 = vrot.slane %v1587, 5
  %v1590 = vshll.u32 %v1584, 16
  %v1592 = vrot.slane %v1590, 6
  %v1593 = vor.u32 %v1589, %v1592
  %v1594 = vrot.slane %v1593, 4
  %v1596 = vshrl.u32 %v1585, 16
  %v1598 = vrot.slane %v1596, 5
  %v1599 = vshll.u32 %v1585, 16
  %v1601 = vrot.slane %v1599, 6
  %v1602 = vor.u32 %v1598, %v1601
  %v1603 = vsel %vm1356, %v1594, %v1602
  %v1604 = vrot.slane %v1602, 4
  %v1608 = vld [vmem:[#allocation2 + $0xc4] sm:$0xc]
  %v1609 = vsel %vm1381, %v1593, %v1608
  %1610 = vst [vmem:[#allocation2 + $0xc4] sm:$0xc] %v1609
  %1611 = vst [vmem:[#allocation2 + $0xd0] sm:$0xf] %v1603
  %v1612 = vld [vmem:[#allocation2 + $0xdc] sm:$0x7]
  %v1613 = vsel %vm1387, %v1604, %v1612
  %1614 = vst [vmem:[#allocation2 + $0xdc] sm:$0x7] %v1613
  %v1615 = vrot.slane %v1584, 5
  %v1616 = vrot.slane %v1615, 4
  %v1617 = vrot.slane %v1585, 5
  %v1618 = vsel %vm1392, %v1616, %v1617
  %v1619 = vrot.slane %v1617, 4
  %1623 = vst [vmem:[#allocation2 + $0xc0] sm:$0x8] %v1615
  %1624 = vst [vmem:[#allocation2 + $0xcc] sm:$0xf] %v1618
  %1625 = vst [vmem:[#allocation2 + $0xd8] sm:$0x7] %v1619
  %v1626 = vrot.slane %v1584, 6
  %v1627 = vrot.slane %v1626, 4
  %v1628 = vrot.slane %v1585, 6
  %v1629 = vsel %vm1323, %v1627, %v1628
  %v1630 = vrot.slane %v1628, 4
  %1634 = vst [vmem:[#allocation2 + $0xc8] sm:$0xc] %v1626
  %1635 = vst [vmem:[#allocation2 + $0xd4] sm:$0xf] %v1629
  %1636 = vst [vmem:[#allocation2 + $0xe0] sm:$0x3] %v1630
  %v1638 = vunpack.c.l.b16 %v1080
  %v1639 = vunpack.c.h.b16 %v1080
  %v1640 = vpack.c.b16 %v1638, %v1638
  %v1641 = vpack.c.b16 %v1639, %v1639
  %v1643 = vshll.u32 %v1640, 16
  %v1645 = vrot.slane %v1643, 5
  %v1646 = vshrl.u32 %v1640, 16
  %v1648 = vrot.slane %v1646, 4
  %v1649 = vor.u32 %v1648, %v1645
  %v1650 = vrot.slane %v1649, 4
  %v1652 = vshll.u32 %v1641, 16
  %v1654 = vrot.slane %v1652, 5
  %v1655 = vsel %vm1422, %v1650, %v1654
  %v1656 = vshrl.u32 %v1641, 16
  %v1658 = vrot.slane %v1656, 4
  %v1659 = vor.u32 %v1658, %v1654
  %v1660 = vrot.slane %v1659, 4
  %v1664 = vld [vmem:[#allocation2 + $0xdc] sm:$0x8]
  %v1665 = vsel %vm1447, %v1645, %v1664
  %1666 = vst [vmem:[#allocation2 + $0xdc] sm:$0x8] %v1665
  %1667 = vst [vmem:[#allocation2 + $0xe8] sm:$0xf] %v1655
  %v1668 = vld [vmem:[#allocation2 + $0xf4] sm:$0xf]
  %v1669 = vsel %vm1453, %v1660, %v1668
  %1670 = vst [vmem:[#allocation2 + $0xf4] sm:$0xf] %v1669
  %1673 = vst [vmem:[#allocation2 + $0xe4] sm:$0xf] %v1640
  %1674 = vst [vmem:[#allocation2 + $0xf0] sm:$0xf] %v1641
  %v1675 = vrot.slane %v1640, 5
  %v1676 = vrot.slane %v1675, 4
  %v1677 = vrot.slane %v1641, 5
  %v1678 = vsel %vm1392, %v1676, %v1677
  %v1679 = vrot.slane %v1677, 4
  %1683 = vst [vmem:[#allocation2 + $0xe0] sm:$0x8] %v1675
  %1684 = vst [vmem:[#allocation2 + $0xec] sm:$0xf] %v1678
  %1685 = vst [vmem:[#allocation2 + $0xf8] sm:$0x7] %v1679
  %v1687 = vunpack.c.l.b16 %v1081
  %v1688 = vunpack.c.h.b16 %v1081
  %v1689 = vpack.c.b16 %v1687, %v1687
  %v1690 = vpack.c.b16 %v1688, %v1688
  %v1692 = vshrl.u32 %v1689, 16
  %v1694 = vrot.slane %v1692, 7
  %v1695 = vshll.u32 %v1689, 16
  %v1697 = vor.u32 %v1694, %v1695
  %v1698 = vrot.slane %v1694, 4
  %v1700 = vshrl.u32 %v1690, 16
  %v1702 = vrot.slane %v1700, 7
  %v1703 = vshll.u32 %v1690, 16
  %v1705 = vor.u32 %v1702, %v1703
  %v1706 = vsel %vm1479, %v1698, %v1705
  %v1707 = vrot.slane %v1702, 4
  %v1711 = vld [vmem:[#allocation2 + $0x100] sm:$0xf]
  %v1712 = vsel %vm1501, %v1697, %v1711
  %1713 = vst [vmem:[#allocation2 + $0x100] sm:$0xf] %v1712
  %1714 = vst [vmem:[#allocation2 + $0x10c] sm:$0xf] %v1706
  %v1715 = vld [vmem:[#allocation2 + $0x118] sm:$0x1]
  %v1716 = vsel %vm1506, %v1707, %v1715
  %1717 = vst [vmem:[#allocation2 + $0x118] sm:$0x1] %v1716
  %v1718 = vrot.slane %v1689, 7
  %v1719 = vrot.slane %v1718, 4
  %v1720 = vrot.slane %v1690, 7
  %v1721 = vsel %vm1337, %v1719, %v1720
  %v1722 = vrot.slane %v1720, 4
  %1726 = vst [vmem:[#allocation2 + $0xfc] sm:$0xe] %v1718
  %1727 = vst [vmem:[#allocation2 + $0x108] sm:$0xf] %v1721
  %1728 = vst [vmem:[#allocation2 + $0x114] sm:$0x1] %v1722
  %1731 = vst [vmem:[#allocation2 + $0x104] sm:$0xf] %v1689
  %1732 = vst [vmem:[#allocation2 + $0x110] sm:$0xf] %v1690
  %v1734 = vunpack.c.l.b16 %v1082
  %v1735 = vunpack.c.h.b16 %v1082
  %v1736 = vpack.c.b16 %v1734, %v1734
  %v1737 = vpack.c.b16 %v1735, %v1735
  %v1739 = vshrl.u32 %v1736, 16
  %v1741 = vrot.slane %v1739, 6
  %v1742 = vshll.u32 %v1736, 16
  %v1744 = vrot.slane %v1742, 7
  %v1745 = vor.u32 %v1741, %v1744
  %v1746 = vrot.slane %v1745, 4
  %v1748 = vshrl.u32 %v1737, 16
  %v1750 = vrot.slane %v1748, 6
  %v1751 = vshll.u32 %v1737, 16
  %v1753 = vrot.slane %v1751, 7
  %v1754 = vor.u32 %v1750, %v1753
  %v1755 = vsel %vm1287, %v1746, %v1754
  %v1756 = vrot.slane %v1754, 4
  %v1760 = vld [vmem:[#allocation2 + $0x118] sm:$0xe]
  %v1761 = vsel %vm1312, %v1745, %v1760
  %1762 = vst [vmem:[#allocation2 + $0x118] sm:$0xe] %v1761
  %1763 = vst [vmem:[#allocation2 + $0x124] sm:$0xf] %v1755
  %v1764 = vld [vmem:[#allocation2 + $0x130] sm:$0x3]
  %v1765 = vsel %vm1318, %v1756, %v1764
  %1766 = vst [vmem:[#allocation2 + $0x130] sm:$0x3] %v1765
  %v1767 = vrot.slane %v1736, 6
  %v1768 = vrot.slane %v1767, 4
  %v1769 = vrot.slane %v1737, 6
  %v1770 = vsel %vm1323, %v1768, %v1769
  %v1771 = vrot.slane %v1769, 4
  %1775 = vst [vmem:[#allocation2 + $0x114] sm:$0xc] %v1767
  %1776 = vst [vmem:[#allocation2 + $0x120] sm:$0xf] %v1770
  %1777 = vst [vmem:[#allocation2 + $0x12c] sm:$0x3] %v1771
  %v1778 = vrot.slane %v1736, 7
  %v1779 = vrot.slane %v1778, 4
  %v1780 = vrot.slane %v1737, 7
  %v1781 = vsel %vm1337, %v1779, %v1780
  %v1782 = vrot.slane %v1780, 4
  %1786 = vst [vmem:[#allocation2 + $0x11c] sm:$0xe] %v1778
  %1787 = vst [vmem:[#allocation2 + $0x128] sm:$0xf] %v1781
  %1788 = vst [vmem:[#allocation2 + $0x134] sm:$0x1] %v1782
  %v1790 = vunpack.c.l.b16 %v1083
  %v1791 = vunpack.c.h.b16 %v1083
  %v1792 = vpack.c.b16 %v1790, %v1790
  %v1793 = vpack.c.b16 %v1791, %v1791
  %v1795 = vshrl.u32 %v1792, 16
  %v1797 = vrot.slane %v1795, 5
  %v1798 = vshll.u32 %v1792, 16
  %v1800 = vrot.slane %v1798, 6
  %v1801 = vor.u32 %v1797, %v1800
  %v1802 = vrot.slane %v1801, 4
  %v1804 = vshrl.u32 %v1793, 16
  %v1806 = vrot.slane %v1804, 5
  %v1807 = vshll.u32 %v1793, 16
  %v1809 = vrot.slane %v1807, 6
  %v1810 = vor.u32 %v1806, %v1809
  %v1811 = vsel %vm1356, %v1802, %v1810
  %v1812 = vrot.slane %v1810, 4
  %v1816 = vld [vmem:[#allocation2 + $0x130] sm:$0xc]
  %v1817 = vsel %vm1381, %v1801, %v1816
  %1818 = vst [vmem:[#allocation2 + $0x130] sm:$0xc] %v1817
  %1819 = vst [vmem:[#allocation2 + $0x13c] sm:$0xf] %v1811
  %v1820 = vld [vmem:[#allocation2 + $0x148] sm:$0x7]
  %v1821 = vsel %vm1387, %v1812, %v1820
  %1822 = vst [vmem:[#allocation2 + $0x148] sm:$0x7] %v1821
  %v1823 = vrot.slane %v1792, 5
  %v1824 = vrot.slane %v1823, 4
  %v1825 = vrot.slane %v1793, 5
  %v1826 = vsel %vm1392, %v1824, %v1825
  %v1827 = vrot.slane %v1825, 4
  %1831 = vst [vmem:[#allocation2 + $0x12c] sm:$0x8] %v1823
  %1832 = vst [vmem:[#allocation2 + $0x138] sm:$0xf] %v1826
  %1833 = vst [vmem:[#allocation2 + $0x144] sm:$0x7] %v1827
  %v1834 = vrot.slane %v1792, 6
  %v1835 = vrot.slane %v1834, 4
  %v1836 = vrot.slane %v1793, 6
  %v1837 = vsel %vm1323, %v1835, %v1836
  %v1838 = vrot.slane %v1836, 4
  %1842 = vst [vmem:[#allocation2 + $0x134] sm:$0xc] %v1834
  %1843 = vst [vmem:[#allocation2 + $0x140] sm:$0xf] %v1837
  %1844 = vst [vmem:[#allocation2 + $0x14c] sm:$0x3] %v1838
  %v1846 = vunpack.c.l.b16 %v1084
  %v1847 = vunpack.c.h.b16 %v1084
  %v1848 = vpack.c.b16 %v1846, %v1846
  %v1849 = vpack.c.b16 %v1847, %v1847
  %v1851 = vshll.u32 %v1848, 16
  %v1853 = vrot.slane %v1851, 5
  %v1854 = vshrl.u32 %v1848, 16
  %v1856 = vrot.slane %v1854, 4
  %v1857 = vor.u32 %v1856, %v1853
  %v1858 = vrot.slane %v1857, 4
  %v1860 = vshll.u32 %v1849, 16
  %v1862 = vrot.slane %v1860, 5
  %v1863 = vsel %vm1422, %v1858, %v1862
  %v1864 = vshrl.u32 %v1849, 16
  %v1866 = vrot.slane %v1864, 4
  %v1867 = vor.u32 %v1866, %v1862
  %v1868 = vrot.slane %v1867, 4
  %v1872 = vld [vmem:[#allocation2 + $0x148] sm:$0x8]
  %v1873 = vsel %vm1447, %v1853, %v1872
  %1874 = vst [vmem:[#allocation2 + $0x148] sm:$0x8] %v1873
  %1875 = vst [vmem:[#allocation2 + $0x154] sm:$0xf] %v1863
  %v1876 = vld [vmem:[#allocation2 + $0x160] sm:$0xf]
  %v1877 = vsel %vm1453, %v1868, %v1876
  %1878 = vst [vmem:[#allocation2 + $0x160] sm:$0xf] %v1877
  %1881 = vst [vmem:[#allocation2 + $0x150] sm:$0xf] %v1848
  %1882 = vst [vmem:[#allocation2 + $0x15c] sm:$0xf] %v1849
  %v1883 = vrot.slane %v1848, 5
  %v1884 = vrot.slane %v1883, 4
  %v1885 = vrot.slane %v1849, 5
  %v1886 = vsel %vm1392, %v1884, %v1885
  %v1887 = vrot.slane %v1885, 4
  %1891 = vst [vmem:[#allocation2 + $0x14c] sm:$0x8] %v1883
  %1892 = vst [vmem:[#allocation2 + $0x158] sm:$0xf] %v1886
  %1893 = vst [vmem:[#allocation2 + $0x164] sm:$0x7] %v1887
  %v1895 = vunpack.c.l.b16 %v1085
  %v1896 = vunpack.c.h.b16 %v1085
  %v1897 = vpack.c.b16 %v1895, %v1895
  %v1898 = vpack.c.b16 %v1896, %v1896
  %v1900 = vshrl.u32 %v1897, 16
  %v1902 = vrot.slane %v1900, 7
  %v1903 = vshll.u32 %v1897, 16
  %v1905 = vor.u32 %v1902, %v1903
  %v1906 = vrot.slane %v1902, 4
  %v1908 = vshrl.u32 %v1898, 16
  %v1910 = vrot.slane %v1908, 7
  %v1911 = vshll.u32 %v1898, 16
  %v1913 = vor.u32 %v1910, %v1911
  %v1914 = vsel %vm1479, %v1906, %v1913
  %v1915 = vrot.slane %v1910, 4
  %v1919 = vld [vmem:[#allocation2 + $0x16c] sm:$0xf]
  %v1920 = vsel %vm1501, %v1905, %v1919
  %1921 = vst [vmem:[#allocation2 + $0x16c] sm:$0xf] %v1920
  %1922 = vst [vmem:[#allocation2 + $0x178] sm:$0xf] %v1914
  %v1923 = vld [vmem:[#allocation2 + $0x184] sm:$0x1]
  %v1924 = vsel %vm1506, %v1915, %v1923
  %1925 = vst [vmem:[#allocation2 + $0x184] sm:$0x1] %v1924
  %v1926 = vrot.slane %v1897, 7
  %v1927 = vrot.slane %v1926, 4
  %v1928 = vrot.slane %v1898, 7
  %v1929 = vsel %vm1337, %v1927, %v1928
  %v1930 = vrot.slane %v1928, 4
  %1934 = vst [vmem:[#allocation2 + $0x168] sm:$0xe] %v1926
  %1935 = vst [vmem:[#allocation2 + $0x174] sm:$0xf] %v1929
  %1936 = vst [vmem:[#allocation2 + $0x180] sm:$0x1] %v1930
  %1939 = vst [vmem:[#allocation2 + $0x170] sm:$0xf] %v1897
  %1940 = vst [vmem:[#allocation2 + $0x17c] sm:$0xf] %v1898
  %v1942 = vunpack.c.l.b16 %v1086
  %v1943 = vunpack.c.h.b16 %v1086
  %v1944 = vpack.c.b16 %v1942, %v1942
  %v1945 = vpack.c.b16 %v1943, %v1943
  %v1947 = vshrl.u32 %v1944, 16
  %v1949 = vrot.slane %v1947, 6
  %v1950 = vshll.u32 %v1944, 16
  %v1952 = vrot.slane %v1950, 7
  %v1953 = vor.u32 %v1949, %v1952
  %v1954 = vrot.slane %v1953, 4
  %v1956 = vshrl.u32 %v1945, 16
  %v1958 = vrot.slane %v1956, 6
  %v1959 = vshll.u32 %v1945, 16
  %v1961 = vrot.slane %v1959, 7
  %v1962 = vor.u32 %v1958, %v1961
  %v1963 = vsel %vm1287, %v1954, %v1962
  %v1964 = vrot.slane %v1962, 4
  %v1968 = vld [vmem:[#allocation2 + $0x184] sm:$0xe]
  %v1969 = vsel %vm1312, %v1953, %v1968
  %1970 = vst [vmem:[#allocation2 + $0x184] sm:$0xe] %v1969
  %1971 = vst [vmem:[#allocation2 + $0x190] sm:$0xf] %v1963
  %v1972 = vld [vmem:[#allocation2 + $0x19c] sm:$0x3]
  %v1973 = vsel %vm1318, %v1964, %v1972
  %1974 = vst [vmem:[#allocation2 + $0x19c] sm:$0x3] %v1973
  %v1975 = vrot.slane %v1944, 6
  %v1976 = vrot.slane %v1975, 4
  %v1977 = vrot.slane %v1945, 6
  %v1978 = vsel %vm1323, %v1976, %v1977
  %v1979 = vrot.slane %v1977, 4
  %1983 = vst [vmem:[#allocation2 + $0x180] sm:$0xc] %v1975
  %1984 = vst [vmem:[#allocation2 + $0x18c] sm:$0xf] %v1978
  %1985 = vst [vmem:[#allocation2 + $0x198] sm:$0x3] %v1979
  %v1986 = vrot.slane %v1944, 7
  %v1987 = vrot.slane %v1986, 4
  %v1988 = vrot.slane %v1945, 7
  %v1989 = vsel %vm1337, %v1987, %v1988
  %v1990 = vrot.slane %v1988, 4
  %1994 = vst [vmem:[#allocation2 + $0x188] sm:$0xe] %v1986
  %1995 = vst [vmem:[#allocation2 + $0x194] sm:$0xf] %v1989
  %1996 = vst [vmem:[#allocation2 + $0x1a0] sm:$0x1] %v1990
  %v1998 = vunpack.c.l.b16 %v1087
  %v1999 = vunpack.c.h.b16 %v1087
  %v2000 = vpack.c.b16 %v1998, %v1998
  %v2001 = vpack.c.b16 %v1999, %v1999
  %v2003 = vshrl.u32 %v2000, 16
  %v2005 = vrot.slane %v2003, 5
  %v2006 = vshll.u32 %v2000, 16
  %v2008 = vrot.slane %v2006, 6
  %v2009 = vor.u32 %v2005, %v2008
  %v2010 = vrot.slane %v2009, 4
  %v2012 = vshrl.u32 %v2001, 16
  %v2014 = vrot.slane %v2012, 5
  %v2015 = vshll.u32 %v2001, 16
  %v2017 = vrot.slane %v2015, 6
  %v2018 = vor.u32 %v2014, %v2017
  %v2019 = vsel %vm1356, %v2010, %v2018
  %v2020 = vrot.slane %v2018, 4
  %v2024 = vld [vmem:[#allocation2 + $0x19c] sm:$0xc]
  %v2025 = vsel %vm1381, %v2009, %v2024
  %2026 = vst [vmem:[#allocation2 + $0x19c] sm:$0xc] %v2025
  %2027 = vst [vmem:[#allocation2 + $0x1a8] sm:$0xf] %v2019
  %v2028 = vld [vmem:[#allocation2 + $0x1b4] sm:$0x7]
  %v2029 = vsel %vm1387, %v2020, %v2028
  %2030 = vst [vmem:[#allocation2 + $0x1b4] sm:$0x7] %v2029
  %v2031 = vrot.slane %v2000, 5
  %v2032 = vrot.slane %v2031, 4
  %v2033 = vrot.slane %v2001, 5
  %v2034 = vsel %vm1392, %v2032, %v2033
  %v2035 = vrot.slane %v2033, 4
  %2039 = vst [vmem:[#allocation2 + $0x198] sm:$0x8] %v2031
  %2040 = vst [vmem:[#allocation2 + $0x1a4] sm:$0xf] %v2034
  %2041 = vst [vmem:[#allocation2 + $0x1b0] sm:$0x7] %v2035
  %v2042 = vrot.slane %v2000, 6
  %v2043 = vrot.slane %v2042, 4
  %v2044 = vrot.slane %v2001, 6
  %v2045 = vsel %vm1323, %v2043, %v2044
  %v2046 = vrot.slane %v2044, 4
  %2050 = vst [vmem:[#allocation2 + $0x1a0] sm:$0xc] %v2042
  %2051 = vst [vmem:[#allocation2 + $0x1ac] sm:$0xf] %v2045
  %2052 = vst [vmem:[#allocation2 + $0x1b8] sm:$0x3] %v2046
  %v2054 = vunpack.c.l.b16 %v1088
  %v2055 = vunpack.c.h.b16 %v1088
  %v2056 = vpack.c.b16 %v2054, %v2054
  %v2057 = vpack.c.b16 %v2055, %v2055
  %v2059 = vshll.u32 %v2056, 16
  %v2061 = vrot.slane %v2059, 5
  %v2062 = vshrl.u32 %v2056, 16
  %v2064 = vrot.slane %v2062, 4
  %v2065 = vor.u32 %v2064, %v2061
  %v2066 = vrot.slane %v2065, 4
  %v2068 = vshll.u32 %v2057, 16
  %v2070 = vrot.slane %v2068, 5
  %v2071 = vsel %vm1422, %v2066, %v2070
  %v2072 = vshrl.u32 %v2057, 16
  %v2074 = vrot.slane %v2072, 4
  %v2075 = vor.u32 %v2074, %v2070
  %v2076 = vrot.slane %v2075, 4
  %v2080 = vld [vmem:[#allocation2 + $0x1b4] sm:$0x8]
  %v2081 = vsel %vm1447, %v2061, %v2080
  %2082 = vst [vmem:[#allocation2 + $0x1b4] sm:$0x8] %v2081
  %2083 = vst [vmem:[#allocation2 + $0x1c0] sm:$0xf] %v2071
  %v2084 = vld [vmem:[#allocation2 + $0x1cc] sm:$0xf]
  %v2085 = vsel %vm1453, %v2076, %v2084
  %2086 = vst [vmem:[#allocation2 + $0x1cc] sm:$0xf] %v2085
  %2089 = vst [vmem:[#allocation2 + $0x1bc] sm:$0xf] %v2056
  %2090 = vst [vmem:[#allocation2 + $0x1c8] sm:$0xf] %v2057
  %v2091 = vrot.slane %v2056, 5
  %v2092 = vrot.slane %v2091, 4
  %v2093 = vrot.slane %v2057, 5
  %v2094 = vsel %vm1392, %v2092, %v2093
  %v2095 = vrot.slane %v2093, 4
  %2099 = vst [vmem:[#allocation2 + $0x1b8] sm:$0x8] %v2091
  %2100 = vst [vmem:[#allocation2 + $0x1c4] sm:$0xf] %v2094
  %2101 = vst [vmem:[#allocation2 + $0x1d0] sm:$0x7] %v2095
  %v2103 = vunpack.c.l.b16 %v1089
  %v2104 = vunpack.c.h.b16 %v1089
  %v2105 = vpack.c.b16 %v2103, %v2103
  %v2106 = vpack.c.b16 %v2104, %v2104
  %v2108 = vshrl.u32 %v2105, 16
  %v2110 = vrot.slane %v2108, 7
  %v2111 = vshll.u32 %v2105, 16
  %v2113 = vor.u32 %v2110, %v2111
  %v2114 = vrot.slane %v2110, 4
  %v2116 = vshrl.u32 %v2106, 16
  %v2118 = vrot.slane %v2116, 7
  %v2119 = vshll.u32 %v2106, 16
  %v2121 = vor.u32 %v2118, %v2119
  %v2122 = vsel %vm1479, %v2114, %v2121
  %v2123 = vrot.slane %v2118, 4
  %v2127 = vld [vmem:[#allocation2 + $0x1d8] sm:$0xf]
  %v2128 = vsel %vm1501, %v2113, %v2127
  %2129 = vst [vmem:[#allocation2 + $0x1d8] sm:$0xf] %v2128
  %2130 = vst [vmem:[#allocation2 + $0x1e4] sm:$0xf] %v2122
  %v2131 = vld [vmem:[#allocation2 + $0x1f0] sm:$0x1]
  %v2132 = vsel %vm1506, %v2123, %v2131
  %2133 = vst [vmem:[#allocation2 + $0x1f0] sm:$0x1] %v2132
  %v2134 = vrot.slane %v2105, 7
  %v2135 = vrot.slane %v2134, 4
  %v2136 = vrot.slane %v2106, 7
  %v2137 = vsel %vm1337, %v2135, %v2136
  %v2138 = vrot.slane %v2136, 4
  %2142 = vst [vmem:[#allocation2 + $0x1d4] sm:$0xe] %v2134
  %2143 = vst [vmem:[#allocation2 + $0x1e0] sm:$0xf] %v2137
  %2144 = vst [vmem:[#allocation2 + $0x1ec] sm:$0x1] %v2138
  %2147 = vst [vmem:[#allocation2 + $0x1dc] sm:$0xf] %v2105
  %2148 = vst [vmem:[#allocation2 + $0x1e8] sm:$0xf] %v2106
  %v2150 = vunpack.c.l.b16 %v1090
  %v2151 = vunpack.c.h.b16 %v1090
  %v2152 = vpack.c.b16 %v2150, %v2150
  %v2153 = vpack.c.b16 %v2151, %v2151
  %v2155 = vshll.u32 %v2152, 16
  %v2157 = vrot.slane %v2155, 5
  %v2158 = vshrl.u32 %v2152, 16
  %v2160 = vrot.slane %v2158, 4
  %v2161 = vor.u32 %v2160, %v2157
  %v2162 = vrot.slane %v2161, 4
  %v2164 = vshll.u32 %v2153, 16
  %v2166 = vrot.slane %v2164, 5
  %v2167 = vsel %vm1422, %v2162, %v2166
  %v2168 = vshrl.u32 %v2153, 16
  %v2170 = vrot.slane %v2168, 4
  %v2171 = vor.u32 %v2170, %v2166
  %v2172 = vrot.slane %v2171, 4
  %v2176 = vld [vmem:[#allocation2 + $0x220] sm:$0x8]
  %v2177 = vsel %vm1447, %v2157, %v2176
  %2178 = vst [vmem:[#allocation2 + $0x220] sm:$0x8] %v2177
  %2179 = vst [vmem:[#allocation2 + $0x22c] sm:$0xf] %v2167
  %v2180 = vld [vmem:[#allocation2 + $0x238] sm:$0xf]
  %v2181 = vsel %vm1453, %v2172, %v2180
  %2182 = vst [vmem:[#allocation2 + $0x238] sm:$0xf] %v2181
  %2185 = vst [vmem:[#allocation2 + $0x228] sm:$0xf] %v2152
  %2186 = vst [vmem:[#allocation2 + $0x234] sm:$0xf] %v2153
  %v2187 = vrot.slane %v2152, 5
  %v2188 = vrot.slane %v2187, 4
  %v2189 = vrot.slane %v2153, 5
  %v2190 = vsel %vm1392, %v2188, %v2189
  %v2191 = vrot.slane %v2189, 4
  %2195 = vst [vmem:[#allocation2 + $0x224] sm:$0x8] %v2187
  %2196 = vst [vmem:[#allocation2 + $0x230] sm:$0xf] %v2190
  %2197 = vst [vmem:[#allocation2 + $0x23c] sm:$0x7] %v2191
  %v2199 = vunpack.c.l.b16 %v1091
  %v2200 = vunpack.c.h.b16 %v1091
  %v2201 = vpack.c.b16 %v2199, %v2199
  %v2202 = vpack.c.b16 %v2200, %v2200
  %v2204 = vshrl.u32 %v2201, 16
  %v2206 = vrot.slane %v2204, 7
  %v2207 = vshll.u32 %v2201, 16
  %v2209 = vor.u32 %v2206, %v2207
  %v2210 = vrot.slane %v2206, 4
  %v2212 = vshrl.u32 %v2202, 16
  %v2214 = vrot.slane %v2212, 7
  %v2215 = vshll.u32 %v2202, 16
  %v2217 = vor.u32 %v2214, %v2215
  %v2218 = vsel %vm1479, %v2210, %v2217
  %v2219 = vrot.slane %v2214, 4
  %v2223 = vld [vmem:[#allocation2 + $0x244] sm:$0xf]
  %v2224 = vsel %vm1501, %v2209, %v2223
  %2225 = vst [vmem:[#allocation2 + $0x244] sm:$0xf] %v2224
  %2226 = vst [vmem:[#allocation2 + $0x250] sm:$0xf] %v2218
  %v2227 = vld [vmem:[#allocation2 + $0x25c] sm:$0x1]
  %v2228 = vsel %vm1506, %v2219, %v2227
  %2229 = vst [vmem:[#allocation2 + $0x25c] sm:$0x1] %v2228
  %v2230 = vrot.slane %v2201, 7
  %v2231 = vrot.slane %v2230, 4
  %v2232 = vrot.slane %v2202, 7
  %v2233 = vsel %vm1337, %v2231, %v2232
  %v2234 = vrot.slane %v2232, 4
  %2238 = vst [vmem:[#allocation2 + $0x240] sm:$0xe] %v2230
  %2239 = vst [vmem:[#allocation2 + $0x24c] sm:$0xf] %v2233
  %2240 = vst [vmem:[#allocation2 + $0x258] sm:$0x1] %v2234
  %2243 = vst [vmem:[#allocation2 + $0x248] sm:$0xf] %v2201
  %2244 = vst [vmem:[#allocation2 + $0x254] sm:$0xf] %v2202
  %v2246 = vunpack.c.l.b16 %v1092
  %v2247 = vunpack.c.h.b16 %v1092
  %v2248 = vpack.c.b16 %v2246, %v2246
  %v2249 = vpack.c.b16 %v2247, %v2247
  %v2251 = vshrl.u32 %v2248, 16
  %v2253 = vrot.slane %v2251, 6
  %v2254 = vshll.u32 %v2248, 16
  %v2256 = vrot.slane %v2254, 7
  %v2257 = vor.u32 %v2253, %v2256
  %v2258 = vrot.slane %v2257, 4
  %v2260 = vshrl.u32 %v2249, 16
  %v2262 = vrot.slane %v2260, 6
  %v2263 = vshll.u32 %v2249, 16
  %v2265 = vrot.slane %v2263, 7
  %v2266 = vor.u32 %v2262, %v2265
  %v2267 = vsel %vm1287, %v2258, %v2266
  %v2268 = vrot.slane %v2266, 4
  %v2272 = vld [vmem:[#allocation2 + $0x25c] sm:$0xe]
  %v2273 = vsel %vm1312, %v2257, %v2272
  %2274 = vst [vmem:[#allocation2 + $0x25c] sm:$0xe] %v2273
  %2275 = vst [vmem:[#allocation2 + $0x268] sm:$0xf] %v2267
  %v2276 = vld [vmem:[#allocation2 + $0x274] sm:$0x3]
  %v2277 = vsel %vm1318, %v2268, %v2276
  %2278 = vst [vmem:[#allocation2 + $0x274] sm:$0x3] %v2277
  %v2279 = vrot.slane %v2248, 6
  %v2280 = vrot.slane %v2279, 4
  %v2281 = vrot.slane %v2249, 6
  %v2282 = vsel %vm1323, %v2280, %v2281
  %v2283 = vrot.slane %v2281, 4
  %2287 = vst [vmem:[#allocation2 + $0x258] sm:$0xc] %v2279
  %2288 = vst [vmem:[#allocation2 + $0x264] sm:$0xf] %v2282
  %2289 = vst [vmem:[#allocation2 + $0x270] sm:$0x3] %v2283
  %v2290 = vrot.slane %v2248, 7
  %v2291 = vrot.slane %v2290, 4
  %v2292 = vrot.slane %v2249, 7
  %v2293 = vsel %vm1337, %v2291, %v2292
  %v2294 = vrot.slane %v2292, 4
  %2298 = vst [vmem:[#allocation2 + $0x260] sm:$0xe] %v2290
  %2299 = vst [vmem:[#allocation2 + $0x26c] sm:$0xf] %v2293
  %2300 = vst [vmem:[#allocation2 + $0x278] sm:$0x1] %v2294
  %v2302 = vunpack.c.l.b16 %v1093
  %v2303 = vunpack.c.h.b16 %v1093
  %v2304 = vpack.c.b16 %v2302, %v2302
  %v2305 = vpack.c.b16 %v2303, %v2303
  %v2307 = vshrl.u32 %v2304, 16
  %v2309 = vrot.slane %v2307, 5
  %v2310 = vshll.u32 %v2304, 16
  %v2312 = vrot.slane %v2310, 6
  %v2313 = vor.u32 %v2309, %v2312
  %v2314 = vrot.slane %v2313, 4
  %v2316 = vshrl.u32 %v2305, 16
  %v2318 = vrot.slane %v2316, 5
  %v2319 = vshll.u32 %v2305, 16
  %v2321 = vrot.slane %v2319, 6
  %v2322 = vor.u32 %v2318, %v2321
  %v2323 = vsel %vm1356, %v2314, %v2322
  %v2324 = vrot.slane %v2322, 4
  %v2328 = vld [vmem:[#allocation2 + $0x274] sm:$0xc]
  %v2329 = vsel %vm1381, %v2313, %v2328
  %2330 = vst [vmem:[#allocation2 + $0x274] sm:$0xc] %v2329
  %2331 = vst [vmem:[#allocation2 + $0x280] sm:$0xf] %v2323
  %v2332 = vld [vmem:[#allocation2 + $0x28c] sm:$0x7]
  %v2333 = vsel %vm1387, %v2324, %v2332
  %2334 = vst [vmem:[#allocation2 + $0x28c] sm:$0x7] %v2333
  %v2335 = vrot.slane %v2304, 5
  %v2336 = vrot.slane %v2335, 4
  %v2337 = vrot.slane %v2305, 5
  %v2338 = vsel %vm1392, %v2336, %v2337
  %v2339 = vrot.slane %v2337, 4
  %2343 = vst [vmem:[#allocation2 + $0x270] sm:$0x8] %v2335
  %2344 = vst [vmem:[#allocation2 + $0x27c] sm:$0xf] %v2338
  %2345 = vst [vmem:[#allocation2 + $0x288] sm:$0x7] %v2339
  %v2346 = vrot.slane %v2304, 6
  %v2347 = vrot.slane %v2346, 4
  %v2348 = vrot.slane %v2305, 6
  %v2349 = vsel %vm1323, %v2347, %v2348
  %v2350 = vrot.slane %v2348, 4
  %2354 = vst [vmem:[#allocation2 + $0x278] sm:$0xc] %v2346
  %2355 = vst [vmem:[#allocation2 + $0x284] sm:$0xf] %v2349
  %2356 = vst [vmem:[#allocation2 + $0x290] sm:$0x3] %v2350
  %v2358 = vunpack.c.l.b16 %v1094
  %v2359 = vunpack.c.h.b16 %v1094
  %v2360 = vpack.c.b16 %v2358, %v2358
  %v2361 = vpack.c.b16 %v2359, %v2359
  %v2363 = vshll.u32 %v2360, 16
  %v2365 = vrot.slane %v2363, 5
  %v2366 = vshrl.u32 %v2360, 16
  %v2368 = vrot.slane %v2366, 4
  %v2369 = vor.u32 %v2368, %v2365
  %v2370 = vrot.slane %v2369, 4
  %v2372 = vshll.u32 %v2361, 16
  %v2374 = vrot.slane %v2372, 5
  %v2375 = vsel %vm1422, %v2370, %v2374
  %v2376 = vshrl.u32 %v2361, 16
  %v2378 = vrot.slane %v2376, 4
  %v2379 = vor.u32 %v2378, %v2374
  %v2380 = vrot.slane %v2379, 4
  %v2384 = vld [vmem:[#allocation2 + $0x28c] sm:$0x8]
  %v2385 = vsel %vm1447, %v2365, %v2384
  %2386 = vst [vmem:[#allocation2 + $0x28c] sm:$0x8] %v2385
  %2387 = vst [vmem:[#allocation2 + $0x298] sm:$0xf] %v2375
  %v2388 = vld [vmem:[#allocation2 + $0x2a4] sm:$0xf]
  %v2389 = vsel %vm1453, %v2380, %v2388
  %2390 = vst [vmem:[#allocation2 + $0x2a4] sm:$0xf] %v2389
  %2393 = vst [vmem:[#allocation2 + $0x294] sm:$0xf] %v2360
  %2394 = vst [vmem:[#allocation2 + $0x2a0] sm:$0xf] %v2361
  %v2395 = vrot.slane %v2360, 5
  %v2396 = vrot.slane %v2395, 4
  %v2397 = vrot.slane %v2361, 5
  %v2398 = vsel %vm1392, %v2396, %v2397
  %v2399 = vrot.slane %v2397, 4
  %2403 = vst [vmem:[#allocation2 + $0x290] sm:$0x8] %v2395
  %2404 = vst [vmem:[#allocation2 + $0x29c] sm:$0xf] %v2398
  %2405 = vst [vmem:[#allocation2 + $0x2a8] sm:$0x7] %v2399
  %v2407 = vunpack.c.l.b16 %v1095
  %v2408 = vunpack.c.h.b16 %v1095
  %v2409 = vpack.c.b16 %v2407, %v2407
  %v2410 = vpack.c.b16 %v2408, %v2408
  %v2412 = vshrl.u32 %v2409, 16
  %v2414 = vrot.slane %v2412, 7
  %v2415 = vshll.u32 %v2409, 16
  %v2417 = vor.u32 %v2414, %v2415
  %v2418 = vrot.slane %v2414, 4
  %v2420 = vshrl.u32 %v2410, 16
  %v2422 = vrot.slane %v2420, 7
  %v2423 = vshll.u32 %v2410, 16
  %v2425 = vor.u32 %v2422, %v2423
  %v2426 = vsel %vm1479, %v2418, %v2425
  %v2427 = vrot.slane %v2422, 4
  %v2431 = vld [vmem:[#allocation2 + $0x2b0] sm:$0xf]
  %v2432 = vsel %vm1501, %v2417, %v2431
  %2433 = vst [vmem:[#allocation2 + $0x2b0] sm:$0xf] %v2432
  %2434 = vst [vmem:[#allocation2 + $0x2bc] sm:$0xf] %v2426
  %v2435 = vld [vmem:[#allocation2 + $0x2c8] sm:$0x1]
  %v2436 = vsel %vm1506, %v2427, %v2435
  %2437 = vst [vmem:[#allocation2 + $0x2c8] sm:$0x1] %v2436
  %v2438 = vrot.slane %v2409, 7
  %v2439 = vrot.slane %v2438, 4
  %v2440 = vrot.slane %v2410, 7
  %v2441 = vsel %vm1337, %v2439, %v2440
  %v2442 = vrot.slane %v2440, 4
  %2446 = vst [vmem:[#allocation2 + $0x2ac] sm:$0xe] %v2438
  %2447 = vst [vmem:[#allocation2 + $0x2b8] sm:$0xf] %v2441
  %2448 = vst [vmem:[#allocation2 + $0x2c4] sm:$0x1] %v2442
  %2451 = vst [vmem:[#allocation2 + $0x2b4] sm:$0xf] %v2409
  %2452 = vst [vmem:[#allocation2 + $0x2c0] sm:$0xf] %v2410
  %v2454 = vunpack.c.l.b16 %v1096
  %v2455 = vunpack.c.h.b16 %v1096
  %v2456 = vpack.c.b16 %v2454, %v2454
  %v2457 = vpack.c.b16 %v2455, %v2455
  %v2459 = vshrl.u32 %v2456, 16
  %v2461 = vrot.slane %v2459, 6
  %v2462 = vshll.u32 %v2456, 16
  %v2464 = vrot.slane %v2462, 7
  %v2465 = vor.u32 %v2461, %v2464
  %v2466 = vrot.slane %v2465, 4
  %v2468 = vshrl.u32 %v2457, 16
  %v2470 = vrot.slane %v2468, 6
  %v2471 = vshll.u32 %v2457, 16
  %v2473 = vrot.slane %v2471, 7
  %v2474 = vor.u32 %v2470, %v2473
  %v2475 = vsel %vm1287, %v2466, %v2474
  %v2476 = vrot.slane %v2474, 4
  %v2480 = vld [vmem:[#allocation2 + $0x2c8] sm:$0xe]
  %v2481 = vsel %vm1312, %v2465, %v2480
  %2482 = vst [vmem:[#allocation2 + $0x2c8] sm:$0xe] %v2481
  %2483 = vst [vmem:[#allocation2 + $0x2d4] sm:$0xf] %v2475
  %v2484 = vld [vmem:[#allocation2 + $0x2e0] sm:$0x3]
  %v2485 = vsel %vm1318, %v2476, %v2484
  %2486 = vst [vmem:[#allocation2 + $0x2e0] sm:$0x3] %v2485
  %v2487 = vrot.slane %v2456, 6
  %v2488 = vrot.slane %v2487, 4
  %v2489 = vrot.slane %v2457, 6
  %v2490 = vsel %vm1323, %v2488, %v2489
  %v2491 = vrot.slane %v2489, 4
  %2495 = vst [vmem:[#allocation2 + $0x2c4] sm:$0xc] %v2487
  %2496 = vst [vmem:[#allocation2 + $0x2d0] sm:$0xf] %v2490
  %2497 = vst [vmem:[#allocation2 + $0x2dc] sm:$0x3] %v2491
  %v2498 = vrot.slane %v2456, 7
  %v2499 = vrot.slane %v2498, 4
  %v2500 = vrot.slane %v2457, 7
  %v2501 = vsel %vm1337, %v2499, %v2500
  %v2502 = vrot.slane %v2500, 4
  %2506 = vst [vmem:[#allocation2 + $0x2cc] sm:$0xe] %v2498
  %2507 = vst [vmem:[#allocation2 + $0x2d8] sm:$0xf] %v2501
  %2508 = vst [vmem:[#allocation2 + $0x2e4] sm:$0x1] %v2502
  %v2510 = vunpack.c.l.b16 %v1097
  %v2511 = vunpack.c.h.b16 %v1097
  %v2512 = vpack.c.b16 %v2510, %v2510
  %v2513 = vpack.c.b16 %v2511, %v2511
  %v2515 = vshrl.u32 %v2512, 16
  %v2517 = vrot.slane %v2515, 5
  %v2518 = vshll.u32 %v2512, 16
  %v2520 = vrot.slane %v2518, 6
  %v2521 = vor.u32 %v2517, %v2520
  %v2522 = vrot.slane %v2521, 4
  %v2524 = vshrl.u32 %v2513, 16
  %v2526 = vrot.slane %v2524, 5
  %v2527 = vshll.u32 %v2513, 16
  %v2529 = vrot.slane %v2527, 6
  %v2530 = vor.u32 %v2526, %v2529
  %v2531 = vsel %vm1356, %v2522, %v2530
  %v2532 = vrot.slane %v2530, 4
  %v2536 = vld [vmem:[#allocation2 + $0x2e0] sm:$0xc]
  %v2537 = vsel %vm1381, %v2521, %v2536
  %2538 = vst [vmem:[#allocation2 + $0x2e0] sm:$0xc] %v2537
  %2539 = vst [vmem:[#allocation2 + $0x2ec] sm:$0xf] %v2531
  %v2540 = vld [vmem:[#allocation2 + $0x2f8] sm:$0x7]
  %v2541 = vsel %vm1387, %v2532, %v2540
  %2542 = vst [vmem:[#allocation2 + $0x2f8] sm:$0x7] %v2541
  %v2543 = vrot.slane %v2512, 5
  %v2544 = vrot.slane %v2543, 4
  %v2545 = vrot.slane %v2513, 5
  %v2546 = vsel %vm1392, %v2544, %v2545
  %v2547 = vrot.slane %v2545, 4
  %2551 = vst [vmem:[#allocation2 + $0x2dc] sm:$0x8] %v2543
  %2552 = vst [vmem:[#allocation2 + $0x2e8] sm:$0xf] %v2546
  %2553 = vst [vmem:[#allocation2 + $0x2f4] sm:$0x7] %v2547
  %v2554 = vrot.slane %v2512, 6
  %v2555 = vrot.slane %v2554, 4
  %v2556 = vrot.slane %v2513, 6
  %v2557 = vsel %vm1323, %v2555, %v2556
  %v2558 = vrot.slane %v2556, 4
  %2562 = vst [vmem:[#allocation2 + $0x2e4] sm:$0xc] %v2554
  %2563 = vst [vmem:[#allocation2 + $0x2f0] sm:$0xf] %v2557
  %2564 = vst [vmem:[#allocation2 + $0x2fc] sm:$0x3] %v2558
  %v2566 = vunpack.c.l.b16 %v1098
  %v2567 = vunpack.c.h.b16 %v1098
  %v2568 = vpack.c.b16 %v2566, %v2566
  %v2569 = vpack.c.b16 %v2567, %v2567
  %v2571 = vshll.u32 %v2568, 16
  %v2573 = vrot.slane %v2571, 5
  %v2574 = vshrl.u32 %v2568, 16
  %v2576 = vrot.slane %v2574, 4
  %v2577 = vor.u32 %v2576, %v2573
  %v2578 = vrot.slane %v2577, 4
  %v2580 = vshll.u32 %v2569, 16
  %v2582 = vrot.slane %v2580, 5
  %v2583 = vsel %vm1422, %v2578, %v2582
  %v2584 = vshrl.u32 %v2569, 16
  %v2586 = vrot.slane %v2584, 4
  %v2587 = vor.u32 %v2586, %v2582
  %v2588 = vrot.slane %v2587, 4
  %v2592 = vld [vmem:[#allocation2 + $0x2f8] sm:$0x8]
  %v2593 = vsel %vm1447, %v2573, %v2592
  %2594 = vst [vmem:[#allocation2 + $0x2f8] sm:$0x8] %v2593
  %2595 = vst [vmem:[#allocation2 + $0x304] sm:$0xf] %v2583
  %v2596 = vld [vmem:[#allocation2 + $0x310] sm:$0xf]
  %v2597 = vsel %vm1453, %v2588, %v2596
  %2598 = vst [vmem:[#allocation2 + $0x310] sm:$0xf] %v2597
  %2601 = vst [vmem:[#allocation2 + $0x300] sm:$0xf] %v2568
  %2602 = vst [vmem:[#allocation2 + $0x30c] sm:$0xf] %v2569
  %v2603 = vrot.slane %v2568, 5
  %v2604 = vrot.slane %v2603, 4
  %v2605 = vrot.slane %v2569, 5
  %v2606 = vsel %vm1392, %v2604, %v2605
  %v2607 = vrot.slane %v2605, 4
  %2611 = vst [vmem:[#allocation2 + $0x2fc] sm:$0x8] %v2603
  %2612 = vst [vmem:[#allocation2 + $0x308] sm:$0xf] %v2606
  %2613 = vst [vmem:[#allocation2 + $0x314] sm:$0x7] %v2607
  %v2615 = vunpack.c.l.b16 %v1099
  %v2616 = vunpack.c.h.b16 %v1099
  %v2617 = vpack.c.b16 %v2615, %v2615
  %v2618 = vpack.c.b16 %v2616, %v2616
  %v2620 = vshrl.u32 %v2617, 16
  %v2622 = vrot.slane %v2620, 7
  %v2623 = vshll.u32 %v2617, 16
  %v2625 = vor.u32 %v2622, %v2623
  %v2626 = vrot.slane %v2622, 4
  %v2628 = vshrl.u32 %v2618, 16
  %v2630 = vrot.slane %v2628, 7
  %v2631 = vshll.u32 %v2618, 16
  %v2633 = vor.u32 %v2630, %v2631
  %v2634 = vsel %vm1479, %v2626, %v2633
  %v2635 = vrot.slane %v2630, 4
  %v2639 = vld [vmem:[#allocation2 + $0x31c] sm:$0xf]
  %v2640 = vsel %vm1501, %v2625, %v2639
  %2641 = vst [vmem:[#allocation2 + $0x31c] sm:$0xf] %v2640
  %2642 = vst [vmem:[#allocation2 + $0x328] sm:$0xf] %v2634
  %v2643 = vld [vmem:[#allocation2 + $0x334] sm:$0x1]
  %v2644 = vsel %vm1506, %v2635, %v2643
  %2645 = vst [vmem:[#allocation2 + $0x334] sm:$0x1] %v2644
  %v2646 = vrot.slane %v2617, 7
  %v2647 = vrot.slane %v2646, 4
  %v2648 = vrot.slane %v2618, 7
  %v2649 = vsel %vm1337, %v2647, %v2648
  %v2650 = vrot.slane %v2648, 4
  %2654 = vst [vmem:[#allocation2 + $0x318] sm:$0xe] %v2646
  %2655 = vst [vmem:[#allocation2 + $0x324] sm:$0xf] %v2649
  %2656 = vst [vmem:[#allocation2 + $0x330] sm:$0x1] %v2650
  %2659 = vst [vmem:[#allocation2 + $0x320] sm:$0xf] %v2617
  %2660 = vst [vmem:[#allocation2 + $0x32c] sm:$0xf] %v2618
  %v2662 = vunpack.c.l.b16 %v1100
  %v2663 = vunpack.c.h.b16 %v1100
  %v2664 = vpack.c.b16 %v2662, %v2662
  %v2665 = vpack.c.b16 %v2663, %v2663
  %v2667 = vshrl.u32 %v2664, 16
  %v2669 = vrot.slane %v2667, 6
  %v2670 = vshll.u32 %v2664, 16
  %v2672 = vrot.slane %v2670, 7
  %v2673 = vor.u32 %v2669, %v2672
  %v2674 = vrot.slane %v2673, 4
  %v2676 = vshrl.u32 %v2665, 16
  %v2678 = vrot.slane %v2676, 6
  %v2679 = vshll.u32 %v2665, 16
  %v2681 = vrot.slane %v2679, 7
  %v2682 = vor.u32 %v2678, %v2681
  %v2683 = vsel %vm1287, %v2674, %v2682
  %v2684 = vrot.slane %v2682, 4
  %v2688 = vld [vmem:[#allocation2 + $0x334] sm:$0xe]
  %v2689 = vsel %vm1312, %v2673, %v2688
  %2690 = vst [vmem:[#allocation2 + $0x334] sm:$0xe] %v2689
  %2691 = vst [vmem:[#allocation2 + $0x340] sm:$0xf] %v2683
  %v2692 = vld [vmem:[#allocation2 + $0x34c] sm:$0x3]
  %v2693 = vsel %vm1318, %v2684, %v2692
  %2694 = vst [vmem:[#allocation2 + $0x34c] sm:$0x3] %v2693
  %v2695 = vrot.slane %v2664, 6
  %v2696 = vrot.slane %v2695, 4
  %v2697 = vrot.slane %v2665, 6
  %v2698 = vsel %vm1323, %v2696, %v2697
  %v2699 = vrot.slane %v2697, 4
  %2703 = vst [vmem:[#allocation2 + $0x330] sm:$0xc] %v2695
  %2704 = vst [vmem:[#allocation2 + $0x33c] sm:$0xf] %v2698
  %2705 = vst [vmem:[#allocation2 + $0x348] sm:$0x3] %v2699
  %v2706 = vrot.slane %v2664, 7
  %v2707 = vrot.slane %v2706, 4
  %v2708 = vrot.slane %v2665, 7
  %v2709 = vsel %vm1337, %v2707, %v2708
  %v2710 = vrot.slane %v2708, 4
  %2714 = vst [vmem:[#allocation2 + $0x338] sm:$0xe] %v2706
  %2715 = vst [vmem:[#allocation2 + $0x344] sm:$0xf] %v2709
  %2716 = vst [vmem:[#allocation2 + $0x350] sm:$0x1] %v2710
  %v2718 = vunpack.c.l.b16 %v1101
  %v2719 = vunpack.c.h.b16 %v1101
  %v2720 = vpack.c.b16 %v2718, %v2718
  %v2721 = vpack.c.b16 %v2719, %v2719
  %v2723 = vshrl.u32 %v2720, 16
  %v2725 = vrot.slane %v2723, 5
  %v2726 = vshll.u32 %v2720, 16
  %v2728 = vrot.slane %v2726, 6
  %v2729 = vor.u32 %v2725, %v2728
  %v2730 = vrot.slane %v2729, 4
  %v2732 = vshrl.u32 %v2721, 16
  %v2734 = vrot.slane %v2732, 5
  %v2735 = vshll.u32 %v2721, 16
  %v2737 = vrot.slane %v2735, 6
  %v2738 = vor.u32 %v2734, %v2737
  %v2739 = vsel %vm1356, %v2730, %v2738
  %v2740 = vrot.slane %v2738, 4
  %v2744 = vld [vmem:[#allocation2 + $0x34c] sm:$0xc]
  %v2745 = vsel %vm1381, %v2729, %v2744
  %2746 = vst [vmem:[#allocation2 + $0x34c] sm:$0xc] %v2745
  %2747 = vst [vmem:[#allocation2 + $0x358] sm:$0xf] %v2739
  %v2748 = vld [vmem:[#allocation2 + $0x364] sm:$0x7]
  %v2749 = vsel %vm1387, %v2740, %v2748
  %2750 = vst [vmem:[#allocation2 + $0x364] sm:$0x7] %v2749
  %v2751 = vrot.slane %v2720, 5
  %v2752 = vrot.slane %v2751, 4
  %v2753 = vrot.slane %v2721, 5
  %v2754 = vsel %vm1392, %v2752, %v2753
  %v2755 = vrot.slane %v2753, 4
  %2759 = vst [vmem:[#allocation2 + $0x348] sm:$0x8] %v2751
  %2760 = vst [vmem:[#allocation2 + $0x354] sm:$0xf] %v2754
  %2761 = vst [vmem:[#allocation2 + $0x360] sm:$0x7] %v2755
  %v2762 = vrot.slane %v2720, 6
  %v2763 = vrot.slane %v2762, 4
  %v2764 = vrot.slane %v2721, 6
  %v2765 = vsel %vm1323, %v2763, %v2764
  %v2766 = vrot.slane %v2764, 4
  %2770 = vst [vmem:[#allocation2 + $0x350] sm:$0xc] %v2762
  %2771 = vst [vmem:[#allocation2 + $0x35c] sm:$0xf] %v2765
  %2772 = vst [vmem:[#allocation2 + $0x368] sm:$0x3] %v2766
  %v2774 = vunpack.c.l.b16 %v1102
  %v2775 = vunpack.c.h.b16 %v1102
  %v2776 = vpack.c.b16 %v2774, %v2774
  %v2777 = vpack.c.b16 %v2775, %v2775
  %v2779 = vshll.u32 %v2776, 16
  %v2781 = vrot.slane %v2779, 5
  %v2782 = vshrl.u32 %v2776, 16
  %v2784 = vrot.slane %v2782, 4
  %v2785 = vor.u32 %v2784, %v2781
  %v2786 = vrot.slane %v2785, 4
  %v2788 = vshll.u32 %v2777, 16
  %v2790 = vrot.slane %v2788, 5
  %v2791 = vsel %vm1422, %v2786, %v2790
  %v2792 = vshrl.u32 %v2777, 16
  %v2794 = vrot.slane %v2792, 4
  %v2795 = vor.u32 %v2794, %v2790
  %v2796 = vrot.slane %v2795, 4
  %v2800 = vld [vmem:[#allocation2 + $0x364] sm:$0x8]
  %v2801 = vsel %vm1447, %v2781, %v2800
  %2802 = vst [vmem:[#allocation2 + $0x364] sm:$0x8] %v2801
  %2803 = vst [vmem:[#allocation2 + $0x370] sm:$0xf] %v2791
  %v2804 = vld [vmem:[#allocation2 + $0x37c] sm:$0xf]
  %v2805 = vsel %vm1453, %v2796, %v2804
  %2806 = vst [vmem:[#allocation2 + $0x37c] sm:$0xf] %v2805
  %2809 = vst [vmem:[#allocation2 + $0x36c] sm:$0xf] %v2776
  %2810 = vst [vmem:[#allocation2 + $0x378] sm:$0xf] %v2777
  %v2811 = vrot.slane %v2776, 5
  %v2812 = vrot.slane %v2811, 4
  %v2813 = vrot.slane %v2777, 5
  %v2814 = vsel %vm1392, %v2812, %v2813
  %v2815 = vrot.slane %v2813, 4
  %2819 = vst [vmem:[#allocation2 + $0x368] sm:$0x8] %v2811
  %2820 = vst [vmem:[#allocation2 + $0x374] sm:$0xf] %v2814
  %2821 = vst [vmem:[#allocation2 + $0x380] sm:$0x7] %v2815
  %v2823 = vunpack.c.l.b16 %v1103
  %v2824 = vunpack.c.h.b16 %v1103
  %v2825 = vpack.c.b16 %v2823, %v2823
  %v2826 = vpack.c.b16 %v2824, %v2824
  %v2828 = vshrl.u32 %v2825, 16
  %v2830 = vrot.slane %v2828, 7
  %v2831 = vshll.u32 %v2825, 16
  %v2833 = vor.u32 %v2830, %v2831
  %v2834 = vrot.slane %v2830, 4
  %v2836 = vshrl.u32 %v2826, 16
  %v2838 = vrot.slane %v2836, 7
  %v2839 = vshll.u32 %v2826, 16
  %v2841 = vor.u32 %v2838, %v2839
  %v2842 = vsel %vm1479, %v2834, %v2841
  %v2843 = vrot.slane %v2838, 4
  %v2847 = vld [vmem:[#allocation2 + $0x388] sm:$0xf]
  %v2848 = vsel %vm1501, %v2833, %v2847
  %2849 = vst [vmem:[#allocation2 + $0x388] sm:$0xf] %v2848
  %2850 = vst [vmem:[#allocation2 + $0x394] sm:$0xf] %v2842
  %v2851 = vld [vmem:[#allocation2 + $0x3a0] sm:$0x1]
  %v2852 = vsel %vm1506, %v2843, %v2851
  %2853 = vst [vmem:[#allocation2 + $0x3a0] sm:$0x1] %v2852
  %v2854 = vrot.slane %v2825, 7
  %v2855 = vrot.slane %v2854, 4
  %v2856 = vrot.slane %v2826, 7
  %v2857 = vsel %vm1337, %v2855, %v2856
  %v2858 = vrot.slane %v2856, 4
  %2862 = vst [vmem:[#allocation2 + $0x384] sm:$0xe] %v2854
  %2863 = vst [vmem:[#allocation2 + $0x390] sm:$0xf] %v2857
  %2864 = vst [vmem:[#allocation2 + $0x39c] sm:$0x1] %v2858
  %2867 = vst [vmem:[#allocation2 + $0x38c] sm:$0xf] %v2825
  %2868 = vst [vmem:[#allocation2 + $0x398] sm:$0xf] %v2826
  %v2870 = vunpack.c.l.b16 %v1104
  %v2871 = vunpack.c.h.b16 %v1104
  %v2872 = vpack.c.b16 %v2870, %v2870
  %v2873 = vpack.c.b16 %v2871, %v2871
  %v2875 = vshrl.u32 %v2872, 16
  %v2877 = vrot.slane %v2875, 6
  %v2878 = vshll.u32 %v2872, 16
  %v2880 = vrot.slane %v2878, 7
  %v2881 = vor.u32 %v2877, %v2880
  %v2882 = vrot.slane %v2881, 4
  %v2884 = vshrl.u32 %v2873, 16
  %v2886 = vrot.slane %v2884, 6
  %v2887 = vshll.u32 %v2873, 16
  %v2889 = vrot.slane %v2887, 7
  %v2890 = vor.u32 %v2886, %v2889
  %v2891 = vsel %vm1287, %v2882, %v2890
  %v2892 = vrot.slane %v2890, 4
  %v2896 = vld [vmem:[#allocation2 + $0x3a0] sm:$0xe]
  %v2897 = vsel %vm1312, %v2881, %v2896
  %2898 = vst [vmem:[#allocation2 + $0x3a0] sm:$0xe] %v2897
  %2899 = vst [vmem:[#allocation2 + $0x3ac] sm:$0xf] %v2891
  %v2900 = vld [vmem:[#allocation2 + $0x3b8] sm:$0x3]
  %v2901 = vsel %vm1318, %v2892, %v2900
  %2902 = vst [vmem:[#allocation2 + $0x3b8] sm:$0x3] %v2901
  %v2903 = vrot.slane %v2872, 6
  %v2904 = vrot.slane %v2903, 4
  %v2905 = vrot.slane %v2873, 6
  %v2906 = vsel %vm1323, %v2904, %v2905
  %v2907 = vrot.slane %v2905, 4
  %2911 = vst [vmem:[#allocation2 + $0x39c] sm:$0xc] %v2903
  %2912 = vst [vmem:[#allocation2 + $0x3a8] sm:$0xf] %v2906
  %2913 = vst [vmem:[#allocation2 + $0x3b4] sm:$0x3] %v2907
  %v2914 = vrot.slane %v2872, 7
  %v2915 = vrot.slane %v2914, 4
  %v2916 = vrot.slane %v2873, 7
  %v2917 = vsel %vm1337, %v2915, %v2916
  %v2918 = vrot.slane %v2916, 4
  %2922 = vst [vmem:[#allocation2 + $0x3a4] sm:$0xe] %v2914
  %2923 = vst [vmem:[#allocation2 + $0x3b0] sm:$0xf] %v2917
  %2924 = vst [vmem:[#allocation2 + $0x3bc] sm:$0x1] %v2918
  %v2926 = vunpack.c.l.b16 %v1105
  %v2927 = vunpack.c.h.b16 %v1105
  %v2928 = vpack.c.b16 %v2926, %v2926
  %v2929 = vpack.c.b16 %v2927, %v2927
  %v2931 = vshrl.u32 %v2928, 16
  %v2933 = vrot.slane %v2931, 5
  %v2934 = vshll.u32 %v2928, 16
  %v2936 = vrot.slane %v2934, 6
  %v2937 = vor.u32 %v2933, %v2936
  %v2938 = vrot.slane %v2937, 4
  %v2940 = vshrl.u32 %v2929, 16
  %v2942 = vrot.slane %v2940, 5
  %v2943 = vshll.u32 %v2929, 16
  %v2945 = vrot.slane %v2943, 6
  %v2946 = vor.u32 %v2942, %v2945
  %v2947 = vsel %vm1356, %v2938, %v2946
  %v2948 = vrot.slane %v2946, 4
  %v2952 = vld [vmem:[#allocation2 + $0x3b8] sm:$0xc]
  %v2953 = vsel %vm1381, %v2937, %v2952
  %2954 = vst [vmem:[#allocation2 + $0x3b8] sm:$0xc] %v2953
  %2955 = vst [vmem:[#allocation2 + $0x3c4] sm:$0xf] %v2947
  %v2956 = vld [vmem:[#allocation2 + $0x3d0] sm:$0x7]
  %v2957 = vsel %vm1387, %v2948, %v2956
  %2958 = vst [vmem:[#allocation2 + $0x3d0] sm:$0x7] %v2957
  %v2959 = vrot.slane %v2928, 5
  %v2960 = vrot.slane %v2959, 4
  %v2961 = vrot.slane %v2929, 5
  %v2962 = vsel %vm1392, %v2960, %v2961
  %v2963 = vrot.slane %v2961, 4
  %2967 = vst [vmem:[#allocation2 + $0x3b4] sm:$0x8] %v2959
  %2968 = vst [vmem:[#allocation2 + $0x3c0] sm:$0xf] %v2962
  %2969 = vst [vmem:[#allocation2 + $0x3cc] sm:$0x7] %v2963
  %v2970 = vrot.slane %v2928, 6
  %v2971 = vrot.slane %v2970, 4
  %v2972 = vrot.slane %v2929, 6
  %v2973 = vsel %vm1323, %v2971, %v2972
  %v2974 = vrot.slane %v2972, 4
  %2978 = vst [vmem:[#allocation2 + $0x3bc] sm:$0xc] %v2970
  %2979 = vst [vmem:[#allocation2 + $0x3c8] sm:$0xf] %v2973
  %2980 = vst [vmem:[#allocation2 + $0x3d4] sm:$0x3] %v2974
  %v2981 = vld [vmem:[#allocation2] sm:$0x88]
  %v2982 = vld [vmem:[#allocation2 + $0x8] sm:$0x8]
  %v2983 = vld [vmem:[#allocation2 + $0xc] sm:$0xff]
  %v2984 = vld [vmem:[#allocation2 + $0x14] sm:$0xf]
  %v2985 = vld [vmem:[#allocation2 + $0x18] sm:$0xff]
  %v2986 = vld [vmem:[#allocation2 + $0x20] sm:$0xf]
  %v2987 = vld [vmem:[#allocation2 + $0x24] sm:$0xff]
  %v2988 = vld [vmem:[#allocation2 + $0x2c] sm:$0xf]
  %v2989 = vld [vmem:[#allocation2 + $0x30] sm:$0xff]
  %v2990 = vld [vmem:[#allocation2 + $0x38] sm:$0xf]
  %v2991 = vld [vmem:[#allocation2 + $0x3c] sm:$0xff]
  %v2992 = vld [vmem:[#allocation2 + $0x44] sm:$0xf]
  %v2993 = vld [vmem:[#allocation2 + $0x48] sm:$0xff]
  %v2994 = vld [vmem:[#allocation2 + $0x50] sm:$0xf]
  %v2995 = vld [vmem:[#allocation2 + $0x54] sm:$0xff]
  %v2996 = vld [vmem:[#allocation2 + $0x5c] sm:$0xf]
  %v2997 = vld [vmem:[#allocation2 + $0x60] sm:$0xff]
  %v2998 = vld [vmem:[#allocation2 + $0x68] sm:$0xf]
  %v2999 = vld [vmem:[#allocation2 + $0x6c] sm:$0xff]
  %v3000 = vld [vmem:[#allocation2 + $0x74] sm:$0xf]
  %v3001 = vld [vmem:[#allocation2 + $0x78] sm:$0xff]
  %v3002 = vld [vmem:[#allocation2 + $0x80] sm:$0xf]
  %v3003 = vld [vmem:[#allocation2 + $0x84] sm:$0xff]
  %v3004 = vld [vmem:[#allocation2 + $0x8c] sm:$0xf]
  %v3005 = vld [vmem:[#allocation2 + $0x90] sm:$0xff]
  %v3006 = vld [vmem:[#allocation2 + $0x98] sm:$0xf]
  %v3007 = vld [vmem:[#allocation2 + $0x9c] sm:$0xff]
  %v3008 = vld [vmem:[#allocation2 + $0xa4] sm:$0xf]
  %v3009 = vld [vmem:[#allocation2 + $0xa8] sm:$0xff]
  %v3010 = vld [vmem:[#allocation2 + $0xb0] sm:$0xf]
  %v3011 = vld [vmem:[#allocation2 + $0xb4] sm:$0xff]
  %v3012 = vld [vmem:[#allocation2 + $0xbc] sm:$0xf]
  %v3013 = vld [vmem:[#allocation2 + $0xc0] sm:$0xff]
  %v3014 = vld [vmem:[#allocation2 + $0xc8] sm:$0xf]
  %v3015 = vld [vmem:[#allocation2 + $0xcc] sm:$0xff]
  %v3016 = vld [vmem:[#allocation2 + $0xd4] sm:$0xf]
  %v3017 = vld [vmem:[#allocation2 + $0xd8] sm:$0xff]
  %v3018 = vld [vmem:[#allocation2 + $0xe0] sm:$0xf]
  %v3019 = vld [vmem:[#allocation2 + $0xe4] sm:$0xff]
  %v3020 = vld [vmem:[#allocation2 + $0xec] sm:$0xf]
  %v3021 = vld [vmem:[#allocation2 + $0xf0] sm:$0xff]
  %v3022 = vld [vmem:[#allocation2 + $0xf8] sm:$0xf]
  %v3023 = vld [vmem:[#allocation2 + $0xfc] sm:$0xff]
  %v3024 = vld [vmem:[#allocation2 + $0x104] sm:$0xf]
  %v3025 = vld [vmem:[#allocation2 + $0x108] sm:$0xff]
  %v3026 = vld [vmem:[#allocation2 + $0x110] sm:$0xf]
  %v3027 = vld [vmem:[#allocation2 + $0x114] sm:$0xff]
  %v3028 = vld [vmem:[#allocation2 + $0x11c] sm:$0xf]
  %v3029 = vld [vmem:[#allocation2 + $0x120] sm:$0xff]
  %v3030 = vld [vmem:[#allocation2 + $0x128] sm:$0xf]
  %v3031 = vld [vmem:[#allocation2 + $0x12c] sm:$0xff]
  %v3032 = vld [vmem:[#allocation2 + $0x134] sm:$0xf]
  %v3033 = vld [vmem:[#allocation2 + $0x138] sm:$0xff]
  %v3034 = vld [vmem:[#allocation2 + $0x140] sm:$0xf]
  %v3035 = vld [vmem:[#allocation2 + $0x144] sm:$0xff]
  %v3036 = vld [vmem:[#allocation2 + $0x14c] sm:$0xf]
  %v3037 = vld [vmem:[#allocation2 + $0x150] sm:$0xff]
  %v3038 = vld [vmem:[#allocation2 + $0x158] sm:$0xf]
  %v3039 = vld [vmem:[#allocation2 + $0x15c] sm:$0xff]
  %v3040 = vld [vmem:[#allocation2 + $0x164] sm:$0xf]
  %v3041 = vld [vmem:[#allocation2 + $0x168] sm:$0xff]
  %v3042 = vld [vmem:[#allocation2 + $0x170] sm:$0xf]
  %v3043 = vld [vmem:[#allocation2 + $0x174] sm:$0xff]
  %v3044 = vld [vmem:[#allocation2 + $0x17c] sm:$0xf]
  %v3045 = vld [vmem:[#allocation2 + $0x180] sm:$0xff]
  %v3046 = vld [vmem:[#allocation2 + $0x188] sm:$0xf]
  %v3047 = vld [vmem:[#allocation2 + $0x18c] sm:$0xff]
  %v3048 = vld [vmem:[#allocation2 + $0x194] sm:$0xf]
  %v3049 = vld [vmem:[#allocation2 + $0x198] sm:$0xff]
  %v3050 = vld [vmem:[#allocation2 + $0x1a0] sm:$0xf]
  %v3051 = vld [vmem:[#allocation2 + $0x1a4] sm:$0xff]
  %v3052 = vld [vmem:[#allocation2 + $0x1ac] sm:$0xf]
  %v3053 = vld [vmem:[#allocation2 + $0x1b0] sm:$0xff]
  %v3054 = vld [vmem:[#allocation2 + $0x1b8] sm:$0xf]
  %v3055 = vld [vmem:[#allocation2 + $0x1bc] sm:$0xff]
  %v3056 = vld [vmem:[#allocation2 + $0x1c4] sm:$0xf]
  %v3057 = vld [vmem:[#allocation2 + $0x1c8] sm:$0xff]
  %v3058 = vld [vmem:[#allocation2 + $0x1d0] sm:$0xf]
  %v3059 = vld [vmem:[#allocation2 + $0x1d4] sm:$0xff]
  %v3060 = vld [vmem:[#allocation2 + $0x1dc] sm:$0xf]
  %v3061 = vld [vmem:[#allocation2 + $0x1e0] sm:$0xff]
  %v3062 = vld [vmem:[#allocation2 + $0x1e8] sm:$0xf]
  %v3063 = vld [vmem:[#allocation2 + $0x1ec] sm:$0xff]
  %v3064 = vld [vmem:[#allocation2 + $0x1f4] sm:$0xf]
  %v3065 = vld [vmem:[#allocation2 + $0x1f8] sm:$0xff]
  %v3066 = vld [vmem:[#allocation2 + $0x200] sm:$0xf]
  %v3067 = vld [vmem:[#allocation2 + $0x204] sm:$0xff]
  %v3068 = vld [vmem:[#allocation2 + $0x20c] sm:$0xf]
  %v3069 = vld [vmem:[#allocation2 + $0x210] sm:$0xff]
  %v3070 = vld [vmem:[#allocation2 + $0x218] sm:$0xf]
  %v3071 = vld [vmem:[#allocation2 + $0x21c] sm:$0xff]
  %v3072 = vld [vmem:[#allocation2 + $0x224] sm:$0xf]
  %v3073 = vld [vmem:[#allocation2 + $0x228] sm:$0xff]
  %v3074 = vld [vmem:[#allocation2 + $0x230] sm:$0xf]
  %v3075 = vld [vmem:[#allocation2 + $0x234] sm:$0xff]
  %v3076 = vld [vmem:[#allocation2 + $0x23c] sm:$0xf]
  %v3077 = vld [vmem:[#allocation2 + $0x240] sm:$0xff]
  %v3078 = vld [vmem:[#allocation2 + $0x248] sm:$0xf]
  %v3079 = vld [vmem:[#allocation2 + $0x24c] sm:$0xff]
  %v3080 = vld [vmem:[#allocation2 + $0x254] sm:$0xf]
  %v3081 = vld [vmem:[#allocation2 + $0x258] sm:$0xff]
  %v3082 = vld [vmem:[#allocation2 + $0x260] sm:$0xf]
  %v3083 = vld [vmem:[#allocation2 + $0x264] sm:$0xff]
  %v3084 = vld [vmem:[#allocation2 + $0x26c] sm:$0xf]
  %v3085 = vld [vmem:[#allocation2 + $0x270] sm:$0xff]
  %v3086 = vld [vmem:[#allocation2 + $0x278] sm:$0xf]
  %v3087 = vld [vmem:[#allocation2 + $0x27c] sm:$0xff]
  %v3088 = vld [vmem:[#allocation2 + $0x284] sm:$0xf]
  %v3089 = vld [vmem:[#allocation2 + $0x288] sm:$0xff]
  %v3090 = vld [vmem:[#allocation2 + $0x290] sm:$0xf]
  %v3091 = vld [vmem:[#allocation2 + $0x294] sm:$0xff]
  %v3092 = vld [vmem:[#allocation2 + $0x29c] sm:$0xf]
  %v3093 = vld [vmem:[#allocation2 + $0x2a0] sm:$0xff]
  %v3094 = vld [vmem:[#allocation2 + $0x2a8] sm:$0xf]
  %v3095 = vld [vmem:[#allocation2 + $0x2ac] sm:$0xff]
  %v3096 = vld [vmem:[#allocation2 + $0x2b4] sm:$0xf]
  %v3097 = vld [vmem:[#allocation2 + $0x2b8] sm:$0xff]
  %v3098 = vld [vmem:[#allocation2 + $0x2c0] sm:$0xf]
  %v3099 = vld [vmem:[#allocation2 + $0x2c4] sm:$0xff]
  %v3100 = vld [vmem:[#allocation2 + $0x2cc] sm:$0xf]
  %v3101 = vld [vmem:[#allocation2 + $0x2d0] sm:$0xff]
  %v3102 = vld [vmem:[#allocation2 + $0x2d8] sm:$0xf]
  %v3103 = vld [vmem:[#allocation2 + $0x2dc] sm:$0xff]
  %v3104 = vld [vmem:[#allocation2 + $0x2e4] sm:$0xf]
  %v3105 = vld [vmem:[#allocation2 + $0x2e8] sm:$0xff]
  %v3106 = vld [vmem:[#allocation2 + $0x2f0] sm:$0xf]
  %v3107 = vld [vmem:[#allocation2 + $0x2f4] sm:$0xff]
  %v3108 = vld [vmem:[#allocation2 + $0x2fc] sm:$0xf]
  %v3109 = vld [vmem:[#allocation2 + $0x300] sm:$0xff]
  %v3110 = vld [vmem:[#allocation2 + $0x308] sm:$0xf]
  %v3111 = vld [vmem:[#allocation2 + $0x30c] sm:$0xff]
  %v3112 = vld [vmem:[#allocation2 + $0x314] sm:$0xf]
  %v3113 = vld [vmem:[#allocation2 + $0x318] sm:$0xff]
  %v3114 = vld [vmem:[#allocation2 + $0x320] sm:$0xf]
  %v3115 = vld [vmem:[#allocation2 + $0x324] sm:$0xff]
  %v3116 = vld [vmem:[#allocation2 + $0x32c] sm:$0xf]
  %v3117 = vld [vmem:[#allocation2 + $0x330] sm:$0xff]
  %v3118 = vld [vmem:[#allocation2 + $0x338] sm:$0xf]
  %v3119 = vld [vmem:[#allocation2 + $0x33c] sm:$0xff]
  %v3120 = vld [vmem:[#allocation2 + $0x344] sm:$0xf]
  %v3121 = vld [vmem:[#allocation2 + $0x348] sm:$0xff]
  %v3122 = vld [vmem:[#allocation2 + $0x350] sm:$0xf]
  %v3123 = vld [vmem:[#allocation2 + $0x354] sm:$0xff]
  %v3124 = vld [vmem:[#allocation2 + $0x35c] sm:$0xf]
  %v3125 = vld [vmem:[#allocation2 + $0x360] sm:$0xff]
  %v3126 = vld [vmem:[#allocation2 + $0x368] sm:$0xf]
  %v3127 = vld [vmem:[#allocation2 + $0x36c] sm:$0xff]
  %v3128 = vld [vmem:[#allocation2 + $0x374] sm:$0xf]
  %v3129 = vld [vmem:[#allocation2 + $0x378] sm:$0xff]
  %v3130 = vld [vmem:[#allocation2 + $0x380] sm:$0xf]
  %v3131 = vld [vmem:[#allocation2 + $0x384] sm:$0xff]
  %v3132 = vld [vmem:[#allocation2 + $0x38c] sm:$0xf]
  %v3133 = vld [vmem:[#allocation2 + $0x390] sm:$0xff]
  %v3134 = vld [vmem:[#allocation2 + $0x398] sm:$0xf]
  %v3135 = vld [vmem:[#allocation2 + $0x39c] sm:$0xff]
  %v3136 = vld [vmem:[#allocation2 + $0x3a4] sm:$0xf]
  %v3137 = vld [vmem:[#allocation2 + $0x3a8] sm:$0xff]
  %v3138 = vld [vmem:[#allocation2 + $0x3b0] sm:$0xf]
  %v3139 = vld [vmem:[#allocation2 + $0x3b4] sm:$0xff]
  %v3140 = vld [vmem:[#allocation2 + $0x3bc] sm:$0xf]
  %v3141 = vld [vmem:[#allocation2 + $0x3c0] sm:$0xff]
  %v3142 = vld [vmem:[#allocation2 + $0x3c8] sm:$0xf]
  %v3143 = vld [vmem:[#allocation2 + $0x3cc] sm:$0x77]
  %v3144 = vld [vmem:[#allocation2 + $0x3d4] sm:$0x7]
  %v3145 = vld [vmem:[%s3] sm:$0xf]
  %v3146 = vld [vmem:[%s3 + $0x4] sm:$0xf]
  %v3147 = vld [vmem:[%s3 + $0x8] sm:$0xf]
  %v3148 = vld [vmem:[%s3 + $0xc] sm:$0xf]
  %v3149 = vld [vmem:[%s3 + $0x10] sm:$0xf]
  %v3150 = vld [vmem:[%s3 + $0x14] sm:$0xf]
  %v3151 = vld [vmem:[%s3 + $0x18] sm:$0xf]
  %v3152 = vld [vmem:[%s3 + $0x1c] sm:$0xf]
  %v3153 = vld [vmem:[%s3 + $0x20] sm:$0xf]
  %v3154 = vld [vmem:[%s3 + $0x24] sm:$0xf]
  %v3155 = vld [vmem:[%s3 + $0x28] sm:$0xf]
  %v3156 = vld [vmem:[%s3 + $0x2c] sm:$0xf]
  %v3157 = vld [vmem:[%s3 + $0x30] sm:$0xf]
  %v3158 = vld [vmem:[%s3 + $0x34] sm:$0xf]
  %v3159 = vld [vmem:[%s3 + $0x38] sm:$0xf]
  %v3160 = vld [vmem:[%s3 + $0x3c] sm:$0xf]
  %v3161 = vld [vmem:[%s3 + $0x40] sm:$0xf]
  %v3162 = vld [vmem:[%s3 + $0x44] sm:$0xf]
  %v3163 = vld [vmem:[%s3 + $0x48] sm:$0xf]
  %v3164 = vld [vmem:[%s3 + $0x4c] sm:$0xf]
  %v3165 = vld [vmem:[%s3 + $0x50] sm:$0xf]
  %v3166 = vld [vmem:[%s3 + $0x54] sm:$0xf]
  %v3167 = vld [vmem:[%s3 + $0x58] sm:$0xf]
  %v3168 = vld [vmem:[%s3 + $0x5c] sm:$0xf]
  %v3169 = vld [vmem:[%s3 + $0x60] sm:$0xf]
  %v3170 = vld [vmem:[%s3 + $0x64] sm:$0xf]
  %v3171 = vld [vmem:[%s3 + $0x68] sm:$0xf]
  %v3172 = vld [vmem:[%s3 + $0x6c] sm:$0xf]
  %v3173 = vld [vmem:[%s3 + $0x70] sm:$0xf]
  %v3174 = vld [vmem:[%s3 + $0x74] sm:$0xf]
  %v3175 = vld [vmem:[%s3 + $0x78] sm:$0xf]
  %v3176 = vld [vmem:[%s3 + $0x7c] sm:$0xf]
  %v3177 = vld [vmem:[%s3 + $0x80] sm:$0xf]
  %v3178 = vld [vmem:[%s3 + $0x84] sm:$0xf]
  %v3179 = vld [vmem:[%s3 + $0x88] sm:$0xf]
  %v3180 = vld [vmem:[%s3 + $0x8c] sm:$0xf]
  %v3181 = vld [vmem:[%s3 + $0x90] sm:$0xf]
  %v3182 = vld [vmem:[%s3 + $0x94] sm:$0xf]
  %v3183 = vld [vmem:[%s3 + $0x98] sm:$0xf]
  %v3184 = vld [vmem:[%s3 + $0x9c] sm:$0xf]
  %v3185 = vld [vmem:[%s3 + $0xa0] sm:$0xf]
  %v3186 = vld [vmem:[%s3 + $0xa4] sm:$0xf]
  %v3187 = vld [vmem:[%s3 + $0xa8] sm:$0xf]
  %v3188 = vld [vmem:[%s3 + $0xac] sm:$0xf]
  %v3189 = vld [vmem:[%s3 + $0xb0] sm:$0xf]
  %v3190 = vld [vmem:[%s3 + $0xb4] sm:$0xf]
  %v3191 = vld [vmem:[%s3 + $0xb8] sm:$0xf]
  %v3192 = vld [vmem:[%s3 + $0xbc] sm:$0xf]
  %v3357 = vunpack.c.l.b16 %v2981
  %v3358 = vunpack.c.h.b16 %v2981
  %v3359 = vunpack.c.l.b16 %v2982
  %v3360 = vunpack.c.l.b16 %v2983
  %v3361 = vunpack.c.h.b16 %v2983
  %v3362 = vunpack.c.l.b16 %v2984
  %v3363 = vunpack.c.l.b16 %v2985
  %v3364 = vunpack.c.h.b16 %v2985
  %v3365 = vunpack.c.l.b16 %v2986
  %v3366 = vunpack.c.l.b16 %v2987
  %v3367 = vunpack.c.h.b16 %v2987
  %v3368 = vunpack.c.l.b16 %v2988
  %v3369 = vunpack.c.l.b16 %v2989
  %v3370 = vunpack.c.h.b16 %v2989
  %v3371 = vunpack.c.l.b16 %v2990
  %v3372 = vunpack.c.l.b16 %v2991
  %v3373 = vunpack.c.h.b16 %v2991
  %v3374 = vunpack.c.l.b16 %v2992
  %v3375 = vunpack.c.l.b16 %v2993
  %v3376 = vunpack.c.h.b16 %v2993
  %v3377 = vunpack.c.l.b16 %v2994
  %v3378 = vunpack.c.l.b16 %v2995
  %v3379 = vunpack.c.h.b16 %v2995
  %v3380 = vunpack.c.l.b16 %v2996
  %v3381 = vunpack.c.l.b16 %v2997
  %v3382 = vunpack.c.h.b16 %v2997
  %v3383 = vunpack.c.l.b16 %v2998
  %v3384 = vunpack.c.l.b16 %v2999
  %v3385 = vunpack.c.h.b16 %v2999
  %v3386 = vunpack.c.l.b16 %v3000
  %v3387 = vunpack.c.l.b16 %v3001
  %v3388 = vunpack.c.h.b16 %v3001
  %v3389 = vunpack.c.l.b16 %v3002
  %v3390 = vunpack.c.l.b16 %v3003
  %v3391 = vunpack.c.h.b16 %v3003
  %v3392 = vunpack.c.l.b16 %v3004
  %v3393 = vunpack.c.l.b16 %v3005
  %v3394 = vunpack.c.h.b16 %v3005
  %v3395 = vunpack.c.l.b16 %v3006
  %v3396 = vunpack.c.l.b16 %v3007
  %v3397 = vunpack.c.h.b16 %v3007
  %v3398 = vunpack.c.l.b16 %v3008
  %v3399 = vunpack.c.l.b16 %v3009
  %v3400 = vunpack.c.h.b16 %v3009
  %v3401 = vunpack.c.l.b16 %v3010
  %v3402 = vunpack.c.l.b16 %v3011
  %v3403 = vunpack.c.h.b16 %v3011
  %v3404 = vunpack.c.l.b16 %v3012
  %v3405 = vunpack.c.l.b16 %v3013
  %v3406 = vunpack.c.h.b16 %v3013
  %v3407 = vunpack.c.l.b16 %v3014
  %v3408 = vunpack.c.l.b16 %v3015
  %v3409 = vunpack.c.h.b16 %v3015
  %v3410 = vunpack.c.l.b16 %v3016
  %v3411 = vunpack.c.l.b16 %v3017
  %v3412 = vunpack.c.h.b16 %v3017
  %v3413 = vunpack.c.l.b16 %v3018
  %v3414 = vunpack.c.l.b16 %v3019
  %v3415 = vunpack.c.h.b16 %v3019
  %v3416 = vunpack.c.l.b16 %v3020
  %v3417 = vunpack.c.l.b16 %v3021
  %v3418 = vunpack.c.h.b16 %v3021
  %v3419 = vunpack.c.l.b16 %v3022
  %v3420 = vunpack.c.l.b16 %v3023
  %v3421 = vunpack.c.h.b16 %v3023
  %v3422 = vunpack.c.l.b16 %v3024
  %v3423 = vunpack.c.l.b16 %v3025
  %v3424 = vunpack.c.h.b16 %v3025
  %v3425 = vunpack.c.l.b16 %v3026
  %v3426 = vunpack.c.l.b16 %v3027
  %v3427 = vunpack.c.h.b16 %v3027
  %v3428 = vunpack.c.l.b16 %v3028
  %v3429 = vunpack.c.l.b16 %v3029
  %v3430 = vunpack.c.h.b16 %v3029
  %v3431 = vunpack.c.l.b16 %v3030
  %v3432 = vunpack.c.l.b16 %v3031
  %v3433 = vunpack.c.h.b16 %v3031
  %v3434 = vunpack.c.l.b16 %v3032
  %v3435 = vunpack.c.l.b16 %v3033
  %v3436 = vunpack.c.h.b16 %v3033
  %v3437 = vunpack.c.l.b16 %v3034
  %v3438 = vunpack.c.l.b16 %v3035
  %v3439 = vunpack.c.h.b16 %v3035
  %v3440 = vunpack.c.l.b16 %v3036
  %v3441 = vunpack.c.l.b16 %v3037
  %v3442 = vunpack.c.h.b16 %v3037
  %v3443 = vunpack.c.l.b16 %v3038
  %v3444 = vunpack.c.l.b16 %v3039
  %v3445 = vunpack.c.h.b16 %v3039
  %v3446 = vunpack.c.l.b16 %v3040
  %v3447 = vunpack.c.l.b16 %v3041
  %v3448 = vunpack.c.h.b16 %v3041
  %v3449 = vunpack.c.l.b16 %v3042
  %v3450 = vunpack.c.l.b16 %v3043
  %v3451 = vunpack.c.h.b16 %v3043
  %v3452 = vunpack.c.l.b16 %v3044
  %v3453 = vunpack.c.l.b16 %v3045
  %v3454 = vunpack.c.h.b16 %v3045
  %v3455 = vunpack.c.l.b16 %v3046
  %v3456 = vunpack.c.l.b16 %v3047
  %v3457 = vunpack.c.h.b16 %v3047
  %v3458 = vunpack.c.l.b16 %v3048
  %v3459 = vunpack.c.l.b16 %v3049
  %v3460 = vunpack.c.h.b16 %v3049
  %v3461 = vunpack.c.l.b16 %v3050
  %v3462 = vunpack.c.l.b16 %v3051
  %v3463 = vunpack.c.h.b16 %v3051
  %v3464 = vunpack.c.l.b16 %v3052
  %v3465 = vunpack.c.l.b16 %v3053
  %v3466 = vunpack.c.h.b16 %v3053
  %v3467 = vunpack.c.l.b16 %v3054
  %v3468 = vunpack.c.l.b16 %v3055
  %v3469 = vunpack.c.h.b16 %v3055
  %v3470 = vunpack.c.l.b16 %v3056
  %v3471 = vunpack.c.l.b16 %v3057
  %v3472 = vunpack.c.h.b16 %v3057
  %v3473 = vunpack.c.l.b16 %v3058
  %v3474 = vunpack.c.l.b16 %v3059
  %v3475 = vunpack.c.h.b16 %v3059
  %v3476 = vunpack.c.l.b16 %v3060
  %v3477 = vunpack.c.l.b16 %v3061
  %v3478 = vunpack.c.h.b16 %v3061
  %v3479 = vunpack.c.l.b16 %v3062
  %v3480 = vunpack.c.l.b16 %v3063
  %v3481 = vunpack.c.h.b16 %v3063
  %v3482 = vunpack.c.l.b16 %v3064
  %v3483 = vunpack.c.l.b16 %v3065
  %v3484 = vunpack.c.h.b16 %v3065
  %v3485 = vunpack.c.l.b16 %v3066
  %v3486 = vunpack.c.l.b16 %v3067
  %v3487 = vunpack.c.h.b16 %v3067
  %v3488 = vunpack.c.l.b16 %v3068
  %v3489 = vunpack.c.l.b16 %v3069
  %v3490 = vunpack.c.h.b16 %v3069
  %v3491 = vunpack.c.l.b16 %v3070
  %v3492 = vunpack.c.l.b16 %v3071
  %v3493 = vunpack.c.h.b16 %v3071
  %v3494 = vunpack.c.l.b16 %v3072
  %v3495 = vunpack.c.l.b16 %v3073
  %v3496 = vunpack.c.h.b16 %v3073
  %v3497 = vunpack.c.l.b16 %v3074
  %v3498 = vunpack.c.l.b16 %v3075
  %v3499 = vunpack.c.h.b16 %v3075
  %v3500 = vunpack.c.l.b16 %v3076
  %v3501 = vunpack.c.l.b16 %v3077
  %v3502 = vunpack.c.h.b16 %v3077
  %v3503 = vunpack.c.l.b16 %v3078
  %v3504 = vunpack.c.l.b16 %v3079
  %v3505 = vunpack.c.h.b16 %v3079
  %v3506 = vunpack.c.l.b16 %v3080
  %v3507 = vunpack.c.l.b16 %v3081
  %v3508 = vunpack.c.h.b16 %v3081
  %v3509 = vunpack.c.l.b16 %v3082
  %v3510 = vunpack.c.l.b16 %v3083
  %v3511 = vunpack.c.h.b16 %v3083
  %v3512 = vunpack.c.l.b16 %v3084
  %v3513 = vunpack.c.l.b16 %v3085
  %v3514 = vunpack.c.h.b16 %v3085
  %v3515 = vunpack.c.l.b16 %v3086
  %v3516 = vunpack.c.l.b16 %v3087
  %v3517 = vunpack.c.h.b16 %v3087
  %v3518 = vunpack.c.l.b16 %v3088
  %v3519 = vunpack.c.l.b16 %v3089
  %v3520 = vunpack.c.h.b16 %v3089
  %v3521 = vunpack.c.l.b16 %v3090
  %v3522 = vunpack.c.l.b16 %v3091
  %v3523 = vunpack.c.h.b16 %v3091
  %v3524 = vunpack.c.l.b16 %v3092
  %v3525 = vunpack.c.l.b16 %v3093
  %v3526 = vunpack.c.h.b16 %v3093
  %v3527 = vunpack.c.l.b16 %v3094
  %v3528 = vunpack.c.l.b16 %v3095
  %v3529 = vunpack.c.h.b16 %v3095
  %v3530 = vunpack.c.l.b16 %v3096
  %v3531 = vunpack.c.l.b16 %v3097
  %v3532 = vunpack.c.h.b16 %v3097
  %v3533 = vunpack.c.l.b16 %v3098
  %v3534 = vunpack.c.l.b16 %v3099
  %v3535 = vunpack.c.h.b16 %v3099
  %v3536 = vunpack.c.l.b16 %v3100
  %v3537 = vunpack.c.l.b16 %v3101
  %v3538 = vunpack.c.h.b16 %v3101
  %v3539 = vunpack.c.l.b16 %v3102
  %v3540 = vunpack.c.l.b16 %v3103
  %v3541 = vunpack.c.h.b16 %v3103
  %v3542 = vunpack.c.l.b16 %v3104
  %v3543 = vunpack.c.l.b16 %v3105
  %v3544 = vunpack.c.h.b16 %v3105
  %v3545 = vunpack.c.l.b16 %v3106
  %v3546 = vunpack.c.l.b16 %v3107
  %v3547 = vunpack.c.h.b16 %v3107
  %v3548 = vunpack.c.l.b16 %v3108
  %v3549 = vunpack.c.l.b16 %v3109
  %v3550 = vunpack.c.h.b16 %v3109
  %v3551 = vunpack.c.l.b16 %v3110
  %v3552 = vunpack.c.l.b16 %v3111
  %v3553 = vunpack.c.h.b16 %v3111
  %v3554 = vunpack.c.l.b16 %v3112
  %v3555 = vunpack.c.l.b16 %v3113
  %v3556 = vunpack.c.h.b16 %v3113
  %v3557 = vunpack.c.l.b16 %v3114
  %v3558 = vunpack.c.l.b16 %v3115
  %v3559 = vunpack.c.h.b16 %v3115
  %v3560 = vunpack.c.l.b16 %v3116
  %v3561 = vunpack.c.l.b16 %v3117
  %v3562 = vunpack.c.h.b16 %v3117
  %v3563 = vunpack.c.l.b16 %v3118
  %v3564 = vunpack.c.l.b16 %v3119
  %v3565 = vunpack.c.h.b16 %v3119
  %v3566 = vunpack.c.l.b16 %v3120
  %v3567 = vunpack.c.l.b16 %v3121
  %v3568 = vunpack.c.h.b16 %v3121
  %v3569 = vunpack.c.l.b16 %v3122
  %v3570 = vunpack.c.l.b16 %v3123
  %v3571 = vunpack.c.h.b16 %v3123
  %v3572 = vunpack.c.l.b16 %v3124
  %v3573 = vunpack.c.l.b16 %v3125
  %v3574 = vunpack.c.h.b16 %v3125
  %v3575 = vunpack.c.l.b16 %v3126
  %v3576 = vunpack.c.l.b16 %v3127
  %v3577 = vunpack.c.h.b16 %v3127
  %v3578 = vunpack.c.l.b16 %v3128
  %v3579 = vunpack.c.l.b16 %v3129
  %v3580 = vunpack.c.h.b16 %v3129
  %v3581 = vunpack.c.l.b16 %v3130
  %v3582 = vunpack.c.l.b16 %v3131
  %v3583 = vunpack.c.h.b16 %v3131
  %v3584 = vunpack.c.l.b16 %v3132
  %v3585 = vunpack.c.l.b16 %v3133
  %v3586 = vunpack.c.h.b16 %v3133
  %v3587 = vunpack.c.l.b16 %v3134
  %v3588 = vunpack.c.l.b16 %v3135
  %v3589 = vunpack.c.h.b16 %v3135
  %v3590 = vunpack.c.l.b16 %v3136
  %v3591 = vunpack.c.l.b16 %v3137
  %v3592 = vunpack.c.h.b16 %v3137
  %v3593 = vunpack.c.l.b16 %v3138
  %v3594 = vunpack.c.l.b16 %v3139
  %v3595 = vunpack.c.h.b16 %v3139
  %v3596 = vunpack.c.l.b16 %v3140
  %v3597 = vunpack.c.l.b16 %v3141
  %v3598 = vunpack.c.h.b16 %v3141
  %v3599 = vunpack.c.l.b16 %v3142
  %v3600 = vunpack.c.l.b16 %v3143
  %v3601 = vunpack.c.h.b16 %v3143
  %v3602 = vunpack.c.l.b16 %v3144
  %v3603 = vpack.c.b16 %v3360, %v3357
  %v3604 = vpack.c.b16 %v3361, %v3358
  %v3605 = vpack.c.b16 %v3362, %v3359
  %v3606 = vpack.c.b16 %v3366, %v3363
  %v3607 = vpack.c.b16 %v3367, %v3364
  %v3608 = vpack.c.b16 %v3368, %v3365
  %v3609 = vpack.c.b16 %v3372, %v3369
  %v3610 = vpack.c.b16 %v3373, %v3370
  %v3611 = vpack.c.b16 %v3374, %v3371
  %v3612 = vpack.c.b16 %v3378, %v3375
  %v3613 = vpack.c.b16 %v3379, %v3376
  %v3614 = vpack.c.b16 %v3380, %v3377
  %v3615 = vpack.c.b16 %v3384, %v3381
  %v3616 = vpack.c.b16 %v3385, %v3382
  %v3617 = vpack.c.b16 %v3386, %v3383
  %v3618 = vpack.c.b16 %v3390, %v3387
  %v3619 = vpack.c.b16 %v3391, %v3388
  %v3620 = vpack.c.b16 %v3392, %v3389
  %v3621 = vpack.c.b16 %v3396, %v3393
  %v3622 = vpack.c.b16 %v3397, %v3394
  %v3623 = vpack.c.b16 %v3398, %v3395
  %v3624 = vpack.c.b16 %v3402, %v3399
  %v3625 = vpack.c.b16 %v3403, %v3400
  %v3626 = vpack.c.b16 %v3404, %v3401
  %v3627 = vpack.c.b16 %v3408, %v3405
  %v3628 = vpack.c.b16 %v3409, %v3406
  %v3629 = vpack.c.b16 %v3410, %v3407
  %v3630 = vpack.c.b16 %v3414, %v3411
  %v3631 = vpack.c.b16 %v3415, %v3412
  %v3632 = vpack.c.b16 %v3416, %v3413
  %v3633 = vpack.c.b16 %v3420, %v3417
  %v3634 = vpack.c.b16 %v3421, %v3418
  %v3635 = vpack.c.b16 %v3422, %v3419
  %v3636 = vpack.c.b16 %v3426, %v3423
  %v3637 = vpack.c.b16 %v3427, %v3424
  %v3638 = vpack.c.b16 %v3428, %v3425
  %v3639 = vpack.c.b16 %v3432, %v3429
  %v3640 = vpack.c.b16 %v3433, %v3430
  %v3641 = vpack.c.b16 %v3434, %v3431
  %v3642 = vpack.c.b16 %v3438, %v3435
  %v3643 = vpack.c.b16 %v3439, %v3436
  %v3644 = vpack.c.b16 %v3440, %v3437
  %v3645 = vpack.c.b16 %v3444, %v3441
  %v3646 = vpack.c.b16 %v3445, %v3442
  %v3647 = vpack.c.b16 %v3446, %v3443
  %v3648 = vpack.c.b16 %v3450, %v3447
  %v3649 = vpack.c.b16 %v3451, %v3448
  %v3650 = vpack.c.b16 %v3452, %v3449
  %v3651 = vpack.c.b16 %v3456, %v3453
  %v3652 = vpack.c.b16 %v3457, %v3454
  %v3653 = vpack.c.b16 %v3458, %v3455
  %v3654 = vpack.c.b16 %v3462, %v3459
  %v3655 = vpack.c.b16 %v3463, %v3460
  %v3656 = vpack.c.b16 %v3464, %v3461
  %v3657 = vpack.c.b16 %v3468, %v3465
  %v3658 = vpack.c.b16 %v3469, %v3466
  %v3659 = vpack.c.b16 %v3470, %v3467
  %v3660 = vpack.c.b16 %v3474, %v3471
  %v3661 = vpack.c.b16 %v3475, %v3472
  %v3662 = vpack.c.b16 %v3476, %v3473
  %v3663 = vpack.c.b16 %v3480, %v3477
  %v3664 = vpack.c.b16 %v3481, %v3478
  %v3665 = vpack.c.b16 %v3482, %v3479
  %v3666 = vpack.c.b16 %v3486, %v3483
  %v3667 = vpack.c.b16 %v3487, %v3484
  %v3668 = vpack.c.b16 %v3488, %v3485
  %v3669 = vpack.c.b16 %v3492, %v3489
  %v3670 = vpack.c.b16 %v3493, %v3490
  %v3671 = vpack.c.b16 %v3494, %v3491
  %v3672 = vpack.c.b16 %v3498, %v3495
  %v3673 = vpack.c.b16 %v3499, %v3496
  %v3674 = vpack.c.b16 %v3500, %v3497
  %v3675 = vpack.c.b16 %v3504, %v3501
  %v3676 = vpack.c.b16 %v3505, %v3502
  %v3677 = vpack.c.b16 %v3506, %v3503
  %v3678 = vpack.c.b16 %v3510, %v3507
  %v3679 = vpack.c.b16 %v3511, %v3508
  %v3680 = vpack.c.b16 %v3512, %v3509
  %v3681 = vpack.c.b16 %v3516, %v3513
  %v3682 = vpack.c.b16 %v3517, %v3514
  %v3683 = vpack.c.b16 %v3518, %v3515
  %v3684 = vpack.c.b16 %v3522, %v3519
  %v3685 = vpack.c.b16 %v3523, %v3520
  %v3686 = vpack.c.b16 %v3524, %v3521
  %v3687 = vpack.c.b16 %v3528, %v3525
  %v3688 = vpack.c.b16 %v3529, %v3526
  %v3689 = vpack.c.b16 %v3530, %v3527
  %v3690 = vpack.c.b16 %v3534, %v3531
  %v3691 = vpack.c.b16 %v3535, %v3532
  %v3692 = vpack.c.b16 %v3536, %v3533
  %v3693 = vpack.c.b16 %v3540, %v3537
  %v3694 = vpack.c.b16 %v3541, %v3538
  %v3695 = vpack.c.b16 %v3542, %v3539
  %v3696 = vpack.c.b16 %v3546, %v3543
  %v3697 = vpack.c.b16 %v3547, %v3544
  %v3698 = vpack.c.b16 %v3548, %v3545
  %v3699 = vpack.c.b16 %v3552, %v3549
  %v3700 = vpack.c.b16 %v3553, %v3550
  %v3701 = vpack.c.b16 %v3554, %v3551
  %v3702 = vpack.c.b16 %v3558, %v3555
  %v3703 = vpack.c.b16 %v3559, %v3556
  %v3704 = vpack.c.b16 %v3560, %v3557
  %v3705 = vpack.c.b16 %v3564, %v3561
  %v3706 = vpack.c.b16 %v3565, %v3562
  %v3707 = vpack.c.b16 %v3566, %v3563
  %v3708 = vpack.c.b16 %v3570, %v3567
  %v3709 = vpack.c.b16 %v3571, %v3568
  %v3710 = vpack.c.b16 %v3572, %v3569
  %v3711 = vpack.c.b16 %v3576, %v3573
  %v3712 = vpack.c.b16 %v3577, %v3574
  %v3713 = vpack.c.b16 %v3578, %v3575
  %v3714 = vpack.c.b16 %v3582, %v3579
  %v3715 = vpack.c.b16 %v3583, %v3580
  %v3716 = vpack.c.b16 %v3584, %v3581
  %v3717 = vpack.c.b16 %v3588, %v3585
  %v3718 = vpack.c.b16 %v3589, %v3586
  %v3719 = vpack.c.b16 %v3590, %v3587
  %v3720 = vpack.c.b16 %v3594, %v3591
  %v3721 = vpack.c.b16 %v3595, %v3592
  %v3722 = vpack.c.b16 %v3596, %v3593
  %v3723 = vpack.c.b16 %v3600, %v3597
  %v3724 = vpack.c.b16 %v3601, %v3598
  %v3725 = vpack.c.b16 %v3602, %v3599
  %vm3726 = vcmask 1044480
  %v3727 = vrot.slane %v3603, 3
  %v3728 = vrot.slane %v3606, 3
  %v3729 = vsel %vm3726, %v3727, %v3728
  %v3730 = vrot.slane %v3604, 3
  %v3731 = vrot.slane %v3607, 3
  %v3732 = vsel %vm3726, %v3730, %v3731
  %v3733 = vrot.slane %v3605, 3
  %v3734 = vrot.slane %v3608, 3
  %v3735 = vsel %vm3726, %v3733, %v3734
  %v3736 = vrot.slane %v3609, 3
  %v3737 = vsel %vm3726, %v3728, %v3736
  %v3738 = vrot.slane %v3610, 3
  %v3739 = vsel %vm3726, %v3731, %v3738
  %v3740 = vrot.slane %v3611, 3
  %v3741 = vsel %vm3726, %v3734, %v3740
  %v3742 = vrot.slane %v3612, 3
  %v3743 = vsel %vm3726, %v3736, %v3742
  %v3744 = vrot.slane %v3613, 3
  %v3745 = vsel %vm3726, %v3738, %v3744
  %v3746 = vrot.slane %v3614, 3
  %v3747 = vsel %vm3726, %v3740, %v3746
  %v3748 = vrot.slane %v3615, 3
  %v3749 = vsel %vm3726, %v3742, %v3748
  %v3750 = vrot.slane %v3616, 3
  %v3751 = vsel %vm3726, %v3744, %v3750
  %v3752 = vrot.slane %v3617, 3
  %v3753 = vsel %vm3726, %v3746, %v3752
  %v3754 = vrot.slane %v3618, 3
  %v3755 = vsel %vm3726, %v3748, %v3754
  %v3756 = vrot.slane %v3619, 3
  %v3757 = vsel %vm3726, %v3750, %v3756
  %v3758 = vrot.slane %v3620, 3
  %v3759 = vsel %vm3726, %v3752, %v3758
  %v3760 = vrot.slane %v3621, 3
  %v3761 = vsel %vm3726, %v3754, %v3760
  %v3762 = vrot.slane %v3622, 3
  %v3763 = vsel %vm3726, %v3756, %v3762
  %v3764 = vrot.slane %v3623, 3
  %v3765 = vsel %vm3726, %v3758, %v3764
  %v3766 = vrot.slane %v3624, 3
  %v3767 = vsel %vm3726, %v3760, %v3766
  %v3768 = vrot.slane %v3625, 3
  %v3769 = vsel %vm3726, %v3762, %v3768
  %v3770 = vrot.slane %v3626, 3
  %v3771 = vsel %vm3726, %v3764, %v3770
  %v3772 = vrot.slane %v3627, 3
  %v3773 = vsel %vm3726, %v3766, %v3772
  %v3774 = vrot.slane %v3628, 3
  %v3775 = vsel %vm3726, %v3768, %v3774
  %v3776 = vrot.slane %v3629, 3
  %v3777 = vsel %vm3726, %v3770, %v3776
  %v3778 = vrot.slane %v3630, 3
  %v3779 = vsel %vm3726, %v3772, %v3778
  %v3780 = vrot.slane %v3631, 3
  %v3781 = vsel %vm3726, %v3774, %v3780
  %v3782 = vrot.slane %v3632, 3
  %v3783 = vsel %vm3726, %v3776, %v3782
  %v3784 = vrot.slane %v3633, 3
  %v3785 = vsel %vm3726, %v3778, %v3784
  %v3786 = vrot.slane %v3634, 3
  %v3787 = vsel %vm3726, %v3780, %v3786
  %v3788 = vrot.slane %v3635, 3
  %v3789 = vsel %vm3726, %v3782, %v3788
  %v3790 = vrot.slane %v3636, 3
  %v3791 = vsel %vm3726, %v3784, %v3790
  %v3792 = vrot.slane %v3637, 3
  %v3793 = vsel %vm3726, %v3786, %v3792
  %v3794 = vrot.slane %v3638, 3
  %v3795 = vsel %vm3726, %v3788, %v3794
  %v3796 = vrot.slane %v3639, 3
  %v3797 = vsel %vm3726, %v3790, %v3796
  %v3798 = vrot.slane %v3640, 3
  %v3799 = vsel %vm3726, %v3792, %v3798
  %v3800 = vrot.slane %v3641, 3
  %v3801 = vsel %vm3726, %v3794, %v3800
  %v3802 = vrot.slane %v3642, 3
  %v3803 = vsel %vm3726, %v3796, %v3802
  %v3804 = vrot.slane %v3643, 3
  %v3805 = vsel %vm3726, %v3798, %v3804
  %v3806 = vrot.slane %v3644, 3
  %v3807 = vsel %vm3726, %v3800, %v3806
  %v3808 = vrot.slane %v3645, 3
  %v3809 = vsel %vm3726, %v3802, %v3808
  %v3810 = vrot.slane %v3646, 3
  %v3811 = vsel %vm3726, %v3804, %v3810
  %v3812 = vrot.slane %v3647, 3
  %v3813 = vsel %vm3726, %v3806, %v3812
  %v3814 = vrot.slane %v3648, 3
  %v3815 = vsel %vm3726, %v3808, %v3814
  %v3816 = vrot.slane %v3649, 3
  %v3817 = vsel %vm3726, %v3810, %v3816
  %v3818 = vrot.slane %v3650, 3
  %v3819 = vsel %vm3726, %v3812, %v3818
  %v3820 = vrot.slane %v3651, 3
  %v3821 = vsel %vm3726, %v3814, %v3820
  %v3822 = vrot.slane %v3652, 3
  %v3823 = vsel %vm3726, %v3816, %v3822
  %v3824 = vrot.slane %v3653, 3
  %v3825 = vsel %vm3726, %v3818, %v3824
  %v3826 = vrot.slane %v3654, 3
  %v3827 = vsel %vm3726, %v3820, %v3826
  %v3828 = vrot.slane %v3655, 3
  %v3829 = vsel %vm3726, %v3822, %v3828
  %v3830 = vrot.slane %v3656, 3
  %v3831 = vsel %vm3726, %v3824, %v3830
  %v3832 = vrot.slane %v3657, 3
  %v3833 = vsel %vm3726, %v3826, %v3832
  %v3834 = vrot.slane %v3658, 3
  %v3835 = vsel %vm3726, %v3828, %v3834
  %v3836 = vrot.slane %v3659, 3
  %v3837 = vsel %vm3726, %v3830, %v3836
  %v3838 = vrot.slane %v3660, 3
  %v3839 = vsel %vm3726, %v3832, %v3838
  %v3840 = vrot.slane %v3661, 3
  %v3841 = vsel %vm3726, %v3834, %v3840
  %v3842 = vrot.slane %v3662, 3
  %v3843 = vsel %vm3726, %v3836, %v3842
  %v3844 = vrot.slane %v3663, 3
  %v3845 = vsel %vm3726, %v3838, %v3844
  %v3846 = vrot.slane %v3664, 3
  %v3847 = vsel %vm3726, %v3840, %v3846
  %v3848 = vrot.slane %v3665, 3
  %v3849 = vsel %vm3726, %v3842, %v3848
  %v3850 = vrot.slane %v3666, 3
  %v3851 = vsel %vm3726, %v3844, %v3850
  %v3852 = vrot.slane %v3667, 3
  %v3853 = vsel %vm3726, %v3846, %v3852
  %v3854 = vrot.slane %v3668, 3
  %v3855 = vsel %vm3726, %v3848, %v3854
  %v3856 = vrot.slane %v3669, 3
  %v3857 = vsel %vm3726, %v3850, %v3856
  %v3858 = vrot.slane %v3670, 3
  %v3859 = vsel %vm3726, %v3852, %v3858
  %v3860 = vrot.slane %v3671, 3
  %v3861 = vsel %vm3726, %v3854, %v3860
  %v3862 = vrot.slane %v3672, 3
  %v3863 = vsel %vm3726, %v3856, %v3862
  %v3864 = vrot.slane %v3673, 3
  %v3865 = vsel %vm3726, %v3858, %v3864
  %v3866 = vrot.slane %v3674, 3
  %v3867 = vsel %vm3726, %v3860, %v3866
  %v3868 = vrot.slane %v3675, 3
  %v3869 = vsel %vm3726, %v3862, %v3868
  %v3870 = vrot.slane %v3676, 3
  %v3871 = vsel %vm3726, %v3864, %v3870
  %v3872 = vrot.slane %v3677, 3
  %v3873 = vsel %vm3726, %v3866, %v3872
  %v3874 = vrot.slane %v3678, 3
  %v3875 = vsel %vm3726, %v3868, %v3874
  %v3876 = vrot.slane %v3679, 3
  %v3877 = vsel %vm3726, %v3870, %v3876
  %v3878 = vrot.slane %v3680, 3
  %v3879 = vsel %vm3726, %v3872, %v3878
  %v3880 = vrot.slane %v3681, 3
  %v3881 = vsel %vm3726, %v3874, %v3880
  %v3882 = vrot.slane %v3682, 3
  %v3883 = vsel %vm3726, %v3876, %v3882
  %v3884 = vrot.slane %v3683, 3
  %v3885 = vsel %vm3726, %v3878, %v3884
  %v3886 = vrot.slane %v3684, 3
  %v3887 = vsel %vm3726, %v3880, %v3886
  %v3888 = vrot.slane %v3685, 3
  %v3889 = vsel %vm3726, %v3882, %v3888
  %v3890 = vrot.slane %v3686, 3
  %v3891 = vsel %vm3726, %v3884, %v3890
  %v3892 = vrot.slane %v3687, 3
  %v3893 = vsel %vm3726, %v3886, %v3892
  %v3894 = vrot.slane %v3688, 3
  %v3895 = vsel %vm3726, %v3888, %v3894
  %v3896 = vrot.slane %v3689, 3
  %v3897 = vsel %vm3726, %v3890, %v3896
  %v3898 = vrot.slane %v3690, 3
  %v3899 = vsel %vm3726, %v3892, %v3898
  %v3900 = vrot.slane %v3691, 3
  %v3901 = vsel %vm3726, %v3894, %v3900
  %v3902 = vrot.slane %v3692, 3
  %v3903 = vsel %vm3726, %v3896, %v3902
  %v3904 = vrot.slane %v3693, 3
  %v3905 = vsel %vm3726, %v3898, %v3904
  %v3906 = vrot.slane %v3694, 3
  %v3907 = vsel %vm3726, %v3900, %v3906
  %v3908 = vrot.slane %v3695, 3
  %v3909 = vsel %vm3726, %v3902, %v3908
  %v3910 = vrot.slane %v3696, 3
  %v3911 = vsel %vm3726, %v3904, %v3910
  %v3912 = vrot.slane %v3697, 3
  %v3913 = vsel %vm3726, %v3906, %v3912
  %v3914 = vrot.slane %v3698, 3
  %v3915 = vsel %vm3726, %v3908, %v3914
  %v3916 = vrot.slane %v3699, 3
  %v3917 = vsel %vm3726, %v3910, %v3916
  %v3918 = vrot.slane %v3700, 3
  %v3919 = vsel %vm3726, %v3912, %v3918
  %v3920 = vrot.slane %v3701, 3
  %v3921 = vsel %vm3726, %v3914, %v3920
  %v3922 = vrot.slane %v3702, 3
  %v3923 = vsel %vm3726, %v3916, %v3922
  %v3924 = vrot.slane %v3703, 3
  %v3925 = vsel %vm3726, %v3918, %v3924
  %v3926 = vrot.slane %v3704, 3
  %v3927 = vsel %vm3726, %v3920, %v3926
  %v3928 = vrot.slane %v3705, 3
  %v3929 = vsel %vm3726, %v3922, %v3928
  %v3930 = vrot.slane %v3706, 3
  %v3931 = vsel %vm3726, %v3924, %v3930
  %v3932 = vrot.slane %v3707, 3
  %v3933 = vsel %vm3726, %v3926, %v3932
  %v3934 = vrot.slane %v3708, 3
  %v3935 = vsel %vm3726, %v3928, %v3934
  %v3936 = vrot.slane %v3709, 3
  %v3937 = vsel %vm3726, %v3930, %v3936
  %v3938 = vrot.slane %v3710, 3
  %v3939 = vsel %vm3726, %v3932, %v3938
  %v3940 = vrot.slane %v3711, 3
  %v3941 = vsel %vm3726, %v3934, %v3940
  %v3942 = vrot.slane %v3712, 3
  %v3943 = vsel %vm3726, %v3936, %v3942
  %v3944 = vrot.slane %v3713, 3
  %v3945 = vsel %vm3726, %v3938, %v3944
  %v3946 = vrot.slane %v3714, 3
  %v3947 = vsel %vm3726, %v3940, %v3946
  %v3948 = vrot.slane %v3715, 3
  %v3949 = vsel %vm3726, %v3942, %v3948
  %v3950 = vrot.slane %v3716, 3
  %v3951 = vsel %vm3726, %v3944, %v3950
  %v3952 = vrot.slane %v3717, 3
  %v3953 = vsel %vm3726, %v3946, %v3952
  %v3954 = vrot.slane %v3718, 3
  %v3955 = vsel %vm3726, %v3948, %v3954
  %v3956 = vrot.slane %v3719, 3
  %v3957 = vsel %vm3726, %v3950, %v3956
  %v3958 = vrot.slane %v3720, 3
  %v3959 = vsel %vm3726, %v3952, %v3958
  %v3960 = vrot.slane %v3721, 3
  %v3961 = vsel %vm3726, %v3954, %v3960
  %v3962 = vrot.slane %v3722, 3
  %v3963 = vsel %vm3726, %v3956, %v3962
  %v3964 = vrot.slane %v3723, 3
  %v3965 = vsel %vm3726, %v3958, %v3964
  %v3966 = vrot.slane %v3724, 3
  %v3967 = vsel %vm3726, %v3960, %v3966
  %v3968 = vrot.slane %v3725, 3
  %v3969 = vsel %vm3726, %v3962, %v3968
  %v4141 = vunpack.c.l.b16 %v3145
  %v4142 = vunpack.c.l.b16 %v3146
  %v4143 = vunpack.c.l.b16 %v3147
  %v4144 = vunpack.c.l.b16 %v3148
  %v4145 = vunpack.c.l.b16 %v3149
  %v4146 = vunpack.c.l.b16 %v3150
  %v4147 = vunpack.c.l.b16 %v3151
  %v4148 = vunpack.c.l.b16 %v3152
  %v4149 = vunpack.c.l.b16 %v3153
  %v4150 = vunpack.c.l.b16 %v3154
  %v4151 = vunpack.c.l.b16 %v3155
  %v4152 = vunpack.c.l.b16 %v3156
  %v4153 = vunpack.c.l.b16 %v3157
  %v4154 = vunpack.c.l.b16 %v3158
  %v4155 = vunpack.c.l.b16 %v3159
  %v4156 = vunpack.c.l.b16 %v3160
  %v4157 = vunpack.c.l.b16 %v3161
  %v4158 = vunpack.c.l.b16 %v3162
  %v4159 = vunpack.c.l.b16 %v3163
  %v4160 = vunpack.c.l.b16 %v3164
  %v4161 = vunpack.c.l.b16 %v3165
  %v4162 = vunpack.c.l.b16 %v3166
  %v4163 = vunpack.c.l.b16 %v3167
  %v4164 = vunpack.c.l.b16 %v3168
  %v4165 = vunpack.c.l.b16 %v3169
  %v4166 = vunpack.c.l.b16 %v3170
  %v4167 = vunpack.c.l.b16 %v3171
  %v4168 = vunpack.c.l.b16 %v3172
  %v4169 = vunpack.c.l.b16 %v3173
  %v4170 = vunpack.c.l.b16 %v3174
  %v4171 = vunpack.c.l.b16 %v3175
  %v4172 = vunpack.c.l.b16 %v3176
  %v4173 = vunpack.c.l.b16 %v3177
  %v4174 = vunpack.c.l.b16 %v3178
  %v4175 = vunpack.c.l.b16 %v3179
  %v4176 = vunpack.c.l.b16 %v3180
  %v4177 = vunpack.c.l.b16 %v3181
  %v4178 = vunpack.c.l.b16 %v3182
  %v4179 = vunpack.c.l.b16 %v3183
  %v4180 = vunpack.c.l.b16 %v3184
  %v4181 = vunpack.c.l.b16 %v3185
  %v4182 = vunpack.c.l.b16 %v3186
  %v4183 = vunpack.c.l.b16 %v3187
  %v4184 = vunpack.c.l.b16 %v3188
  %v4185 = vunpack.c.l.b16 %v3189
  %v4186 = vunpack.c.l.b16 %v3190
  %v4187 = vunpack.c.l.b16 %v3191
  %v4188 = vunpack.c.l.b16 %v3192
  %v4189 = vpack.c.b16 %v4142, %v4141
  %v4190 = vpack.c.b16 %v4144, %v4143
  %v4191 = vpack.c.b16 %v4146, %v4145
  %v4192 = vpack.c.b16 %v4148, %v4147
  %v4193 = vpack.c.b16 %v4150, %v4149
  %v4194 = vpack.c.b16 %v4152, %v4151
  %v4195 = vpack.c.b16 %v4154, %v4153
  %v4196 = vpack.c.b16 %v4156, %v4155
  %v4197 = vpack.c.b16 %v4158, %v4157
  %v4198 = vpack.c.b16 %v4160, %v4159
  %v4199 = vpack.c.b16 %v4162, %v4161
  %v4200 = vpack.c.b16 %v4164, %v4163
  %v4201 = vpack.c.b16 %v4166, %v4165
  %v4202 = vpack.c.b16 %v4168, %v4167
  %v4203 = vpack.c.b16 %v4170, %v4169
  %v4204 = vpack.c.b16 %v4172, %v4171
  %v4205 = vpack.c.b16 %v4174, %v4173
  %v4206 = vpack.c.b16 %v4176, %v4175
  %v4207 = vpack.c.b16 %v4178, %v4177
  %v4208 = vpack.c.b16 %v4180, %v4179
  %v4209 = vpack.c.b16 %v4182, %v4181
  %v4210 = vpack.c.b16 %v4184, %v4183
  %v4211 = vpack.c.b16 %v4186, %v4185
  %v4212 = vpack.c.b16 %v4188, %v4187
  %4237 = vmatprep.subr.bf16.mxu0 0
  %4238 = vmatpush1.bf16.msra.mxu0 %v4189
  %4239 = vmatprep.subr.bf16.mxu0 0
  %4240 = vmatpush1.bf16.msra.mxu0 %v4190
  %4241 = vmatprep.subr.bf16.mxu0 0
  %4242 = vmatpush1.bf16.msra.mxu0 %v4191
  %4243 = vmatprep.subr.bf16.mxu0 0
  %4244 = vmatpush1.bf16.msra.mxu0 %v4192
  %4245 = vmatprep.subr.bf16.mxu0 0
  %4246 = vmatpush1.bf16.msra.mxu0 %v4193
  %4247 = vmatprep.subr.bf16.mxu0 0
  %4248 = vmatpush1.bf16.msra.mxu0 %v4194
  %4249 = vmatprep.subr.bf16.mxu0 0
  %4250 = vmatpush1.bf16.msra.mxu0 %v4195
  %4251 = vmatprep.subr.bf16.mxu0 0
  %4252 = vmatpush1.bf16.msra.mxu0 %v4196
  %4253 = vmatprep.subr.bf16.mxu0 0
  %4254 = vmatpush1.bf16.msra.mxu0 %v4197
  %4255 = vmatprep.subr.bf16.mxu0 0
  %4256 = vmatpush1.bf16.msra.mxu0 %v4198
  %4257 = vmatprep.subr.bf16.mxu0 0
  %4258 = vmatpush1.bf16.msra.mxu0 %v4199
  %4259 = vmatprep.subr.bf16.mxu0 0
  %4260 = vmatpush1.bf16.msra.mxu0 %v4200
  %4261 = vmatprep.subr.bf16.mxu0 0
  %4262 = vmatpush1.bf16.msra.mxu0 %v4201
  %4263 = vmatprep.subr.bf16.mxu0 0
  %4264 = vmatpush1.bf16.msra.mxu0 %v4202
  %4265 = vmatprep.subr.bf16.mxu0 0
  %4266 = vmatpush1.bf16.msra.mxu0 %v4203
  %4267 = vmatprep.subr.bf16.mxu0 0
  %4268 = vmatpush1.bf16.msra.mxu0 %v4204
  %4269 = vmatprep.mubr.bf16.mxu0 %v3732
  %4270 = vmatmul.mubr.bf16.gmra.mrb[0].mxu0 %v3729
  %v4271 = vpop.f32.mrb[0].mxu0
  %v4272 = vadd.f32 0.0, %v4271
  %v4273 = vpop.f32.mrb[0].mxu0
  %v4274 = vpop.f32.mrb[0].mxu0
  %v4275 = vadd.f32 0.0, %v4274
  %v4276 = vpop.f32.mrb[0].mxu0
  %4277 = vmatprep.mubr.bf16.mxu0 %v3739
  %4278 = vmatmul.mubr.bf16.gmra.mrb[0].mxu0 %v3737
  %v4279 = vpop.f32.mrb[0].mxu0
  %v4280 = vadd.f32 0.0, %v4279
  %v4281 = vpop.f32.mrb[0].mxu0
  %v4282 = vpop.f32.mrb[0].mxu0
  %v4283 = vadd.f32 0.0, %v4282
  %v4284 = vpop.f32.mrb[0].mxu0
  %4285 = vmatprep.mubr.bf16.mxu0 %v3745
  %4286 = vmatmul.mubr.bf16.gmra.mrb[0].mxu0 %v3743
  %v4287 = vpop.f32.mrb[0].mxu0
  %v4288 = vadd.f32 0.0, %v4287
  %v4289 = vpop.f32.mrb[0].mxu0
  %v4290 = vpop.f32.mrb[0].mxu0
  %v4291 = vadd.f32 0.0, %v4290
  %v4292 = vpop.f32.mrb[0].mxu0
  %4293 = vmatprep.mubr.bf16.mxu0 %v3751
  %4294 = vmatmul.mubr.bf16.gmra.mrb[0].mxu0 %v3749
  %v4295 = vpop.f32.mrb[0].mxu0
  %v4296 = vadd.f32 0.0, %v4295
  %v4297 = vpop.f32.mrb[0].mxu0
  %v4298 = vpop.f32.mrb[0].mxu0
  %v4299 = vadd.f32 0.0, %v4298
  %v4300 = vpop.f32.mrb[0].mxu0
  %4301 = vmatprep.mubr.bf16.mxu0 %v3757
  %4302 = vmatmul.mubr.bf16.gmra.mrb[0].mxu0 %v3755
  %v4303 = vpop.f32.mrb[0].mxu0
  %v4304 = vadd.f32 0.0, %v4303
  %v4305 = vpop.f32.mrb[0].mxu0
  %v4306 = vpop.f32.mrb[0].mxu0
  %v4307 = vadd.f32 0.0, %v4306
  %v4308 = vpop.f32.mrb[0].mxu0
  %4309 = vmatprep.mubr.bf16.mxu0 %v3763
  %4310 = vmatmul.mubr.bf16.gmra.mrb[0].mxu0 %v3761
  %v4311 = vpop.f32.mrb[0].mxu0
  %v4312 = vadd.f32 0.0, %v4311
  %v4313 = vpop.f32.mrb[0].mxu0
  %v4314 = vpop.f32.mrb[0].mxu0
  %v4315 = vadd.f32 0.0, %v4314
  %v4316 = vpop.f32.mrb[0].mxu0
  %4317 = vmatprep.mubr.bf16.mxu0 %v3769
  %4318 = vmatmul.mubr.bf16.gmra.mrb[0].mxu0 %v3767
  %v4319 = vpop.f32.mrb[0].mxu0
  %v4320 = vadd.f32 0.0, %v4319
  %v4321 = vpop.f32.mrb[0].mxu0
  %v4322 = vpop.f32.mrb[0].mxu0
  %v4323 = vadd.f32 0.0, %v4322
  %v4324 = vpop.f32.mrb[0].mxu0
  %4325 = vmatprep.mubr.bf16.mxu0 %v3775
  %4326 = vmatmul.mubr.bf16.gmra.mrb[0].mxu0 %v3773
  %v4327 = vpop.f32.mrb[0].mxu0
  %v4328 = vadd.f32 0.0, %v4327
  %v4329 = vpop.f32.mrb[0].mxu0
  %v4330 = vpop.f32.mrb[0].mxu0
  %v4331 = vadd.f32 0.0, %v4330
  %v4332 = vpop.f32.mrb[0].mxu0
  %4333 = vmatprep.mubr.bf16.mxu0 %v3781
  %4334 = vmatmul.mubr.bf16.gmra.mrb[0].mxu0 %v3779
  %v4335 = vpop.f32.mrb[0].mxu0
  %v4336 = vadd.f32 0.0, %v4335
  %v4337 = vpop.f32.mrb[0].mxu0
  %v4338 = vpop.f32.mrb[0].mxu0
  %v4339 = vadd.f32 0.0, %v4338
  %v4340 = vpop.f32.mrb[0].mxu0
  %4341 = vmatprep.mubr.bf16.mxu0 %v3787
  %4342 = vmatmul.mubr.bf16.gmra.mrb[0].mxu0 %v3785
  %v4343 = vpop.f32.mrb[0].mxu0
  %v4344 = vadd.f32 0.0, %v4343
  %v4345 = vpop.f32.mrb[0].mxu0
  %v4346 = vpop.f32.mrb[0].mxu0
  %v4347 = vadd.f32 0.0, %v4346
  %v4348 = vpop.f32.mrb[0].mxu0
  %4349 = vmatprep.mubr.bf16.mxu0 %v3793
  %4350 = vmatmul.mubr.bf16.gmra.mrb[0].mxu0 %v3791
  %v4351 = vpop.f32.mrb[0].mxu0
  %v4352 = vadd.f32 0.0, %v4351
  %v4353 = vpop.f32.mrb[0].mxu0
  %v4354 = vpop.f32.mrb[0].mxu0
  %v4355 = vadd.f32 0.0, %v4354
  %v4356 = vpop.f32.mrb[0].mxu0
  %4357 = vmatprep.mubr.bf16.mxu0 %v3799
  %4358 = vmatmul.mubr.bf16.gmra.mrb[0].mxu0 %v3797
  %v4359 = vpop.f32.mrb[0].mxu0
  %v4360 = vadd.f32 0.0, %v4359
  %v4361 = vpop.f32.mrb[0].mxu0
  %v4362 = vpop.f32.mrb[0].mxu0
  %v4363 = vadd.f32 0.0, %v4362
  %v4364 = vpop.f32.mrb[0].mxu0
  %4365 = vmatprep.mubr.bf16.mxu0 %v3805
  %4366 = vmatmul.mubr.bf16.gmra.mrb[0].mxu0 %v3803
  %v4367 = vpop.f32.mrb[0].mxu0
  %v4368 = vadd.f32 0.0, %v4367
  %v4369 = vpop.f32.mrb[0].mxu0
  %v4370 = vpop.f32.mrb[0].mxu0
  %v4371 = vadd.f32 0.0, %v4370
  %v4372 = vpop.f32.mrb[0].mxu0
  %4373 = vmatprep.mubr.bf16.mxu0 %v3811
  %4374 = vmatmul.mubr.bf16.gmra.mrb[0].mxu0 %v3809
  %v4375 = vpop.f32.mrb[0].mxu0
  %v4376 = vadd.f32 0.0, %v4375
  %v4377 = vpop.f32.mrb[0].mxu0
  %v4378 = vpop.f32.mrb[0].mxu0
  %v4379 = vadd.f32 0.0, %v4378
  %v4380 = vpop.f32.mrb[0].mxu0
  %4381 = vmatprep.mubr.bf16.mxu0 %v3817
  %4382 = vmatmul.mubr.bf16.gmra.mrb[0].mxu0 %v3815
  %v4383 = vpop.f32.mrb[0].mxu0
  %v4384 = vadd.f32 0.0, %v4383
  %v4385 = vpop.f32.mrb[0].mxu0
  %v4386 = vpop.f32.mrb[0].mxu0
  %v4387 = vadd.f32 0.0, %v4386
  %v4388 = vpop.f32.mrb[0].mxu0
  %4389 = vmatprep.mubr.bf16.mxu0 %v3823
  %4390 = vmatmul.mubr.bf16.gmra.mrb[0].mxu0 %v3821
  %v4391 = vpop.f32.mrb[0].mxu0
  %v4392 = vadd.f32 0.0, %v4391
  %v4393 = vpop.f32.mrb[0].mxu0
  %v4394 = vpop.f32.mrb[0].mxu0
  %v4395 = vadd.f32 0.0, %v4394
  %v4396 = vpop.f32.mrb[0].mxu0
  %4397 = vmatprep.mubr.bf16.mxu0 %v3829
  %4398 = vmatmul.mubr.bf16.gmra.mrb[0].mxu0 %v3827
  %v4399 = vpop.f32.mrb[0].mxu0
  %v4400 = vadd.f32 0.0, %v4399
  %v4401 = vpop.f32.mrb[0].mxu0
  %v4402 = vpop.f32.mrb[0].mxu0
  %v4403 = vadd.f32 0.0, %v4402
  %v4404 = vpop.f32.mrb[0].mxu0
  %4405 = vmatprep.mubr.bf16.mxu0 %v3835
  %4406 = vmatmul.mubr.bf16.gmra.mrb[0].mxu0 %v3833
  %v4407 = vpop.f32.mrb[0].mxu0
  %v4408 = vadd.f32 0.0, %v4407
  %v4409 = vpop.f32.mrb[0].mxu0
  %v4410 = vpop.f32.mrb[0].mxu0
  %v4411 = vadd.f32 0.0, %v4410
  %v4412 = vpop.f32.mrb[0].mxu0
  %4413 = vmatprep.mubr.bf16.mxu0 %v3841
  %4414 = vmatmul.mubr.bf16.gmra.mrb[0].mxu0 %v3839
  %v4415 = vpop.f32.mrb[0].mxu0
  %v4416 = vadd.f32 0.0, %v4415
  %v4417 = vpop.f32.mrb[0].mxu0
  %v4418 = vpop.f32.mrb[0].mxu0
  %v4419 = vadd.f32 0.0, %v4418
  %v4420 = vpop.f32.mrb[0].mxu0
  %4421 = vmatprep.mubr.bf16.mxu0 %v3847
  %4422 = vmatmul.mubr.bf16.gmra.mrb[0].mxu0 %v3845
  %v4423 = vpop.f32.mrb[0].mxu0
  %v4424 = vadd.f32 0.0, %v4423
  %v4425 = vpop.f32.mrb[0].mxu0
  %v4426 = vpop.f32.mrb[0].mxu0
  %v4427 = vadd.f32 0.0, %v4426
  %v4428 = vpop.f32.mrb[0].mxu0
  %4429 = vmatprep.mubr.bf16.mxu0 %v3853
  %4430 = vmatmul.mubr.bf16.gmra.mrb[0].mxu0 %v3851
  %v4431 = vpop.f32.mrb[0].mxu0
  %v4432 = vadd.f32 0.0, %v4431
  %v4433 = vpop.f32.mrb[0].mxu0
  %v4434 = vpop.f32.mrb[0].mxu0
  %v4435 = vadd.f32 0.0, %v4434
  %v4436 = vpop.f32.mrb[0].mxu0
  %4437 = vmatprep.mubr.bf16.mxu0 %v3859
  %4438 = vmatmul.mubr.bf16.gmra.mrb[0].mxu0 %v3857
  %v4439 = vpop.f32.mrb[0].mxu0
  %v4440 = vadd.f32 0.0, %v4439
  %v4441 = vpop.f32.mrb[0].mxu0
  %v4442 = vpop.f32.mrb[0].mxu0
  %v4443 = vadd.f32 0.0, %v4442
  %v4444 = vpop.f32.mrb[0].mxu0
  %4445 = vmatprep.mubr.bf16.mxu0 %v3865
  %4446 = vmatmul.mubr.bf16.gmra.mrb[0].mxu0 %v3863
  %v4447 = vpop.f32.mrb[0].mxu0
  %v4448 = vadd.f32 0.0, %v4447
  %v4449 = vpop.f32.mrb[0].mxu0
  %v4450 = vpop.f32.mrb[0].mxu0
  %v4451 = vadd.f32 0.0, %v4450
  %v4452 = vpop.f32.mrb[0].mxu0
  %4453 = vmatprep.mubr.bf16.mxu0 %v3871
  %4454 = vmatmul.mubr.bf16.gmra.mrb[0].mxu0 %v3869
  %v4455 = vpop.f32.mrb[0].mxu0
  %v4456 = vadd.f32 0.0, %v4455
  %v4457 = vpop.f32.mrb[0].mxu0
  %v4458 = vpop.f32.mrb[0].mxu0
  %v4459 = vadd.f32 0.0, %v4458
  %v4460 = vpop.f32.mrb[0].mxu0
  %4461 = vmatprep.mubr.bf16.mxu0 %v3877
  %4462 = vmatmul.mubr.bf16.gmra.mrb[0].mxu0 %v3875
  %v4463 = vpop.f32.mrb[0].mxu0
  %v4464 = vadd.f32 0.0, %v4463
  %v4465 = vpop.f32.mrb[0].mxu0
  %v4466 = vpop.f32.mrb[0].mxu0
  %v4467 = vadd.f32 0.0, %v4466
  %v4468 = vpop.f32.mrb[0].mxu0
  %4469 = vmatprep.mubr.bf16.mxu0 %v3883
  %4470 = vmatmul.mubr.bf16.gmra.mrb[0].mxu0 %v3881
  %v4471 = vpop.f32.mrb[0].mxu0
  %v4472 = vadd.f32 0.0, %v4471
  %v4473 = vpop.f32.mrb[0].mxu0
  %v4474 = vpop.f32.mrb[0].mxu0
  %v4475 = vadd.f32 0.0, %v4474
  %v4476 = vpop.f32.mrb[0].mxu0
  %4477 = vmatprep.mubr.bf16.mxu0 %v3889
  %4478 = vmatmul.mubr.bf16.gmra.mrb[0].mxu0 %v3887
  %v4479 = vpop.f32.mrb[0].mxu0
  %v4480 = vadd.f32 0.0, %v4479
  %v4481 = vpop.f32.mrb[0].mxu0
  %v4482 = vpop.f32.mrb[0].mxu0
  %v4483 = vadd.f32 0.0, %v4482
  %v4484 = vpop.f32.mrb[0].mxu0
  %4485 = vmatprep.mubr.bf16.mxu0 %v3895
  %4486 = vmatmul.mubr.bf16.gmra.mrb[0].mxu0 %v3893
  %v4487 = vpop.f32.mrb[0].mxu0
  %v4488 = vadd.f32 0.0, %v4487
  %v4489 = vpop.f32.mrb[0].mxu0
  %v4490 = vpop.f32.mrb[0].mxu0
  %v4491 = vadd.f32 0.0, %v4490
  %v4492 = vpop.f32.mrb[0].mxu0
  %4493 = vmatprep.mubr.bf16.mxu0 %v3901
  %4494 = vmatmul.mubr.bf16.gmra.mrb[0].mxu0 %v3899
  %v4495 = vpop.f32.mrb[0].mxu0
  %v4496 = vadd.f32 0.0, %v4495
  %v4497 = vpop.f32.mrb[0].mxu0
  %v4498 = vpop.f32.mrb[0].mxu0
  %v4499 = vadd.f32 0.0, %v4498
  %v4500 = vpop.f32.mrb[0].mxu0
  %4501 = vmatprep.mubr.bf16.mxu0 %v3907
  %4502 = vmatmul.mubr.bf16.gmra.mrb[0].mxu0 %v3905
  %v4503 = vpop.f32.mrb[0].mxu0
  %v4504 = vadd.f32 0.0, %v4503
  %v4505 = vpop.f32.mrb[0].mxu0
  %v4506 = vpop.f32.mrb[0].mxu0
  %v4507 = vadd.f32 0.0, %v4506
  %v4508 = vpop.f32.mrb[0].mxu0
  %4509 = vmatprep.mubr.bf16.mxu0 %v3913
  %4510 = vmatmul.mubr.bf16.gmra.mrb[0].mxu0 %v3911
  %v4511 = vpop.f32.mrb[0].mxu0
  %v4512 = vadd.f32 0.0, %v4511
  %v4513 = vpop.f32.mrb[0].mxu0
  %v4514 = vpop.f32.mrb[0].mxu0
  %v4515 = vadd.f32 0.0, %v4514
  %v4516 = vpop.f32.mrb[0].mxu0
  %4517 = vmatprep.mubr.bf16.mxu0 %v3919
  %4518 = vmatmul.mubr.bf16.gmra.mrb[0].mxu0 %v3917
  %v4519 = vpop.f32.mrb[0].mxu0
  %v4520 = vadd.f32 0.0, %v4519
  %v4521 = vpop.f32.mrb[0].mxu0
  %v4522 = vpop.f32.mrb[0].mxu0
  %v4523 = vadd.f32 0.0, %v4522
  %v4524 = vpop.f32.mrb[0].mxu0
  %4525 = vmatprep.mubr.bf16.mxu0 %v3925
  %4526 = vmatmul.mubr.bf16.gmra.mrb[0].mxu0 %v3923
  %v4527 = vpop.f32.mrb[0].mxu0
  %v4528 = vadd.f32 0.0, %v4527
  %v4529 = vpop.f32.mrb[0].mxu0
  %v4530 = vpop.f32.mrb[0].mxu0
  %v4531 = vadd.f32 0.0, %v4530
  %v4532 = vpop.f32.mrb[0].mxu0
  %4533 = vmatprep.mubr.bf16.mxu0 %v3931
  %4534 = vmatmul.mubr.bf16.gmra.mrb[0].mxu0 %v3929
  %v4535 = vpop.f32.mrb[0].mxu0
  %v4536 = vadd.f32 0.0, %v4535
  %v4537 = vpop.f32.mrb[0].mxu0
  %v4538 = vpop.f32.mrb[0].mxu0
  %v4539 = vadd.f32 0.0, %v4538
  %v4540 = vpop.f32.mrb[0].mxu0
  %4541 = vmatprep.mubr.bf16.mxu0 %v3937
  %4542 = vmatmul.mubr.bf16.gmra.mrb[0].mxu0 %v3935
  %v4543 = vpop.f32.mrb[0].mxu0
  %v4544 = vadd.f32 0.0, %v4543
  %v4545 = vpop.f32.mrb[0].mxu0
  %v4546 = vpop.f32.mrb[0].mxu0
  %v4547 = vadd.f32 0.0, %v4546
  %v4548 = vpop.f32.mrb[0].mxu0
  %4549 = vmatprep.mubr.bf16.mxu0 %v3943
  %4550 = vmatmul.mubr.bf16.gmra.mrb[0].mxu0 %v3941
  %v4551 = vpop.f32.mrb[0].mxu0
  %v4552 = vadd.f32 0.0, %v4551
  %v4553 = vpop.f32.mrb[0].mxu0
  %v4554 = vpop.f32.mrb[0].mxu0
  %v4555 = vadd.f32 0.0, %v4554
  %v4556 = vpop.f32.mrb[0].mxu0
  %4557 = vmatprep.mubr.bf16.mxu0 %v3949
  %4558 = vmatmul.mubr.bf16.gmra.mrb[0].mxu0 %v3947
  %v4559 = vpop.f32.mrb[0].mxu0
  %v4560 = vadd.f32 0.0, %v4559
  %v4561 = vpop.f32.mrb[0].mxu0
  %v4562 = vpop.f32.mrb[0].mxu0
  %v4563 = vadd.f32 0.0, %v4562
  %v4564 = vpop.f32.mrb[0].mxu0
  %4565 = vmatprep.mubr.bf16.mxu0 %v3955
  %4566 = vmatmul.mubr.bf16.gmra.mrb[0].mxu0 %v3953
  %v4567 = vpop.f32.mrb[0].mxu0
  %v4568 = vadd.f32 0.0, %v4567
  %v4569 = vpop.f32.mrb[0].mxu0
  %v4570 = vpop.f32.mrb[0].mxu0
  %v4571 = vadd.f32 0.0, %v4570
  %v4572 = vpop.f32.mrb[0].mxu0
  %4573 = vmatprep.mubr.bf16.mxu0 %v3961
  %4574 = vmatmul.mubr.bf16.gmra.mrb[0].mxu0 %v3959
  %v4575 = vpop.f32.mrb[0].mxu0
  %v4576 = vadd.f32 0.0, %v4575
  %v4577 = vpop.f32.mrb[0].mxu0
  %v4578 = vpop.f32.mrb[0].mxu0
  %v4579 = vadd.f32 0.0, %v4578
  %v4580 = vpop.f32.mrb[0].mxu0
  %4581 = vmatprep.mubr.bf16.mxu0 %v3967
  %4582 = vmatmul.mubr.bf16.gmra.mrb[0].mxu0 %v3965
  %v4583 = vpop.f32.mrb[0].mxu0
  %v4584 = vadd.f32 0.0, %v4583
  %v4585 = vpop.f32.mrb[0].mxu0
  %v4586 = vpop.f32.mrb[0].mxu0
  %v4587 = vadd.f32 0.0, %v4586
  %v4588 = vpop.f32.mrb[0].mxu0
  %4589 = vmatprep.mubr.bf16.mxu0 %v3966
  %4590 = vmatmul.mubr.bf16.gmra.mrb[0].mxu0 %v3964
  %v4591 = vpop.f32.mrb[0].mxu0
  %v4592 = vadd.f32 0.0, %v4591
  %v4593 = vpop.f32.mrb[0].mxu0
  %v4594 = vpop.f32.mrb[0].mxu0
  %v4595 = vpop.f32.mrb[0].mxu0
  %4596 = vdwg.mxu0
  %4597 = vmatprep.subr.bf16.mxu0 0
  %4598 = vmatpush1.bf16.msra.mxu0 %v4205
  %4599 = vmatprep.subr.bf16.mxu0 0
  %4600 = vmatpush1.bf16.msra.mxu0 %v4206
  %4601 = vmatprep.subr.bf16.mxu0 0
  %4602 = vmatpush1.bf16.msra.mxu0 %v4207
  %4603 = vmatprep.subr.bf16.mxu0 0
  %4604 = vmatpush1.bf16.msra.mxu0 %v4208
  %4605 = vmatprep.subr.bf16.mxu0 0
  %4606 = vmatpush1.bf16.msra.mxu0 %v4209
  %4607 = vmatprep.subr.bf16.mxu0 0
  %4608 = vmatpush1.bf16.msra.mxu0 %v4210
  %4609 = vmatprep.subr.bf16.mxu0 0
  %4610 = vmatpush1.bf16.msra.mxu0 %v4211
  %4611 = vmatprep.subr.bf16.mxu0 0
  %4612 = vmatpush1.bf16.msra.mxu0 %v4212
  %4613 = vmatprep.subr.bf16.mxu0 0
  %4614 = vmatpush1.bf16.msra.mxu0 0
  %4615 = vmatprep.subr.bf16.mxu0 0
  %4616 = vmatpush1.bf16.msra.mxu0 0
  %4617 = vmatprep.subr.bf16.mxu0 0
  %4618 = vmatpush1.bf16.msra.mxu0 0
  %4619 = vmatprep.subr.bf16.mxu0 0
  %4620 = vmatpush1.bf16.msra.mxu0 0
  %4621 = vmatprep.subr.bf16.mxu0 0
  %4622 = vmatpush1.bf16.msra.mxu0 0
  %4623 = vmatprep.subr.bf16.mxu0 0
  %4624 = vmatpush1.bf16.msra.mxu0 0
  %4625 = vmatprep.subr.bf16.mxu0 0
  %4626 = vmatpush1.bf16.msra.mxu0 0
  %4627 = vmatprep.subr.bf16.mxu0 0
  %4628 = vmatpush1.bf16.msra.mxu0 0
  %4629 = vmatprep.mubr.bf16.mxu0 0
  %4630 = vmatmul.mubr.bf16.gmra.mrb[0].mxu0 %v3735
  %v4631 = vpop.f32.mrb[0].mxu0
  %v4632 = vadd.f32 %v4272, %v4631
  %v4633 = vpop.f32.mrb[0].mxu0
  %v4634 = vpop.f32.mrb[0].mxu0
  %v4635 = vadd.f32 %v4275, %v4634
  %v4636 = vpop.f32.mrb[0].mxu0
  %4637 = vmatprep.mubr.bf16.mxu0 0
  %4638 = vmatmul.mubr.bf16.gmra.mrb[0].mxu0 %v3741
  %v4639 = vpop.f32.mrb[0].mxu0
  %v4640 = vadd.f32 %v4280, %v4639
  %v4641 = vpop.f32.mrb[0].mxu0
  %v4642 = vpop.f32.mrb[0].mxu0
  %v4643 = vadd.f32 %v4283, %v4642
  %v4644 = vpop.f32.mrb[0].mxu0
  %4645 = vmatprep.mubr.bf16.mxu0 0
  %4646 = vmatmul.mubr.bf16.gmra.mrb[0].mxu0 %v3747
  %v4647 = vpop.f32.mrb[0].mxu0
  %v4648 = vadd.f32 %v4288, %v4647
  %v4649 = vpop.f32.mrb[0].mxu0
  %v4650 = vpop.f32.mrb[0].mxu0
  %v4651 = vadd.f32 %v4291, %v4650
  %v4652 = vpop.f32.mrb[0].mxu0
  %4653 = vmatprep.mubr.bf16.mxu0 0
  %4654 = vmatmul.mubr.bf16.gmra.mrb[0].mxu0 %v3753
  %v4655 = vpop.f32.mrb[0].mxu0
  %v4656 = vadd.f32 %v4296, %v4655
  %v4657 = vpop.f32.mrb[0].mxu0
  %v4658 = vpop.f32.mrb[0].mxu0
  %v4659 = vadd.f32 %v4299, %v4658
  %v4660 = vpop.f32.mrb[0].mxu0
  %4661 = vmatprep.mubr.bf16.mxu0 0
  %4662 = vmatmul.mubr.bf16.gmra.mrb[0].mxu0 %v3759
  %v4663 = vpop.f32.mrb[0].mxu0
  %v4664 = vadd.f32 %v4304, %v4663
  %v4665 = vpop.f32.mrb[0].mxu0
  %v4666 = vpop.f32.mrb[0].mxu0
  %v4667 = vadd.f32 %v4307, %v4666
  %v4668 = vpop.f32.mrb[0].mxu0
  %4669 = vmatprep.mubr.bf16.mxu0 0
  %4670 = vmatmul.mubr.bf16.gmra.mrb[0].mxu0 %v3765
  %v4671 = vpop.f32.mrb[0].mxu0
  %v4672 = vadd.f32 %v4312, %v4671
  %v4673 = vpop.f32.mrb[0].mxu0
  %v4674 = vpop.f32.mrb[0].mxu0
  %v4675 = vadd.f32 %v4315, %v4674
  %v4676 = vpop.f32.mrb[0].mxu0
  %4677 = vmatprep.mubr.bf16.mxu0 0
  %4678 = vmatmul.mubr.bf16.gmra.mrb[0].mxu0 %v3771
  %v4679 = vpop.f32.mrb[0].mxu0
  %v4680 = vadd.f32 %v4320, %v4679
  %v4681 = vpop.f32.mrb[0].mxu0
  %v4682 = vpop.f32.mrb[0].mxu0
  %v4683 = vadd.f32 %v4323, %v4682
  %v4684 = vpop.f32.mrb[0].mxu0
  %4685 = vmatprep.mubr.bf16.mxu0 0
  %4686 = vmatmul.mubr.bf16.gmra.mrb[0].mxu0 %v3777
  %v4687 = vpop.f32.mrb[0].mxu0
  %v4688 = vadd.f32 %v4328, %v4687
  %v4689 = vpop.f32.mrb[0].mxu0
  %v4690 = vpop.f32.mrb[0].mxu0
  %v4691 = vadd.f32 %v4331, %v4690
  %v4692 = vpop.f32.mrb[0].mxu0
  %4693 = vmatprep.mubr.bf16.mxu0 0
  %4694 = vmatmul.mubr.bf16.gmra.mrb[0].mxu0 %v3783
  %v4695 = vpop.f32.mrb[0].mxu0
  %v4696 = vadd.f32 %v4336, %v4695
  %v4697 = vpop.f32.mrb[0].mxu0
  %v4698 = vpop.f32.mrb[0].mxu0
  %v4699 = vadd.f32 %v4339, %v4698
  %v4700 = vpop.f32.mrb[0].mxu0
  %4701 = vmatprep.mubr.bf16.mxu0 0
  %4702 = vmatmul.mubr.bf16.gmra.mrb[0].mxu0 %v3789
  %v4703 = vpop.f32.mrb[0].mxu0
  %v4704 = vadd.f32 %v4344, %v4703
  %v4705 = vpop.f32.mrb[0].mxu0
  %v4706 = vpop.f32.mrb[0].mxu0
  %v4707 = vadd.f32 %v4347, %v4706
  %v4708 = vpop.f32.mrb[0].mxu0
  %4709 = vmatprep.mubr.bf16.mxu0 0
  %4710 = vmatmul.mubr.bf16.gmra.mrb[0].mxu0 %v3795
  %v4711 = vpop.f32.mrb[0].mxu0
  %v4712 = vadd.f32 %v4352, %v4711
  %v4713 = vpop.f32.mrb[0].mxu0
  %v4714 = vpop.f32.mrb[0].mxu0
  %v4715 = vadd.f32 %v4355, %v4714
  %v4716 = vpop.f32.mrb[0].mxu0
  %4717 = vmatprep.mubr.bf16.mxu0 0
  %4718 = vmatmul.mubr.bf16.gmra.mrb[0].mxu0 %v3801
  %v4719 = vpop.f32.mrb[0].mxu0
  %v4720 = vadd.f32 %v4360, %v4719
  %v4721 = vpop.f32.mrb[0].mxu0
  %v4722 = vpop.f32.mrb[0].mxu0
  %v4723 = vadd.f32 %v4363, %v4722
  %v4724 = vpop.f32.mrb[0].mxu0
  %4725 = vmatprep.mubr.bf16.mxu0 0
  %4726 = vmatmul.mubr.bf16.gmra.mrb[0].mxu0 %v3807
  %v4727 = vpop.f32.mrb[0].mxu0
  %v4728 = vadd.f32 %v4368, %v4727
  %v4729 = vpop.f32.mrb[0].mxu0
  %v4730 = vpop.f32.mrb[0].mxu0
  %v4731 = vadd.f32 %v4371, %v4730
  %v4732 = vpop.f32.mrb[0].mxu0
  %4733 = vmatprep.mubr.bf16.mxu0 0
  %4734 = vmatmul.mubr.bf16.gmra.mrb[0].mxu0 %v3813
  %v4735 = vpop.f32.mrb[0].mxu0
  %v4736 = vadd.f32 %v4376, %v4735
  %v4737 = vpop.f32.mrb[0].mxu0
  %v4738 = vpop.f32.mrb[0].mxu0
  %v4739 = vadd.f32 %v4379, %v4738
  %v4740 = vpop.f32.mrb[0].mxu0
  %4741 = vmatprep.mubr.bf16.mxu0 0
  %4742 = vmatmul.mubr.bf16.gmra.mrb[0].mxu0 %v3819
  %v4743 = vpop.f32.mrb[0].mxu0
  %v4744 = vadd.f32 %v4384, %v4743
  %v4745 = vpop.f32.mrb[0].mxu0
  %v4746 = vpop.f32.mrb[0].mxu0
  %v4747 = vadd.f32 %v4387, %v4746
  %v4748 = vpop.f32.mrb[0].mxu0
  %4749 = vmatprep.mubr.bf16.mxu0 0
  %4750 = vmatmul.mubr.bf16.gmra.mrb[0].mxu0 %v3825
  %v4751 = vpop.f32.mrb[0].mxu0
  %v4752 = vadd.f32 %v4392, %v4751
  %v4753 = vpop.f32.mrb[0].mxu0
  %v4754 = vpop.f32.mrb[0].mxu0
  %v4755 = vadd.f32 %v4395, %v4754
  %v4756 = vpop.f32.mrb[0].mxu0
  %4757 = vmatprep.mubr.bf16.mxu0 0
  %4758 = vmatmul.mubr.bf16.gmra.mrb[0].mxu0 %v3831
  %v4759 = vpop.f32.mrb[0].mxu0
  %v4760 = vadd.f32 %v4400, %v4759
  %v4761 = vpop.f32.mrb[0].mxu0
  %v4762 = vpop.f32.mrb[0].mxu0
  %v4763 = vadd.f32 %v4403, %v4762
  %v4764 = vpop.f32.mrb[0].mxu0
  %4765 = vmatprep.mubr.bf16.mxu0 0
  %4766 = vmatmul.mubr.bf16.gmra.mrb[0].mxu0 %v3837
  %v4767 = vpop.f32.mrb[0].mxu0
  %v4768 = vadd.f32 %v4408, %v4767
  %v4769 = vpop.f32.mrb[0].mxu0
  %v4770 = vpop.f32.mrb[0].mxu0
  %v4771 = vadd.f32 %v4411, %v4770
  %v4772 = vpop.f32.mrb[0].mxu0
  %4773 = vmatprep.mubr.bf16.mxu0 0
  %4774 = vmatmul.mubr.bf16.gmra.mrb[0].mxu0 %v3843
  %v4775 = vpop.f32.mrb[0].mxu0
  %v4776 = vadd.f32 %v4416, %v4775
  %v4777 = vpop.f32.mrb[0].mxu0
  %v4778 = vpop.f32.mrb[0].mxu0
  %v4779 = vadd.f32 %v4419, %v4778
  %v4780 = vpop.f32.mrb[0].mxu0
  %4781 = vmatprep.mubr.bf16.mxu0 0
  %4782 = vmatmul.mubr.bf16.gmra.mrb[0].mxu0 %v3849
  %v4783 = vpop.f32.mrb[0].mxu0
  %v4784 = vadd.f32 %v4424, %v4783
  %v4785 = vpop.f32.mrb[0].mxu0
  %v4786 = vpop.f32.mrb[0].mxu0
  %v4787 = vadd.f32 %v4427, %v4786
  %v4788 = vpop.f32.mrb[0].mxu0
  %4789 = vmatprep.mubr.bf16.mxu0 0
  %4790 = vmatmul.mubr.bf16.gmra.mrb[0].mxu0 %v3855
  %v4791 = vpop.f32.mrb[0].mxu0
  %v4792 = vadd.f32 %v4432, %v4791
  %v4793 = vpop.f32.mrb[0].mxu0
  %v4794 = vpop.f32.mrb[0].mxu0
  %v4795 = vadd.f32 %v4435, %v4794
  %v4796 = vpop.f32.mrb[0].mxu0
  %4797 = vmatprep.mubr.bf16.mxu0 0
  %4798 = vmatmul.mubr.bf16.gmra.mrb[0].mxu0 %v3861
  %v4799 = vpop.f32.mrb[0].mxu0
  %v4800 = vadd.f32 %v4440, %v4799
  %v4801 = vpop.f32.mrb[0].mxu0
  %v4802 = vpop.f32.mrb[0].mxu0
  %v4803 = vadd.f32 %v4443, %v4802
  %v4804 = vpop.f32.mrb[0].mxu0
  %4805 = vmatprep.mubr.bf16.mxu0 0
  %4806 = vmatmul.mubr.bf16.gmra.mrb[0].mxu0 %v3867
  %v4807 = vpop.f32.mrb[0].mxu0
  %v4808 = vadd.f32 %v4448, %v4807
  %v4809 = vpop.f32.mrb[0].mxu0
  %v4810 = vpop.f32.mrb[0].mxu0
  %v4811 = vadd.f32 %v4451, %v4810
  %v4812 = vpop.f32.mrb[0].mxu0
  %4813 = vmatprep.mubr.bf16.mxu0 0
  %4814 = vmatmul.mubr.bf16.gmra.mrb[0].mxu0 %v3873
  %v4815 = vpop.f32.mrb[0].mxu0
  %v4816 = vadd.f32 %v4456, %v4815
  %v4817 = vpop.f32.mrb[0].mxu0
  %v4818 = vpop.f32.mrb[0].mxu0
  %v4819 = vadd.f32 %v4459, %v4818
  %v4820 = vpop.f32.mrb[0].mxu0
  %4821 = vmatprep.mubr.bf16.mxu0 0
  %4822 = vmatmul.mubr.bf16.gmra.mrb[0].mxu0 %v3879
  %v4823 = vpop.f32.mrb[0].mxu0
  %v4824 = vadd.f32 %v4464, %v4823
  %v4825 = vpop.f32.mrb[0].mxu0
  %v4826 = vpop.f32.mrb[0].mxu0
  %v4827 = vadd.f32 %v4467, %v4826
  %v4828 = vpop.f32.mrb[0].mxu0
  %4829 = vmatprep.mubr.bf16.mxu0 0
  %4830 = vmatmul.mubr.bf16.gmra.mrb[0].mxu0 %v3885
  %v4831 = vpop.f32.mrb[0].mxu0
  %v4832 = vadd.f32 %v4472, %v4831
  %v4833 = vpop.f32.mrb[0].mxu0
  %v4834 = vpop.f32.mrb[0].mxu0
  %v4835 = vadd.f32 %v4475, %v4834
  %v4836 = vpop.f32.mrb[0].mxu0
  %4837 = vmatprep.mubr.bf16.mxu0 0
  %4838 = vmatmul.mubr.bf16.gmra.mrb[0].mxu0 %v3891
  %v4839 = vpop.f32.mrb[0].mxu0
  %v4840 = vadd.f32 %v4480, %v4839
  %v4841 = vpop.f32.mrb[0].mxu0
  %v4842 = vpop.f32.mrb[0].mxu0
  %v4843 = vadd.f32 %v4483, %v4842
  %v4844 = vpop.f32.mrb[0].mxu0
  %4845 = vmatprep.mubr.bf16.mxu0 0
  %4846 = vmatmul.mubr.bf16.gmra.mrb[0].mxu0 %v3897
  %v4847 = vpop.f32.mrb[0].mxu0
  %v4848 = vadd.f32 %v4488, %v4847
  %v4849 = vpop.f32.mrb[0].mxu0
  %v4850 = vpop.f32.mrb[0].mxu0
  %v4851 = vadd.f32 %v4491, %v4850
  %v4852 = vpop.f32.mrb[0].mxu0
  %4853 = vmatprep.mubr.bf16.mxu0 0
  %4854 = vmatmul.mubr.bf16.gmra.mrb[0].mxu0 %v3903
  %v4855 = vpop.f32.mrb[0].mxu0
  %v4856 = vadd.f32 %v4496, %v4855
  %v4857 = vpop.f32.mrb[0].mxu0
  %v4858 = vpop.f32.mrb[0].mxu0
  %v4859 = vadd.f32 %v4499, %v4858
  %v4860 = vpop.f32.mrb[0].mxu0
  %4861 = vmatprep.mubr.bf16.mxu0 0
  %4862 = vmatmul.mubr.bf16.gmra.mrb[0].mxu0 %v3909
  %v4863 = vpop.f32.mrb[0].mxu0
  %v4864 = vadd.f32 %v4504, %v4863
  %v4865 = vpop.f32.mrb[0].mxu0
  %v4866 = vpop.f32.mrb[0].mxu0
  %v4867 = vadd.f32 %v4507, %v4866
  %v4868 = vpop.f32.mrb[0].mxu0
  %4869 = vmatprep.mubr.bf16.mxu0 0
  %4870 = vmatmul.mubr.bf16.gmra.mrb[0].mxu0 %v3915
  %v4871 = vpop.f32.mrb[0].mxu0
  %v4872 = vadd.f32 %v4512, %v4871
  %v4873 = vpop.f32.mrb[0].mxu0
  %v4874 = vpop.f32.mrb[0].mxu0
  %v4875 = vadd.f32 %v4515, %v4874
  %v4876 = vpop.f32.mrb[0].mxu0
  %4877 = vmatprep.mubr.bf16.mxu0 0
  %4878 = vmatmul.mubr.bf16.gmra.mrb[0].mxu0 %v3921
  %v4879 = vpop.f32.mrb[0].mxu0
  %v4880 = vadd.f32 %v4520, %v4879
  %v4881 = vpop.f32.mrb[0].mxu0
  %v4882 = vpop.f32.mrb[0].mxu0
  %v4883 = vadd.f32 %v4523, %v4882
  %v4884 = vpop.f32.mrb[0].mxu0
  %4885 = vmatprep.mubr.bf16.mxu0 0
  %4886 = vmatmul.mubr.bf16.gmra.mrb[0].mxu0 %v3927
  %v4887 = vpop.f32.mrb[0].mxu0
  %v4888 = vadd.f32 %v4528, %v4887
  %v4889 = vpop.f32.mrb[0].mxu0
  %v4890 = vpop.f32.mrb[0].mxu0
  %v4891 = vadd.f32 %v4531, %v4890
  %v4892 = vpop.f32.mrb[0].mxu0
  %4893 = vmatprep.mubr.bf16.mxu0 0
  %4894 = vmatmul.mubr.bf16.gmra.mrb[0].mxu0 %v3933
  %v4895 = vpop.f32.mrb[0].mxu0
  %v4896 = vadd.f32 %v4536, %v4895
  %v4897 = vpop.f32.mrb[0].mxu0
  %v4898 = vpop.f32.mrb[0].mxu0
  %v4899 = vadd.f32 %v4539, %v4898
  %v4900 = vpop.f32.mrb[0].mxu0
  %4901 = vmatprep.mubr.bf16.mxu0 0
  %4902 = vmatmul.mubr.bf16.gmra.mrb[0].mxu0 %v3939
  %v4903 = vpop.f32.mrb[0].mxu0
  %v4904 = vadd.f32 %v4544, %v4903
  %v4905 = vpop.f32.mrb[0].mxu0
  %v4906 = vpop.f32.mrb[0].mxu0
  %v4907 = vadd.f32 %v4547, %v4906
  %v4908 = vpop.f32.mrb[0].mxu0
  %4909 = vmatprep.mubr.bf16.mxu0 0
  %4910 = vmatmul.mubr.bf16.gmra.mrb[0].mxu0 %v3945
  %v4911 = vpop.f32.mrb[0].mxu0
  %v4912 = vadd.f32 %v4552, %v4911
  %v4913 = vpop.f32.mrb[0].mxu0
  %v4914 = vpop.f32.mrb[0].mxu0
  %v4915 = vadd.f32 %v4555, %v4914
  %v4916 = vpop.f32.mrb[0].mxu0
  %4917 = vmatprep.mubr.bf16.mxu0 0
  %4918 = vmatmul.mubr.bf16.gmra.mrb[0].mxu0 %v3951
  %v4919 = vpop.f32.mrb[0].mxu0
  %v4920 = vadd.f32 %v4560, %v4919
  %v4921 = vpop.f32.mrb[0].mxu0
  %v4922 = vpop.f32.mrb[0].mxu0
  %v4923 = vadd.f32 %v4563, %v4922
  %v4924 = vpop.f32.mrb[0].mxu0
  %4925 = vmatprep.mubr.bf16.mxu0 0
  %4926 = vmatmul.mubr.bf16.gmra.mrb[0].mxu0 %v3957
  %v4927 = vpop.f32.mrb[0].mxu0
  %v4928 = vadd.f32 %v4568, %v4927
  %v4929 = vpop.f32.mrb[0].mxu0
  %v4930 = vpop.f32.mrb[0].mxu0
  %v4931 = vadd.f32 %v4571, %v4930
  %v4932 = vpop.f32.mrb[0].mxu0
  %4933 = vmatprep.mubr.bf16.mxu0 0
  %4934 = vmatmul.mubr.bf16.gmra.mrb[0].mxu0 %v3963
  %v4935 = vpop.f32.mrb[0].mxu0
  %v4936 = vadd.f32 %v4576, %v4935
  %v4937 = vpop.f32.mrb[0].mxu0
  %v4938 = vpop.f32.mrb[0].mxu0
  %v4939 = vadd.f32 %v4579, %v4938
  %v4940 = vpop.f32.mrb[0].mxu0
  %4941 = vmatprep.mubr.bf16.mxu0 0
  %4942 = vmatmul.mubr.bf16.gmra.mrb[0].mxu0 %v3969
  %v4943 = vpop.f32.mrb[0].mxu0
  %v4944 = vadd.f32 %v4584, %v4943
  %v4945 = vpop.f32.mrb[0].mxu0
  %v4946 = vpop.f32.mrb[0].mxu0
  %v4947 = vadd.f32 %v4587, %v4946
  %v4948 = vpop.f32.mrb[0].mxu0
  %4949 = vmatprep.mubr.bf16.mxu0 0
  %4950 = vmatmul.mubr.bf16.gmra.mrb[0].mxu0 %v3968
  %v4951 = vpop.f32.mrb[0].mxu0
  %v4952 = vadd.f32 %v4592, %v4951
  %v4953 = vpop.f32.mrb[0].mxu0
  %v4954 = vpop.f32.mrb[0].mxu0
  %v4955 = vpop.f32.mrb[0].mxu0
  %4956 = vdwg.mxu0
  %4957 = vst [vmem:[#allocation3] sm:$0xff] %v4632
  %4958 = vst [vmem:[#allocation3 + $0x8] sm:$0xff] %v4635
  %4959 = vst [vmem:[#allocation3 + $0x10] sm:$0xff] %v4640
  %4960 = vst [vmem:[#allocation3 + $0x18] sm:$0xff] %v4643
  %4961 = vst [vmem:[#allocation3 + $0x20] sm:$0xff] %v4648
  %4962 = vst [vmem:[#allocation3 + $0x28] sm:$0xff] %v4651
  %4963 = vst [vmem:[#allocation3 + $0x30] sm:$0xff] %v4656
  %4964 = vst [vmem:[#allocation3 + $0x38] sm:$0xff] %v4659
  %4965 = vst [vmem:[#allocation3 + $0x40] sm:$0xff] %v4664
  %4966 = vst [vmem:[#allocation3 + $0x48] sm:$0xff] %v4667
  %4967 = vst [vmem:[#allocation3 + $0x50] sm:$0xff] %v4672
  %4968 = vst [vmem:[#allocation3 + $0x58] sm:$0xff] %v4675
  %4969 = vst [vmem:[#allocation3 + $0x60] sm:$0xff] %v4680
  %4970 = vst [vmem:[#allocation3 + $0x68] sm:$0xff] %v4683
  %4971 = vst [vmem:[#allocation3 + $0x70] sm:$0xff] %v4688
  %4972 = vst [vmem:[#allocation3 + $0x78] sm:$0xff] %v4691
  %4973 = vst [vmem:[#allocation3 + $0x80] sm:$0xff] %v4696
  %4974 = vst [vmem:[#allocation3 + $0x88] sm:$0xff] %v4699
  %4975 = vst [vmem:[#allocation3 + $0x90] sm:$0xff] %v4704
  %4976 = vst [vmem:[#allocation3 + $0x98] sm:$0xff] %v4707
  %4977 = vst [vmem:[#allocation3 + $0xa0] sm:$0xff] %v4712
  %4978 = vst [vmem:[#allocation3 + $0xa8] sm:$0xff] %v4715
  %4979 = vst [vmem:[#allocation3 + $0xb0] sm:$0xff] %v4720
  %4980 = vst [vmem:[#allocation3 + $0xb8] sm:$0xff] %v4723
  %4981 = vst [vmem:[#allocation3 + $0xc0] sm:$0xff] %v4728
  %4982 = vst [vmem:[#allocation3 + $0xc8] sm:$0xff] %v4731
  %4983 = vst [vmem:[#allocation3 + $0xd0] sm:$0xff] %v4736
  %4984 = vst [vmem:[#allocation3 + $0xd8] sm:$0xff] %v4739
  %4985 = vst [vmem:[#allocation3 + $0xe0] sm:$0xff] %v4744
  %4986 = vst [vmem:[#allocation3 + $0xe8] sm:$0xff] %v4747
  %4987 = vst [vmem:[#allocation3 + $0xf0] sm:$0xff] %v4752
  %4988 = vst [vmem:[#allocation3 + $0xf8] sm:$0xff] %v4755
  %4989 = vst [vmem:[#allocation3 + $0x100] sm:$0xff] %v4760
  %4990 = vst [vmem:[#allocation3 + $0x108] sm:$0xff] %v4763
  %4991 = vst [vmem:[#allocation3 + $0x110] sm:$0xff] %v4768
  %4992 = vst [vmem:[#allocation3 + $0x118] sm:$0xff] %v4771
  %4993 = vst [vmem:[#allocation3 + $0x120] sm:$0xff] %v4776
  %4994 = vst [vmem:[#allocation3 + $0x128] sm:$0xff] %v4779
  %4995 = vst [vmem:[#allocation3 + $0x130] sm:$0xff] %v4784
  %4996 = vst [vmem:[#allocation3 + $0x138] sm:$0xff] %v4787
  %4997 = vst [vmem:[#allocation3 + $0x140] sm:$0xff] %v4792
  %4998 = vst [vmem:[#allocation3 + $0x148] sm:$0xff] %v4795
  %4999 = vst [vmem:[#allocation3 + $0x150] sm:$0xff] %v4800
  %5000 = vst [vmem:[#allocation3 + $0x158] sm:$0xff] %v4803
  %5001 = vst [vmem:[#allocation3 + $0x160] sm:$0xff] %v4808
  %5002 = vst [vmem:[#allocation3 + $0x168] sm:$0xff] %v4811
  %5003 = vst [vmem:[#allocation3 + $0x170] sm:$0xff] %v4816
  %5004 = vst [vmem:[#allocation3 + $0x178] sm:$0xff] %v4819
  %5005 = vst [vmem:[#allocation3 + $0x180] sm:$0xff] %v4824
  %5006 = vst [vmem:[#allocation3 + $0x188] sm:$0xff] %v4827
  %5007 = vst [vmem:[#allocation3 + $0x190] sm:$0xff] %v4832
  %5008 = vst [vmem:[#allocation3 + $0x198] sm:$0xff] %v4835
  %5009 = vst [vmem:[#allocation3 + $0x1a0] sm:$0xff] %v4840
  %5010 = vst [vmem:[#allocation3 + $0x1a8] sm:$0xff] %v4843
  %5011 = vst [vmem:[#allocation3 + $0x1b0] sm:$0xff] %v4848
  %5012 = vst [vmem:[#allocation3 + $0x1b8] sm:$0xff] %v4851
  %5013 = vst [vmem:[#allocation3 + $0x1c0] sm:$0xff] %v4856
  %5014 = vst [vmem:[#allocation3 + $0x1c8] sm:$0xff] %v4859
  %5015 = vst [vmem:[#allocation3 + $0x1d0] sm:$0xff] %v4864
  %5016 = vst [vmem:[#allocation3 + $0x1d8] sm:$0xff] %v4867
  %5017 = vst [vmem:[#allocation3 + $0x1e0] sm:$0xff] %v4872
  %5018 = vst [vmem:[#allocation3 + $0x1e8] sm:$0xff] %v4875
  %5019 = vst [vmem:[#allocation3 + $0x1f0] sm:$0xff] %v4880
  %5020 = vst [vmem:[#allocation3 + $0x1f8] sm:$0xff] %v4883
  %5021 = vst [vmem:[#allocation3 + $0x200] sm:$0xff] %v4888
  %5022 = vst [vmem:[#allocation3 + $0x208] sm:$0xff] %v4891
  %5023 = vst [vmem:[#allocation3 + $0x210] sm:$0xff] %v4896
  %5024 = vst [vmem:[#allocation3 + $0x218] sm:$0xff] %v4899
  %5025 = vst [vmem:[#allocation3 + $0x220] sm:$0xff] %v4904
  %5026 = vst [vmem:[#allocation3 + $0x228] sm:$0xff] %v4907
  %5027 = vst [vmem:[#allocation3 + $0x230] sm:$0xff] %v4912
  %5028 = vst [vmem:[#allocation3 + $0x238] sm:$0xff] %v4915
  %5029 = vst [vmem:[#allocation3 + $0x240] sm:$0xff] %v4920
  %5030 = vst [vmem:[#allocation3 + $0x248] sm:$0xff] %v4923
  %5031 = vst [vmem:[#allocation3 + $0x250] sm:$0xff] %v4928
  %5032 = vst [vmem:[#allocation3 + $0x258] sm:$0xff] %v4931
  %5033 = vst [vmem:[#allocation3 + $0x260] sm:$0xff] %v4936
  %5034 = vst [vmem:[#allocation3 + $0x268] sm:$0xff] %v4939
  %5035 = vst [vmem:[#allocation3 + $0x270] sm:$0xff] %v4944
  %5036 = vst [vmem:[#allocation3 + $0x278] sm:$0xff] %v4947
  %5037 = vst [vmem:[#allocation3 + $0x280] sm:$0xff] %v4952
  %v5038 = vld [vmem:[#allocation3] sm:$0xff]
  %v5039 = vld [vmem:[#allocation3 + $0x8] sm:$0xff]
  %v5040 = vld [vmem:[#allocation3 + $0x10] sm:$0xff]
  %v5041 = vld [vmem:[#allocation3 + $0x18] sm:$0xff]
  %v5042 = vld [vmem:[#allocation3 + $0x20] sm:$0xff]
  %v5043 = vld [vmem:[#allocation3 + $0x28] sm:$0xff]
  %v5044 = vld [vmem:[#allocation3 + $0x30] sm:$0xff]
  %v5045 = vld [vmem:[#allocation3 + $0x38] sm:$0xff]
  %v5046 = vld [vmem:[#allocation3 + $0x40] sm:$0xff]
  %v5047 = vld [vmem:[#allocation3 + $0x48] sm:$0xff]
  %v5048 = vld [vmem:[#allocation3 + $0x50] sm:$0xff]
  %v5049 = vld [vmem:[#allocation3 + $0x58] sm:$0xff]
  %v5050 = vld [vmem:[#allocation3 + $0x60] sm:$0xff]
  %v5051 = vld [vmem:[#allocation3 + $0x68] sm:$0xff]
  %v5052 = vld [vmem:[#allocation3 + $0x70] sm:$0xff]
  %v5053 = vld [vmem:[#allocation3 + $0x78] sm:$0xff]
  %v5054 = vld [vmem:[#allocation3 + $0x80] sm:$0xff]
  %v5055 = vld [vmem:[#allocation3 + $0x88] sm:$0xff]
  %v5056 = vld [vmem:[#allocation3 + $0x90] sm:$0xff]
  %v5057 = vld [vmem:[#allocation3 + $0x98] sm:$0xff]
  %v5058 = vld [vmem:[#allocation3 + $0xa0] sm:$0xff]
  %v5059 = vld [vmem:[#allocation3 + $0xa8] sm:$0xff]
  %v5060 = vld [vmem:[#allocation3 + $0xb0] sm:$0xff]
  %v5061 = vld [vmem:[#allocation3 + $0xb8] sm:$0xff]
  %v5062 = vld [vmem:[#allocation3 + $0xc0] sm:$0xff]
  %v5063 = vld [vmem:[#allocation3 + $0xc8] sm:$0xff]
  %v5064 = vld [vmem:[#allocation3 + $0xd0] sm:$0xff]
  %v5065 = vld [vmem:[#allocation3 + $0xd8] sm:$0xff]
  %v5066 = vld [vmem:[#allocation3 + $0xe0] sm:$0xff]
  %v5067 = vld [vmem:[#allocation3 + $0xe8] sm:$0xff]
  %v5068 = vld [vmem:[#allocation3 + $0xf0] sm:$0xff]
  %v5069 = vld [vmem:[#allocation3 + $0xf8] sm:$0xff]
  %v5070 = vld [vmem:[#allocation3 + $0x100] sm:$0xff]
  %v5071 = vld [vmem:[#allocation3 + $0x108] sm:$0xff]
  %v5072 = vld [vmem:[#allocation3 + $0x110] sm:$0xff]
  %v5073 = vld [vmem:[#allocation3 + $0x118] sm:$0xff]
  %v5074 = vld [vmem:[#allocation3 + $0x120] sm:$0xff]
  %v5075 = vld [vmem:[#allocation3 + $0x128] sm:$0xff]
  %v5076 = vld [vmem:[#allocation3 + $0x130] sm:$0xff]
  %v5077 = vld [vmem:[#allocation3 + $0x138] sm:$0xff]
  %v5078 = vld [vmem:[#allocation3 + $0x140] sm:$0xff]
  %v5079 = vld [vmem:[#allocation3 + $0x148] sm:$0xff]
  %v5080 = vld [vmem:[#allocation3 + $0x150] sm:$0xff]
  %v5081 = vld [vmem:[#allocation3 + $0x158] sm:$0xff]
  %v5082 = vld [vmem:[#allocation3 + $0x160] sm:$0xff]
  %v5083 = vld [vmem:[#allocation3 + $0x168] sm:$0xff]
  %v5084 = vld [vmem:[#allocation3 + $0x170] sm:$0xff]
  %v5085 = vld [vmem:[#allocation3 + $0x178] sm:$0xff]
  %v5086 = vld [vmem:[#allocation3 + $0x180] sm:$0xff]
  %v5087 = vld [vmem:[#allocation3 + $0x188] sm:$0xff]
  %v5088 = vld [vmem:[#allocation3 + $0x190] sm:$0xff]
  %v5089 = vld [vmem:[#allocation3 + $0x198] sm:$0xff]
  %v5090 = vld [vmem:[#allocation3 + $0x1a0] sm:$0xff]
  %v5091 = vld [vmem:[#allocation3 + $0x1a8] sm:$0xff]
  %v5092 = vld [vmem:[#allocation3 + $0x1b0] sm:$0xff]
  %v5093 = vld [vmem:[#allocation3 + $0x1b8] sm:$0xff]
  %v5094 = vld [vmem:[#allocation3 + $0x1c0] sm:$0xff]
  %v5095 = vld [vmem:[#allocation3 + $0x1c8] sm:$0xff]
  %v5096 = vld [vmem:[#allocation3 + $0x1d0] sm:$0xff]
  %v5097 = vld [vmem:[#allocation3 + $0x1d8] sm:$0xff]
  %v5098 = vld [vmem:[#allocation3 + $0x1e0] sm:$0xff]
  %v5099 = vld [vmem:[#allocation3 + $0x1e8] sm:$0xff]
  %v5100 = vld [vmem:[#allocation3 + $0x1f0] sm:$0xff]
  %v5101 = vld [vmem:[#allocation3 + $0x1f8] sm:$0xff]
  %v5102 = vld [vmem:[#allocation3 + $0x200] sm:$0xff]
  %v5103 = vld [vmem:[#allocation3 + $0x208] sm:$0xff]
  %v5104 = vld [vmem:[#allocation3 + $0x210] sm:$0xff]
  %v5105 = vld [vmem:[#allocation3 + $0x218] sm:$0xff]
  %v5106 = vld [vmem:[#allocation3 + $0x220] sm:$0xff]
  %v5107 = vld [vmem:[#allocation3 + $0x228] sm:$0xff]
  %v5108 = vld [vmem:[#allocation3 + $0x230] sm:$0xff]
  %v5109 = vld [vmem:[#allocation3 + $0x238] sm:$0xff]
  %v5110 = vld [vmem:[#allocation3 + $0x240] sm:$0xff]
  %v5111 = vld [vmem:[#allocation3 + $0x248] sm:$0xff]
  %v5112 = vld [vmem:[#allocation3 + $0x250] sm:$0xff]
  %v5113 = vld [vmem:[#allocation3 + $0x258] sm:$0xff]
  %v5114 = vld [vmem:[#allocation3 + $0x260] sm:$0xff]
  %v5115 = vld [vmem:[#allocation3 + $0x268] sm:$0xff]
  %v5116 = vld [vmem:[#allocation3 + $0x270] sm:$0xff]
  %v5117 = vld [vmem:[#allocation3 + $0x278] sm:$0xff]
  %v5118 = vld [vmem:[#allocation3 + $0x280] sm:$0xff]
  %v5119 = vld [vmem:[#allocation2 + $0x24] sm:$0xff]
  %v5120 = vld [vmem:[#allocation2 + $0x2c] sm:$0xf]
  %v5121 = vld [vmem:[#allocation2 + $0x30] sm:$0xff]
  %v5122 = vld [vmem:[#allocation2 + $0x38] sm:$0xf]
  %v5123 = vld [vmem:[#allocation2 + $0x3c] sm:$0xff]
  %v5124 = vld [vmem:[#allocation2 + $0x44] sm:$0xf]
  %v5125 = vld [vmem:[#allocation2 + $0x48] sm:$0xff]
  %v5126 = vld [vmem:[#allocation2 + $0x50] sm:$0xf]
  %v5127 = vld [vmem:[#allocation2 + $0x54] sm:$0xff]
  %v5128 = vld [vmem:[#allocation2 + $0x5c] sm:$0xf]
  %v5129 = vld [vmem:[#allocation2 + $0x60] sm:$0xff]
  %v5130 = vld [vmem:[#allocation2 + $0x68] sm:$0xf]
  %v5131 = vld [vmem:[#allocation2 + $0x6c] sm:$0xff]
  %v5132 = vld [vmem:[#allocation2 + $0x74] sm:$0xf]
  %v5133 = vld [vmem:[#allocation2 + $0x78] sm:$0xff]
  %v5134 = vld [vmem:[#allocation2 + $0x80] sm:$0xf]
  %v5135 = vld [vmem:[#allocation2 + $0x84] sm:$0xff]
  %v5136 = vld [vmem:[#allocation2 + $0x8c] sm:$0xf]
  %v5137 = vld [vmem:[#allocation2 + $0x90] sm:$0xff]
  %v5138 = vld [vmem:[#allocation2 + $0x98] sm:$0xf]
  %v5139 = vld [vmem:[#allocation2 + $0x9c] sm:$0xff]
  %v5140 = vld [vmem:[#allocation2 + $0xa4] sm:$0xf]
  %v5141 = vld [vmem:[#allocation2 + $0xa8] sm:$0xff]
  %v5142 = vld [vmem:[#allocation2 + $0xb0] sm:$0xf]
  %v5143 = vld [vmem:[#allocation2 + $0xb4] sm:$0xff]
  %v5144 = vld [vmem:[#allocation2 + $0xbc] sm:$0xf]
  %v5145 = vld [vmem:[#allocation2 + $0xc0] sm:$0xff]
  %v5146 = vld [vmem:[#allocation2 + $0xc8] sm:$0xf]
  %v5147 = vld [vmem:[#allocation2 + $0xcc] sm:$0xff]
  %v5148 = vld [vmem:[#allocation2 + $0xd4] sm:$0xf]
  %v5149 = vld [vmem:[#allocation2 + $0xd8] sm:$0xff]
  %v5150 = vld [vmem:[#allocation2 + $0xe0] sm:$0xf]
  %v5151 = vld [vmem:[#allocation2 + $0xe4] sm:$0xff]
  %v5152 = vld [vmem:[#allocation2 + $0xec] sm:$0xf]
  %v5153 = vld [vmem:[#allocation2 + $0xf0] sm:$0xff]
  %v5154 = vld [vmem:[#allocation2 + $0xf8] sm:$0xf]
  %v5155 = vld [vmem:[#allocation2 + $0xfc] sm:$0xff]
  %v5156 = vld [vmem:[#allocation2 + $0x104] sm:$0xf]
  %v5157 = vld [vmem:[#allocation2 + $0x108] sm:$0xff]
  %v5158 = vld [vmem:[#allocation2 + $0x110] sm:$0xf]
  %v5159 = vld [vmem:[#allocation2 + $0x114] sm:$0xff]
  %v5160 = vld [vmem:[#allocation2 + $0x11c] sm:$0xf]
  %v5161 = vld [vmem:[#allocation2 + $0x120] sm:$0xff]
  %v5162 = vld [vmem:[#allocation2 + $0x128] sm:$0xf]
  %v5163 = vld [vmem:[#allocation2 + $0x12c] sm:$0xff]
  %v5164 = vld [vmem:[#allocation2 + $0x134] sm:$0xf]
  %v5165 = vld [vmem:[#allocation2 + $0x138] sm:$0xff]
  %v5166 = vld [vmem:[#allocation2 + $0x140] sm:$0xf]
  %v5167 = vld [vmem:[#allocation2 + $0x144] sm:$0xff]
  %v5168 = vld [vmem:[#allocation2 + $0x14c] sm:$0xf]
  %v5169 = vld [vmem:[#allocation2 + $0x150] sm:$0xff]
  %v5170 = vld [vmem:[#allocation2 + $0x158] sm:$0xf]
  %v5171 = vld [vmem:[#allocation2 + $0x15c] sm:$0xff]
  %v5172 = vld [vmem:[#allocation2 + $0x164] sm:$0xf]
  %v5173 = vld [vmem:[#allocation2 + $0x168] sm:$0xff]
  %v5174 = vld [vmem:[#allocation2 + $0x170] sm:$0xf]
  %v5175 = vld [vmem:[#allocation2 + $0x174] sm:$0xff]
  %v5176 = vld [vmem:[#allocation2 + $0x17c] sm:$0xf]
  %v5177 = vld [vmem:[#allocation2 + $0x180] sm:$0xff]
  %v5178 = vld [vmem:[#allocation2 + $0x188] sm:$0xf]
  %v5179 = vld [vmem:[#allocation2 + $0x18c] sm:$0xff]
  %v5180 = vld [vmem:[#allocation2 + $0x194] sm:$0xf]
  %v5181 = vld [vmem:[#allocation2 + $0x198] sm:$0xff]
  %v5182 = vld [vmem:[#allocation2 + $0x1a0] sm:$0xf]
  %v5183 = vld [vmem:[#allocation2 + $0x1a4] sm:$0xff]
  %v5184 = vld [vmem:[#allocation2 + $0x1ac] sm:$0xf]
  %v5185 = vld [vmem:[#allocation2 + $0x1b0] sm:$0xff]
  %v5186 = vld [vmem:[#allocation2 + $0x1b8] sm:$0xf]
  %v5187 = vld [vmem:[#allocation2 + $0x1bc] sm:$0xff]
  %v5188 = vld [vmem:[#allocation2 + $0x1c4] sm:$0xf]
  %v5189 = vld [vmem:[#allocation2 + $0x1c8] sm:$0xff]
  %v5190 = vld [vmem:[#allocation2 + $0x1d0] sm:$0xf]
  %v5191 = vld [vmem:[#allocation2 + $0x1d4] sm:$0xff]
  %v5192 = vld [vmem:[#allocation2 + $0x1dc] sm:$0xf]
  %v5193 = vld [vmem:[#allocation2 + $0x1e0] sm:$0xff]
  %v5194 = vld [vmem:[#allocation2 + $0x1e8] sm:$0xf]
  %v5195 = vld [vmem:[#allocation2 + $0x1ec] sm:$0xff]
  %v5196 = vld [vmem:[#allocation2 + $0x1f4] sm:$0xf]
  %v5197 = vld [vmem:[#allocation2 + $0x1f8] sm:$0xff]
  %v5198 = vld [vmem:[#allocation2 + $0x200] sm:$0xf]
  %v5199 = vld [vmem:[#allocation2 + $0x204] sm:$0xff]
  %v5200 = vld [vmem:[#allocation2 + $0x20c] sm:$0xf]
  %v5201 = vld [vmem:[#allocation2 + $0x210] sm:$0xff]
  %v5202 = vld [vmem:[#allocation2 + $0x218] sm:$0xf]
  %v5203 = vld [vmem:[#allocation2 + $0x21c] sm:$0xff]
  %v5204 = vld [vmem:[#allocation2 + $0x224] sm:$0xf]
  %v5205 = vld [vmem:[#allocation2 + $0x228] sm:$0xff]
  %v5206 = vld [vmem:[#allocation2 + $0x230] sm:$0xf]
  %v5207 = vld [vmem:[#allocation2 + $0x234] sm:$0xff]
  %v5208 = vld [vmem:[#allocation2 + $0x23c] sm:$0xf]
  %v5209 = vld [vmem:[#allocation2 + $0x240] sm:$0xff]
  %v5210 = vld [vmem:[#allocation2 + $0x248] sm:$0xf]
  %v5211 = vld [vmem:[#allocation2 + $0x24c] sm:$0xff]
  %v5212 = vld [vmem:[#allocation2 + $0x254] sm:$0xf]
  %v5213 = vld [vmem:[#allocation2 + $0x258] sm:$0xff]
  %v5214 = vld [vmem:[#allocation2 + $0x260] sm:$0xf]
  %v5215 = vld [vmem:[#allocation2 + $0x264] sm:$0xff]
  %v5216 = vld [vmem:[#allocation2 + $0x26c] sm:$0xf]
  %v5217 = vld [vmem:[#allocation2 + $0x270] sm:$0xff]
  %v5218 = vld [vmem:[#allocation2 + $0x278] sm:$0xf]
  %v5219 = vld [vmem:[#allocation2 + $0x27c] sm:$0xff]
  %v5220 = vld [vmem:[#allocation2 + $0x284] sm:$0xf]
  %v5221 = vld [vmem:[#allocation2 + $0x288] sm:$0xff]
  %v5222 = vld [vmem:[#allocation2 + $0x290] sm:$0xf]
  %v5223 = vld [vmem:[#allocation2 + $0x294] sm:$0xff]
  %v5224 = vld [vmem:[#allocation2 + $0x29c] sm:$0xf]
  %v5225 = vld [vmem:[#allocation2 + $0x2a0] sm:$0xff]
  %v5226 = vld [vmem:[#allocation2 + $0x2a8] sm:$0xf]
  %v5227 = vld [vmem:[#allocation2 + $0x2ac] sm:$0xff]
  %v5228 = vld [vmem:[#allocation2 + $0x2b4] sm:$0xf]
  %v5229 = vld [vmem:[#allocation2 + $0x2b8] sm:$0xff]
  %v5230 = vld [vmem:[#allocation2 + $0x2c0] sm:$0xf]
  %v5231 = vld [vmem:[#allocation2 + $0x2c4] sm:$0xff]
  %v5232 = vld [vmem:[#allocation2 + $0x2cc] sm:$0xf]
  %v5233 = vld [vmem:[#allocation2 + $0x2d0] sm:$0xff]
  %v5234 = vld [vmem:[#allocation2 + $0x2d8] sm:$0xf]
  %v5235 = vld [vmem:[#allocation2 + $0x2dc] sm:$0xff]
  %v5236 = vld [vmem:[#allocation2 + $0x2e4] sm:$0xf]
  %v5237 = vld [vmem:[#allocation2 + $0x2e8] sm:$0xff]
  %v5238 = vld [vmem:[#allocation2 + $0x2f0] sm:$0xf]
  %v5239 = vld [vmem:[#allocation2 + $0x2f4] sm:$0xff]
  %v5240 = vld [vmem:[#allocation2 + $0x2fc] sm:$0xf]
  %v5241 = vld [vmem:[#allocation2 + $0x300] sm:$0xff]
  %v5242 = vld [vmem:[#allocation2 + $0x308] sm:$0xf]
  %v5243 = vld [vmem:[#allocation2 + $0x30c] sm:$0xff]
  %v5244 = vld [vmem:[#allocation2 + $0x314] sm:$0xf]
  %v5245 = vld [vmem:[#allocation2 + $0x318] sm:$0xff]
  %v5246 = vld [vmem:[#allocation2 + $0x320] sm:$0xf]
  %v5247 = vld [vmem:[#allocation2 + $0x324] sm:$0xff]
  %v5248 = vld [vmem:[#allocation2 + $0x32c] sm:$0xf]
  %v5249 = vld [vmem:[#allocation2 + $0x330] sm:$0xff]
  %v5250 = vld [vmem:[#allocation2 + $0x338] sm:$0xf]
  %v5251 = vld [vmem:[#allocation2 + $0x33c] sm:$0xff]
  %v5252 = vld [vmem:[#allocation2 + $0x344] sm:$0xf]
  %v5253 = vld [vmem:[#allocation2 + $0x348] sm:$0xff]
  %v5254 = vld [vmem:[#allocation2 + $0x350] sm:$0xf]
  %v5255 = vld [vmem:[#allocation2 + $0x354] sm:$0xff]
  %v5256 = vld [vmem:[#allocation2 + $0x35c] sm:$0xf]
  %v5257 = vld [vmem:[#allocation2 + $0x360] sm:$0xff]
  %v5258 = vld [vmem:[#allocation2 + $0x368] sm:$0xf]
  %v5259 = vld [vmem:[#allocation2 + $0x36c] sm:$0xff]
  %v5260 = vld [vmem:[#allocation2 + $0x374] sm:$0xf]
  %v5261 = vld [vmem:[#allocation2 + $0x378] sm:$0xff]
  %v5262 = vld [vmem:[#allocation2 + $0x380] sm:$0xf]
  %v5263 = vld [vmem:[#allocation2 + $0x384] sm:$0xff]
  %v5264 = vld [vmem:[#allocation2 + $0x38c] sm:$0xf]
  %v5265 = vld [vmem:[#allocation2 + $0x390] sm:$0xff]
  %v5266 = vld [vmem:[#allocation2 + $0x398] sm:$0xf]
  %v5267 = vld [vmem:[#allocation2 + $0x39c] sm:$0xff]
  %v5268 = vld [vmem:[#allocation2 + $0x3a4] sm:$0xf]
  %v5269 = vld [vmem:[#allocation2 + $0x3a8] sm:$0xff]
  %v5270 = vld [vmem:[#allocation2 + $0x3b0] sm:$0xf]
  %v5271 = vld [vmem:[#allocation2 + $0x3b4] sm:$0xff]
  %v5272 = vld [vmem:[#allocation2 + $0x3bc] sm:$0xf]
  %v5273 = vld [vmem:[#allocation2 + $0x3c0] sm:$0xff]
  %v5274 = vld [vmem:[#allocation2 + $0x3c8] sm:$0xf]
  %v5275 = vld [vmem:[#allocation2 + $0x3cc] sm:$0xff]
  %v5276 = vld [vmem:[#allocation2 + $0x3d4] sm:$0xf]
  %v5277 = vld [vmem:[#allocation2 + $0x3d8] sm:$0xff]
  %v5278 = vld [vmem:[#allocation2 + $0x3e0] sm:$0xf]
  %v5279 = vld [vmem:[#allocation2 + $0x3e4] sm:$0xff]
  %v5280 = vld [vmem:[#allocation2 + $0x3ec] sm:$0xf]
  %s5281 = scalar_lea.vmem %s3, 192
  %v5282 = vld [vmem:[%s5281] sm:$0xf]
  %v5283 = vld [vmem:[%s5281 + $0x4] sm:$0xf]
  %v5284 = vld [vmem:[%s5281 + $0x8] sm:$0xf]
  %v5285 = vld [vmem:[%s5281 + $0xc] sm:$0xf]
  %v5286 = vld [vmem:[%s5281 + $0x10] sm:$0xf]
  %v5287 = vld [vmem:[%s5281 + $0x14] sm:$0xf]
  %v5288 = vld [vmem:[%s5281 + $0x18] sm:$0xf]
  %v5289 = vld [vmem:[%s5281 + $0x1c] sm:$0xf]
  %v5290 = vld [vmem:[%s5281 + $0x20] sm:$0xf]
  %v5291 = vld [vmem:[%s5281 + $0x24] sm:$0xf]
  %v5292 = vld [vmem:[%s5281 + $0x28] sm:$0xf]
  %v5293 = vld [vmem:[%s5281 + $0x2c] sm:$0xf]
  %v5294 = vld [vmem:[%s5281 + $0x30] sm:$0xf]
  %v5295 = vld [vmem:[%s5281 + $0x34] sm:$0xf]
  %v5296 = vld [vmem:[%s5281 + $0x38] sm:$0xf]
  %v5297 = vld [vmem:[%s5281 + $0x3c] sm:$0xf]
  %v5298 = vld [vmem:[%s5281 + $0x40] sm:$0xf]
  %v5299 = vld [vmem:[%s5281 + $0x44] sm:$0xf]
  %v5300 = vld [vmem:[%s5281 + $0x48] sm:$0xf]
  %v5301 = vld [vmem:[%s5281 + $0x4c] sm:$0xf]
  %v5302 = vld [vmem:[%s5281 + $0x50] sm:$0xf]
  %v5303 = vld [vmem:[%s5281 + $0x54] sm:$0xf]
  %v5304 = vld [vmem:[%s5281 + $0x58] sm:$0xf]
  %v5305 = vld [vmem:[%s5281 + $0x5c] sm:$0xf]
  %v5306 = vld [vmem:[%s5281 + $0x60] sm:$0xf]
  %v5307 = vld [vmem:[%s5281 + $0x64] sm:$0xf]
  %v5308 = vld [vmem:[%s5281 + $0x68] sm:$0xf]
  %v5309 = vld [vmem:[%s5281 + $0x6c] sm:$0xf]
  %v5310 = vld [vmem:[%s5281 + $0x70] sm:$0xf]
  %v5311 = vld [vmem:[%s5281 + $0x74] sm:$0xf]
  %v5312 = vld [vmem:[%s5281 + $0x78] sm:$0xf]
  %v5313 = vld [vmem:[%s5281 + $0x7c] sm:$0xf]
  %v5314 = vld [vmem:[%s5281 + $0x80] sm:$0xf]
  %v5315 = vld [vmem:[%s5281 + $0x84] sm:$0xf]
  %v5316 = vld [vmem:[%s5281 + $0x88] sm:$0xf]
  %v5317 = vld [vmem:[%s5281 + $0x8c] sm:$0xf]
  %v5318 = vld [vmem:[%s5281 + $0x90] sm:$0xf]
  %v5319 = vld [vmem:[%s5281 + $0x94] sm:$0xf]
  %v5320 = vld [vmem:[%s5281 + $0x98] sm:$0xf]
  %v5321 = vld [vmem:[%s5281 + $0x9c] sm:$0xf]
  %v5322 = vld [vmem:[%s5281 + $0xa0] sm:$0xf]
  %v5323 = vld [vmem:[%s5281 + $0xa4] sm:$0xf]
  %v5324 = vld [vmem:[%s5281 + $0xa8] sm:$0xf]
  %v5325 = vld [vmem:[%s5281 + $0xac] sm:$0xf]
  %v5326 = vld [vmem:[%s5281 + $0xb0] sm:$0xf]
  %v5327 = vld [vmem:[%s5281 + $0xb4] sm:$0xf]
  %v5328 = vld [vmem:[%s5281 + $0xb8] sm:$0xf]
  %v5329 = vld [vmem:[%s5281 + $0xbc] sm:$0xf]
  %v5492 = vunpack.c.l.b16 %v5119
  %v5493 = vunpack.c.h.b16 %v5119
  %v5494 = vunpack.c.l.b16 %v5120
  %v5495 = vunpack.c.l.b16 %v5121
  %v5496 = vunpack.c.h.b16 %v5121
  %v5497 = vunpack.c.l.b16 %v5122
  %v5498 = vunpack.c.l.b16 %v5123
  %v5499 = vunpack.c.h.b16 %v5123
  %v5500 = vunpack.c.l.b16 %v5124
  %v5501 = vunpack.c.l.b16 %v5125
  %v5502 = vunpack.c.h.b16 %v5125
  %v5503 = vunpack.c.l.b16 %v5126
  %v5504 = vunpack.c.l.b16 %v5127
  %v5505 = vunpack.c.h.b16 %v5127
  %v5506 = vunpack.c.l.b16 %v5128
  %v5507 = vunpack.c.l.b16 %v5129
  %v5508 = vunpack.c.h.b16 %v5129
  %v5509 = vunpack.c.l.b16 %v5130
  %v5510 = vunpack.c.l.b16 %v5131
  %v5511 = vunpack.c.h.b16 %v5131
  %v5512 = vunpack.c.l.b16 %v5132
  %v5513 = vunpack.c.l.b16 %v5133
  %v5514 = vunpack.c.h.b16 %v5133
  %v5515 = vunpack.c.l.b16 %v5134
  %v5516 = vunpack.c.l.b16 %v5135
  %v5517 = vunpack.c.h.b16 %v5135
  %v5518 = vunpack.c.l.b16 %v5136
  %v5519 = vunpack.c.l.b16 %v5137
  %v5520 = vunpack.c.h.b16 %v5137
  %v5521 = vunpack.c.l.b16 %v5138
  %v5522 = vunpack.c.l.b16 %v5139
  %v5523 = vunpack.c.h.b16 %v5139
  %v5524 = vunpack.c.l.b16 %v5140
  %v5525 = vunpack.c.l.b16 %v5141
  %v5526 = vunpack.c.h.b16 %v5141
  %v5527 = vunpack.c.l.b16 %v5142
  %v5528 = vunpack.c.l.b16 %v5143
  %v5529 = vunpack.c.h.b16 %v5143
  %v5530 = vunpack.c.l.b16 %v5144
  %v5531 = vunpack.c.l.b16 %v5145
  %v5532 = vunpack.c.h.b16 %v5145
  %v5533 = vunpack.c.l.b16 %v5146
  %v5534 = vunpack.c.l.b16 %v5147
  %v5535 = vunpack.c.h.b16 %v5147
  %v5536 = vunpack.c.l.b16 %v5148
  %v5537 = vunpack.c.l.b16 %v5149
  %v5538 = vunpack.c.h.b16 %v5149
  %v5539 = vunpack.c.l.b16 %v5150
  %v5540 = vunpack.c.l.b16 %v5151
  %v5541 = vunpack.c.h.b16 %v5151
  %v5542 = vunpack.c.l.b16 %v5152
  %v5543 = vunpack.c.l.b16 %v5153
  %v5544 = vunpack.c.h.b16 %v5153
  %v5545 = vunpack.c.l.b16 %v5154
  %v5546 = vunpack.c.l.b16 %v5155
  %v5547 = vunpack.c.h.b16 %v5155
  %v5548 = vunpack.c.l.b16 %v5156
  %v5549 = vunpack.c.l.b16 %v5157
  %v5550 = vunpack.c.h.b16 %v5157
  %v5551 = vunpack.c.l.b16 %v5158
  %v5552 = vunpack.c.l.b16 %v5159
  %v5553 = vunpack.c.h.b16 %v5159
  %v5554 = vunpack.c.l.b16 %v5160
  %v5555 = vunpack.c.l.b16 %v5161
  %v5556 = vunpack.c.h.b16 %v5161
  %v5557 = vunpack.c.l.b16 %v5162
  %v5558 = vunpack.c.l.b16 %v5163
  %v5559 = vunpack.c.h.b16 %v5163
  %v5560 = vunpack.c.l.b16 %v5164
  %v5561 = vunpack.c.l.b16 %v5165
  %v5562 = vunpack.c.h.b16 %v5165
  %v5563 = vunpack.c.l.b16 %v5166
  %v5564 = vunpack.c.l.b16 %v5167
  %v5565 = vunpack.c.h.b16 %v5167
  %v5566 = vunpack.c.l.b16 %v5168
  %v5567 = vunpack.c.l.b16 %v5169
  %v5568 = vunpack.c.h.b16 %v5169
  %v5569 = vunpack.c.l.b16 %v5170
  %v5570 = vunpack.c.l.b16 %v5171
  %v5571 = vunpack.c.h.b16 %v5171
  %v5572 = vunpack.c.l.b16 %v5172
  %v5573 = vunpack.c.l.b16 %v5173
  %v5574 = vunpack.c.h.b16 %v5173
  %v5575 = vunpack.c.l.b16 %v5174
  %v5576 = vunpack.c.l.b16 %v5175
  %v5577 = vunpack.c.h.b16 %v5175
  %v5578 = vunpack.c.l.b16 %v5176
  %v5579 = vunpack.c.l.b16 %v5177
  %v5580 = vunpack.c.h.b16 %v5177
  %v5581 = vunpack.c.l.b16 %v5178
  %v5582 = vunpack.c.l.b16 %v5179
  %v5583 = vunpack.c.h.b16 %v5179
  %v5584 = vunpack.c.l.b16 %v5180
  %v5585 = vunpack.c.l.b16 %v5181
  %v5586 = vunpack.c.h.b16 %v5181
  %v5587 = vunpack.c.l.b16 %v5182
  %v5588 = vunpack.c.l.b16 %v5183
  %v5589 = vunpack.c.h.b16 %v5183
  %v5590 = vunpack.c.l.b16 %v5184
  %v5591 = vunpack.c.l.b16 %v5185
  %v5592 = vunpack.c.h.b16 %v5185
  %v5593 = vunpack.c.l.b16 %v5186
  %v5594 = vunpack.c.l.b16 %v5187
  %v5595 = vunpack.c.h.b16 %v5187
  %v5596 = vunpack.c.l.b16 %v5188
  %v5597 = vunpack.c.l.b16 %v5189
  %v5598 = vunpack.c.h.b16 %v5189
  %v5599 = vunpack.c.l.b16 %v5190
  %v5600 = vunpack.c.l.b16 %v5191
  %v5601 = vunpack.c.h.b16 %v5191
  %v5602 = vunpack.c.l.b16 %v5192
  %v5603 = vunpack.c.l.b16 %v5193
  %v5604 = vunpack.c.h.b16 %v5193
  %v5605 = vunpack.c.l.b16 %v5194
  %v5606 = vunpack.c.l.b16 %v5195
  %v5607 = vunpack.c.h.b16 %v5195
  %v5608 = vunpack.c.l.b16 %v5196
  %v5609 = vunpack.c.l.b16 %v5197
  %v5610 = vunpack.c.h.b16 %v5197
  %v5611 = vunpack.c.l.b16 %v5198
  %v5612 = vunpack.c.l.b16 %v5199
  %v5613 = vunpack.c.h.b16 %v5199
  %v5614 = vunpack.c.l.b16 %v5200
  %v5615 = vunpack.c.l.b16 %v5201
  %v5616 = vunpack.c.h.b16 %v5201
  %v5617 = vunpack.c.l.b16 %v5202
  %v5618 = vunpack.c.l.b16 %v5203
  %v5619 = vunpack.c.h.b16 %v5203
  %v5620 = vunpack.c.l.b16 %v5204
  %v5621 = vunpack.c.l.b16 %v5205
  %v5622 = vunpack.c.h.b16 %v5205
  %v5623 = vunpack.c.l.b16 %v5206
  %v5624 = vunpack.c.l.b16 %v5207
  %v5625 = vunpack.c.h.b16 %v5207
  %v5626 = vunpack.c.l.b16 %v5208
  %v5627 = vunpack.c.l.b16 %v5209
  %v5628 = vunpack.c.h.b16 %v5209
  %v5629 = vunpack.c.l.b16 %v5210
  %v5630 = vunpack.c.l.b16 %v5211
  %v5631 = vunpack.c.h.b16 %v5211
  %v5632 = vunpack.c.l.b16 %v5212
  %v5633 = vunpack.c.l.b16 %v5213
  %v5634 = vunpack.c.h.b16 %v5213
  %v5635 = vunpack.c.l.b16 %v5214
  %v5636 = vunpack.c.l.b16 %v5215
  %v5637 = vunpack.c.h.b16 %v5215
  %v5638 = vunpack.c.l.b16 %v5216
  %v5639 = vunpack.c.l.b16 %v5217
  %v5640 = vunpack.c.h.b16 %v5217
  %v5641 = vunpack.c.l.b16 %v5218
  %v5642 = vunpack.c.l.b16 %v5219
  %v5643 = vunpack.c.h.b16 %v5219
  %v5644 = vunpack.c.l.b16 %v5220
  %v5645 = vunpack.c.l.b16 %v5221
  %v5646 = vunpack.c.h.b16 %v5221
  %v5647 = vunpack.c.l.b16 %v5222
  %v5648 = vunpack.c.l.b16 %v5223
  %v5649 = vunpack.c.h.b16 %v5223
  %v5650 = vunpack.c.l.b16 %v5224
  %v5651 = vunpack.c.l.b16 %v5225
  %v5652 = vunpack.c.h.b16 %v5225
  %v5653 = vunpack.c.l.b16 %v5226
  %v5654 = vunpack.c.l.b16 %v5227
  %v5655 = vunpack.c.h.b16 %v5227
  %v5656 = vunpack.c.l.b16 %v5228
  %v5657 = vunpack.c.l.b16 %v5229
  %v5658 = vunpack.c.h.b16 %v5229
  %v5659 = vunpack.c.l.b16 %v5230
  %v5660 = vunpack.c.l.b16 %v5231
  %v5661 = vunpack.c.h.b16 %v5231
  %v5662 = vunpack.c.l.b16 %v5232
  %v5663 = vunpack.c.l.b16 %v5233
  %v5664 = vunpack.c.h.b16 %v5233
  %v5665 = vunpack.c.l.b16 %v5234
  %v5666 = vunpack.c.l.b16 %v5235
  %v5667 = vunpack.c.h.b16 %v5235
  %v5668 = vunpack.c.l.b16 %v5236
  %v5669 = vunpack.c.l.b16 %v5237
  %v5670 = vunpack.c.h.b16 %v5237
  %v5671 = vunpack.c.l.b16 %v5238
  %v5672 = vunpack.c.l.b16 %v5239
  %v5673 = vunpack.c.h.b16 %v5239
  %v5674 = vunpack.c.l.b16 %v5240
  %v5675 = vunpack.c.l.b16 %v5241
  %v5676 = vunpack.c.h.b16 %v5241
  %v5677 = vunpack.c.l.b16 %v5242
  %v5678 = vunpack.c.l.b16 %v5243
  %v5679 = vunpack.c.h.b16 %v5243
  %v5680 = vunpack.c.l.b16 %v5244
  %v5681 = vunpack.c.l.b16 %v5245
  %v5682 = vunpack.c.h.b16 %v5245
  %v5683 = vunpack.c.l.b16 %v5246
  %v5684 = vunpack.c.l.b16 %v5247
  %v5685 = vunpack.c.h.b16 %v5247
  %v5686 = vunpack.c.l.b16 %v5248
  %v5687 = vunpack.c.l.b16 %v5249
  %v5688 = vunpack.c.h.b16 %v5249
  %v5689 = vunpack.c.l.b16 %v5250
  %v5690 = vunpack.c.l.b16 %v5251
  %v5691 = vunpack.c.h.b16 %v5251
  %v5692 = vunpack.c.l.b16 %v5252
  %v5693 = vunpack.c.l.b16 %v5253
  %v5694 = vunpack.c.h.b16 %v5253
  %v5695 = vunpack.c.l.b16 %v5254
  %v5696 = vunpack.c.l.b16 %v5255
  %v5697 = vunpack.c.h.b16 %v5255
  %v5698 = vunpack.c.l.b16 %v5256
  %v5699 = vunpack.c.l.b16 %v5257
  %v5700 = vunpack.c.h.b16 %v5257
  %v5701 = vunpack.c.l.b16 %v5258
  %v5702 = vunpack.c.l.b16 %v5259
  %v5703 = vunpack.c.h.b16 %v5259
  %v5704 = vunpack.c.l.b16 %v5260
  %v5705 = vunpack.c.l.b16 %v5261
  %v5706 = vunpack.c.h.b16 %v5261
  %v5707 = vunpack.c.l.b16 %v5262
  %v5708 = vunpack.c.l.b16 %v5263
  %v5709 = vunpack.c.h.b16 %v5263
  %v5710 = vunpack.c.l.b16 %v5264
  %v5711 = vunpack.c.l.b16 %v5265
  %v5712 = vunpack.c.h.b16 %v5265
  %v5713 = vunpack.c.l.b16 %v5266
  %v5714 = vunpack.c.l.b16 %v5267
  %v5715 = vunpack.c.h.b16 %v5267
  %v5716 = vunpack.c.l.b16 %v5268
  %v5717 = vunpack.c.l.b16 %v5269
  %v5718 = vunpack.c.h.b16 %v5269
  %v5719 = vunpack.c.l.b16 %v5270
  %v5720 = vunpack.c.l.b16 %v5271
  %v5721 = vunpack.c.h.b16 %v5271
  %v5722 = vunpack.c.l.b16 %v5272
  %v5723 = vunpack.c.l.b16 %v5273
  %v5724 = vunpack.c.h.b16 %v5273
  %v5725 = vunpack.c.l.b16 %v5274
  %v5726 = vunpack.c.l.b16 %v5275
  %v5727 = vunpack.c.h.b16 %v5275
  %v5728 = vunpack.c.l.b16 %v5276
  %v5729 = vunpack.c.l.b16 %v5277
  %v5730 = vunpack.c.h.b16 %v5277
  %v5731 = vunpack.c.l.b16 %v5278
  %v5732 = vunpack.c.l.b16 %v5279
  %v5733 = vunpack.c.h.b16 %v5279
  %v5734 = vunpack.c.l.b16 %v5280
  %v5735 = vpack.c.b16 %v5495, %v5492
  %v5736 = vpack.c.b16 %v5496, %v5493
  %v5737 = vpack.c.b16 %v5497, %v5494
  %v5738 = vpack.c.b16 %v5501, %v5498
  %v5739 = vpack.c.b16 %v5502, %v5499
  %v5740 = vpack.c.b16 %v5503, %v5500
  %v5741 = vpack.c.b16 %v5507, %v5504
  %v5742 = vpack.c.b16 %v5508, %v5505
  %v5743 = vpack.c.b16 %v5509, %v5506
  %v5744 = vpack.c.b16 %v5513, %v5510
  %v5745 = vpack.c.b16 %v5514, %v5511
  %v5746 = vpack.c.b16 %v5515, %v5512
  %v5747 = vpack.c.b16 %v5519, %v5516
  %v5748 = vpack.c.b16 %v5520, %v5517
  %v5749 = vpack.c.b16 %v5521, %v5518
  %v5750 = vpack.c.b16 %v5525, %v5522
  %v5751 = vpack.c.b16 %v5526, %v5523
  %v5752 = vpack.c.b16 %v5527, %v5524
  %v5753 = vpack.c.b16 %v5531, %v5528
  %v5754 = vpack.c.b16 %v5532, %v5529
  %v5755 = vpack.c.b16 %v5533, %v5530
  %v5756 = vpack.c.b16 %v5537, %v5534
  %v5757 = vpack.c.b16 %v5538, %v5535
  %v5758 = vpack.c.b16 %v5539, %v5536
  %v5759 = vpack.c.b16 %v5543, %v5540
  %v5760 = vpack.c.b16 %v5544, %v5541
  %v5761 = vpack.c.b16 %v5545, %v5542
  %v5762 = vpack.c.b16 %v5549, %v5546
  %v5763 = vpack.c.b16 %v5550, %v5547
  %v5764 = vpack.c.b16 %v5551, %v5548
  %v5765 = vpack.c.b16 %v5555, %v5552
  %v5766 = vpack.c.b16 %v5556, %v5553
  %v5767 = vpack.c.b16 %v5557, %v5554
  %v5768 = vpack.c.b16 %v5561, %v5558
  %v5769 = vpack.c.b16 %v5562, %v5559
  %v5770 = vpack.c.b16 %v5563, %v5560
  %v5771 = vpack.c.b16 %v5567, %v5564
  %v5772 = vpack.c.b16 %v5568, %v5565
  %v5773 = vpack.c.b16 %v5569, %v5566
  %v5774 = vpack.c.b16 %v5573, %v5570
  %v5775 = vpack.c.b16 %v5574, %v5571
  %v5776 = vpack.c.b16 %v5575, %v5572
  %v5777 = vpack.c.b16 %v5579, %v5576
  %v5778 = vpack.c.b16 %v5580, %v5577
  %v5779 = vpack.c.b16 %v5581, %v5578
  %v5780 = vpack.c.b16 %v5585, %v5582
  %v5781 = vpack.c.b16 %v5586, %v5583
  %v5782 = vpack.c.b16 %v5587, %v5584
  %v5783 = vpack.c.b16 %v5591, %v5588
  %v5784 = vpack.c.b16 %v5592, %v5589
  %v5785 = vpack.c.b16 %v5593, %v5590
  %v5786 = vpack.c.b16 %v5597, %v5594
  %v5787 = vpack.c.b16 %v5598, %v5595
  %v5788 = vpack.c.b16 %v5599, %v5596
  %v5789 = vpack.c.b16 %v5603, %v5600
  %v5790 = vpack.c.b16 %v5604, %v5601
  %v5791 = vpack.c.b16 %v5605, %v5602
  %v5792 = vpack.c.b16 %v5609, %v5606
  %v5793 = vpack.c.b16 %v5610, %v5607
  %v5794 = vpack.c.b16 %v5611, %v5608
  %v5795 = vpack.c.b16 %v5615, %v5612
  %v5796 = vpack.c.b16 %v5616, %v5613
  %v5797 = vpack.c.b16 %v5617, %v5614
  %v5798 = vpack.c.b16 %v5621, %v5618
  %v5799 = vpack.c.b16 %v5622, %v5619
  %v5800 = vpack.c.b16 %v5623, %v5620
  %v5801 = vpack.c.b16 %v5627, %v5624
  %v5802 = vpack.c.b16 %v5628, %v5625
  %v5803 = vpack.c.b16 %v5629, %v5626
  %v5804 = vpack.c.b16 %v5633, %v5630
  %v5805 = vpack.c.b16 %v5634, %v5631
  %v5806 = vpack.c.b16 %v5635, %v5632
  %v5807 = vpack.c.b16 %v5639, %v5636
  %v5808 = vpack.c.b16 %v5640, %v5637
  %v5809 = vpack.c.b16 %v5641, %v5638
  %v5810 = vpack.c.b16 %v5645, %v5642
  %v5811 = vpack.c.b16 %v5646, %v5643
  %v5812 = vpack.c.b16 %v5647, %v5644
  %v5813 = vpack.c.b16 %v5651, %v5648
  %v5814 = vpack.c.b16 %v5652, %v5649
  %v5815 = vpack.c.b16 %v5653, %v5650
  %v5816 = vpack.c.b16 %v5657, %v5654
  %v5817 = vpack.c.b16 %v5658, %v5655
  %v5818 = vpack.c.b16 %v5659, %v5656
  %v5819 = vpack.c.b16 %v5663, %v5660
  %v5820 = vpack.c.b16 %v5664, %v5661
  %v5821 = vpack.c.b16 %v5665, %v5662
  %v5822 = vpack.c.b16 %v5669, %v5666
  %v5823 = vpack.c.b16 %v5670, %v5667
  %v5824 = vpack.c.b16 %v5671, %v5668
  %v5825 = vpack.c.b16 %v5675, %v5672
  %v5826 = vpack.c.b16 %v5676, %v5673
  %v5827 = vpack.c.b16 %v5677, %v5674
  %v5828 = vpack.c.b16 %v5681, %v5678
  %v5829 = vpack.c.b16 %v5682, %v5679
  %v5830 = vpack.c.b16 %v5683, %v5680
  %v5831 = vpack.c.b16 %v5687, %v5684
  %v5832 = vpack.c.b16 %v5688, %v5685
  %v5833 = vpack.c.b16 %v5689, %v5686
  %v5834 = vpack.c.b16 %v5693, %v5690
  %v5835 = vpack.c.b16 %v5694, %v5691
  %v5836 = vpack.c.b16 %v5695, %v5692
  %v5837 = vpack.c.b16 %v5699, %v5696
  %v5838 = vpack.c.b16 %v5700, %v5697
  %v5839 = vpack.c.b16 %v5701, %v5698
  %v5840 = vpack.c.b16 %v5705, %v5702
  %v5841 = vpack.c.b16 %v5706, %v5703
  %v5842 = vpack.c.b16 %v5707, %v5704
  %v5843 = vpack.c.b16 %v5711, %v5708
  %v5844 = vpack.c.b16 %v5712, %v5709
  %v5845 = vpack.c.b16 %v5713, %v5710
  %v5846 = vpack.c.b16 %v5717, %v5714
  %v5847 = vpack.c.b16 %v5718, %v5715
  %v5848 = vpack.c.b16 %v5719, %v5716
  %v5849 = vpack.c.b16 %v5723, %v5720
  %v5850 = vpack.c.b16 %v5724, %v5721
  %v5851 = vpack.c.b16 %v5725, %v5722
  %v5852 = vpack.c.b16 %v5729, %v5726
  %v5853 = vpack.c.b16 %v5730, %v5727
  %v5854 = vpack.c.b16 %v5731, %v5728
  %v5855 = vpack.c.b16 %v5732, %v5732
  %v5856 = vpack.c.b16 %v5733, %v5733
  %v5857 = vpack.c.b16 %v5734, %v5734
  %v6029 = vunpack.c.l.b16 %v5282
  %v6030 = vunpack.c.l.b16 %v5283
  %v6031 = vunpack.c.l.b16 %v5284
  %v6032 = vunpack.c.l.b16 %v5285
  %v6033 = vunpack.c.l.b16 %v5286
  %v6034 = vunpack.c.l.b16 %v5287
  %v6035 = vunpack.c.l.b16 %v5288
  %v6036 = vunpack.c.l.b16 %v5289
  %v6037 = vunpack.c.l.b16 %v5290
  %v6038 = vunpack.c.l.b16 %v5291
  %v6039 = vunpack.c.l.b16 %v5292
  %v6040 = vunpack.c.l.b16 %v5293
  %v6041 = vunpack.c.l.b16 %v5294
  %v6042 = vunpack.c.l.b16 %v5295
  %v6043 = vunpack.c.l.b16 %v5296
  %v6044 = vunpack.c.l.b16 %v5297
  %v6045 = vunpack.c.l.b16 %v5298
  %v6046 = vunpack.c.l.b16 %v5299
  %v6047 = vunpack.c.l.b16 %v5300
  %v6048 = vunpack.c.l.b16 %v5301
  %v6049 = vunpack.c.l.b16 %v5302
  %v6050 = vunpack.c.l.b16 %v5303
  %v6051 = vunpack.c.l.b16 %v5304
  %v6052 = vunpack.c.l.b16 %v5305
  %v6053 = vunpack.c.l.b16 %v5306
  %v6054 = vunpack.c.l.b16 %v5307
  %v6055 = vunpack.c.l.b16 %v5308
  %v6056 = vunpack.c.l.b16 %v5309
  %v6057 = vunpack.c.l.b16 %v5310
  %v6058 = vunpack.c.l.b16 %v5311
  %v6059 = vunpack.c.l.b16 %v5312
  %v6060 = vunpack.c.l.b16 %v5313
  %v6061 = vunpack.c.l.b16 %v5314
  %v6062 = vunpack.c.l.b16 %v5315
  %v6063 = vunpack.c.l.b16 %v5316
  %v6064 = vunpack.c.l.b16 %v5317
  %v6065 = vunpack.c.l.b16 %v5318
  %v6066 = vunpack.c.l.b16 %v5319
  %v6067 = vunpack.c.l.b16 %v5320
  %v6068 = vunpack.c.l.b16 %v5321
  %v6069 = vunpack.c.l.b16 %v5322
  %v6070 = vunpack.c.l.b16 %v5323
  %v6071 = vunpack.c.l.b16 %v5324
  %v6072 = vunpack.c.l.b16 %v5325
  %v6073 = vunpack.c.l.b16 %v5326
  %v6074 = vunpack.c.l.b16 %v5327
  %v6075 = vunpack.c.l.b16 %v5328
  %v6076 = vunpack.c.l.b16 %v5329
  %v6077 = vpack.c.b16 %v6030, %v6029
  %v6078 = vpack.c.b16 %v6032, %v6031
  %v6079 = vpack.c.b16 %v6034, %v6033
  %v6080 = vpack.c.b16 %v6036, %v6035
  %v6081 = vpack.c.b16 %v6038, %v6037
  %v6082 = vpack.c.b16 %v6040, %v6039
  %v6083 = vpack.c.b16 %v6042, %v6041
  %v6084 = vpack.c.b16 %v6044, %v6043
  %v6085 = vpack.c.b16 %v6046, %v6045
  %v6086 = vpack.c.b16 %v6048, %v6047
  %v6087 = vpack.c.b16 %v6050, %v6049
  %v6088 = vpack.c.b16 %v6052, %v6051
  %v6089 = vpack.c.b16 %v6054, %v6053
  %v6090 = vpack.c.b16 %v6056, %v6055
  %v6091 = vpack.c.b16 %v6058, %v6057
  %v6092 = vpack.c.b16 %v6060, %v6059
  %v6093 = vpack.c.b16 %v6062, %v6061
  %v6094 = vpack.c.b16 %v6064, %v6063
  %v6095 = vpack.c.b16 %v6066, %v6065
  %v6096 = vpack.c.b16 %v6068, %v6067
  %v6097 = vpack.c.b16 %v6070, %v6069
  %v6098 = vpack.c.b16 %v6072, %v6071
  %v6099 = vpack.c.b16 %v6074, %v6073
  %v6100 = vpack.c.b16 %v6076, %v6075
  %6125 = vmatprep.subr.bf16.mxu0 0
  %6126 = vmatpush1.bf16.msra.mxu0 %v6077
  %6127 = vmatprep.subr.bf16.mxu0 0
  %6128 = vmatpush1.bf16.msra.mxu0 %v6078
  %6129 = vmatprep.subr.bf16.mxu0 0
  %6130 = vmatpush1.bf16.msra.mxu0 %v6079
  %6131 = vmatprep.subr.bf16.mxu0 0
  %6132 = vmatpush1.bf16.msra.mxu0 %v6080
  %6133 = vmatprep.subr.bf16.mxu0 0
  %6134 = vmatpush1.bf16.msra.mxu0 %v6081
  %6135 = vmatprep.subr.bf16.mxu0 0
  %6136 = vmatpush1.bf16.msra.mxu0 %v6082
  %6137 = vmatprep.subr.bf16.mxu0 0
  %6138 = vmatpush1.bf16.msra.mxu0 %v6083
  %6139 = vmatprep.subr.bf16.mxu0 0
  %6140 = vmatpush1.bf16.msra.mxu0 %v6084
  %6141 = vmatprep.subr.bf16.mxu0 0
  %6142 = vmatpush1.bf16.msra.mxu0 %v6085
  %6143 = vmatprep.subr.bf16.mxu0 0
  %6144 = vmatpush1.bf16.msra.mxu0 %v6086
  %6145 = vmatprep.subr.bf16.mxu0 0
  %6146 = vmatpush1.bf16.msra.mxu0 %v6087
  %6147 = vmatprep.subr.bf16.mxu0 0
  %6148 = vmatpush1.bf16.msra.mxu0 %v6088
  %6149 = vmatprep.subr.bf16.mxu0 0
  %6150 = vmatpush1.bf16.msra.mxu0 %v6089
  %6151 = vmatprep.subr.bf16.mxu0 0
  %6152 = vmatpush1.bf16.msra.mxu0 %v6090
  %6153 = vmatprep.subr.bf16.mxu0 0
  %6154 = vmatpush1.bf16.msra.mxu0 %v6091
  %6155 = vmatprep.subr.bf16.mxu0 0
  %6156 = vmatpush1.bf16.msra.mxu0 %v6092
  %6157 = vmatprep.mubr.bf16.mxu0 %v5736
  %6158 = vmatmul.mubr.bf16.gmra.mrb[0].mxu0 %v5735
  %v6159 = vpop.f32.mrb[0].mxu0
  %v6160 = vadd.f32 0.0, %v6159
  %v6161 = vpop.f32.mrb[0].mxu0
  %v6162 = vpop.f32.mrb[0].mxu0
  %v6163 = vadd.f32 0.0, %v6162
  %v6164 = vpop.f32.mrb[0].mxu0
  %6165 = vmatprep.mubr.bf16.mxu0 %v5739
  %6166 = vmatmul.mubr.bf16.gmra.mrb[0].mxu0 %v5738
  %v6167 = vpop.f32.mrb[0].mxu0
  %v6168 = vadd.f32 0.0, %v6167
  %v6169 = vpop.f32.mrb[0].mxu0
  %v6170 = vpop.f32.mrb[0].mxu0
  %v6171 = vadd.f32 0.0, %v6170
  %v6172 = vpop.f32.mrb[0].mxu0
  %6173 = vmatprep.mubr.bf16.mxu0 %v5742
  %6174 = vmatmul.mubr.bf16.gmra.mrb[0].mxu0 %v5741
  %v6175 = vpop.f32.mrb[0].mxu0
  %v6176 = vadd.f32 0.0, %v6175
  %v6177 = vpop.f32.mrb[0].mxu0
  %v6178 = vpop.f32.mrb[0].mxu0
  %v6179 = vadd.f32 0.0, %v6178
  %v6180 = vpop.f32.mrb[0].mxu0
  %6181 = vmatprep.mubr.bf16.mxu0 %v5745
  %6182 = vmatmul.mubr.bf16.gmra.mrb[0].mxu0 %v5744
  %v6183 = vpop.f32.mrb[0].mxu0
  %v6184 = vadd.f32 0.0, %v6183
  %v6185 = vpop.f32.mrb[0].mxu0
  %v6186 = vpop.f32.mrb[0].mxu0
  %v6187 = vadd.f32 0.0, %v6186
  %v6188 = vpop.f32.mrb[0].mxu0
  %6189 = vmatprep.mubr.bf16.mxu0 %v5748
  %6190 = vmatmul.mubr.bf16.gmra.mrb[0].mxu0 %v5747
  %v6191 = vpop.f32.mrb[0].mxu0
  %v6192 = vadd.f32 0.0, %v6191
  %v6193 = vpop.f32.mrb[0].mxu0
  %v6194 = vpop.f32.mrb[0].mxu0
  %v6195 = vadd.f32 0.0, %v6194
  %v6196 = vpop.f32.mrb[0].mxu0
  %6197 = vmatprep.mubr.bf16.mxu0 %v5751
  %6198 = vmatmul.mubr.bf16.gmra.mrb[0].mxu0 %v5750
  %v6199 = vpop.f32.mrb[0].mxu0
  %v6200 = vadd.f32 0.0, %v6199
  %v6201 = vpop.f32.mrb[0].mxu0
  %v6202 = vpop.f32.mrb[0].mxu0
  %v6203 = vadd.f32 0.0, %v6202
  %v6204 = vpop.f32.mrb[0].mxu0
  %6205 = vmatprep.mubr.bf16.mxu0 %v5754
  %6206 = vmatmul.mubr.bf16.gmra.mrb[0].mxu0 %v5753
  %v6207 = vpop.f32.mrb[0].mxu0
  %v6208 = vadd.f32 0.0, %v6207
  %v6209 = vpop.f32.mrb[0].mxu0
  %v6210 = vpop.f32.mrb[0].mxu0
  %v6211 = vadd.f32 0.0, %v6210
  %v6212 = vpop.f32.mrb[0].mxu0
  %6213 = vmatprep.mubr.bf16.mxu0 %v5757
  %6214 = vmatmul.mubr.bf16.gmra.mrb[0].mxu0 %v5756
  %v6215 = vpop.f32.mrb[0].mxu0
  %v6216 = vadd.f32 0.0, %v6215
  %v6217 = vpop.f32.mrb[0].mxu0
  %v6218 = vpop.f32.mrb[0].mxu0
  %v6219 = vadd.f32 0.0, %v6218
  %v6220 = vpop.f32.mrb[0].mxu0
  %6221 = vmatprep.mubr.bf16.mxu0 %v5760
  %6222 = vmatmul.mubr.bf16.gmra.mrb[0].mxu0 %v5759
  %v6223 = vpop.f32.mrb[0].mxu0
  %v6224 = vadd.f32 0.0, %v6223
  %v6225 = vpop.f32.mrb[0].mxu0
  %v6226 = vpop.f32.mrb[0].mxu0
  %v6227 = vadd.f32 0.0, %v6226
  %v6228 = vpop.f32.mrb[0].mxu0
  %6229 = vmatprep.mubr.bf16.mxu0 %v5763
  %6230 = vmatmul.mubr.bf16.gmra.mrb[0].mxu0 %v5762
  %v6231 = vpop.f32.mrb[0].mxu0
  %v6232 = vadd.f32 0.0, %v6231
  %v6233 = vpop.f32.mrb[0].mxu0
  %v6234 = vpop.f32.mrb[0].mxu0
  %v6235 = vadd.f32 0.0, %v6234
  %v6236 = vpop.f32.mrb[0].mxu0
  %6237 = vmatprep.mubr.bf16.mxu0 %v5766
  %6238 = vmatmul.mubr.bf16.gmra.mrb[0].mxu0 %v5765
  %v6239 = vpop.f32.mrb[0].mxu0
  %v6240 = vadd.f32 0.0, %v6239
  %v6241 = vpop.f32.mrb[0].mxu0
  %v6242 = vpop.f32.mrb[0].mxu0
  %v6243 = vadd.f32 0.0, %v6242
  %v6244 = vpop.f32.mrb[0].mxu0
  %6245 = vmatprep.mubr.bf16.mxu0 %v5769
  %6246 = vmatmul.mubr.bf16.gmra.mrb[0].mxu0 %v5768
  %v6247 = vpop.f32.mrb[0].mxu0
  %v6248 = vadd.f32 0.0, %v6247
  %v6249 = vpop.f32.mrb[0].mxu0
  %v6250 = vpop.f32.mrb[0].mxu0
  %v6251 = vadd.f32 0.0, %v6250
  %v6252 = vpop.f32.mrb[0].mxu0
  %6253 = vmatprep.mubr.bf16.mxu0 %v5772
  %6254 = vmatmul.mubr.bf16.gmra.mrb[0].mxu0 %v5771
  %v6255 = vpop.f32.mrb[0].mxu0
  %v6256 = vadd.f32 0.0, %v6255
  %v6257 = vpop.f32.mrb[0].mxu0
  %v6258 = vpop.f32.mrb[0].mxu0
  %v6259 = vadd.f32 0.0, %v6258
  %v6260 = vpop.f32.mrb[0].mxu0
  %6261 = vmatprep.mubr.bf16.mxu0 %v5775
  %6262 = vmatmul.mubr.bf16.gmra.mrb[0].mxu0 %v5774
  %v6263 = vpop.f32.mrb[0].mxu0
  %v6264 = vadd.f32 0.0, %v6263
  %v6265 = vpop.f32.mrb[0].mxu0
  %v6266 = vpop.f32.mrb[0].mxu0
  %v6267 = vadd.f32 0.0, %v6266
  %v6268 = vpop.f32.mrb[0].mxu0
  %6269 = vmatprep.mubr.bf16.mxu0 %v5778
  %6270 = vmatmul.mubr.bf16.gmra.mrb[0].mxu0 %v5777
  %v6271 = vpop.f32.mrb[0].mxu0
  %v6272 = vadd.f32 0.0, %v6271
  %v6273 = vpop.f32.mrb[0].mxu0
  %v6274 = vpop.f32.mrb[0].mxu0
  %v6275 = vadd.f32 0.0, %v6274
  %v6276 = vpop.f32.mrb[0].mxu0
  %6277 = vmatprep.mubr.bf16.mxu0 %v5781
  %6278 = vmatmul.mubr.bf16.gmra.mrb[0].mxu0 %v5780
  %v6279 = vpop.f32.mrb[0].mxu0
  %v6280 = vadd.f32 0.0, %v6279
  %v6281 = vpop.f32.mrb[0].mxu0
  %v6282 = vpop.f32.mrb[0].mxu0
  %v6283 = vadd.f32 0.0, %v6282
  %v6284 = vpop.f32.mrb[0].mxu0
  %6285 = vmatprep.mubr.bf16.mxu0 %v5784
  %6286 = vmatmul.mubr.bf16.gmra.mrb[0].mxu0 %v5783
  %v6287 = vpop.f32.mrb[0].mxu0
  %v6288 = vadd.f32 0.0, %v6287
  %v6289 = vpop.f32.mrb[0].mxu0
  %v6290 = vpop.f32.mrb[0].mxu0
  %v6291 = vadd.f32 0.0, %v6290
  %v6292 = vpop.f32.mrb[0].mxu0
  %6293 = vmatprep.mubr.bf16.mxu0 %v5787
  %6294 = vmatmul.mubr.bf16.gmra.mrb[0].mxu0 %v5786
  %v6295 = vpop.f32.mrb[0].mxu0
  %v6296 = vadd.f32 0.0, %v6295
  %v6297 = vpop.f32.mrb[0].mxu0
  %v6298 = vpop.f32.mrb[0].mxu0
  %v6299 = vadd.f32 0.0, %v6298
  %v6300 = vpop.f32.mrb[0].mxu0
  %6301 = vmatprep.mubr.bf16.mxu0 %v5790
  %6302 = vmatmul.mubr.bf16.gmra.mrb[0].mxu0 %v5789
  %v6303 = vpop.f32.mrb[0].mxu0
  %v6304 = vadd.f32 0.0, %v6303
  %v6305 = vpop.f32.mrb[0].mxu0
  %v6306 = vpop.f32.mrb[0].mxu0
  %v6307 = vadd.f32 0.0, %v6306
  %v6308 = vpop.f32.mrb[0].mxu0
  %6309 = vmatprep.mubr.bf16.mxu0 %v5793
  %6310 = vmatmul.mubr.bf16.gmra.mrb[0].mxu0 %v5792
  %v6311 = vpop.f32.mrb[0].mxu0
  %v6312 = vadd.f32 0.0, %v6311
  %v6313 = vpop.f32.mrb[0].mxu0
  %v6314 = vpop.f32.mrb[0].mxu0
  %v6315 = vadd.f32 0.0, %v6314
  %v6316 = vpop.f32.mrb[0].mxu0
  %6317 = vmatprep.mubr.bf16.mxu0 %v5796
  %6318 = vmatmul.mubr.bf16.gmra.mrb[0].mxu0 %v5795
  %v6319 = vpop.f32.mrb[0].mxu0
  %v6320 = vadd.f32 0.0, %v6319
  %v6321 = vpop.f32.mrb[0].mxu0
  %v6322 = vpop.f32.mrb[0].mxu0
  %v6323 = vadd.f32 0.0, %v6322
  %v6324 = vpop.f32.mrb[0].mxu0
  %6325 = vmatprep.mubr.bf16.mxu0 %v5799
  %6326 = vmatmul.mubr.bf16.gmra.mrb[0].mxu0 %v5798
  %v6327 = vpop.f32.mrb[0].mxu0
  %v6328 = vadd.f32 0.0, %v6327
  %v6329 = vpop.f32.mrb[0].mxu0
  %v6330 = vpop.f32.mrb[0].mxu0
  %v6331 = vadd.f32 0.0, %v6330
  %v6332 = vpop.f32.mrb[0].mxu0
  %6333 = vmatprep.mubr.bf16.mxu0 %v5802
  %6334 = vmatmul.mubr.bf16.gmra.mrb[0].mxu0 %v5801
  %v6335 = vpop.f32.mrb[0].mxu0
  %v6336 = vadd.f32 0.0, %v6335
  %v6337 = vpop.f32.mrb[0].mxu0
  %v6338 = vpop.f32.mrb[0].mxu0
  %v6339 = vadd.f32 0.0, %v6338
  %v6340 = vpop.f32.mrb[0].mxu0
  %6341 = vmatprep.mubr.bf16.mxu0 %v5805
  %6342 = vmatmul.mubr.bf16.gmra.mrb[0].mxu0 %v5804
  %v6343 = vpop.f32.mrb[0].mxu0
  %v6344 = vadd.f32 0.0, %v6343
  %v6345 = vpop.f32.mrb[0].mxu0
  %v6346 = vpop.f32.mrb[0].mxu0
  %v6347 = vadd.f32 0.0, %v6346
  %v6348 = vpop.f32.mrb[0].mxu0
  %6349 = vmatprep.mubr.bf16.mxu0 %v5808
  %6350 = vmatmul.mubr.bf16.gmra.mrb[0].mxu0 %v5807
  %v6351 = vpop.f32.mrb[0].mxu0
  %v6352 = vadd.f32 0.0, %v6351
  %v6353 = vpop.f32.mrb[0].mxu0
  %v6354 = vpop.f32.mrb[0].mxu0
  %v6355 = vadd.f32 0.0, %v6354
  %v6356 = vpop.f32.mrb[0].mxu0
  %6357 = vmatprep.mubr.bf16.mxu0 %v5811
  %6358 = vmatmul.mubr.bf16.gmra.mrb[0].mxu0 %v5810
  %v6359 = vpop.f32.mrb[0].mxu0
  %v6360 = vadd.f32 0.0, %v6359
  %v6361 = vpop.f32.mrb[0].mxu0
  %v6362 = vpop.f32.mrb[0].mxu0
  %v6363 = vadd.f32 0.0, %v6362
  %v6364 = vpop.f32.mrb[0].mxu0
  %6365 = vmatprep.mubr.bf16.mxu0 %v5814
  %6366 = vmatmul.mubr.bf16.gmra.mrb[0].mxu0 %v5813
  %v6367 = vpop.f32.mrb[0].mxu0
  %v6368 = vadd.f32 0.0, %v6367
  %v6369 = vpop.f32.mrb[0].mxu0
  %v6370 = vpop.f32.mrb[0].mxu0
  %v6371 = vadd.f32 0.0, %v6370
  %v6372 = vpop.f32.mrb[0].mxu0
  %6373 = vmatprep.mubr.bf16.mxu0 %v5817
  %6374 = vmatmul.mubr.bf16.gmra.mrb[0].mxu0 %v5816
  %v6375 = vpop.f32.mrb[0].mxu0
  %v6376 = vadd.f32 0.0, %v6375
  %v6377 = vpop.f32.mrb[0].mxu0
  %v6378 = vpop.f32.mrb[0].mxu0
  %v6379 = vadd.f32 0.0, %v6378
  %v6380 = vpop.f32.mrb[0].mxu0
  %6381 = vmatprep.mubr.bf16.mxu0 %v5820
  %6382 = vmatmul.mubr.bf16.gmra.mrb[0].mxu0 %v5819
  %v6383 = vpop.f32.mrb[0].mxu0
  %v6384 = vadd.f32 0.0, %v6383
  %v6385 = vpop.f32.mrb[0].mxu0
  %v6386 = vpop.f32.mrb[0].mxu0
  %v6387 = vadd.f32 0.0, %v6386
  %v6388 = vpop.f32.mrb[0].mxu0
  %6389 = vmatprep.mubr.bf16.mxu0 %v5823
  %6390 = vmatmul.mubr.bf16.gmra.mrb[0].mxu0 %v5822
  %v6391 = vpop.f32.mrb[0].mxu0
  %v6392 = vadd.f32 0.0, %v6391
  %v6393 = vpop.f32.mrb[0].mxu0
  %v6394 = vpop.f32.mrb[0].mxu0
  %v6395 = vadd.f32 0.0, %v6394
  %v6396 = vpop.f32.mrb[0].mxu0
  %6397 = vmatprep.mubr.bf16.mxu0 %v5826
  %6398 = vmatmul.mubr.bf16.gmra.mrb[0].mxu0 %v5825
  %v6399 = vpop.f32.mrb[0].mxu0
  %v6400 = vadd.f32 0.0, %v6399
  %v6401 = vpop.f32.mrb[0].mxu0
  %v6402 = vpop.f32.mrb[0].mxu0
  %v6403 = vadd.f32 0.0, %v6402
  %v6404 = vpop.f32.mrb[0].mxu0
  %6405 = vmatprep.mubr.bf16.mxu0 %v5829
  %6406 = vmatmul.mubr.bf16.gmra.mrb[0].mxu0 %v5828
  %v6407 = vpop.f32.mrb[0].mxu0
  %v6408 = vadd.f32 0.0, %v6407
  %v6409 = vpop.f32.mrb[0].mxu0
  %v6410 = vpop.f32.mrb[0].mxu0
  %v6411 = vadd.f32 0.0, %v6410
  %v6412 = vpop.f32.mrb[0].mxu0
  %6413 = vmatprep.mubr.bf16.mxu0 %v5832
  %6414 = vmatmul.mubr.bf16.gmra.mrb[0].mxu0 %v5831
  %v6415 = vpop.f32.mrb[0].mxu0
  %v6416 = vadd.f32 0.0, %v6415
  %v6417 = vpop.f32.mrb[0].mxu0
  %v6418 = vpop.f32.mrb[0].mxu0
  %v6419 = vadd.f32 0.0, %v6418
  %v6420 = vpop.f32.mrb[0].mxu0
  %6421 = vmatprep.mubr.bf16.mxu0 %v5835
  %6422 = vmatmul.mubr.bf16.gmra.mrb[0].mxu0 %v5834
  %v6423 = vpop.f32.mrb[0].mxu0
  %v6424 = vadd.f32 0.0, %v6423
  %v6425 = vpop.f32.mrb[0].mxu0
  %v6426 = vpop.f32.mrb[0].mxu0
  %v6427 = vadd.f32 0.0, %v6426
  %v6428 = vpop.f32.mrb[0].mxu0
  %6429 = vmatprep.mubr.bf16.mxu0 %v5838
  %6430 = vmatmul.mubr.bf16.gmra.mrb[0].mxu0 %v5837
  %v6431 = vpop.f32.mrb[0].mxu0
  %v6432 = vadd.f32 0.0, %v6431
  %v6433 = vpop.f32.mrb[0].mxu0
  %v6434 = vpop.f32.mrb[0].mxu0
  %v6435 = vadd.f32 0.0, %v6434
  %v6436 = vpop.f32.mrb[0].mxu0
  %6437 = vmatprep.mubr.bf16.mxu0 %v5841
  %6438 = vmatmul.mubr.bf16.gmra.mrb[0].mxu0 %v5840
  %v6439 = vpop.f32.mrb[0].mxu0
  %v6440 = vadd.f32 0.0, %v6439
  %v6441 = vpop.f32.mrb[0].mxu0
  %v6442 = vpop.f32.mrb[0].mxu0
  %v6443 = vadd.f32 0.0, %v6442
  %v6444 = vpop.f32.mrb[0].mxu0
  %6445 = vmatprep.mubr.bf16.mxu0 %v5844
  %6446 = vmatmul.mubr.bf16.gmra.mrb[0].mxu0 %v5843
  %v6447 = vpop.f32.mrb[0].mxu0
  %v6448 = vadd.f32 0.0, %v6447
  %v6449 = vpop.f32.mrb[0].mxu0
  %v6450 = vpop.f32.mrb[0].mxu0
  %v6451 = vadd.f32 0.0, %v6450
  %v6452 = vpop.f32.mrb[0].mxu0
  %6453 = vmatprep.mubr.bf16.mxu0 %v5847
  %6454 = vmatmul.mubr.bf16.gmra.mrb[0].mxu0 %v5846
  %v6455 = vpop.f32.mrb[0].mxu0
  %v6456 = vadd.f32 0.0, %v6455
  %v6457 = vpop.f32.mrb[0].mxu0
  %v6458 = vpop.f32.mrb[0].mxu0
  %v6459 = vadd.f32 0.0, %v6458
  %v6460 = vpop.f32.mrb[0].mxu0
  %6461 = vmatprep.mubr.bf16.mxu0 %v5850
  %6462 = vmatmul.mubr.bf16.gmra.mrb[0].mxu0 %v5849
  %v6463 = vpop.f32.mrb[0].mxu0
  %v6464 = vadd.f32 0.0, %v6463
  %v6465 = vpop.f32.mrb[0].mxu0
  %v6466 = vpop.f32.mrb[0].mxu0
  %v6467 = vadd.f32 0.0, %v6466
  %v6468 = vpop.f32.mrb[0].mxu0
  %6469 = vmatprep.mubr.bf16.mxu0 %v5853
  %6470 = vmatmul.mubr.bf16.gmra.mrb[0].mxu0 %v5852
  %v6471 = vpop.f32.mrb[0].mxu0
  %v6472 = vadd.f32 0.0, %v6471
  %v6473 = vpop.f32.mrb[0].mxu0
  %v6474 = vpop.f32.mrb[0].mxu0
  %v6475 = vadd.f32 0.0, %v6474
  %v6476 = vpop.f32.mrb[0].mxu0
  %6477 = vmatprep.mubr.bf16.mxu0 %v5856
  %6478 = vmatmul.mubr.bf16.gmra.mrb[0].mxu0 %v5855
  %v6479 = vpop.f32.mrb[0].mxu0
  %v6480 = vadd.f32 0.0, %v6479
  %v6481 = vpop.f32.mrb[0].mxu0
  %v6482 = vpop.f32.mrb[0].mxu0
  %v6483 = vpop.f32.mrb[0].mxu0
  %6484 = vdwg.mxu0
  %6485 = vmatprep.subr.bf16.mxu0 0
  %6486 = vmatpush1.bf16.msra.mxu0 %v6093
  %6487 = vmatprep.subr.bf16.mxu0 0
  %6488 = vmatpush1.bf16.msra.mxu0 %v6094
  %6489 = vmatprep.subr.bf16.mxu0 0
  %6490 = vmatpush1.bf16.msra.mxu0 %v6095
  %6491 = vmatprep.subr.bf16.mxu0 0
  %6492 = vmatpush1.bf16.msra.mxu0 %v6096
  %6493 = vmatprep.subr.bf16.mxu0 0
  %6494 = vmatpush1.bf16.msra.mxu0 %v6097
  %6495 = vmatprep.subr.bf16.mxu0 0
  %6496 = vmatpush1.bf16.msra.mxu0 %v6098
  %6497 = vmatprep.subr.bf16.mxu0 0
  %6498 = vmatpush1.bf16.msra.mxu0 %v6099
  %6499 = vmatprep.subr.bf16.mxu0 0
  %6500 = vmatpush1.bf16.msra.mxu0 %v6100
  %6501 = vmatprep.subr.bf16.mxu0 0
  %6502 = vmatpush1.bf16.msra.mxu0 0
  %6503 = vmatprep.subr.bf16.mxu0 0
  %6504 = vmatpush1.bf16.msra.mxu0 0
  %6505 = vmatprep.subr.bf16.mxu0 0
  %6506 = vmatpush1.bf16.msra.mxu0 0
  %6507 = vmatprep.subr.bf16.mxu0 0
  %6508 = vmatpush1.bf16.msra.mxu0 0
  %6509 = vmatprep.subr.bf16.mxu0 0
  %6510 = vmatpush1.bf16.msra.mxu0 0
  %6511 = vmatprep.subr.bf16.mxu0 0
  %6512 = vmatpush1.bf16.msra.mxu0 0
  %6513 = vmatprep.subr.bf16.mxu0 0
  %6514 = vmatpush1.bf16.msra.mxu0 0
  %6515 = vmatprep.subr.bf16.mxu0 0
  %6516 = vmatpush1.bf16.msra.mxu0 0
  %6517 = vmatprep.mubr.bf16.mxu0 0
  %6518 = vmatmul.mubr.bf16.gmra.mrb[0].mxu0 %v5737
  %v6519 = vpop.f32.mrb[0].mxu0
  %v6520 = vadd.f32 %v6160, %v6519
  %v6521 = vpop.f32.mrb[0].mxu0
  %v6522 = vpop.f32.mrb[0].mxu0
  %v6523 = vadd.f32 %v6163, %v6522
  %v6524 = vpop.f32.mrb[0].mxu0
  %6525 = vmatprep.mubr.bf16.mxu0 0
  %6526 = vmatmul.mubr.bf16.gmra.mrb[0].mxu0 %v5740
  %v6527 = vpop.f32.mrb[0].mxu0
  %v6528 = vadd.f32 %v6168, %v6527
  %v6529 = vpop.f32.mrb[0].mxu0
  %v6530 = vpop.f32.mrb[0].mxu0
  %v6531 = vadd.f32 %v6171, %v6530
  %v6532 = vpop.f32.mrb[0].mxu0
  %6533 = vmatprep.mubr.bf16.mxu0 0
  %6534 = vmatmul.mubr.bf16.gmra.mrb[0].mxu0 %v5743
  %v6535 = vpop.f32.mrb[0].mxu0
  %v6536 = vadd.f32 %v6176, %v6535
  %v6537 = vpop.f32.mrb[0].mxu0
  %v6538 = vpop.f32.mrb[0].mxu0
  %v6539 = vadd.f32 %v6179, %v6538
  %v6540 = vpop.f32.mrb[0].mxu0
  %6541 = vmatprep.mubr.bf16.mxu0 0
  %6542 = vmatmul.mubr.bf16.gmra.mrb[0].mxu0 %v5746
  %v6543 = vpop.f32.mrb[0].mxu0
  %v6544 = vadd.f32 %v6184, %v6543
  %v6545 = vpop.f32.mrb[0].mxu0
  %v6546 = vpop.f32.mrb[0].mxu0
  %v6547 = vadd.f32 %v6187, %v6546
  %v6548 = vpop.f32.mrb[0].mxu0
  %6549 = vmatprep.mubr.bf16.mxu0 0
  %6550 = vmatmul.mubr.bf16.gmra.mrb[0].mxu0 %v5749
  %v6551 = vpop.f32.mrb[0].mxu0
  %v6552 = vadd.f32 %v6192, %v6551
  %v6553 = vpop.f32.mrb[0].mxu0
  %v6554 = vpop.f32.mrb[0].mxu0
  %v6555 = vadd.f32 %v6195, %v6554
  %v6556 = vpop.f32.mrb[0].mxu0
  %6557 = vmatprep.mubr.bf16.mxu0 0
  %6558 = vmatmul.mubr.bf16.gmra.mrb[0].mxu0 %v5752
  %v6559 = vpop.f32.mrb[0].mxu0
  %v6560 = vadd.f32 %v6200, %v6559
  %v6561 = vpop.f32.mrb[0].mxu0
  %v6562 = vpop.f32.mrb[0].mxu0
  %v6563 = vadd.f32 %v6203, %v6562
  %v6564 = vpop.f32.mrb[0].mxu0
  %6565 = vmatprep.mubr.bf16.mxu0 0
  %6566 = vmatmul.mubr.bf16.gmra.mrb[0].mxu0 %v5755
  %v6567 = vpop.f32.mrb[0].mxu0
  %v6568 = vadd.f32 %v6208, %v6567
  %v6569 = vpop.f32.mrb[0].mxu0
  %v6570 = vpop.f32.mrb[0].mxu0
  %v6571 = vadd.f32 %v6211, %v6570
  %v6572 = vpop.f32.mrb[0].mxu0
  %6573 = vmatprep.mubr.bf16.mxu0 0
  %6574 = vmatmul.mubr.bf16.gmra.mrb[0].mxu0 %v5758
  %v6575 = vpop.f32.mrb[0].mxu0
  %v6576 = vadd.f32 %v6216, %v6575
  %v6577 = vpop.f32.mrb[0].mxu0
  %v6578 = vpop.f32.mrb[0].mxu0
  %v6579 = vadd.f32 %v6219, %v6578
  %v6580 = vpop.f32.mrb[0].mxu0
  %6581 = vmatprep.mubr.bf16.mxu0 0
  %6582 = vmatmul.mubr.bf16.gmra.mrb[0].mxu0 %v5761
  %v6583 = vpop.f32.mrb[0].mxu0
  %v6584 = vadd.f32 %v6224, %v6583
  %v6585 = vpop.f32.mrb[0].mxu0
  %v6586 = vpop.f32.mrb[0].mxu0
  %v6587 = vadd.f32 %v6227, %v6586
  %v6588 = vpop.f32.mrb[0].mxu0
  %6589 = vmatprep.mubr.bf16.mxu0 0
  %6590 = vmatmul.mubr.bf16.gmra.mrb[0].mxu0 %v5764
  %v6591 = vpop.f32.mrb[0].mxu0
  %v6592 = vadd.f32 %v6232, %v6591
  %v6593 = vpop.f32.mrb[0].mxu0
  %v6594 = vpop.f32.mrb[0].mxu0
  %v6595 = vadd.f32 %v6235, %v6594
  %v6596 = vpop.f32.mrb[0].mxu0
  %6597 = vmatprep.mubr.bf16.mxu0 0
  %6598 = vmatmul.mubr.bf16.gmra.mrb[0].mxu0 %v5767
  %v6599 = vpop.f32.mrb[0].mxu0
  %v6600 = vadd.f32 %v6240, %v6599
  %v6601 = vpop.f32.mrb[0].mxu0
  %v6602 = vpop.f32.mrb[0].mxu0
  %v6603 = vadd.f32 %v6243, %v6602
  %v6604 = vpop.f32.mrb[0].mxu0
  %6605 = vmatprep.mubr.bf16.mxu0 0
  %6606 = vmatmul.mubr.bf16.gmra.mrb[0].mxu0 %v5770
  %v6607 = vpop.f32.mrb[0].mxu0
  %v6608 = vadd.f32 %v6248, %v6607
  %v6609 = vpop.f32.mrb[0].mxu0
  %v6610 = vpop.f32.mrb[0].mxu0
  %v6611 = vadd.f32 %v6251, %v6610
  %v6612 = vpop.f32.mrb[0].mxu0
  %6613 = vmatprep.mubr.bf16.mxu0 0
  %6614 = vmatmul.mubr.bf16.gmra.mrb[0].mxu0 %v5773
  %v6615 = vpop.f32.mrb[0].mxu0
  %v6616 = vadd.f32 %v6256, %v6615
  %v6617 = vpop.f32.mrb[0].mxu0
  %v6618 = vpop.f32.mrb[0].mxu0
  %v6619 = vadd.f32 %v6259, %v6618
  %v6620 = vpop.f32.mrb[0].mxu0
  %6621 = vmatprep.mubr.bf16.mxu0 0
  %6622 = vmatmul.mubr.bf16.gmra.mrb[0].mxu0 %v5776
  %v6623 = vpop.f32.mrb[0].mxu0
  %v6624 = vadd.f32 %v6264, %v6623
  %v6625 = vpop.f32.mrb[0].mxu0
  %v6626 = vpop.f32.mrb[0].mxu0
  %v6627 = vadd.f32 %v6267, %v6626
  %v6628 = vpop.f32.mrb[0].mxu0
  %6629 = vmatprep.mubr.bf16.mxu0 0
  %6630 = vmatmul.mubr.bf16.gmra.mrb[0].mxu0 %v5779
  %v6631 = vpop.f32.mrb[0].mxu0
  %v6632 = vadd.f32 %v6272, %v6631
  %v6633 = vpop.f32.mrb[0].mxu0
  %v6634 = vpop.f32.mrb[0].mxu0
  %v6635 = vadd.f32 %v6275, %v6634
  %v6636 = vpop.f32.mrb[0].mxu0
  %6637 = vmatprep.mubr.bf16.mxu0 0
  %6638 = vmatmul.mubr.bf16.gmra.mrb[0].mxu0 %v5782
  %v6639 = vpop.f32.mrb[0].mxu0
  %v6640 = vadd.f32 %v6280, %v6639
  %v6641 = vpop.f32.mrb[0].mxu0
  %v6642 = vpop.f32.mrb[0].mxu0
  %v6643 = vadd.f32 %v6283, %v6642
  %v6644 = vpop.f32.mrb[0].mxu0
  %6645 = vmatprep.mubr.bf16.mxu0 0
  %6646 = vmatmul.mubr.bf16.gmra.mrb[0].mxu0 %v5785
  %v6647 = vpop.f32.mrb[0].mxu0
  %v6648 = vadd.f32 %v6288, %v6647
  %v6649 = vpop.f32.mrb[0].mxu0
  %v6650 = vpop.f32.mrb[0].mxu0
  %v6651 = vadd.f32 %v6291, %v6650
  %v6652 = vpop.f32.mrb[0].mxu0
  %6653 = vmatprep.mubr.bf16.mxu0 0
  %6654 = vmatmul.mubr.bf16.gmra.mrb[0].mxu0 %v5788
  %v6655 = vpop.f32.mrb[0].mxu0
  %v6656 = vadd.f32 %v6296, %v6655
  %v6657 = vpop.f32.mrb[0].mxu0
  %v6658 = vpop.f32.mrb[0].mxu0
  %v6659 = vadd.f32 %v6299, %v6658
  %v6660 = vpop.f32.mrb[0].mxu0
  %6661 = vmatprep.mubr.bf16.mxu0 0
  %6662 = vmatmul.mubr.bf16.gmra.mrb[0].mxu0 %v5791
  %v6663 = vpop.f32.mrb[0].mxu0
  %v6664 = vadd.f32 %v6304, %v6663
  %v6665 = vpop.f32.mrb[0].mxu0
  %v6666 = vpop.f32.mrb[0].mxu0
  %v6667 = vadd.f32 %v6307, %v6666
  %v6668 = vpop.f32.mrb[0].mxu0
  %6669 = vmatprep.mubr.bf16.mxu0 0
  %6670 = vmatmul.mubr.bf16.gmra.mrb[0].mxu0 %v5794
  %v6671 = vpop.f32.mrb[0].mxu0
  %v6672 = vadd.f32 %v6312, %v6671
  %v6673 = vpop.f32.mrb[0].mxu0
  %v6674 = vpop.f32.mrb[0].mxu0
  %v6675 = vadd.f32 %v6315, %v6674
  %v6676 = vpop.f32.mrb[0].mxu0
  %6677 = vmatprep.mubr.bf16.mxu0 0
  %6678 = vmatmul.mubr.bf16.gmra.mrb[0].mxu0 %v5797
  %v6679 = vpop.f32.mrb[0].mxu0
  %v6680 = vadd.f32 %v6320, %v6679
  %v6681 = vpop.f32.mrb[0].mxu0
  %v6682 = vpop.f32.mrb[0].mxu0
  %v6683 = vadd.f32 %v6323, %v6682
  %v6684 = vpop.f32.mrb[0].mxu0
  %6685 = vmatprep.mubr.bf16.mxu0 0
  %6686 = vmatmul.mubr.bf16.gmra.mrb[0].mxu0 %v5800
  %v6687 = vpop.f32.mrb[0].mxu0
  %v6688 = vadd.f32 %v6328, %v6687
  %v6689 = vpop.f32.mrb[0].mxu0
  %v6690 = vpop.f32.mrb[0].mxu0
  %v6691 = vadd.f32 %v6331, %v6690
  %v6692 = vpop.f32.mrb[0].mxu0
  %6693 = vmatprep.mubr.bf16.mxu0 0
  %6694 = vmatmul.mubr.bf16.gmra.mrb[0].mxu0 %v5803
  %v6695 = vpop.f32.mrb[0].mxu0
  %v6696 = vadd.f32 %v6336, %v6695
  %v6697 = vpop.f32.mrb[0].mxu0
  %v6698 = vpop.f32.mrb[0].mxu0
  %v6699 = vadd.f32 %v6339, %v6698
  %v6700 = vpop.f32.mrb[0].mxu0
  %6701 = vmatprep.mubr.bf16.mxu0 0
  %6702 = vmatmul.mubr.bf16.gmra.mrb[0].mxu0 %v5806
  %v6703 = vpop.f32.mrb[0].mxu0
  %v6704 = vadd.f32 %v6344, %v6703
  %v6705 = vpop.f32.mrb[0].mxu0
  %v6706 = vpop.f32.mrb[0].mxu0
  %v6707 = vadd.f32 %v6347, %v6706
  %v6708 = vpop.f32.mrb[0].mxu0
  %6709 = vmatprep.mubr.bf16.mxu0 0
  %6710 = vmatmul.mubr.bf16.gmra.mrb[0].mxu0 %v5809
  %v6711 = vpop.f32.mrb[0].mxu0
  %v6712 = vadd.f32 %v6352, %v6711
  %v6713 = vpop.f32.mrb[0].mxu0
  %v6714 = vpop.f32.mrb[0].mxu0
  %v6715 = vadd.f32 %v6355, %v6714
  %v6716 = vpop.f32.mrb[0].mxu0
  %6717 = vmatprep.mubr.bf16.mxu0 0
  %6718 = vmatmul.mubr.bf16.gmra.mrb[0].mxu0 %v5812
  %v6719 = vpop.f32.mrb[0].mxu0
  %v6720 = vadd.f32 %v6360, %v6719
  %v6721 = vpop.f32.mrb[0].mxu0
  %v6722 = vpop.f32.mrb[0].mxu0
  %v6723 = vadd.f32 %v6363, %v6722
  %v6724 = vpop.f32.mrb[0].mxu0
  %6725 = vmatprep.mubr.bf16.mxu0 0
  %6726 = vmatmul.mubr.bf16.gmra.mrb[0].mxu0 %v5815
  %v6727 = vpop.f32.mrb[0].mxu0
  %v6728 = vadd.f32 %v6368, %v6727
  %v6729 = vpop.f32.mrb[0].mxu0
  %v6730 = vpop.f32.mrb[0].mxu0
  %v6731 = vadd.f32 %v6371, %v6730
  %v6732 = vpop.f32.mrb[0].mxu0
  %6733 = vmatprep.mubr.bf16.mxu0 0
  %6734 = vmatmul.mubr.bf16.gmra.mrb[0].mxu0 %v5818
  %v6735 = vpop.f32.mrb[0].mxu0
  %v6736 = vadd.f32 %v6376, %v6735
  %v6737 = vpop.f32.mrb[0].mxu0
  %v6738 = vpop.f32.mrb[0].mxu0
  %v6739 = vadd.f32 %v6379, %v6738
  %v6740 = vpop.f32.mrb[0].mxu0
  %6741 = vmatprep.mubr.bf16.mxu0 0
  %6742 = vmatmul.mubr.bf16.gmra.mrb[0].mxu0 %v5821
  %v6743 = vpop.f32.mrb[0].mxu0
  %v6744 = vadd.f32 %v6384, %v6743
  %v6745 = vpop.f32.mrb[0].mxu0
  %v6746 = vpop.f32.mrb[0].mxu0
  %v6747 = vadd.f32 %v6387, %v6746
  %v6748 = vpop.f32.mrb[0].mxu0
  %6749 = vmatprep.mubr.bf16.mxu0 0
  %6750 = vmatmul.mubr.bf16.gmra.mrb[0].mxu0 %v5824
  %v6751 = vpop.f32.mrb[0].mxu0
  %v6752 = vadd.f32 %v6392, %v6751
  %v6753 = vpop.f32.mrb[0].mxu0
  %v6754 = vpop.f32.mrb[0].mxu0
  %v6755 = vadd.f32 %v6395, %v6754
  %v6756 = vpop.f32.mrb[0].mxu0
  %6757 = vmatprep.mubr.bf16.mxu0 0
  %6758 = vmatmul.mubr.bf16.gmra.mrb[0].mxu0 %v5827
  %v6759 = vpop.f32.mrb[0].mxu0
  %v6760 = vadd.f32 %v6400, %v6759
  %v6761 = vpop.f32.mrb[0].mxu0
  %v6762 = vpop.f32.mrb[0].mxu0
  %v6763 = vadd.f32 %v6403, %v6762
  %v6764 = vpop.f32.mrb[0].mxu0
  %6765 = vmatprep.mubr.bf16.mxu0 0
  %6766 = vmatmul.mubr.bf16.gmra.mrb[0].mxu0 %v5830
  %v6767 = vpop.f32.mrb[0].mxu0
  %v6768 = vadd.f32 %v6408, %v6767
  %v6769 = vpop.f32.mrb[0].mxu0
  %v6770 = vpop.f32.mrb[0].mxu0
  %v6771 = vadd.f32 %v6411, %v6770
  %v6772 = vpop.f32.mrb[0].mxu0
  %6773 = vmatprep.mubr.bf16.mxu0 0
  %6774 = vmatmul.mubr.bf16.gmra.mrb[0].mxu0 %v5833
  %v6775 = vpop.f32.mrb[0].mxu0
  %v6776 = vadd.f32 %v6416, %v6775
  %v6777 = vpop.f32.mrb[0].mxu0
  %v6778 = vpop.f32.mrb[0].mxu0
  %v6779 = vadd.f32 %v6419, %v6778
  %v6780 = vpop.f32.mrb[0].mxu0
  %6781 = vmatprep.mubr.bf16.mxu0 0
  %6782 = vmatmul.mubr.bf16.gmra.mrb[0].mxu0 %v5836
  %v6783 = vpop.f32.mrb[0].mxu0
  %v6784 = vadd.f32 %v6424, %v6783
  %v6785 = vpop.f32.mrb[0].mxu0
  %v6786 = vpop.f32.mrb[0].mxu0
  %v6787 = vadd.f32 %v6427, %v6786
  %v6788 = vpop.f32.mrb[0].mxu0
  %6789 = vmatprep.mubr.bf16.mxu0 0
  %6790 = vmatmul.mubr.bf16.gmra.mrb[0].mxu0 %v5839
  %v6791 = vpop.f32.mrb[0].mxu0
  %v6792 = vadd.f32 %v6432, %v6791
  %v6793 = vpop.f32.mrb[0].mxu0
  %v6794 = vpop.f32.mrb[0].mxu0
  %v6795 = vadd.f32 %v6435, %v6794
  %v6796 = vpop.f32.mrb[0].mxu0
  %6797 = vmatprep.mubr.bf16.mxu0 0
  %6798 = vmatmul.mubr.bf16.gmra.mrb[0].mxu0 %v5842
  %v6799 = vpop.f32.mrb[0].mxu0
  %v6800 = vadd.f32 %v6440, %v6799
  %v6801 = vpop.f32.mrb[0].mxu0
  %v6802 = vpop.f32.mrb[0].mxu0
  %v6803 = vadd.f32 %v6443, %v6802
  %v6804 = vpop.f32.mrb[0].mxu0
  %6805 = vmatprep.mubr.bf16.mxu0 0
  %6806 = vmatmul.mubr.bf16.gmra.mrb[0].mxu0 %v5845
  %v6807 = vpop.f32.mrb[0].mxu0
  %v6808 = vadd.f32 %v6448, %v6807
  %v6809 = vpop.f32.mrb[0].mxu0
  %v6810 = vpop.f32.mrb[0].mxu0
  %v6811 = vadd.f32 %v6451, %v6810
  %v6812 = vpop.f32.mrb[0].mxu0
  %6813 = vmatprep.mubr.bf16.mxu0 0
  %6814 = vmatmul.mubr.bf16.gmra.mrb[0].mxu0 %v5848
  %v6815 = vpop.f32.mrb[0].mxu0
  %v6816 = vadd.f32 %v6456, %v6815
  %v6817 = vpop.f32.mrb[0].mxu0
  %v6818 = vpop.f32.mrb[0].mxu0
  %v6819 = vadd.f32 %v6459, %v6818
  %v6820 = vpop.f32.mrb[0].mxu0
  %6821 = vmatprep.mubr.bf16.mxu0 0
  %6822 = vmatmul.mubr.bf16.gmra.mrb[0].mxu0 %v5851
  %v6823 = vpop.f32.mrb[0].mxu0
  %v6824 = vadd.f32 %v6464, %v6823
  %v6825 = vpop.f32.mrb[0].mxu0
  %v6826 = vpop.f32.mrb[0].mxu0
  %v6827 = vadd.f32 %v6467, %v6826
  %v6828 = vpop.f32.mrb[0].mxu0
  %6829 = vmatprep.mubr.bf16.mxu0 0
  %6830 = vmatmul.mubr.bf16.gmra.mrb[0].mxu0 %v5854
  %v6831 = vpop.f32.mrb[0].mxu0
  %v6832 = vadd.f32 %v6472, %v6831
  %v6833 = vpop.f32.mrb[0].mxu0
  %v6834 = vpop.f32.mrb[0].mxu0
  %v6835 = vadd.f32 %v6475, %v6834
  %v6836 = vpop.f32.mrb[0].mxu0
  %6837 = vmatprep.mubr.bf16.mxu0 0
  %6838 = vmatmul.mubr.bf16.gmra.mrb[0].mxu0 %v5857
  %v6839 = vpop.f32.mrb[0].mxu0
  %v6840 = vadd.f32 %v6480, %v6839
  %v6841 = vpop.f32.mrb[0].mxu0
  %v6842 = vpop.f32.mrb[0].mxu0
  %v6843 = vpop.f32.mrb[0].mxu0
  %6844 = vdwg.mxu0
  %v6845 = vadd.f32 %v5038, %v6520
  %v6846 = vadd.f32 %v5039, %v6523
  %v6847 = vadd.f32 %v5040, %v6528
  %v6848 = vadd.f32 %v5041, %v6531
  %v6849 = vadd.f32 %v5042, %v6536
  %v6850 = vadd.f32 %v5043, %v6539
  %v6851 = vadd.f32 %v5044, %v6544
  %v6852 = vadd.f32 %v5045, %v6547
  %v6853 = vadd.f32 %v5046, %v6552
  %v6854 = vadd.f32 %v5047, %v6555
  %v6855 = vadd.f32 %v5048, %v6560
  %v6856 = vadd.f32 %v5049, %v6563
  %v6857 = vadd.f32 %v5050, %v6568
  %v6858 = vadd.f32 %v5051, %v6571
  %v6859 = vadd.f32 %v5052, %v6576
  %v6860 = vadd.f32 %v5053, %v6579
  %v6861 = vadd.f32 %v5054, %v6584
  %v6862 = vadd.f32 %v5055, %v6587
  %v6863 = vadd.f32 %v5056, %v6592
  %v6864 = vadd.f32 %v5057, %v6595
  %v6865 = vadd.f32 %v5058, %v6600
  %v6866 = vadd.f32 %v5059, %v6603
  %v6867 = vadd.f32 %v5060, %v6608
  %v6868 = vadd.f32 %v5061, %v6611
  %v6869 = vadd.f32 %v5062, %v6616
  %v6870 = vadd.f32 %v5063, %v6619
  %v6871 = vadd.f32 %v5064, %v6624
  %v6872 = vadd.f32 %v5065, %v6627
  %v6873 = vadd.f32 %v5066, %v6632
  %v6874 = vadd.f32 %v5067, %v6635
  %v6875 = vadd.f32 %v5068, %v6640
  %v6876 = vadd.f32 %v5069, %v6643
  %v6877 = vadd.f32 %v5070, %v6648
  %v6878 = vadd.f32 %v5071, %v6651
  %v6879 = vadd.f32 %v5072, %v6656
  %v6880 = vadd.f32 %v5073, %v6659
  %v6881 = vadd.f32 %v5074, %v6664
  %v6882 = vadd.f32 %v5075, %v6667
  %v6883 = vadd.f32 %v5076, %v6672
  %v6884 = vadd.f32 %v5077, %v6675
  %v6885 = vadd.f32 %v5078, %v6680
  %v6886 = vadd.f32 %v5079, %v6683
  %v6887 = vadd.f32 %v5080, %v6688
  %v6888 = vadd.f32 %v5081, %v6691
  %v6889 = vadd.f32 %v5082, %v6696
  %v6890 = vadd.f32 %v5083, %v6699
  %v6891 = vadd.f32 %v5084, %v6704
  %v6892 = vadd.f32 %v5085, %v6707
  %v6893 = vadd.f32 %v5086, %v6712
  %v6894 = vadd.f32 %v5087, %v6715
  %v6895 = vadd.f32 %v5088, %v6720
  %v6896 = vadd.f32 %v5089, %v6723
  %v6897 = vadd.f32 %v5090, %v6728
  %v6898 = vadd.f32 %v5091, %v6731
  %v6899 = vadd.f32 %v5092, %v6736
  %v6900 = vadd.f32 %v5093, %v6739
  %v6901 = vadd.f32 %v5094, %v6744
  %v6902 = vadd.f32 %v5095, %v6747
  %v6903 = vadd.f32 %v5096, %v6752
  %v6904 = vadd.f32 %v5097, %v6755
  %v6905 = vadd.f32 %v5098, %v6760
  %v6906 = vadd.f32 %v5099, %v6763
  %v6907 = vadd.f32 %v5100, %v6768
  %v6908 = vadd.f32 %v5101, %v6771
  %v6909 = vadd.f32 %v5102, %v6776
  %v6910 = vadd.f32 %v5103, %v6779
  %v6911 = vadd.f32 %v5104, %v6784
  %v6912 = vadd.f32 %v5105, %v6787
  %v6913 = vadd.f32 %v5106, %v6792
  %v6914 = vadd.f32 %v5107, %v6795
  %v6915 = vadd.f32 %v5108, %v6800
  %v6916 = vadd.f32 %v5109, %v6803
  %v6917 = vadd.f32 %v5110, %v6808
  %v6918 = vadd.f32 %v5111, %v6811
  %v6919 = vadd.f32 %v5112, %v6816
  %v6920 = vadd.f32 %v5113, %v6819
  %v6921 = vadd.f32 %v5114, %v6824
  %v6922 = vadd.f32 %v5115, %v6827
  %v6923 = vadd.f32 %v5116, %v6832
  %v6924 = vadd.f32 %v5117, %v6835
  %v6925 = vadd.f32 %v5118, %v6840
  %6926 = vst [vmem:[#allocation3] sm:$0xff] %v6845
  %6927 = vst [vmem:[#allocation3 + $0x8] sm:$0xff] %v6846
  %6928 = vst [vmem:[#allocation3 + $0x10] sm:$0xff] %v6847
  %6929 = vst [vmem:[#allocation3 + $0x18] sm:$0xff] %v6848
  %6930 = vst [vmem:[#allocation3 + $0x20] sm:$0xff] %v6849
  %6931 = vst [vmem:[#allocation3 + $0x28] sm:$0xff] %v6850
  %6932 = vst [vmem:[#allocation3 + $0x30] sm:$0xff] %v6851
  %6933 = vst [vmem:[#allocation3 + $0x38] sm:$0xff] %v6852
  %6934 = vst [vmem:[#allocation3 + $0x40] sm:$0xff] %v6853
  %6935 = vst [vmem:[#allocation3 + $0x48] sm:$0xff] %v6854
  %6936 = vst [vmem:[#allocation3 + $0x50] sm:$0xff] %v6855
  %6937 = vst [vmem:[#allocation3 + $0x58] sm:$0xff] %v6856
  %6938 = vst [vmem:[#allocation3 + $0x60] sm:$0xff] %v6857
  %6939 = vst [vmem:[#allocation3 + $0x68] sm:$0xff] %v6858
  %6940 = vst [vmem:[#allocation3 + $0x70] sm:$0xff] %v6859
  %6941 = vst [vmem:[#allocation3 + $0x78] sm:$0xff] %v6860
  %6942 = vst [vmem:[#allocation3 + $0x80] sm:$0xff] %v6861
  %6943 = vst [vmem:[#allocation3 + $0x88] sm:$0xff] %v6862
  %6944 = vst [vmem:[#allocation3 + $0x90] sm:$0xff] %v6863
  %6945 = vst [vmem:[#allocation3 + $0x98] sm:$0xff] %v6864
  %6946 = vst [vmem:[#allocation3 + $0xa0] sm:$0xff] %v6865
  %6947 = vst [vmem:[#allocation3 + $0xa8] sm:$0xff] %v6866
  %6948 = vst [vmem:[#allocation3 + $0xb0] sm:$0xff] %v6867
  %6949 = vst [vmem:[#allocation3 + $0xb8] sm:$0xff] %v6868
  %6950 = vst [vmem:[#allocation3 + $0xc0] sm:$0xff] %v6869
  %6951 = vst [vmem:[#allocation3 + $0xc8] sm:$0xff] %v6870
  %6952 = vst [vmem:[#allocation3 + $0xd0] sm:$0xff] %v6871
  %6953 = vst [vmem:[#allocation3 + $0xd8] sm:$0xff] %v6872
  %6954 = vst [vmem:[#allocation3 + $0xe0] sm:$0xff] %v6873
  %6955 = vst [vmem:[#allocation3 + $0xe8] sm:$0xff] %v6874
  %6956 = vst [vmem:[#allocation3 + $0xf0] sm:$0xff] %v6875
  %6957 = vst [vmem:[#allocation3 + $0xf8] sm:$0xff] %v6876
  %6958 = vst [vmem:[#allocation3 + $0x100] sm:$0xff] %v6877
  %6959 = vst [vmem:[#allocation3 + $0x108] sm:$0xff] %v6878
  %6960 = vst [vmem:[#allocation3 + $0x110] sm:$0xff] %v6879
  %6961 = vst [vmem:[#allocation3 + $0x118] sm:$0xff] %v6880
  %6962 = vst [vmem:[#allocation3 + $0x120] sm:$0xff] %v6881
  %6963 = vst [vmem:[#allocation3 + $0x128] sm:$0xff] %v6882
  %6964 = vst [vmem:[#allocation3 + $0x130] sm:$0xff] %v6883
  %6965 = vst [vmem:[#allocation3 + $0x138] sm:$0xff] %v6884
  %6966 = vst [vmem:[#allocation3 + $0x140] sm:$0xff] %v6885
  %6967 = vst [vmem:[#allocation3 + $0x148] sm:$0xff] %v6886
  %6968 = vst [vmem:[#allocation3 + $0x150] sm:$0xff] %v6887
  %6969 = vst [vmem:[#allocation3 + $0x158] sm:$0xff] %v6888
  %6970 = vst [vmem:[#allocation3 + $0x160] sm:$0xff] %v6889
  %6971 = vst [vmem:[#allocation3 + $0x168] sm:$0xff] %v6890
  %6972 = vst [vmem:[#allocation3 + $0x170] sm:$0xff] %v6891
  %6973 = vst [vmem:[#allocation3 + $0x178] sm:$0xff] %v6892
  %6974 = vst [vmem:[#allocation3 + $0x180] sm:$0xff] %v6893
  %6975 = vst [vmem:[#allocation3 + $0x188] sm:$0xff] %v6894
  %6976 = vst [vmem:[#allocation3 + $0x190] sm:$0xff] %v6895
  %6977 = vst [vmem:[#allocation3 + $0x198] sm:$0xff] %v6896
  %6978 = vst [vmem:[#allocation3 + $0x1a0] sm:$0xff] %v6897
  %6979 = vst [vmem:[#allocation3 + $0x1a8] sm:$0xff] %v6898
  %6980 = vst [vmem:[#allocation3 + $0x1b0] sm:$0xff] %v6899
  %6981 = vst [vmem:[#allocation3 + $0x1b8] sm:$0xff] %v6900
  %6982 = vst [vmem:[#allocation3 + $0x1c0] sm:$0xff] %v6901
  %6983 = vst [vmem:[#allocation3 + $0x1c8] sm:$0xff] %v6902
  %6984 = vst [vmem:[#allocation3 + $0x1d0] sm:$0xff] %v6903
  %6985 = vst [vmem:[#allocation3 + $0x1d8] sm:$0xff] %v6904
  %6986 = vst [vmem:[#allocation3 + $0x1e0] sm:$0xff] %v6905
  %6987 = vst [vmem:[#allocation3 + $0x1e8] sm:$0xff] %v6906
  %6988 = vst [vmem:[#allocation3 + $0x1f0] sm:$0xff] %v6907
  %6989 = vst [vmem:[#allocation3 + $0x1f8] sm:$0xff] %v6908
  %6990 = vst [vmem:[#allocation3 + $0x200] sm:$0xff] %v6909
  %6991 = vst [vmem:[#allocation3 + $0x208] sm:$0xff] %v6910
  %6992 = vst [vmem:[#allocation3 + $0x210] sm:$0xff] %v6911
  %6993 = vst [vmem:[#allocation3 + $0x218] sm:$0xff] %v6912
  %6994 = vst [vmem:[#allocation3 + $0x220] sm:$0xff] %v6913
  %6995 = vst [vmem:[#allocation3 + $0x228] sm:$0xff] %v6914
  %6996 = vst [vmem:[#allocation3 + $0x230] sm:$0xff] %v6915
  %6997 = vst [vmem:[#allocation3 + $0x238] sm:$0xff] %v6916
  %6998 = vst [vmem:[#allocation3 + $0x240] sm:$0xff] %v6917
  %6999 = vst [vmem:[#allocation3 + $0x248] sm:$0xff] %v6918
  %7000 = vst [vmem:[#allocation3 + $0x250] sm:$0xff] %v6919
  %7001 = vst [vmem:[#allocation3 + $0x258] sm:$0xff] %v6920
  %7002 = vst [vmem:[#allocation3 + $0x260] sm:$0xff] %v6921
  %7003 = vst [vmem:[#allocation3 + $0x268] sm:$0xff] %v6922
  %7004 = vst [vmem:[#allocation3 + $0x270] sm:$0xff] %v6923
  %7005 = vst [vmem:[#allocation3 + $0x278] sm:$0xff] %v6924
  %7006 = vst [vmem:[#allocation3 + $0x280] sm:$0xff] %v6925
  %v7007 = vld [vmem:[#allocation3] sm:$0xff]
  %v7008 = vld [vmem:[#allocation3 + $0x8] sm:$0xff]
  %v7009 = vld [vmem:[#allocation3 + $0x10] sm:$0xff]
  %v7010 = vld [vmem:[#allocation3 + $0x18] sm:$0xff]
  %v7011 = vld [vmem:[#allocation3 + $0x20] sm:$0xff]
  %v7012 = vld [vmem:[#allocation3 + $0x28] sm:$0xff]
  %v7013 = vld [vmem:[#allocation3 + $0x30] sm:$0xff]
  %v7014 = vld [vmem:[#allocation3 + $0x38] sm:$0xff]
  %v7015 = vld [vmem:[#allocation3 + $0x40] sm:$0xff]
  %v7016 = vld [vmem:[#allocation3 + $0x48] sm:$0xff]
  %v7017 = vld [vmem:[#allocation3 + $0x50] sm:$0xff]
  %v7018 = vld [vmem:[#allocation3 + $0x58] sm:$0xff]
  %v7019 = vld [vmem:[#allocation3 + $0x60] sm:$0xff]
  %v7020 = vld [vmem:[#allocation3 + $0x68] sm:$0xff]
  %v7021 = vld [vmem:[#allocation3 + $0x70] sm:$0xff]
  %v7022 = vld [vmem:[#allocation3 + $0x78] sm:$0xff]
  %v7023 = vld [vmem:[#allocation3 + $0x80] sm:$0xff]
  %v7024 = vld [vmem:[#allocation3 + $0x88] sm:$0xff]
  %v7025 = vld [vmem:[#allocation3 + $0x90] sm:$0xff]
  %v7026 = vld [vmem:[#allocation3 + $0x98] sm:$0xff]
  %v7027 = vld [vmem:[#allocation3 + $0xa0] sm:$0xff]
  %v7028 = vld [vmem:[#allocation3 + $0xa8] sm:$0xff]
  %v7029 = vld [vmem:[#allocation3 + $0xb0] sm:$0xff]
  %v7030 = vld [vmem:[#allocation3 + $0xb8] sm:$0xff]
  %v7031 = vld [vmem:[#allocation3 + $0xc0] sm:$0xff]
  %v7032 = vld [vmem:[#allocation3 + $0xc8] sm:$0xff]
  %v7033 = vld [vmem:[#allocation3 + $0xd0] sm:$0xff]
  %v7034 = vld [vmem:[#allocation3 + $0xd8] sm:$0xff]
  %v7035 = vld [vmem:[#allocation3 + $0xe0] sm:$0xff]
  %v7036 = vld [vmem:[#allocation3 + $0xe8] sm:$0xff]
  %v7037 = vld [vmem:[#allocation3 + $0xf0] sm:$0xff]
  %v7038 = vld [vmem:[#allocation3 + $0xf8] sm:$0xff]
  %v7039 = vld [vmem:[#allocation3 + $0x100] sm:$0xff]
  %v7040 = vld [vmem:[#allocation3 + $0x108] sm:$0xff]
  %v7041 = vld [vmem:[#allocation3 + $0x110] sm:$0xff]
  %v7042 = vld [vmem:[#allocation3 + $0x118] sm:$0xff]
  %v7043 = vld [vmem:[#allocation3 + $0x120] sm:$0xff]
  %v7044 = vld [vmem:[#allocation3 + $0x128] sm:$0xff]
  %v7045 = vld [vmem:[#allocation3 + $0x130] sm:$0xff]
  %v7046 = vld [vmem:[#allocation3 + $0x138] sm:$0xff]
  %v7047 = vld [vmem:[#allocation3 + $0x140] sm:$0xff]
  %v7048 = vld [vmem:[#allocation3 + $0x148] sm:$0xff]
  %v7049 = vld [vmem:[#allocation3 + $0x150] sm:$0xff]
  %v7050 = vld [vmem:[#allocation3 + $0x158] sm:$0xff]
  %v7051 = vld [vmem:[#allocation3 + $0x160] sm:$0xff]
  %v7052 = vld [vmem:[#allocation3 + $0x168] sm:$0xff]
  %v7053 = vld [vmem:[#allocation3 + $0x170] sm:$0xff]
  %v7054 = vld [vmem:[#allocation3 + $0x178] sm:$0xff]
  %v7055 = vld [vmem:[#allocation3 + $0x180] sm:$0xff]
  %v7056 = vld [vmem:[#allocation3 + $0x188] sm:$0xff]
  %v7057 = vld [vmem:[#allocation3 + $0x190] sm:$0xff]
  %v7058 = vld [vmem:[#allocation3 + $0x198] sm:$0xff]
  %v7059 = vld [vmem:[#allocation3 + $0x1a0] sm:$0xff]
  %v7060 = vld [vmem:[#allocation3 + $0x1a8] sm:$0xff]
  %v7061 = vld [vmem:[#allocation3 + $0x1b0] sm:$0xff]
  %v7062 = vld [vmem:[#allocation3 + $0x1b8] sm:$0xff]
  %v7063 = vld [vmem:[#allocation3 + $0x1c0] sm:$0xff]
  %v7064 = vld [vmem:[#allocation3 + $0x1c8] sm:$0xff]
  %v7065 = vld [vmem:[#allocation3 + $0x1d0] sm:$0xff]
  %v7066 = vld [vmem:[#allocation3 + $0x1d8] sm:$0xff]
  %v7067 = vld [vmem:[#allocation3 + $0x1e0] sm:$0xff]
  %v7068 = vld [vmem:[#allocation3 + $0x1e8] sm:$0xff]
  %v7069 = vld [vmem:[#allocation3 + $0x1f0] sm:$0xff]
  %v7070 = vld [vmem:[#allocation3 + $0x1f8] sm:$0xff]
  %v7071 = vld [vmem:[#allocation3 + $0x200] sm:$0xff]
  %v7072 = vld [vmem:[#allocation3 + $0x208] sm:$0xff]
  %v7073 = vld [vmem:[#allocation3 + $0x210] sm:$0xff]
  %v7074 = vld [vmem:[#allocation3 + $0x218] sm:$0xff]
  %v7075 = vld [vmem:[#allocation3 + $0x220] sm:$0xff]
  %v7076 = vld [vmem:[#allocation3 + $0x228] sm:$0xff]
  %v7077 = vld [vmem:[#allocation3 + $0x230] sm:$0xff]
  %v7078 = vld [vmem:[#allocation3 + $0x238] sm:$0xff]
  %v7079 = vld [vmem:[#allocation3 + $0x240] sm:$0xff]
  %v7080 = vld [vmem:[#allocation3 + $0x248] sm:$0xff]
  %v7081 = vld [vmem:[#allocation3 + $0x250] sm:$0xff]
  %v7082 = vld [vmem:[#allocation3 + $0x258] sm:$0xff]
  %v7083 = vld [vmem:[#allocation3 + $0x260] sm:$0xff]
  %v7084 = vld [vmem:[#allocation3 + $0x268] sm:$0xff]
  %v7085 = vld [vmem:[#allocation3 + $0x270] sm:$0xff]
  %v7086 = vld [vmem:[#allocation3 + $0x278] sm:$0xff]
  %v7087 = vld [vmem:[#allocation3 + $0x280] sm:$0xff]
  %v7088 = vld [vmem:[#allocation2 + $0x3c] sm:$0xee]
  %v7089 = vld [vmem:[#allocation2 + $0x44] sm:$0xe]
  %v7090 = vld [vmem:[#allocation2 + $0x48] sm:$0xff]
  %v7091 = vld [vmem:[#allocation2 + $0x50] sm:$0xf]
  %v7092 = vld [vmem:[#allocation2 + $0x54] sm:$0xff]
  %v7093 = vld [vmem:[#allocation2 + $0x5c] sm:$0xf]
  %v7094 = vld [vmem:[#allocation2 + $0x60] sm:$0xff]
  %v7095 = vld [vmem:[#allocation2 + $0x68] sm:$0xf]
  %v7096 = vld [vmem:[#allocation2 + $0x6c] sm:$0xff]
  %v7097 = vld [vmem:[#allocation2 + $0x74] sm:$0xf]
  %v7098 = vld [vmem:[#allocation2 + $0x78] sm:$0xff]
  %v7099 = vld [vmem:[#allocation2 + $0x80] sm:$0xf]
  %v7100 = vld [vmem:[#allocation2 + $0x84] sm:$0xff]
  %v7101 = vld [vmem:[#allocation2 + $0x8c] sm:$0xf]
  %v7102 = vld [vmem:[#allocation2 + $0x90] sm:$0xff]
  %v7103 = vld [vmem:[#allocation2 + $0x98] sm:$0xf]
  %v7104 = vld [vmem:[#allocation2 + $0x9c] sm:$0xff]
  %v7105 = vld [vmem:[#allocation2 + $0xa4] sm:$0xf]
  %v7106 = vld [vmem:[#allocation2 + $0xa8] sm:$0xff]
  %v7107 = vld [vmem:[#allocation2 + $0xb0] sm:$0xf]
  %v7108 = vld [vmem:[#allocation2 + $0xb4] sm:$0xff]
  %v7109 = vld [vmem:[#allocation2 + $0xbc] sm:$0xf]
  %v7110 = vld [vmem:[#allocation2 + $0xc0] sm:$0xff]
  %v7111 = vld [vmem:[#allocation2 + $0xc8] sm:$0xf]
  %v7112 = vld [vmem:[#allocation2 + $0xcc] sm:$0xff]
  %v7113 = vld [vmem:[#allocation2 + $0xd4] sm:$0xf]
  %v7114 = vld [vmem:[#allocation2 + $0xd8] sm:$0xff]
  %v7115 = vld [vmem:[#allocation2 + $0xe0] sm:$0xf]
  %v7116 = vld [vmem:[#allocation2 + $0xe4] sm:$0xff]
  %v7117 = vld [vmem:[#allocation2 + $0xec] sm:$0xf]
  %v7118 = vld [vmem:[#allocation2 + $0xf0] sm:$0xff]
  %v7119 = vld [vmem:[#allocation2 + $0xf8] sm:$0xf]
  %v7120 = vld [vmem:[#allocation2 + $0xfc] sm:$0xff]
  %v7121 = vld [vmem:[#allocation2 + $0x104] sm:$0xf]
  %v7122 = vld [vmem:[#allocation2 + $0x108] sm:$0xff]
  %v7123 = vld [vmem:[#allocation2 + $0x110] sm:$0xf]
  %v7124 = vld [vmem:[#allocation2 + $0x114] sm:$0xff]
  %v7125 = vld [vmem:[#allocation2 + $0x11c] sm:$0xf]
  %v7126 = vld [vmem:[#allocation2 + $0x120] sm:$0xff]
  %v7127 = vld [vmem:[#allocation2 + $0x128] sm:$0xf]
  %v7128 = vld [vmem:[#allocation2 + $0x12c] sm:$0xff]
  %v7129 = vld [vmem:[#allocation2 + $0x134] sm:$0xf]
  %v7130 = vld [vmem:[#allocation2 + $0x138] sm:$0xff]
  %v7131 = vld [vmem:[#allocation2 + $0x140] sm:$0xf]
  %v7132 = vld [vmem:[#allocation2 + $0x144] sm:$0xff]
  %v7133 = vld [vmem:[#allocation2 + $0x14c] sm:$0xf]
  %v7134 = vld [vmem:[#allocation2 + $0x150] sm:$0xff]
  %v7135 = vld [vmem:[#allocation2 + $0x158] sm:$0xf]
  %v7136 = vld [vmem:[#allocation2 + $0x15c] sm:$0xff]
  %v7137 = vld [vmem:[#allocation2 + $0x164] sm:$0xf]
  %v7138 = vld [vmem:[#allocation2 + $0x168] sm:$0xff]
  %v7139 = vld [vmem:[#allocation2 + $0x170] sm:$0xf]
  %v7140 = vld [vmem:[#allocation2 + $0x174] sm:$0xff]
  %v7141 = vld [vmem:[#allocation2 + $0x17c] sm:$0xf]
  %v7142 = vld [vmem:[#allocation2 + $0x180] sm:$0xff]
  %v7143 = vld [vmem:[#allocation2 + $0x188] sm:$0xf]
  %v7144 = vld [vmem:[#allocation2 + $0x18c] sm:$0xff]
  %v7145 = vld [vmem:[#allocation2 + $0x194] sm:$0xf]
  %v7146 = vld [vmem:[#allocation2 + $0x198] sm:$0xff]
  %v7147 = vld [vmem:[#allocation2 + $0x1a0] sm:$0xf]
  %v7148 = vld [vmem:[#allocation2 + $0x1a4] sm:$0xff]
  %v7149 = vld [vmem:[#allocation2 + $0x1ac] sm:$0xf]
  %v7150 = vld [vmem:[#allocation2 + $0x1b0] sm:$0xff]
  %v7151 = vld [vmem:[#allocation2 + $0x1b8] sm:$0xf]
  %v7152 = vld [vmem:[#allocation2 + $0x1bc] sm:$0xff]
  %v7153 = vld [vmem:[#allocation2 + $0x1c4] sm:$0xf]
  %v7154 = vld [vmem:[#allocation2 + $0x1c8] sm:$0xff]
  %v7155 = vld [vmem:[#allocation2 + $0x1d0] sm:$0xf]
  %v7156 = vld [vmem:[#allocation2 + $0x1d4] sm:$0xff]
  %v7157 = vld [vmem:[#allocation2 + $0x1dc] sm:$0xf]
  %v7158 = vld [vmem:[#allocation2 + $0x1e0] sm:$0xff]
  %v7159 = vld [vmem:[#allocation2 + $0x1e8] sm:$0xf]
  %v7160 = vld [vmem:[#allocation2 + $0x1ec] sm:$0xff]
  %v7161 = vld [vmem:[#allocation2 + $0x1f4] sm:$0xf]
  %v7162 = vld [vmem:[#allocation2 + $0x1f8] sm:$0xff]
  %v7163 = vld [vmem:[#allocation2 + $0x200] sm:$0xf]
  %v7164 = vld [vmem:[#allocation2 + $0x204] sm:$0xff]
  %v7165 = vld [vmem:[#allocation2 + $0x20c] sm:$0xf]
  %v7166 = vld [vmem:[#allocation2 + $0x210] sm:$0xff]
  %v7167 = vld [vmem:[#allocation2 + $0x218] sm:$0xf]
  %v7168 = vld [vmem:[#allocation2 + $0x21c] sm:$0xff]
  %v7169 = vld [vmem:[#allocation2 + $0x224] sm:$0xf]
  %v7170 = vld [vmem:[#allocation2 + $0x228] sm:$0xff]
  %v7171 = vld [vmem:[#allocation2 + $0x230] sm:$0xf]
  %v7172 = vld [vmem:[#allocation2 + $0x234] sm:$0xff]
  %v7173 = vld [vmem:[#allocation2 + $0x23c] sm:$0xf]
  %v7174 = vld [vmem:[#allocation2 + $0x240] sm:$0xff]
  %v7175 = vld [vmem:[#allocation2 + $0x248] sm:$0xf]
  %v7176 = vld [vmem:[#allocation2 + $0x24c] sm:$0xff]
  %v7177 = vld [vmem:[#allocation2 + $0x254] sm:$0xf]
  %v7178 = vld [vmem:[#allocation2 + $0x258] sm:$0xff]
  %v7179 = vld [vmem:[#allocation2 + $0x260] sm:$0xf]
  %v7180 = vld [vmem:[#allocation2 + $0x264] sm:$0xff]
  %v7181 = vld [vmem:[#allocation2 + $0x26c] sm:$0xf]
  %v7182 = vld [vmem:[#allocation2 + $0x270] sm:$0xff]
  %v7183 = vld [vmem:[#allocation2 + $0x278] sm:$0xf]
  %v7184 = vld [vmem:[#allocation2 + $0x27c] sm:$0xff]
  %v7185 = vld [vmem:[#allocation2 + $0x284] sm:$0xf]
  %v7186 = vld [vmem:[#allocation2 + $0x288] sm:$0xff]
  %v7187 = vld [vmem:[#allocation2 + $0x290] sm:$0xf]
  %v7188 = vld [vmem:[#allocation2 + $0x294] sm:$0xff]
  %v7189 = vld [vmem:[#allocation2 + $0x29c] sm:$0xf]
  %v7190 = vld [vmem:[#allocation2 + $0x2a0] sm:$0xff]
  %v7191 = vld [vmem:[#allocation2 + $0x2a8] sm:$0xf]
  %v7192 = vld [vmem:[#allocation2 + $0x2ac] sm:$0xff]
  %v7193 = vld [vmem:[#allocation2 + $0x2b4] sm:$0xf]
  %v7194 = vld [vmem:[#allocation2 + $0x2b8] sm:$0xff]
  %v7195 = vld [vmem:[#allocation2 + $0x2c0] sm:$0xf]
  %v7196 = vld [vmem:[#allocation2 + $0x2c4] sm:$0xff]
  %v7197 = vld [vmem:[#allocation2 + $0x2cc] sm:$0xf]
  %v7198 = vld [vmem:[#allocation2 + $0x2d0] sm:$0xff]
  %v7199 = vld [vmem:[#allocation2 + $0x2d8] sm:$0xf]
  %v7200 = vld [vmem:[#allocation2 + $0x2dc] sm:$0xff]
  %v7201 = vld [vmem:[#allocation2 + $0x2e4] sm:$0xf]
  %v7202 = vld [vmem:[#allocation2 + $0x2e8] sm:$0xff]
  %v7203 = vld [vmem:[#allocation2 + $0x2f0] sm:$0xf]
  %v7204 = vld [vmem:[#allocation2 + $0x2f4] sm:$0xff]
  %v7205 = vld [vmem:[#allocation2 + $0x2fc] sm:$0xf]
  %v7206 = vld [vmem:[#allocation2 + $0x300] sm:$0xff]
  %v7207 = vld [vmem:[#allocation2 + $0x308] sm:$0xf]
  %v7208 = vld [vmem:[#allocation2 + $0x30c] sm:$0xff]
  %v7209 = vld [vmem:[#allocation2 + $0x314] sm:$0xf]
  %v7210 = vld [vmem:[#allocation2 + $0x318] sm:$0xff]
  %v7211 = vld [vmem:[#allocation2 + $0x320] sm:$0xf]
  %v7212 = vld [vmem:[#allocation2 + $0x324] sm:$0xff]
  %v7213 = vld [vmem:[#allocation2 + $0x32c] sm:$0xf]
  %v7214 = vld [vmem:[#allocation2 + $0x330] sm:$0xff]
  %v7215 = vld [vmem:[#allocation2 + $0x338] sm:$0xf]
  %v7216 = vld [vmem:[#allocation2 + $0x33c] sm:$0xff]
  %v7217 = vld [vmem:[#allocation2 + $0x344] sm:$0xf]
  %v7218 = vld [vmem:[#allocation2 + $0x348] sm:$0xff]
  %v7219 = vld [vmem:[#allocation2 + $0x350] sm:$0xf]
  %v7220 = vld [vmem:[#allocation2 + $0x354] sm:$0xff]
  %v7221 = vld [vmem:[#allocation2 + $0x35c] sm:$0xf]
  %v7222 = vld [vmem:[#allocation2 + $0x360] sm:$0xff]
  %v7223 = vld [vmem:[#allocation2 + $0x368] sm:$0xf]
  %v7224 = vld [vmem:[#allocation2 + $0x36c] sm:$0xff]
  %v7225 = vld [vmem:[#allocation2 + $0x374] sm:$0xf]
  %v7226 = vld [vmem:[#allocation2 + $0x378] sm:$0xff]
  %v7227 = vld [vmem:[#allocation2 + $0x380] sm:$0xf]
  %v7228 = vld [vmem:[#allocation2 + $0x384] sm:$0xff]
  %v7229 = vld [vmem:[#allocation2 + $0x38c] sm:$0xf]
  %v7230 = vld [vmem:[#allocation2 + $0x390] sm:$0xff]
  %v7231 = vld [vmem:[#allocation2 + $0x398] sm:$0xf]
  %v7232 = vld [vmem:[#allocation2 + $0x39c] sm:$0xff]
  %v7233 = vld [vmem:[#allocation2 + $0x3a4] sm:$0xf]
  %v7234 = vld [vmem:[#allocation2 + $0x3a8] sm:$0xff]
  %v7235 = vld [vmem:[#allocation2 + $0x3b0] sm:$0xf]
  %v7236 = vld [vmem:[#allocation2 + $0x3b4] sm:$0xff]
  %v7237 = vld [vmem:[#allocation2 + $0x3bc] sm:$0xf]
  %v7238 = vld [vmem:[#allocation2 + $0x3c0] sm:$0xff]
  %v7239 = vld [vmem:[#allocation2 + $0x3c8] sm:$0xf]
  %v7240 = vld [vmem:[#allocation2 + $0x3cc] sm:$0xff]
  %v7241 = vld [vmem:[#allocation2 + $0x3d4] sm:$0xf]
  %v7242 = vld [vmem:[#allocation2 + $0x3d8] sm:$0xff]
  %v7243 = vld [vmem:[#allocation2 + $0x3e0] sm:$0xf]
  %v7244 = vld [vmem:[#allocation2 + $0x3e4] sm:$0xff]
  %v7245 = vld [vmem:[#allocation2 + $0x3ec] sm:$0xf]
  %v7246 = vld [vmem:[#allocation2 + $0x3f0] sm:$0xff]
  %v7247 = vld [vmem:[#allocation2 + $0x3f8] sm:$0xf]
  %v7248 = vld [vmem:[#allocation2 + $0x3fc] sm:$0xff]
  %v7249 = vld [vmem:[#allocation2 + $0x404] sm:$0xf]
  %v7250 = vld [vmem:[#allocation2 + $0x408] sm:$0x11]
  %v7251 = vld [vmem:[#allocation2 + $0x410] sm:$0x1]
  %s7252 = scalar_lea.vmem %s3, 384
  %v7253 = vld [vmem:[%s7252] sm:$0xf]
  %v7254 = vld [vmem:[%s7252 + $0x4] sm:$0xf]
  %v7255 = vld [vmem:[%s7252 + $0x8] sm:$0xf]
  %v7256 = vld [vmem:[%s7252 + $0xc] sm:$0xf]
  %v7257 = vld [vmem:[%s7252 + $0x10] sm:$0xf]
  %v7258 = vld [vmem:[%s7252 + $0x14] sm:$0xf]
  %v7259 = vld [vmem:[%s7252 + $0x18] sm:$0xf]
  %v7260 = vld [vmem:[%s7252 + $0x1c] sm:$0xf]
  %v7261 = vld [vmem:[%s7252 + $0x20] sm:$0xf]
  %v7262 = vld [vmem:[%s7252 + $0x24] sm:$0xf]
  %v7263 = vld [vmem:[%s7252 + $0x28] sm:$0xf]
  %v7264 = vld [vmem:[%s7252 + $0x2c] sm:$0xf]
  %v7265 = vld [vmem:[%s7252 + $0x30] sm:$0xf]
  %v7266 = vld [vmem:[%s7252 + $0x34] sm:$0xf]
  %v7267 = vld [vmem:[%s7252 + $0x38] sm:$0xf]
  %v7268 = vld [vmem:[%s7252 + $0x3c] sm:$0xf]
  %v7269 = vld [vmem:[%s7252 + $0x40] sm:$0xf]
  %v7270 = vld [vmem:[%s7252 + $0x44] sm:$0xf]
  %v7271 = vld [vmem:[%s7252 + $0x48] sm:$0xf]
  %v7272 = vld [vmem:[%s7252 + $0x4c] sm:$0xf]
  %v7273 = vld [vmem:[%s7252 + $0x50] sm:$0xf]
  %v7274 = vld [vmem:[%s7252 + $0x54] sm:$0xf]
  %v7275 = vld [vmem:[%s7252 + $0x58] sm:$0xf]
  %v7276 = vld [vmem:[%s7252 + $0x5c] sm:$0xf]
  %v7277 = vld [vmem:[%s7252 + $0x60] sm:$0xf]
  %v7278 = vld [vmem:[%s7252 + $0x64] sm:$0xf]
  %v7279 = vld [vmem:[%s7252 + $0x68] sm:$0xf]
  %v7280 = vld [vmem:[%s7252 + $0x6c] sm:$0xf]
  %v7281 = vld [vmem:[%s7252 + $0x70] sm:$0xf]
  %v7282 = vld [vmem:[%s7252 + $0x74] sm:$0xf]
  %v7283 = vld [vmem:[%s7252 + $0x78] sm:$0xf]
  %v7284 = vld [vmem:[%s7252 + $0x7c] sm:$0xf]
  %v7285 = vld [vmem:[%s7252 + $0x80] sm:$0xf]
  %v7286 = vld [vmem:[%s7252 + $0x84] sm:$0xf]
  %v7287 = vld [vmem:[%s7252 + $0x88] sm:$0xf]
  %v7288 = vld [vmem:[%s7252 + $0x8c] sm:$0xf]
  %v7289 = vld [vmem:[%s7252 + $0x90] sm:$0xf]
  %v7290 = vld [vmem:[%s7252 + $0x94] sm:$0xf]
  %v7291 = vld [vmem:[%s7252 + $0x98] sm:$0xf]
  %v7292 = vld [vmem:[%s7252 + $0x9c] sm:$0xf]
  %v7293 = vld [vmem:[%s7252 + $0xa0] sm:$0xf]
  %v7294 = vld [vmem:[%s7252 + $0xa4] sm:$0xf]
  %v7295 = vld [vmem:[%s7252 + $0xa8] sm:$0xf]
  %v7296 = vld [vmem:[%s7252 + $0xac] sm:$0xf]
  %v7297 = vld [vmem:[%s7252 + $0xb0] sm:$0xf]
  %v7298 = vld [vmem:[%s7252 + $0xb4] sm:$0xf]
  %v7299 = vld [vmem:[%s7252 + $0xb8] sm:$0xf]
  %v7300 = vld [vmem:[%s7252 + $0xbc] sm:$0xf]
  %v7465 = vunpack.c.l.b16 %v7088
  %v7466 = vunpack.c.h.b16 %v7088
  %v7467 = vunpack.c.l.b16 %v7089
  %v7468 = vunpack.c.l.b16 %v7090
  %v7469 = vunpack.c.h.b16 %v7090
  %v7470 = vunpack.c.l.b16 %v7091
  %v7471 = vunpack.c.l.b16 %v7092
  %v7472 = vunpack.c.h.b16 %v7092
  %v7473 = vunpack.c.l.b16 %v7093
  %v7474 = vunpack.c.l.b16 %v7094
  %v7475 = vunpack.c.h.b16 %v7094
  %v7476 = vunpack.c.l.b16 %v7095
  %v7477 = vunpack.c.l.b16 %v7096
  %v7478 = vunpack.c.h.b16 %v7096
  %v7479 = vunpack.c.l.b16 %v7097
  %v7480 = vunpack.c.l.b16 %v7098
  %v7481 = vunpack.c.h.b16 %v7098
  %v7482 = vunpack.c.l.b16 %v7099
  %v7483 = vunpack.c.l.b16 %v7100
  %v7484 = vunpack.c.h.b16 %v7100
  %v7485 = vunpack.c.l.b16 %v7101
  %v7486 = vunpack.c.l.b16 %v7102
  %v7487 = vunpack.c.h.b16 %v7102
  %v7488 = vunpack.c.l.b16 %v7103
  %v7489 = vunpack.c.l.b16 %v7104
  %v7490 = vunpack.c.h.b16 %v7104
  %v7491 = vunpack.c.l.b16 %v7105
  %v7492 = vunpack.c.l.b16 %v7106
  %v7493 = vunpack.c.h.b16 %v7106
  %v7494 = vunpack.c.l.b16 %v7107
  %v7495 = vunpack.c.l.b16 %v7108
  %v7496 = vunpack.c.h.b16 %v7108
  %v7497 = vunpack.c.l.b16 %v7109
  %v7498 = vunpack.c.l.b16 %v7110
  %v7499 = vunpack.c.h.b16 %v7110
  %v7500 = vunpack.c.l.b16 %v7111
  %v7501 = vunpack.c.l.b16 %v7112
  %v7502 = vunpack.c.h.b16 %v7112
  %v7503 = vunpack.c.l.b16 %v7113
  %v7504 = vunpack.c.l.b16 %v7114
  %v7505 = vunpack.c.h.b16 %v7114
  %v7506 = vunpack.c.l.b16 %v7115
  %v7507 = vunpack.c.l.b16 %v7116
  %v7508 = vunpack.c.h.b16 %v7116
  %v7509 = vunpack.c.l.b16 %v7117
  %v7510 = vunpack.c.l.b16 %v7118
  %v7511 = vunpack.c.h.b16 %v7118
  %v7512 = vunpack.c.l.b16 %v7119
  %v7513 = vunpack.c.l.b16 %v7120
  %v7514 = vunpack.c.h.b16 %v7120
  %v7515 = vunpack.c.l.b16 %v7121
  %v7516 = vunpack.c.l.b16 %v7122
  %v7517 = vunpack.c.h.b16 %v7122
  %v7518 = vunpack.c.l.b16 %v7123
  %v7519 = vunpack.c.l.b16 %v7124
  %v7520 = vunpack.c.h.b16 %v7124
  %v7521 = vunpack.c.l.b16 %v7125
  %v7522 = vunpack.c.l.b16 %v7126
  %v7523 = vunpack.c.h.b16 %v7126
  %v7524 = vunpack.c.l.b16 %v7127
  %v7525 = vunpack.c.l.b16 %v7128
  %v7526 = vunpack.c.h.b16 %v7128
  %v7527 = vunpack.c.l.b16 %v7129
  %v7528 = vunpack.c.l.b16 %v7130
  %v7529 = vunpack.c.h.b16 %v7130
  %v7530 = vunpack.c.l.b16 %v7131
  %v7531 = vunpack.c.l.b16 %v7132
  %v7532 = vunpack.c.h.b16 %v7132
  %v7533 = vunpack.c.l.b16 %v7133
  %v7534 = vunpack.c.l.b16 %v7134
  %v7535 = vunpack.c.h.b16 %v7134
  %v7536 = vunpack.c.l.b16 %v7135
  %v7537 = vunpack.c.l.b16 %v7136
  %v7538 = vunpack.c.h.b16 %v7136
  %v7539 = vunpack.c.l.b16 %v7137
  %v7540 = vunpack.c.l.b16 %v7138
  %v7541 = vunpack.c.h.b16 %v7138
  %v7542 = vunpack.c.l.b16 %v7139
  %v7543 = vunpack.c.l.b16 %v7140
  %v7544 = vunpack.c.h.b16 %v7140
  %v7545 = vunpack.c.l.b16 %v7141
  %v7546 = vunpack.c.l.b16 %v7142
  %v7547 = vunpack.c.h.b16 %v7142
  %v7548 = vunpack.c.l.b16 %v7143
  %v7549 = vunpack.c.l.b16 %v7144
  %v7550 = vunpack.c.h.b16 %v7144
  %v7551 = vunpack.c.l.b16 %v7145
  %v7552 = vunpack.c.l.b16 %v7146
  %v7553 = vunpack.c.h.b16 %v7146
  %v7554 = vunpack.c.l.b16 %v7147
  %v7555 = vunpack.c.l.b16 %v7148
  %v7556 = vunpack.c.h.b16 %v7148
  %v7557 = vunpack.c.l.b16 %v7149
  %v7558 = vunpack.c.l.b16 %v7150
  %v7559 = vunpack.c.h.b16 %v7150
  %v7560 = vunpack.c.l.b16 %v7151
  %v7561 = vunpack.c.l.b16 %v7152
  %v7562 = vunpack.c.h.b16 %v7152
  %v7563 = vunpack.c.l.b16 %v7153
  %v7564 = vunpack.c.l.b16 %v7154
  %v7565 = vunpack.c.h.b16 %v7154
  %v7566 = vunpack.c.l.b16 %v7155
  %v7567 = vunpack.c.l.b16 %v7156
  %v7568 = vunpack.c.h.b16 %v7156
  %v7569 = vunpack.c.l.b16 %v7157
  %v7570 = vunpack.c.l.b16 %v7158
  %v7571 = vunpack.c.h.b16 %v7158
  %v7572 = vunpack.c.l.b16 %v7159
  %v7573 = vunpack.c.l.b16 %v7160
  %v7574 = vunpack.c.h.b16 %v7160
  %v7575 = vunpack.c.l.b16 %v7161
  %v7576 = vunpack.c.l.b16 %v7162
  %v7577 = vunpack.c.h.b16 %v7162
  %v7578 = vunpack.c.l.b16 %v7163
  %v7579 = vunpack.c.l.b16 %v7164
  %v7580 = vunpack.c.h.b16 %v7164
  %v7581 = vunpack.c.l.b16 %v7165
  %v7582 = vunpack.c.l.b16 %v7166
  %v7583 = vunpack.c.h.b16 %v7166
  %v7584 = vunpack.c.l.b16 %v7167
  %v7585 = vunpack.c.l.b16 %v7168
  %v7586 = vunpack.c.h.b16 %v7168
  %v7587 = vunpack.c.l.b16 %v7169
  %v7588 = vunpack.c.l.b16 %v7170
  %v7589 = vunpack.c.h.b16 %v7170
  %v7590 = vunpack.c.l.b16 %v7171
  %v7591 = vunpack.c.l.b16 %v7172
  %v7592 = vunpack.c.h.b16 %v7172
  %v7593 = vunpack.c.l.b16 %v7173
  %v7594 = vunpack.c.l.b16 %v7174
  %v7595 = vunpack.c.h.b16 %v7174
  %v7596 = vunpack.c.l.b16 %v7175
  %v7597 = vunpack.c.l.b16 %v7176
  %v7598 = vunpack.c.h.b16 %v7176
  %v7599 = vunpack.c.l.b16 %v7177
  %v7600 = vunpack.c.l.b16 %v7178
  %v7601 = vunpack.c.h.b16 %v7178
  %v7602 = vunpack.c.l.b16 %v7179
  %v7603 = vunpack.c.l.b16 %v7180
  %v7604 = vunpack.c.h.b16 %v7180
  %v7605 = vunpack.c.l.b16 %v7181
  %v7606 = vunpack.c.l.b16 %v7182
  %v7607 = vunpack.c.h.b16 %v7182
  %v7608 = vunpack.c.l.b16 %v7183
  %v7609 = vunpack.c.l.b16 %v7184
  %v7610 = vunpack.c.h.b16 %v7184
  %v7611 = vunpack.c.l.b16 %v7185
  %v7612 = vunpack.c.l.b16 %v7186
  %v7613 = vunpack.c.h.b16 %v7186
  %v7614 = vunpack.c.l.b16 %v7187
  %v7615 = vunpack.c.l.b16 %v7188
  %v7616 = vunpack.c.h.b16 %v7188
  %v7617 = vunpack.c.l.b16 %v7189
  %v7618 = vunpack.c.l.b16 %v7190
  %v7619 = vunpack.c.h.b16 %v7190
  %v7620 = vunpack.c.l.b16 %v7191
  %v7621 = vunpack.c.l.b16 %v7192
  %v7622 = vunpack.c.h.b16 %v7192
  %v7623 = vunpack.c.l.b16 %v7193
  %v7624 = vunpack.c.l.b16 %v7194
  %v7625 = vunpack.c.h.b16 %v7194
  %v7626 = vunpack.c.l.b16 %v7195
  %v7627 = vunpack.c.l.b16 %v7196
  %v7628 = vunpack.c.h.b16 %v7196
  %v7629 = vunpack.c.l.b16 %v7197
  %v7630 = vunpack.c.l.b16 %v7198
  %v7631 = vunpack.c.h.b16 %v7198
  %v7632 = vunpack.c.l.b16 %v7199
  %v7633 = vunpack.c.l.b16 %v7200
  %v7634 = vunpack.c.h.b16 %v7200
  %v7635 = vunpack.c.l.b16 %v7201
  %v7636 = vunpack.c.l.b16 %v7202
  %v7637 = vunpack.c.h.b16 %v7202
  %v7638 = vunpack.c.l.b16 %v7203
  %v7639 = vunpack.c.l.b16 %v7204
  %v7640 = vunpack.c.h.b16 %v7204
  %v7641 = vunpack.c.l.b16 %v7205
  %v7642 = vunpack.c.l.b16 %v7206
  %v7643 = vunpack.c.h.b16 %v7206
  %v7644 = vunpack.c.l.b16 %v7207
  %v7645 = vunpack.c.l.b16 %v7208
  %v7646 = vunpack.c.h.b16 %v7208
  %v7647 = vunpack.c.l.b16 %v7209
  %v7648 = vunpack.c.l.b16 %v7210
  %v7649 = vunpack.c.h.b16 %v7210
  %v7650 = vunpack.c.l.b16 %v7211
  %v7651 = vunpack.c.l.b16 %v7212
  %v7652 = vunpack.c.h.b16 %v7212
  %v7653 = vunpack.c.l.b16 %v7213
  %v7654 = vunpack.c.l.b16 %v7214
  %v7655 = vunpack.c.h.b16 %v7214
  %v7656 = vunpack.c.l.b16 %v7215
  %v7657 = vunpack.c.l.b16 %v7216
  %v7658 = vunpack.c.h.b16 %v7216
  %v7659 = vunpack.c.l.b16 %v7217
  %v7660 = vunpack.c.l.b16 %v7218
  %v7661 = vunpack.c.h.b16 %v7218
  %v7662 = vunpack.c.l.b16 %v7219
  %v7663 = vunpack.c.l.b16 %v7220
  %v7664 = vunpack.c.h.b16 %v7220
  %v7665 = vunpack.c.l.b16 %v7221
  %v7666 = vunpack.c.l.b16 %v7222
  %v7667 = vunpack.c.h.b16 %v7222
  %v7668 = vunpack.c.l.b16 %v7223
  %v7669 = vunpack.c.l.b16 %v7224
  %v7670 = vunpack.c.h.b16 %v7224
  %v7671 = vunpack.c.l.b16 %v7225
  %v7672 = vunpack.c.l.b16 %v7226
  %v7673 = vunpack.c.h.b16 %v7226
  %v7674 = vunpack.c.l.b16 %v7227
  %v7675 = vunpack.c.l.b16 %v7228
  %v7676 = vunpack.c.h.b16 %v7228
  %v7677 = vunpack.c.l.b16 %v7229
  %v7678 = vunpack.c.l.b16 %v7230
  %v7679 = vunpack.c.h.b16 %v7230
  %v7680 = vunpack.c.l.b16 %v7231
  %v7681 = vunpack.c.l.b16 %v7232
  %v7682 = vunpack.c.h.b16 %v7232
  %v7683 = vunpack.c.l.b16 %v7233
  %v7684 = vunpack.c.l.b16 %v7234
  %v7685 = vunpack.c.h.b16 %v7234
  %v7686 = vunpack.c.l.b16 %v7235
  %v7687 = vunpack.c.l.b16 %v7236
  %v7688 = vunpack.c.h.b16 %v7236
  %v7689 = vunpack.c.l.b16 %v7237
  %v7690 = vunpack.c.l.b16 %v7238
  %v7691 = vunpack.c.h.b16 %v7238
  %v7692 = vunpack.c.l.b16 %v7239
  %v7693 = vunpack.c.l.b16 %v7240
  %v7694 = vunpack.c.h.b16 %v7240
  %v7695 = vunpack.c.l.b16 %v7241
  %v7696 = vunpack.c.l.b16 %v7242
  %v7697 = vunpack.c.h.b16 %v7242
  %v7698 = vunpack.c.l.b16 %v7243
  %v7699 = vunpack.c.l.b16 %v7244
  %v7700 = vunpack.c.h.b16 %v7244
  %v7701 = vunpack.c.l.b16 %v7245
  %v7702 = vunpack.c.l.b16 %v7246
  %v7703 = vunpack.c.h.b16 %v7246
  %v7704 = vunpack.c.l.b16 %v7247
  %v7705 = vunpack.c.l.b16 %v7248
  %v7706 = vunpack.c.h.b16 %v7248
  %v7707 = vunpack.c.l.b16 %v7249
  %v7708 = vunpack.c.l.b16 %v7250
  %v7709 = vunpack.c.h.b16 %v7250
  %v7710 = vunpack.c.l.b16 %v7251
  %v7711 = vpack.c.b16 %v7468, %v7465
  %v7712 = vpack.c.b16 %v7469, %v7466
  %v7713 = vpack.c.b16 %v7470, %v7467
  %v7714 = vpack.c.b16 %v7474, %v7471
  %v7715 = vpack.c.b16 %v7475, %v7472
  %v7716 = vpack.c.b16 %v7476, %v7473
  %v7717 = vpack.c.b16 %v7480, %v7477
  %v7718 = vpack.c.b16 %v7481, %v7478
  %v7719 = vpack.c.b16 %v7482, %v7479
  %v7720 = vpack.c.b16 %v7486, %v7483
  %v7721 = vpack.c.b16 %v7487, %v7484
  %v7722 = vpack.c.b16 %v7488, %v7485
  %v7723 = vpack.c.b16 %v7492, %v7489
  %v7724 = vpack.c.b16 %v7493, %v7490
  %v7725 = vpack.c.b16 %v7494, %v7491
  %v7726 = vpack.c.b16 %v7498, %v7495
  %v7727 = vpack.c.b16 %v7499, %v7496
  %v7728 = vpack.c.b16 %v7500, %v7497
  %v7729 = vpack.c.b16 %v7504, %v7501
  %v7730 = vpack.c.b16 %v7505, %v7502
  %v7731 = vpack.c.b16 %v7506, %v7503
  %v7732 = vpack.c.b16 %v7510, %v7507
  %v7733 = vpack.c.b16 %v7511, %v7508
  %v7734 = vpack.c.b16 %v7512, %v7509
  %v7735 = vpack.c.b16 %v7516, %v7513
  %v7736 = vpack.c.b16 %v7517, %v7514
  %v7737 = vpack.c.b16 %v7518, %v7515
  %v7738 = vpack.c.b16 %v7522, %v7519
  %v7739 = vpack.c.b16 %v7523, %v7520
  %v7740 = vpack.c.b16 %v7524, %v7521
  %v7741 = vpack.c.b16 %v7528, %v7525
  %v7742 = vpack.c.b16 %v7529, %v7526
  %v7743 = vpack.c.b16 %v7530, %v7527
  %v7744 = vpack.c.b16 %v7534, %v7531
  %v7745 = vpack.c.b16 %v7535, %v7532
  %v7746 = vpack.c.b16 %v7536, %v7533
  %v7747 = vpack.c.b16 %v7540, %v7537
  %v7748 = vpack.c.b16 %v7541, %v7538
  %v7749 = vpack.c.b16 %v7542, %v7539
  %v7750 = vpack.c.b16 %v7546, %v7543
  %v7751 = vpack.c.b16 %v7547, %v7544
  %v7752 = vpack.c.b16 %v7548, %v7545
  %v7753 = vpack.c.b16 %v7552, %v7549
  %v7754 = vpack.c.b16 %v7553, %v7550
  %v7755 = vpack.c.b16 %v7554, %v7551
  %v7756 = vpack.c.b16 %v7558, %v7555
  %v7757 = vpack.c.b16 %v7559, %v7556
  %v7758 = vpack.c.b16 %v7560, %v7557
  %v7759 = vpack.c.b16 %v7564, %v7561
  %v7760 = vpack.c.b16 %v7565, %v7562
  %v7761 = vpack.c.b16 %v7566, %v7563
  %v7762 = vpack.c.b16 %v7570, %v7567
  %v7763 = vpack.c.b16 %v7571, %v7568
  %v7764 = vpack.c.b16 %v7572, %v7569
  %v7765 = vpack.c.b16 %v7576, %v7573
  %v7766 = vpack.c.b16 %v7577, %v7574
  %v7767 = vpack.c.b16 %v7578, %v7575
  %v7768 = vpack.c.b16 %v7582, %v7579
  %v7769 = vpack.c.b16 %v7583, %v7580
  %v7770 = vpack.c.b16 %v7584, %v7581
  %v7771 = vpack.c.b16 %v7588, %v7585
  %v7772 = vpack.c.b16 %v7589, %v7586
  %v7773 = vpack.c.b16 %v7590, %v7587
  %v7774 = vpack.c.b16 %v7594, %v7591
  %v7775 = vpack.c.b16 %v7595, %v7592
  %v7776 = vpack.c.b16 %v7596, %v7593
  %v7777 = vpack.c.b16 %v7600, %v7597
  %v7778 = vpack.c.b16 %v7601, %v7598
  %v7779 = vpack.c.b16 %v7602, %v7599
  %v7780 = vpack.c.b16 %v7606, %v7603
  %v7781 = vpack.c.b16 %v7607, %v7604
  %v7782 = vpack.c.b16 %v7608, %v7605
  %v7783 = vpack.c.b16 %v7612, %v7609
  %v7784 = vpack.c.b16 %v7613, %v7610
  %v7785 = vpack.c.b16 %v7614, %v7611
  %v7786 = vpack.c.b16 %v7618, %v7615
  %v7787 = vpack.c.b16 %v7619, %v7616
  %v7788 = vpack.c.b16 %v7620, %v7617
  %v7789 = vpack.c.b16 %v7624, %v7621
  %v7790 = vpack.c.b16 %v7625, %v7622
  %v7791 = vpack.c.b16 %v7626, %v7623
  %v7792 = vpack.c.b16 %v7630, %v7627
  %v7793 = vpack.c.b16 %v7631, %v7628
  %v7794 = vpack.c.b16 %v7632, %v7629
  %v7795 = vpack.c.b16 %v7636, %v7633
  %v7796 = vpack.c.b16 %v7637, %v7634
  %v7797 = vpack.c.b16 %v7638, %v7635
  %v7798 = vpack.c.b16 %v7642, %v7639
  %v7799 = vpack.c.b16 %v7643, %v7640
  %v7800 = vpack.c.b16 %v7644, %v7641
  %v7801 = vpack.c.b16 %v7648, %v7645
  %v7802 = vpack.c.b16 %v7649, %v7646
  %v7803 = vpack.c.b16 %v7650, %v7647
  %v7804 = vpack.c.b16 %v7654, %v7651
  %v7805 = vpack.c.b16 %v7655, %v7652
  %v7806 = vpack.c.b16 %v7656, %v7653
  %v7807 = vpack.c.b16 %v7660, %v7657
  %v7808 = vpack.c.b16 %v7661, %v7658
  %v7809 = vpack.c.b16 %v7662, %v7659
  %v7810 = vpack.c.b16 %v7666, %v7663
  %v7811 = vpack.c.b16 %v7667, %v7664
  %v7812 = vpack.c.b16 %v7668, %v7665
  %v7813 = vpack.c.b16 %v7672, %v7669
  %v7814 = vpack.c.b16 %v7673, %v7670
  %v7815 = vpack.c.b16 %v7674, %v7671
  %v7816 = vpack.c.b16 %v7678, %v7675
  %v7817 = vpack.c.b16 %v7679, %v7676
  %v7818 = vpack.c.b16 %v7680, %v7677
  %v7819 = vpack.c.b16 %v7684, %v7681
  %v7820 = vpack.c.b16 %v7685, %v7682
  %v7821 = vpack.c.b16 %v7686, %v7683
  %v7822 = vpack.c.b16 %v7690, %v7687
  %v7823 = vpack.c.b16 %v7691, %v7688
  %v7824 = vpack.c.b16 %v7692, %v7689
  %v7825 = vpack.c.b16 %v7696, %v7693
  %v7826 = vpack.c.b16 %v7697, %v7694
  %v7827 = vpack.c.b16 %v7698, %v7695
  %v7828 = vpack.c.b16 %v7702, %v7699
  %v7829 = vpack.c.b16 %v7703, %v7700
  %v7830 = vpack.c.b16 %v7704, %v7701
  %v7831 = vpack.c.b16 %v7708, %v7705
  %v7832 = vpack.c.b16 %v7709, %v7706
  %v7833 = vpack.c.b16 %v7710, %v7707
  %vm7834 = vcmask 1046528
  %v7835 = vrot.slane %v7711, 1
  %v7836 = vrot.slane %v7714, 1
  %v7837 = vsel %vm7834, %v7835, %v7836
  %v7838 = vrot.slane %v7712, 1
  %v7839 = vrot.slane %v7715, 1
  %v7840 = vsel %vm7834, %v7838, %v7839
  %v7841 = vrot.slane %v7713, 1
  %v7842 = vrot.slane %v7716, 1
  %v7843 = vsel %vm7834, %v7841, %v7842
  %v7844 = vrot.slane %v7717, 1
  %v7845 = vsel %vm7834, %v7836, %v7844
  %v7846 = vrot.slane %v7718, 1
  %v7847 = vsel %vm7834, %v7839, %v7846
  %v7848 = vrot.slane %v7719, 1
  %v7849 = vsel %vm7834, %v7842, %v7848
  %v7850 = vrot.slane %v7720, 1
  %v7851 = vsel %vm7834, %v7844, %v7850
  %v7852 = vrot.slane %v7721, 1
  %v7853 = vsel %vm7834, %v7846, %v7852
  %v7854 = vrot.slane %v7722, 1
  %v7855 = vsel %vm7834, %v7848, %v7854
  %v7856 = vrot.slane %v7723, 1
  %v7857 = vsel %vm7834, %v7850, %v7856
  %v7858 = vrot.slane %v7724, 1
  %v7859 = vsel %vm7834, %v7852, %v7858
  %v7860 = vrot.slane %v7725, 1
  %v7861 = vsel %vm7834, %v7854, %v7860
  %v7862 = vrot.slane %v7726, 1
  %v7863 = vsel %vm7834, %v7856, %v7862
  %v7864 = vrot.slane %v7727, 1
  %v7865 = vsel %vm7834, %v7858, %v7864
  %v7866 = vrot.slane %v7728, 1
  %v7867 = vsel %vm7834, %v7860, %v7866
  %v7868 = vrot.slane %v7729, 1
  %v7869 = vsel %vm7834, %v7862, %v7868
  %v7870 = vrot.slane %v7730, 1
  %v7871 = vsel %vm7834, %v7864, %v7870
  %v7872 = vrot.slane %v7731, 1
  %v7873 = vsel %vm7834, %v7866, %v7872
  %v7874 = vrot.slane %v7732, 1
  %v7875 = vsel %vm7834, %v7868, %v7874
  %v7876 = vrot.slane %v7733, 1
  %v7877 = vsel %vm7834, %v7870, %v7876
  %v7878 = vrot.slane %v7734, 1
  %v7879 = vsel %vm7834, %v7872, %v7878
  %v7880 = vrot.slane %v7735, 1
  %v7881 = vsel %vm7834, %v7874, %v7880
  %v7882 = vrot.slane %v7736, 1
  %v7883 = vsel %vm7834, %v7876, %v7882
  %v7884 = vrot.slane %v7737, 1
  %v7885 = vsel %vm7834, %v7878, %v7884
  %v7886 = vrot.slane %v7738, 1
  %v7887 = vsel %vm7834, %v7880, %v7886
  %v7888 = vrot.slane %v7739, 1
  %v7889 = vsel %vm7834, %v7882, %v7888
  %v7890 = vrot.slane %v7740, 1
  %v7891 = vsel %vm7834, %v7884, %v7890
  %v7892 = vrot.slane %v7741, 1
  %v7893 = vsel %vm7834, %v7886, %v7892
  %v7894 = vrot.slane %v7742, 1
  %v7895 = vsel %vm7834, %v7888, %v7894
  %v7896 = vrot.slane %v7743, 1
  %v7897 = vsel %vm7834, %v7890, %v7896
  %v7898 = vrot.slane %v7744, 1
  %v7899 = vsel %vm7834, %v7892, %v7898
  %v7900 = vrot.slane %v7745, 1
  %v7901 = vsel %vm7834, %v7894, %v7900
  %v7902 = vrot.slane %v7746, 1
  %v7903 = vsel %vm7834, %v7896, %v7902
  %v7904 = vrot.slane %v7747, 1
  %v7905 = vsel %vm7834, %v7898, %v7904
  %v7906 = vrot.slane %v7748, 1
  %v7907 = vsel %vm7834, %v7900, %v7906
  %v7908 = vrot.slane %v7749, 1
  %v7909 = vsel %vm7834, %v7902, %v7908
  %v7910 = vrot.slane %v7750, 1
  %v7911 = vsel %vm7834, %v7904, %v7910
  %v7912 = vrot.slane %v7751, 1
  %v7913 = vsel %vm7834, %v7906, %v7912
  %v7914 = vrot.slane %v7752, 1
  %v7915 = vsel %vm7834, %v7908, %v7914
  %v7916 = vrot.slane %v7753, 1
  %v7917 = vsel %vm7834, %v7910, %v7916
  %v7918 = vrot.slane %v7754, 1
  %v7919 = vsel %vm7834, %v7912, %v7918
  %v7920 = vrot.slane %v7755, 1
  %v7921 = vsel %vm7834, %v7914, %v7920
  %v7922 = vrot.slane %v7756, 1
  %v7923 = vsel %vm7834, %v7916, %v7922
  %v7924 = vrot.slane %v7757, 1
  %v7925 = vsel %vm7834, %v7918, %v7924
  %v7926 = vrot.slane %v7758, 1
  %v7927 = vsel %vm7834, %v7920, %v7926
  %v7928 = vrot.slane %v7759, 1
  %v7929 = vsel %vm7834, %v7922, %v7928
  %v7930 = vrot.slane %v7760, 1
  %v7931 = vsel %vm7834, %v7924, %v7930
  %v7932 = vrot.slane %v7761, 1
  %v7933 = vsel %vm7834, %v7926, %v7932
  %v7934 = vrot.slane %v7762, 1
  %v7935 = vsel %vm7834, %v7928, %v7934
  %v7936 = vrot.slane %v7763, 1
  %v7937 = vsel %vm7834, %v7930, %v7936
  %v7938 = vrot.slane %v7764, 1
  %v7939 = vsel %vm7834, %v7932, %v7938
  %v7940 = vrot.slane %v7765, 1
  %v7941 = vsel %vm7834, %v7934, %v7940
  %v7942 = vrot.slane %v7766, 1
  %v7943 = vsel %vm7834, %v7936, %v7942
  %v7944 = vrot.slane %v7767, 1
  %v7945 = vsel %vm7834, %v7938, %v7944
  %v7946 = vrot.slane %v7768, 1
  %v7947 = vsel %vm7834, %v7940, %v7946
  %v7948 = vrot.slane %v7769, 1
  %v7949 = vsel %vm7834, %v7942, %v7948
  %v7950 = vrot.slane %v7770, 1
  %v7951 = vsel %vm7834, %v7944, %v7950
  %v7952 = vrot.slane %v7771, 1
  %v7953 = vsel %vm7834, %v7946, %v7952
  %v7954 = vrot.slane %v7772, 1
  %v7955 = vsel %vm7834, %v7948, %v7954
  %v7956 = vrot.slane %v7773, 1
  %v7957 = vsel %vm7834, %v7950, %v7956
  %v7958 = vrot.slane %v7774, 1
  %v7959 = vsel %vm7834, %v7952, %v7958
  %v7960 = vrot.slane %v7775, 1
  %v7961 = vsel %vm7834, %v7954, %v7960
  %v7962 = vrot.slane %v7776, 1
  %v7963 = vsel %vm7834, %v7956, %v7962
  %v7964 = vrot.slane %v7777, 1
  %v7965 = vsel %vm7834, %v7958, %v7964
  %v7966 = vrot.slane %v7778, 1
  %v7967 = vsel %vm7834, %v7960, %v7966
  %v7968 = vrot.slane %v7779, 1
  %v7969 = vsel %vm7834, %v7962, %v7968
  %v7970 = vrot.slane %v7780, 1
  %v7971 = vsel %vm7834, %v7964, %v7970
  %v7972 = vrot.slane %v7781, 1
  %v7973 = vsel %vm7834, %v7966, %v7972
  %v7974 = vrot.slane %v7782, 1
  %v7975 = vsel %vm7834, %v7968, %v7974
  %v7976 = vrot.slane %v7783, 1
  %v7977 = vsel %vm7834, %v7970, %v7976
  %v7978 = vrot.slane %v7784, 1
  %v7979 = vsel %vm7834, %v7972, %v7978
  %v7980 = vrot.slane %v7785, 1
  %v7981 = vsel %vm7834, %v7974, %v7980
  %v7982 = vrot.slane %v7786, 1
  %v7983 = vsel %vm7834, %v7976, %v7982
  %v7984 = vrot.slane %v7787, 1
  %v7985 = vsel %vm7834, %v7978, %v7984
  %v7986 = vrot.slane %v7788, 1
  %v7987 = vsel %vm7834, %v7980, %v7986
  %v7988 = vrot.slane %v7789, 1
  %v7989 = vsel %vm7834, %v7982, %v7988
  %v7990 = vrot.slane %v7790, 1
  %v7991 = vsel %vm7834, %v7984, %v7990
  %v7992 = vrot.slane %v7791, 1
  %v7993 = vsel %vm7834, %v7986, %v7992
  %v7994 = vrot.slane %v7792, 1
  %v7995 = vsel %vm7834, %v7988, %v7994
  %v7996 = vrot.slane %v7793, 1
  %v7997 = vsel %vm7834, %v7990, %v7996
  %v7998 = vrot.slane %v7794, 1
  %v7999 = vsel %vm7834, %v7992, %v7998
  %v8000 = vrot.slane %v7795, 1
  %v8001 = vsel %vm7834, %v7994, %v8000
  %v8002 = vrot.slane %v7796, 1
  %v8003 = vsel %vm7834, %v7996, %v8002
  %v8004 = vrot.slane %v7797, 1
  %v8005 = vsel %vm7834, %v7998, %v8004
  %v8006 = vrot.slane %v7798, 1
  %v8007 = vsel %vm7834, %v8000, %v8006
  %v8008 = vrot.slane %v7799, 1
  %v8009 = vsel %vm7834, %v8002, %v8008
  %v8010 = vrot.slane %v7800, 1
  %v8011 = vsel %vm7834, %v8004, %v8010
  %v8012 = vrot.slane %v7801, 1
  %v8013 = vsel %vm7834, %v8006, %v8012
  %v8014 = vrot.slane %v7802, 1
  %v8015 = vsel %vm7834, %v8008, %v8014
  %v8016 = vrot.slane %v7803, 1
  %v8017 = vsel %vm7834, %v8010, %v8016
  %v8018 = vrot.slane %v7804, 1
  %v8019 = vsel %vm7834, %v8012, %v8018
  %v8020 = vrot.slane %v7805, 1
  %v8021 = vsel %vm7834, %v8014, %v8020
  %v8022 = vrot.slane %v7806, 1
  %v8023 = vsel %vm7834, %v8016, %v8022
  %v8024 = vrot.slane %v7807, 1
  %v8025 = vsel %vm7834, %v8018, %v8024
  %v8026 = vrot.slane %v7808, 1
  %v8027 = vsel %vm7834, %v8020, %v8026
  %v8028 = vrot.slane %v7809, 1
  %v8029 = vsel %vm7834, %v8022, %v8028
  %v8030 = vrot.slane %v7810, 1
  %v8031 = vsel %vm7834, %v8024, %v8030
  %v8032 = vrot.slane %v7811, 1
  %v8033 = vsel %vm7834, %v8026, %v8032
  %v8034 = vrot.slane %v7812, 1
  %v8035 = vsel %vm7834, %v8028, %v8034
  %v8036 = vrot.slane %v7813, 1
  %v8037 = vsel %vm7834, %v8030, %v8036
  %v8038 = vrot.slane %v7814, 1
  %v8039 = vsel %vm7834, %v8032, %v8038
  %v8040 = vrot.slane %v7815, 1
  %v8041 = vsel %vm7834, %v8034, %v8040
  %v8042 = vrot.slane %v7816, 1
  %v8043 = vsel %vm7834, %v8036, %v8042
  %v8044 = vrot.slane %v7817, 1
  %v8045 = vsel %vm7834, %v8038, %v8044
  %v8046 = vrot.slane %v7818, 1
  %v8047 = vsel %vm7834, %v8040, %v8046
  %v8048 = vrot.slane %v7819, 1
  %v8049 = vsel %vm7834, %v8042, %v8048
  %v8050 = vrot.slane %v7820, 1
  %v8051 = vsel %vm7834, %v8044, %v8050
  %v8052 = vrot.slane %v7821, 1
  %v8053 = vsel %vm7834, %v8046, %v8052
  %v8054 = vrot.slane %v7822, 1
  %v8055 = vsel %vm7834, %v8048, %v8054
  %v8056 = vrot.slane %v7823, 1
  %v8057 = vsel %vm7834, %v8050, %v8056
  %v8058 = vrot.slane %v7824, 1
  %v8059 = vsel %vm7834, %v8052, %v8058
  %v8060 = vrot.slane %v7825, 1
  %v8061 = vsel %vm7834, %v8054, %v8060
  %v8062 = vrot.slane %v7826, 1
  %v8063 = vsel %vm7834, %v8056, %v8062
  %v8064 = vrot.slane %v7827, 1
  %v8065 = vsel %vm7834, %v8058, %v8064
  %v8066 = vrot.slane %v7828, 1
  %v8067 = vsel %vm7834, %v8060, %v8066
  %v8068 = vrot.slane %v7829, 1
  %v8069 = vsel %vm7834, %v8062, %v8068
  %v8070 = vrot.slane %v7830, 1
  %v8071 = vsel %vm7834, %v8064, %v8070
  %v8072 = vrot.slane %v7831, 1
  %v8073 = vsel %vm7834, %v8066, %v8072
  %v8074 = vrot.slane %v7832, 1
  %v8075 = vsel %vm7834, %v8068, %v8074
  %v8076 = vrot.slane %v7833, 1
  %v8077 = vsel %vm7834, %v8070, %v8076
  %v8249 = vunpack.c.l.b16 %v7253
  %v8250 = vunpack.c.l.b16 %v7254
  %v8251 = vunpack.c.l.b16 %v7255
  %v8252 = vunpack.c.l.b16 %v7256
  %v8253 = vunpack.c.l.b16 %v7257
  %v8254 = vunpack.c.l.b16 %v7258
  %v8255 = vunpack.c.l.b16 %v7259
  %v8256 = vunpack.c.l.b16 %v7260
  %v8257 = vunpack.c.l.b16 %v7261
  %v8258 = vunpack.c.l.b16 %v7262
  %v8259 = vunpack.c.l.b16 %v7263
  %v8260 = vunpack.c.l.b16 %v7264
  %v8261 = vunpack.c.l.b16 %v7265
  %v8262 = vunpack.c.l.b16 %v7266
  %v8263 = vunpack.c.l.b16 %v7267
  %v8264 = vunpack.c.l.b16 %v7268
  %v8265 = vunpack.c.l.b16 %v7269
  %v8266 = vunpack.c.l.b16 %v7270
  %v8267 = vunpack.c.l.b16 %v7271
  %v8268 = vunpack.c.l.b16 %v7272
  %v8269 = vunpack.c.l.b16 %v7273
  %v8270 = vunpack.c.l.b16 %v7274
  %v8271 = vunpack.c.l.b16 %v7275
  %v8272 = vunpack.c.l.b16 %v7276
  %v8273 = vunpack.c.l.b16 %v7277
  %v8274 = vunpack.c.l.b16 %v7278
  %v8275 = vunpack.c.l.b16 %v7279
  %v8276 = vunpack.c.l.b16 %v7280
  %v8277 = vunpack.c.l.b16 %v7281
  %v8278 = vunpack.c.l.b16 %v7282
  %v8279 = vunpack.c.l.b16 %v7283
  %v8280 = vunpack.c.l.b16 %v7284
  %v8281 = vunpack.c.l.b16 %v7285
  %v8282 = vunpack.c.l.b16 %v7286
  %v8283 = vunpack.c.l.b16 %v7287
  %v8284 = vunpack.c.l.b16 %v7288
  %v8285 = vunpack.c.l.b16 %v7289
  %v8286 = vunpack.c.l.b16 %v7290
  %v8287 = vunpack.c.l.b16 %v7291
  %v8288 = vunpack.c.l.b16 %v7292
  %v8289 = vunpack.c.l.b16 %v7293
  %v8290 = vunpack.c.l.b16 %v7294
  %v8291 = vunpack.c.l.b16 %v7295
  %v8292 = vunpack.c.l.b16 %v7296
  %v8293 = vunpack.c.l.b16 %v7297
  %v8294 = vunpack.c.l.b16 %v7298
  %v8295 = vunpack.c.l.b16 %v7299
  %v8296 = vunpack.c.l.b16 %v7300
  %v8297 = vpack.c.b16 %v8250, %v8249
  %v8298 = vpack.c.b16 %v8252, %v8251
  %v8299 = vpack.c.b16 %v8254, %v8253
  %v8300 = vpack.c.b16 %v8256, %v8255
  %v8301 = vpack.c.b16 %v8258, %v8257
  %v8302 = vpack.c.b16 %v8260, %v8259
  %v8303 = vpack.c.b16 %v8262, %v8261
  %v8304 = vpack.c.b16 %v8264, %v8263
  %v8305 = vpack.c.b16 %v8266, %v8265
  %v8306 = vpack.c.b16 %v8268, %v8267
  %v8307 = vpack.c.b16 %v8270, %v8269
  %v8308 = vpack.c.b16 %v8272, %v8271
  %v8309 = vpack.c.b16 %v8274, %v8273
  %v8310 = vpack.c.b16 %v8276, %v8275
  %v8311 = vpack.c.b16 %v8278, %v8277
  %v8312 = vpack.c.b16 %v8280, %v8279
  %v8313 = vpack.c.b16 %v8282, %v8281
  %v8314 = vpack.c.b16 %v8284, %v8283
  %v8315 = vpack.c.b16 %v8286, %v8285
  %v8316 = vpack.c.b16 %v8288, %v8287
  %v8317 = vpack.c.b16 %v8290, %v8289
  %v8318 = vpack.c.b16 %v8292, %v8291
  %v8319 = vpack.c.b16 %v8294, %v8293
  %v8320 = vpack.c.b16 %v8296, %v8295
  %8345 = vmatprep.subr.bf16.mxu0 0
  %8346 = vmatpush1.bf16.msra.mxu0 %v8297
  %8347 = vmatprep.subr.bf16.mxu0 0
  %8348 = vmatpush1.bf16.msra.mxu0 %v8298
  %8349 = vmatprep.subr.bf16.mxu0 0
  %8350 = vmatpush1.bf16.msra.mxu0 %v8299
  %8351 = vmatprep.subr.bf16.mxu0 0
  %8352 = vmatpush1.bf16.msra.mxu0 %v8300
  %8353 = vmatprep.subr.bf16.mxu0 0
  %8354 = vmatpush1.bf16.msra.mxu0 %v8301
  %8355 = vmatprep.subr.bf16.mxu0 0
  %8356 = vmatpush1.bf16.msra.mxu0 %v8302
  %8357 = vmatprep.subr.bf16.mxu0 0
  %8358 = vmatpush1.bf16.msra.mxu0 %v8303
  %8359 = vmatprep.subr.bf16.mxu0 0
  %8360 = vmatpush1.bf16.msra.mxu0 %v8304
  %8361 = vmatprep.subr.bf16.mxu0 0
  %8362 = vmatpush1.bf16.msra.mxu0 %v8305
  %8363 = vmatprep.subr.bf16.mxu0 0
  %8364 = vmatpush1.bf16.msra.mxu0 %v8306
  %8365 = vmatprep.subr.bf16.mxu0 0
  %8366 = vmatpush1.bf16.msra.mxu0 %v8307
  %8367 = vmatprep.subr.bf16.mxu0 0
  %8368 = vmatpush1.bf16.msra.mxu0 %v8308
  %8369 = vmatprep.subr.bf16.mxu0 0
  %8370 = vmatpush1.bf16.msra.mxu0 %v8309
  %8371 = vmatprep.subr.bf16.mxu0 0
  %8372 = vmatpush1.bf16.msra.mxu0 %v8310
  %8373 = vmatprep.subr.bf16.mxu0 0
  %8374 = vmatpush1.bf16.msra.mxu0 %v8311
  %8375 = vmatprep.subr.bf16.mxu0 0
  %8376 = vmatpush1.bf16.msra.mxu0 %v8312
  %8377 = vmatprep.mubr.bf16.mxu0 %v7840
  %8378 = vmatmul.mubr.bf16.gmra.mrb[0].mxu0 %v7837
  %v8379 = vpop.f32.mrb[0].mxu0
  %v8380 = vadd.f32 0.0, %v8379
  %v8381 = vpop.f32.mrb[0].mxu0
  %v8382 = vpop.f32.mrb[0].mxu0
  %v8383 = vadd.f32 0.0, %v8382
  %v8384 = vpop.f32.mrb[0].mxu0
  %8385 = vmatprep.mubr.bf16.mxu0 %v7847
  %8386 = vmatmul.mubr.bf16.gmra.mrb[0].mxu0 %v7845
  %v8387 = vpop.f32.mrb[0].mxu0
  %v8388 = vadd.f32 0.0, %v8387
  %v8389 = vpop.f32.mrb[0].mxu0
  %v8390 = vpop.f32.mrb[0].mxu0
  %v8391 = vadd.f32 0.0, %v8390
  %v8392 = vpop.f32.mrb[0].mxu0
  %8393 = vmatprep.mubr.bf16.mxu0 %v7853
  %8394 = vmatmul.mubr.bf16.gmra.mrb[0].mxu0 %v7851
  %v8395 = vpop.f32.mrb[0].mxu0
  %v8396 = vadd.f32 0.0, %v8395
  %v8397 = vpop.f32.mrb[0].mxu0
  %v8398 = vpop.f32.mrb[0].mxu0
  %v8399 = vadd.f32 0.0, %v8398
  %v8400 = vpop.f32.mrb[0].mxu0
  %8401 = vmatprep.mubr.bf16.mxu0 %v7859
  %8402 = vmatmul.mubr.bf16.gmra.mrb[0].mxu0 %v7857
  %v8403 = vpop.f32.mrb[0].mxu0
  %v8404 = vadd.f32 0.0, %v8403
  %v8405 = vpop.f32.mrb[0].mxu0
  %v8406 = vpop.f32.mrb[0].mxu0
  %v8407 = vadd.f32 0.0, %v8406
  %v8408 = vpop.f32.mrb[0].mxu0
  %8409 = vmatprep.mubr.bf16.mxu0 %v7865
  %8410 = vmatmul.mubr.bf16.gmra.mrb[0].mxu0 %v7863
  %v8411 = vpop.f32.mrb[0].mxu0
  %v8412 = vadd.f32 0.0, %v8411
  %v8413 = vpop.f32.mrb[0].mxu0
  %v8414 = vpop.f32.mrb[0].mxu0
  %v8415 = vadd.f32 0.0, %v8414
  %v8416 = vpop.f32.mrb[0].mxu0
  %8417 = vmatprep.mubr.bf16.mxu0 %v7871
  %8418 = vmatmul.mubr.bf16.gmra.mrb[0].mxu0 %v7869
  %v8419 = vpop.f32.mrb[0].mxu0
  %v8420 = vadd.f32 0.0, %v8419
  %v8421 = vpop.f32.mrb[0].mxu0
  %v8422 = vpop.f32.mrb[0].mxu0
  %v8423 = vadd.f32 0.0, %v8422
  %v8424 = vpop.f32.mrb[0].mxu0
  %8425 = vmatprep.mubr.bf16.mxu0 %v7877
  %8426 = vmatmul.mubr.bf16.gmra.mrb[0].mxu0 %v7875
  %v8427 = vpop.f32.mrb[0].mxu0
  %v8428 = vadd.f32 0.0, %v8427
  %v8429 = vpop.f32.mrb[0].mxu0
  %v8430 = vpop.f32.mrb[0].mxu0
  %v8431 = vadd.f32 0.0, %v8430
  %v8432 = vpop.f32.mrb[0].mxu0
  %8433 = vmatprep.mubr.bf16.mxu0 %v7883
  %8434 = vmatmul.mubr.bf16.gmra.mrb[0].mxu0 %v7881
  %v8435 = vpop.f32.mrb[0].mxu0
  %v8436 = vadd.f32 0.0, %v8435
  %v8437 = vpop.f32.mrb[0].mxu0
  %v8438 = vpop.f32.mrb[0].mxu0
  %v8439 = vadd.f32 0.0, %v8438
  %v8440 = vpop.f32.mrb[0].mxu0
  %8441 = vmatprep.mubr.bf16.mxu0 %v7889
  %8442 = vmatmul.mubr.bf16.gmra.mrb[0].mxu0 %v7887
  %v8443 = vpop.f32.mrb[0].mxu0
  %v8444 = vadd.f32 0.0, %v8443
  %v8445 = vpop.f32.mrb[0].mxu0
  %v8446 = vpop.f32.mrb[0].mxu0
  %v8447 = vadd.f32 0.0, %v8446
  %v8448 = vpop.f32.mrb[0].mxu0
  %8449 = vmatprep.mubr.bf16.mxu0 %v7895
  %8450 = vmatmul.mubr.bf16.gmra.mrb[0].mxu0 %v7893
  %v8451 = vpop.f32.mrb[0].mxu0
  %v8452 = vadd.f32 0.0, %v8451
  %v8453 = vpop.f32.mrb[0].mxu0
  %v8454 = vpop.f32.mrb[0].mxu0
  %v8455 = vadd.f32 0.0, %v8454
  %v8456 = vpop.f32.mrb[0].mxu0
  %8457 = vmatprep.mubr.bf16.mxu0 %v7901
  %8458 = vmatmul.mubr.bf16.gmra.mrb[0].mxu0 %v7899
  %v8459 = vpop.f32.mrb[0].mxu0
  %v8460 = vadd.f32 0.0, %v8459
  %v8461 = vpop.f32.mrb[0].mxu0
  %v8462 = vpop.f32.mrb[0].mxu0
  %v8463 = vadd.f32 0.0, %v8462
  %v8464 = vpop.f32.mrb[0].mxu0
  %8465 = vmatprep.mubr.bf16.mxu0 %v7907
  %8466 = vmatmul.mubr.bf16.gmra.mrb[0].mxu0 %v7905
  %v8467 = vpop.f32.mrb[0].mxu0
  %v8468 = vadd.f32 0.0, %v8467
  %v8469 = vpop.f32.mrb[0].mxu0
  %v8470 = vpop.f32.mrb[0].mxu0
  %v8471 = vadd.f32 0.0, %v8470
  %v8472 = vpop.f32.mrb[0].mxu0
  %8473 = vmatprep.mubr.bf16.mxu0 %v7913
  %8474 = vmatmul.mubr.bf16.gmra.mrb[0].mxu0 %v7911
  %v8475 = vpop.f32.mrb[0].mxu0
  %v8476 = vadd.f32 0.0, %v8475
  %v8477 = vpop.f32.mrb[0].mxu0
  %v8478 = vpop.f32.mrb[0].mxu0
  %v8479 = vadd.f32 0.0, %v8478
  %v8480 = vpop.f32.mrb[0].mxu0
  %8481 = vmatprep.mubr.bf16.mxu0 %v7919
  %8482 = vmatmul.mubr.bf16.gmra.mrb[0].mxu0 %v7917
  %v8483 = vpop.f32.mrb[0].mxu0
  %v8484 = vadd.f32 0.0, %v8483
  %v8485 = vpop.f32.mrb[0].mxu0
  %v8486 = vpop.f32.mrb[0].mxu0
  %v8487 = vadd.f32 0.0, %v8486
  %v8488 = vpop.f32.mrb[0].mxu0
  %8489 = vmatprep.mubr.bf16.mxu0 %v7925
  %8490 = vmatmul.mubr.bf16.gmra.mrb[0].mxu0 %v7923
  %v8491 = vpop.f32.mrb[0].mxu0
  %v8492 = vadd.f32 0.0, %v8491
  %v8493 = vpop.f32.mrb[0].mxu0
  %v8494 = vpop.f32.mrb[0].mxu0
  %v8495 = vadd.f32 0.0, %v8494
  %v8496 = vpop.f32.mrb[0].mxu0
  %8497 = vmatprep.mubr.bf16.mxu0 %v7931
  %8498 = vmatmul.mubr.bf16.gmra.mrb[0].mxu0 %v7929
  %v8499 = vpop.f32.mrb[0].mxu0
  %v8500 = vadd.f32 0.0, %v8499
  %v8501 = vpop.f32.mrb[0].mxu0
  %v8502 = vpop.f32.mrb[0].mxu0
  %v8503 = vadd.f32 0.0, %v8502
  %v8504 = vpop.f32.mrb[0].mxu0
  %8505 = vmatprep.mubr.bf16.mxu0 %v7937
  %8506 = vmatmul.mubr.bf16.gmra.mrb[0].mxu0 %v7935
  %v8507 = vpop.f32.mrb[0].mxu0
  %v8508 = vadd.f32 0.0, %v8507
  %v8509 = vpop.f32.mrb[0].mxu0
  %v8510 = vpop.f32.mrb[0].mxu0
  %v8511 = vadd.f32 0.0, %v8510
  %v8512 = vpop.f32.mrb[0].mxu0
  %8513 = vmatprep.mubr.bf16.mxu0 %v7943
  %8514 = vmatmul.mubr.bf16.gmra.mrb[0].mxu0 %v7941
  %v8515 = vpop.f32.mrb[0].mxu0
  %v8516 = vadd.f32 0.0, %v8515
  %v8517 = vpop.f32.mrb[0].mxu0
  %v8518 = vpop.f32.mrb[0].mxu0
  %v8519 = vadd.f32 0.0, %v8518
  %v8520 = vpop.f32.mrb[0].mxu0
  %8521 = vmatprep.mubr.bf16.mxu0 %v7949
  %8522 = vmatmul.mubr.bf16.gmra.mrb[0].mxu0 %v7947
  %v8523 = vpop.f32.mrb[0].mxu0
  %v8524 = vadd.f32 0.0, %v8523
  %v8525 = vpop.f32.mrb[0].mxu0
  %v8526 = vpop.f32.mrb[0].mxu0
  %v8527 = vadd.f32 0.0, %v8526
  %v8528 = vpop.f32.mrb[0].mxu0
  %8529 = vmatprep.mubr.bf16.mxu0 %v7955
  %8530 = vmatmul.mubr.bf16.gmra.mrb[0].mxu0 %v7953
  %v8531 = vpop.f32.mrb[0].mxu0
  %v8532 = vadd.f32 0.0, %v8531
  %v8533 = vpop.f32.mrb[0].mxu0
  %v8534 = vpop.f32.mrb[0].mxu0
  %v8535 = vadd.f32 0.0, %v8534
  %v8536 = vpop.f32.mrb[0].mxu0
  %8537 = vmatprep.mubr.bf16.mxu0 %v7961
  %8538 = vmatmul.mubr.bf16.gmra.mrb[0].mxu0 %v7959
  %v8539 = vpop.f32.mrb[0].mxu0
  %v8540 = vadd.f32 0.0, %v8539
  %v8541 = vpop.f32.mrb[0].mxu0
  %v8542 = vpop.f32.mrb[0].mxu0
  %v8543 = vadd.f32 0.0, %v8542
  %v8544 = vpop.f32.mrb[0].mxu0
  %8545 = vmatprep.mubr.bf16.mxu0 %v7967
  %8546 = vmatmul.mubr.bf16.gmra.mrb[0].mxu0 %v7965
  %v8547 = vpop.f32.mrb[0].mxu0
  %v8548 = vadd.f32 0.0, %v8547
  %v8549 = vpop.f32.mrb[0].mxu0
  %v8550 = vpop.f32.mrb[0].mxu0
  %v8551 = vadd.f32 0.0, %v8550
  %v8552 = vpop.f32.mrb[0].mxu0
  %8553 = vmatprep.mubr.bf16.mxu0 %v7973
  %8554 = vmatmul.mubr.bf16.gmra.mrb[0].mxu0 %v7971
  %v8555 = vpop.f32.mrb[0].mxu0
  %v8556 = vadd.f32 0.0, %v8555
  %v8557 = vpop.f32.mrb[0].mxu0
  %v8558 = vpop.f32.mrb[0].mxu0
  %v8559 = vadd.f32 0.0, %v8558
  %v8560 = vpop.f32.mrb[0].mxu0
  %8561 = vmatprep.mubr.bf16.mxu0 %v7979
  %8562 = vmatmul.mubr.bf16.gmra.mrb[0].mxu0 %v7977
  %v8563 = vpop.f32.mrb[0].mxu0
  %v8564 = vadd.f32 0.0, %v8563
  %v8565 = vpop.f32.mrb[0].mxu0
  %v8566 = vpop.f32.mrb[0].mxu0
  %v8567 = vadd.f32 0.0, %v8566
  %v8568 = vpop.f32.mrb[0].mxu0
  %8569 = vmatprep.mubr.bf16.mxu0 %v7985
  %8570 = vmatmul.mubr.bf16.gmra.mrb[0].mxu0 %v7983
  %v8571 = vpop.f32.mrb[0].mxu0
  %v8572 = vadd.f32 0.0, %v8571
  %v8573 = vpop.f32.mrb[0].mxu0
  %v8574 = vpop.f32.mrb[0].mxu0
  %v8575 = vadd.f32 0.0, %v8574
  %v8576 = vpop.f32.mrb[0].mxu0
  %8577 = vmatprep.mubr.bf16.mxu0 %v7991
  %8578 = vmatmul.mubr.bf16.gmra.mrb[0].mxu0 %v7989
  %v8579 = vpop.f32.mrb[0].mxu0
  %v8580 = vadd.f32 0.0, %v8579
  %v8581 = vpop.f32.mrb[0].mxu0
  %v8582 = vpop.f32.mrb[0].mxu0
  %v8583 = vadd.f32 0.0, %v8582
  %v8584 = vpop.f32.mrb[0].mxu0
  %8585 = vmatprep.mubr.bf16.mxu0 %v7997
  %8586 = vmatmul.mubr.bf16.gmra.mrb[0].mxu0 %v7995
  %v8587 = vpop.f32.mrb[0].mxu0
  %v8588 = vadd.f32 0.0, %v8587
  %v8589 = vpop.f32.mrb[0].mxu0
  %v8590 = vpop.f32.mrb[0].mxu0
  %v8591 = vadd.f32 0.0, %v8590
  %v8592 = vpop.f32.mrb[0].mxu0
  %8593 = vmatprep.mubr.bf16.mxu0 %v8003
  %8594 = vmatmul.mubr.bf16.gmra.mrb[0].mxu0 %v8001
  %v8595 = vpop.f32.mrb[0].mxu0
  %v8596 = vadd.f32 0.0, %v8595
  %v8597 = vpop.f32.mrb[0].mxu0
  %v8598 = vpop.f32.mrb[0].mxu0
  %v8599 = vadd.f32 0.0, %v8598
  %v8600 = vpop.f32.mrb[0].mxu0
  %8601 = vmatprep.mubr.bf16.mxu0 %v8009
  %8602 = vmatmul.mubr.bf16.gmra.mrb[0].mxu0 %v8007
  %v8603 = vpop.f32.mrb[0].mxu0
  %v8604 = vadd.f32 0.0, %v8603
  %v8605 = vpop.f32.mrb[0].mxu0
  %v8606 = vpop.f32.mrb[0].mxu0
  %v8607 = vadd.f32 0.0, %v8606
  %v8608 = vpop.f32.mrb[0].mxu0
  %8609 = vmatprep.mubr.bf16.mxu0 %v8015
  %8610 = vmatmul.mubr.bf16.gmra.mrb[0].mxu0 %v8013
  %v8611 = vpop.f32.mrb[0].mxu0
  %v8612 = vadd.f32 0.0, %v8611
  %v8613 = vpop.f32.mrb[0].mxu0
  %v8614 = vpop.f32.mrb[0].mxu0
  %v8615 = vadd.f32 0.0, %v8614
  %v8616 = vpop.f32.mrb[0].mxu0
  %8617 = vmatprep.mubr.bf16.mxu0 %v8021
  %8618 = vmatmul.mubr.bf16.gmra.mrb[0].mxu0 %v8019
  %v8619 = vpop.f32.mrb[0].mxu0
  %v8620 = vadd.f32 0.0, %v8619
  %v8621 = vpop.f32.mrb[0].mxu0
  %v8622 = vpop.f32.mrb[0].mxu0
  %v8623 = vadd.f32 0.0, %v8622
  %v8624 = vpop.f32.mrb[0].mxu0
  %8625 = vmatprep.mubr.bf16.mxu0 %v8027
  %8626 = vmatmul.mubr.bf16.gmra.mrb[0].mxu0 %v8025
  %v8627 = vpop.f32.mrb[0].mxu0
  %v8628 = vadd.f32 0.0, %v8627
  %v8629 = vpop.f32.mrb[0].mxu0
  %v8630 = vpop.f32.mrb[0].mxu0
  %v8631 = vadd.f32 0.0, %v8630
  %v8632 = vpop.f32.mrb[0].mxu0
  %8633 = vmatprep.mubr.bf16.mxu0 %v8033
  %8634 = vmatmul.mubr.bf16.gmra.mrb[0].mxu0 %v8031
  %v8635 = vpop.f32.mrb[0].mxu0
  %v8636 = vadd.f32 0.0, %v8635
  %v8637 = vpop.f32.mrb[0].mxu0
  %v8638 = vpop.f32.mrb[0].mxu0
  %v8639 = vadd.f32 0.0, %v8638
  %v8640 = vpop.f32.mrb[0].mxu0
  %8641 = vmatprep.mubr.bf16.mxu0 %v8039
  %8642 = vmatmul.mubr.bf16.gmra.mrb[0].mxu0 %v8037
  %v8643 = vpop.f32.mrb[0].mxu0
  %v8644 = vadd.f32 0.0, %v8643
  %v8645 = vpop.f32.mrb[0].mxu0
  %v8646 = vpop.f32.mrb[0].mxu0
  %v8647 = vadd.f32 0.0, %v8646
  %v8648 = vpop.f32.mrb[0].mxu0
  %8649 = vmatprep.mubr.bf16.mxu0 %v8045
  %8650 = vmatmul.mubr.bf16.gmra.mrb[0].mxu0 %v8043
  %v8651 = vpop.f32.mrb[0].mxu0
  %v8652 = vadd.f32 0.0, %v8651
  %v8653 = vpop.f32.mrb[0].mxu0
  %v8654 = vpop.f32.mrb[0].mxu0
  %v8655 = vadd.f32 0.0, %v8654
  %v8656 = vpop.f32.mrb[0].mxu0
  %8657 = vmatprep.mubr.bf16.mxu0 %v8051
  %8658 = vmatmul.mubr.bf16.gmra.mrb[0].mxu0 %v8049
  %v8659 = vpop.f32.mrb[0].mxu0
  %v8660 = vadd.f32 0.0, %v8659
  %v8661 = vpop.f32.mrb[0].mxu0
  %v8662 = vpop.f32.mrb[0].mxu0
  %v8663 = vadd.f32 0.0, %v8662
  %v8664 = vpop.f32.mrb[0].mxu0
  %8665 = vmatprep.mubr.bf16.mxu0 %v8057
  %8666 = vmatmul.mubr.bf16.gmra.mrb[0].mxu0 %v8055
  %v8667 = vpop.f32.mrb[0].mxu0
  %v8668 = vadd.f32 0.0, %v8667
  %v8669 = vpop.f32.mrb[0].mxu0
  %v8670 = vpop.f32.mrb[0].mxu0
  %v8671 = vadd.f32 0.0, %v8670
  %v8672 = vpop.f32.mrb[0].mxu0
  %8673 = vmatprep.mubr.bf16.mxu0 %v8063
  %8674 = vmatmul.mubr.bf16.gmra.mrb[0].mxu0 %v8061
  %v8675 = vpop.f32.mrb[0].mxu0
  %v8676 = vadd.f32 0.0, %v8675
  %v8677 = vpop.f32.mrb[0].mxu0
  %v8678 = vpop.f32.mrb[0].mxu0
  %v8679 = vadd.f32 0.0, %v8678
  %v8680 = vpop.f32.mrb[0].mxu0
  %8681 = vmatprep.mubr.bf16.mxu0 %v8069
  %8682 = vmatmul.mubr.bf16.gmra.mrb[0].mxu0 %v8067
  %v8683 = vpop.f32.mrb[0].mxu0
  %v8684 = vadd.f32 0.0, %v8683
  %v8685 = vpop.f32.mrb[0].mxu0
  %v8686 = vpop.f32.mrb[0].mxu0
  %v8687 = vadd.f32 0.0, %v8686
  %v8688 = vpop.f32.mrb[0].mxu0
  %8689 = vmatprep.mubr.bf16.mxu0 %v8075
  %8690 = vmatmul.mubr.bf16.gmra.mrb[0].mxu0 %v8073
  %v8691 = vpop.f32.mrb[0].mxu0
  %v8692 = vadd.f32 0.0, %v8691
  %v8693 = vpop.f32.mrb[0].mxu0
  %v8694 = vpop.f32.mrb[0].mxu0
  %v8695 = vadd.f32 0.0, %v8694
  %v8696 = vpop.f32.mrb[0].mxu0
  %8697 = vmatprep.mubr.bf16.mxu0 %v8074
  %8698 = vmatmul.mubr.bf16.gmra.mrb[0].mxu0 %v8072
  %v8699 = vpop.f32.mrb[0].mxu0
  %v8700 = vadd.f32 0.0, %v8699
  %v8701 = vpop.f32.mrb[0].mxu0
  %v8702 = vpop.f32.mrb[0].mxu0
  %v8703 = vpop.f32.mrb[0].mxu0
  %8704 = vdwg.mxu0
  %8705 = vmatprep.subr.bf16.mxu0 0
  %8706 = vmatpush1.bf16.msra.mxu0 %v8313
  %8707 = vmatprep.subr.bf16.mxu0 0
  %8708 = vmatpush1.bf16.msra.mxu0 %v8314
  %8709 = vmatprep.subr.bf16.mxu0 0
  %8710 = vmatpush1.bf16.msra.mxu0 %v8315
  %8711 = vmatprep.subr.bf16.mxu0 0
  %8712 = vmatpush1.bf16.msra.mxu0 %v8316
  %8713 = vmatprep.subr.bf16.mxu0 0
  %8714 = vmatpush1.bf16.msra.mxu0 %v8317
  %8715 = vmatprep.subr.bf16.mxu0 0
  %8716 = vmatpush1.bf16.msra.mxu0 %v8318
  %8717 = vmatprep.subr.bf16.mxu0 0
  %8718 = vmatpush1.bf16.msra.mxu0 %v8319
  %8719 = vmatprep.subr.bf16.mxu0 0
  %8720 = vmatpush1.bf16.msra.mxu0 %v8320
  %8721 = vmatprep.subr.bf16.mxu0 0
  %8722 = vmatpush1.bf16.msra.mxu0 0
  %8723 = vmatprep.subr.bf16.mxu0 0
  %8724 = vmatpush1.bf16.msra.mxu0 0
  %8725 = vmatprep.subr.bf16.mxu0 0
  %8726 = vmatpush1.bf16.msra.mxu0 0
  %8727 = vmatprep.subr.bf16.mxu0 0
  %8728 = vmatpush1.bf16.msra.mxu0 0
  %8729 = vmatprep.subr.bf16.mxu0 0
  %8730 = vmatpush1.bf16.msra.mxu0 0
  %8731 = vmatprep.subr.bf16.mxu0 0
  %8732 = vmatpush1.bf16.msra.mxu0 0
  %8733 = vmatprep.subr.bf16.mxu0 0
  %8734 = vmatpush1.bf16.msra.mxu0 0
  %8735 = vmatprep.subr.bf16.mxu0 0
  %8736 = vmatpush1.bf16.msra.mxu0 0
  %8737 = vmatprep.mubr.bf16.mxu0 0
  %8738 = vmatmul.mubr.bf16.gmra.mrb[0].mxu0 %v7843
  %v8739 = vpop.f32.mrb[0].mxu0
  %v8740 = vadd.f32 %v8380, %v8739
  %v8741 = vpop.f32.mrb[0].mxu0
  %v8742 = vpop.f32.mrb[0].mxu0
  %v8743 = vadd.f32 %v8383, %v8742
  %v8744 = vpop.f32.mrb[0].mxu0
  %8745 = vmatprep.mubr.bf16.mxu0 0
  %8746 = vmatmul.mubr.bf16.gmra.mrb[0].mxu0 %v7849
  %v8747 = vpop.f32.mrb[0].mxu0
  %v8748 = vadd.f32 %v8388, %v8747
  %v8749 = vpop.f32.mrb[0].mxu0
  %v8750 = vpop.f32.mrb[0].mxu0
  %v8751 = vadd.f32 %v8391, %v8750
  %v8752 = vpop.f32.mrb[0].mxu0
  %8753 = vmatprep.mubr.bf16.mxu0 0
  %8754 = vmatmul.mubr.bf16.gmra.mrb[0].mxu0 %v7855
  %v8755 = vpop.f32.mrb[0].mxu0
  %v8756 = vadd.f32 %v8396, %v8755
  %v8757 = vpop.f32.mrb[0].mxu0
  %v8758 = vpop.f32.mrb[0].mxu0
  %v8759 = vadd.f32 %v8399, %v8758
  %v8760 = vpop.f32.mrb[0].mxu0
  %8761 = vmatprep.mubr.bf16.mxu0 0
  %8762 = vmatmul.mubr.bf16.gmra.mrb[0].mxu0 %v7861
  %v8763 = vpop.f32.mrb[0].mxu0
  %v8764 = vadd.f32 %v8404, %v8763
  %v8765 = vpop.f32.mrb[0].mxu0
  %v8766 = vpop.f32.mrb[0].mxu0
  %v8767 = vadd.f32 %v8407, %v8766
  %v8768 = vpop.f32.mrb[0].mxu0
  %8769 = vmatprep.mubr.bf16.mxu0 0
  %8770 = vmatmul.mubr.bf16.gmra.mrb[0].mxu0 %v7867
  %v8771 = vpop.f32.mrb[0].mxu0
  %v8772 = vadd.f32 %v8412, %v8771
  %v8773 = vpop.f32.mrb[0].mxu0
  %v8774 = vpop.f32.mrb[0].mxu0
  %v8775 = vadd.f32 %v8415, %v8774
  %v8776 = vpop.f32.mrb[0].mxu0
  %8777 = vmatprep.mubr.bf16.mxu0 0
  %8778 = vmatmul.mubr.bf16.gmra.mrb[0].mxu0 %v7873
  %v8779 = vpop.f32.mrb[0].mxu0
  %v8780 = vadd.f32 %v8420, %v8779
  %v8781 = vpop.f32.mrb[0].mxu0
  %v8782 = vpop.f32.mrb[0].mxu0
  %v8783 = vadd.f32 %v8423, %v8782
  %v8784 = vpop.f32.mrb[0].mxu0
  %8785 = vmatprep.mubr.bf16.mxu0 0
  %8786 = vmatmul.mubr.bf16.gmra.mrb[0].mxu0 %v7879
  %v8787 = vpop.f32.mrb[0].mxu0
  %v8788 = vadd.f32 %v8428, %v8787
  %v8789 = vpop.f32.mrb[0].mxu0
  %v8790 = vpop.f32.mrb[0].mxu0
  %v8791 = vadd.f32 %v8431, %v8790
  %v8792 = vpop.f32.mrb[0].mxu0
  %8793 = vmatprep.mubr.bf16.mxu0 0
  %8794 = vmatmul.mubr.bf16.gmra.mrb[0].mxu0 %v7885
  %v8795 = vpop.f32.mrb[0].mxu0
  %v8796 = vadd.f32 %v8436, %v8795
  %v8797 = vpop.f32.mrb[0].mxu0
  %v8798 = vpop.f32.mrb[0].mxu0
  %v8799 = vadd.f32 %v8439, %v8798
  %v8800 = vpop.f32.mrb[0].mxu0
  %8801 = vmatprep.mubr.bf16.mxu0 0
  %8802 = vmatmul.mubr.bf16.gmra.mrb[0].mxu0 %v7891
  %v8803 = vpop.f32.mrb[0].mxu0
  %v8804 = vadd.f32 %v8444, %v8803
  %v8805 = vpop.f32.mrb[0].mxu0
  %v8806 = vpop.f32.mrb[0].mxu0
  %v8807 = vadd.f32 %v8447, %v8806
  %v8808 = vpop.f32.mrb[0].mxu0
  %8809 = vmatprep.mubr.bf16.mxu0 0
  %8810 = vmatmul.mubr.bf16.gmra.mrb[0].mxu0 %v7897
  %v8811 = vpop.f32.mrb[0].mxu0
  %v8812 = vadd.f32 %v8452, %v8811
  %v8813 = vpop.f32.mrb[0].mxu0
  %v8814 = vpop.f32.mrb[0].mxu0
  %v8815 = vadd.f32 %v8455, %v8814
  %v8816 = vpop.f32.mrb[0].mxu0
  %8817 = vmatprep.mubr.bf16.mxu0 0
  %8818 = vmatmul.mubr.bf16.gmra.mrb[0].mxu0 %v7903
  %v8819 = vpop.f32.mrb[0].mxu0
  %v8820 = vadd.f32 %v8460, %v8819
  %v8821 = vpop.f32.mrb[0].mxu0
  %v8822 = vpop.f32.mrb[0].mxu0
  %v8823 = vadd.f32 %v8463, %v8822
  %v8824 = vpop.f32.mrb[0].mxu0
  %8825 = vmatprep.mubr.bf16.mxu0 0
  %8826 = vmatmul.mubr.bf16.gmra.mrb[0].mxu0 %v7909
  %v8827 = vpop.f32.mrb[0].mxu0
  %v8828 = vadd.f32 %v8468, %v8827
  %v8829 = vpop.f32.mrb[0].mxu0
  %v8830 = vpop.f32.mrb[0].mxu0
  %v8831 = vadd.f32 %v8471, %v8830
  %v8832 = vpop.f32.mrb[0].mxu0
  %8833 = vmatprep.mubr.bf16.mxu0 0
  %8834 = vmatmul.mubr.bf16.gmra.mrb[0].mxu0 %v7915
  %v8835 = vpop.f32.mrb[0].mxu0
  %v8836 = vadd.f32 %v8476, %v8835
  %v8837 = vpop.f32.mrb[0].mxu0
  %v8838 = vpop.f32.mrb[0].mxu0
  %v8839 = vadd.f32 %v8479, %v8838
  %v8840 = vpop.f32.mrb[0].mxu0
  %8841 = vmatprep.mubr.bf16.mxu0 0
  %8842 = vmatmul.mubr.bf16.gmra.mrb[0].mxu0 %v7921
  %v8843 = vpop.f32.mrb[0].mxu0
  %v8844 = vadd.f32 %v8484, %v8843
  %v8845 = vpop.f32.mrb[0].mxu0
  %v8846 = vpop.f32.mrb[0].mxu0
  %v8847 = vadd.f32 %v8487, %v8846
  %v8848 = vpop.f32.mrb[0].mxu0
  %8849 = vmatprep.mubr.bf16.mxu0 0
  %8850 = vmatmul.mubr.bf16.gmra.mrb[0].mxu0 %v7927
  %v8851 = vpop.f32.mrb[0].mxu0
  %v8852 = vadd.f32 %v8492, %v8851
  %v8853 = vpop.f32.mrb[0].mxu0
  %v8854 = vpop.f32.mrb[0].mxu0
  %v8855 = vadd.f32 %v8495, %v8854
  %v8856 = vpop.f32.mrb[0].mxu0
  %8857 = vmatprep.mubr.bf16.mxu0 0
  %8858 = vmatmul.mubr.bf16.gmra.mrb[0].mxu0 %v7933
  %v8859 = vpop.f32.mrb[0].mxu0
  %v8860 = vadd.f32 %v8500, %v8859
  %v8861 = vpop.f32.mrb[0].mxu0
  %v8862 = vpop.f32.mrb[0].mxu0
  %v8863 = vadd.f32 %v8503, %v8862
  %v8864 = vpop.f32.mrb[0].mxu0
  %8865 = vmatprep.mubr.bf16.mxu0 0
  %8866 = vmatmul.mubr.bf16.gmra.mrb[0].mxu0 %v7939
  %v8867 = vpop.f32.mrb[0].mxu0
  %v8868 = vadd.f32 %v8508, %v8867
  %v8869 = vpop.f32.mrb[0].mxu0
  %v8870 = vpop.f32.mrb[0].mxu0
  %v8871 = vadd.f32 %v8511, %v8870
  %v8872 = vpop.f32.mrb[0].mxu0
  %8873 = vmatprep.mubr.bf16.mxu0 0
  %8874 = vmatmul.mubr.bf16.gmra.mrb[0].mxu0 %v7945
  %v8875 = vpop.f32.mrb[0].mxu0
  %v8876 = vadd.f32 %v8516, %v8875
  %v8877 = vpop.f32.mrb[0].mxu0
  %v8878 = vpop.f32.mrb[0].mxu0
  %v8879 = vadd.f32 %v8519, %v8878
  %v8880 = vpop.f32.mrb[0].mxu0
  %8881 = vmatprep.mubr.bf16.mxu0 0
  %8882 = vmatmul.mubr.bf16.gmra.mrb[0].mxu0 %v7951
  %v8883 = vpop.f32.mrb[0].mxu0
  %v8884 = vadd.f32 %v8524, %v8883
  %v8885 = vpop.f32.mrb[0].mxu0
  %v8886 = vpop.f32.mrb[0].mxu0
  %v8887 = vadd.f32 %v8527, %v8886
  %v8888 = vpop.f32.mrb[0].mxu0
  %8889 = vmatprep.mubr.bf16.mxu0 0
  %8890 = vmatmul.mubr.bf16.gmra.mrb[0].mxu0 %v7957
  %v8891 = vpop.f32.mrb[0].mxu0
  %v8892 = vadd.f32 %v8532, %v8891
  %v8893 = vpop.f32.mrb[0].mxu0
  %v8894 = vpop.f32.mrb[0].mxu0
  %v8895 = vadd.f32 %v8535, %v8894
  %v8896 = vpop.f32.mrb[0].mxu0
  %8897 = vmatprep.mubr.bf16.mxu0 0
  %8898 = vmatmul.mubr.bf16.gmra.mrb[0].mxu0 %v7963
  %v8899 = vpop.f32.mrb[0].mxu0
  %v8900 = vadd.f32 %v8540, %v8899
  %v8901 = vpop.f32.mrb[0].mxu0
  %v8902 = vpop.f32.mrb[0].mxu0
  %v8903 = vadd.f32 %v8543, %v8902
  %v8904 = vpop.f32.mrb[0].mxu0
  %8905 = vmatprep.mubr.bf16.mxu0 0
  %8906 = vmatmul.mubr.bf16.gmra.mrb[0].mxu0 %v7969
  %v8907 = vpop.f32.mrb[0].mxu0
  %v8908 = vadd.f32 %v8548, %v8907
  %v8909 = vpop.f32.mrb[0].mxu0
  %v8910 = vpop.f32.mrb[0].mxu0
  %v8911 = vadd.f32 %v8551, %v8910
  %v8912 = vpop.f32.mrb[0].mxu0
  %8913 = vmatprep.mubr.bf16.mxu0 0
  %8914 = vmatmul.mubr.bf16.gmra.mrb[0].mxu0 %v7975
  %v8915 = vpop.f32.mrb[0].mxu0
  %v8916 = vadd.f32 %v8556, %v8915
  %v8917 = vpop.f32.mrb[0].mxu0
  %v8918 = vpop.f32.mrb[0].mxu0
  %v8919 = vadd.f32 %v8559, %v8918
  %v8920 = vpop.f32.mrb[0].mxu0
  %8921 = vmatprep.mubr.bf16.mxu0 0
  %8922 = vmatmul.mubr.bf16.gmra.mrb[0].mxu0 %v7981
  %v8923 = vpop.f32.mrb[0].mxu0
  %v8924 = vadd.f32 %v8564, %v8923
  %v8925 = vpop.f32.mrb[0].mxu0
  %v8926 = vpop.f32.mrb[0].mxu0
  %v8927 = vadd.f32 %v8567, %v8926
  %v8928 = vpop.f32.mrb[0].mxu0
  %8929 = vmatprep.mubr.bf16.mxu0 0
  %8930 = vmatmul.mubr.bf16.gmra.mrb[0].mxu0 %v7987
  %v8931 = vpop.f32.mrb[0].mxu0
  %v8932 = vadd.f32 %v8572, %v8931
  %v8933 = vpop.f32.mrb[0].mxu0
  %v8934 = vpop.f32.mrb[0].mxu0
  %v8935 = vadd.f32 %v8575, %v8934
  %v8936 = vpop.f32.mrb[0].mxu0
  %8937 = vmatprep.mubr.bf16.mxu0 0
  %8938 = vmatmul.mubr.bf16.gmra.mrb[0].mxu0 %v7993
  %v8939 = vpop.f32.mrb[0].mxu0
  %v8940 = vadd.f32 %v8580, %v8939
  %v8941 = vpop.f32.mrb[0].mxu0
  %v8942 = vpop.f32.mrb[0].mxu0
  %v8943 = vadd.f32 %v8583, %v8942
  %v8944 = vpop.f32.mrb[0].mxu0
  %8945 = vmatprep.mubr.bf16.mxu0 0
  %8946 = vmatmul.mubr.bf16.gmra.mrb[0].mxu0 %v7999
  %v8947 = vpop.f32.mrb[0].mxu0
  %v8948 = vadd.f32 %v8588, %v8947
  %v8949 = vpop.f32.mrb[0].mxu0
  %v8950 = vpop.f32.mrb[0].mxu0
  %v8951 = vadd.f32 %v8591, %v8950
  %v8952 = vpop.f32.mrb[0].mxu0
  %8953 = vmatprep.mubr.bf16.mxu0 0
  %8954 = vmatmul.mubr.bf16.gmra.mrb[0].mxu0 %v8005
  %v8955 = vpop.f32.mrb[0].mxu0
  %v8956 = vadd.f32 %v8596, %v8955
  %v8957 = vpop.f32.mrb[0].mxu0
  %v8958 = vpop.f32.mrb[0].mxu0
  %v8959 = vadd.f32 %v8599, %v8958
  %v8960 = vpop.f32.mrb[0].mxu0
  %8961 = vmatprep.mubr.bf16.mxu0 0
  %8962 = vmatmul.mubr.bf16.gmra.mrb[0].mxu0 %v8011
  %v8963 = vpop.f32.mrb[0].mxu0
  %v8964 = vadd.f32 %v8604, %v8963
  %v8965 = vpop.f32.mrb[0].mxu0
  %v8966 = vpop.f32.mrb[0].mxu0
  %v8967 = vadd.f32 %v8607, %v8966
  %v8968 = vpop.f32.mrb[0].mxu0
  %8969 = vmatprep.mubr.bf16.mxu0 0
  %8970 = vmatmul.mubr.bf16.gmra.mrb[0].mxu0 %v8017
  %v8971 = vpop.f32.mrb[0].mxu0
  %v8972 = vadd.f32 %v8612, %v8971
  %v8973 = vpop.f32.mrb[0].mxu0
  %v8974 = vpop.f32.mrb[0].mxu0
  %v8975 = vadd.f32 %v8615, %v8974
  %v8976 = vpop.f32.mrb[0].mxu0
  %8977 = vmatprep.mubr.bf16.mxu0 0
  %8978 = vmatmul.mubr.bf16.gmra.mrb[0].mxu0 %v8023
  %v8979 = vpop.f32.mrb[0].mxu0
  %v8980 = vadd.f32 %v8620, %v8979
  %v8981 = vpop.f32.mrb[0].mxu0
  %v8982 = vpop.f32.mrb[0].mxu0
  %v8983 = vadd.f32 %v8623, %v8982
  %v8984 = vpop.f32.mrb[0].mxu0
  %8985 = vmatprep.mubr.bf16.mxu0 0
  %8986 = vmatmul.mubr.bf16.gmra.mrb[0].mxu0 %v8029
  %v8987 = vpop.f32.mrb[0].mxu0
  %v8988 = vadd.f32 %v8628, %v8987
  %v8989 = vpop.f32.mrb[0].mxu0
  %v8990 = vpop.f32.mrb[0].mxu0
  %v8991 = vadd.f32 %v8631, %v8990
  %v8992 = vpop.f32.mrb[0].mxu0
  %8993 = vmatprep.mubr.bf16.mxu0 0
  %8994 = vmatmul.mubr.bf16.gmra.mrb[0].mxu0 %v8035
  %v8995 = vpop.f32.mrb[0].mxu0
  %v8996 = vadd.f32 %v8636, %v8995
  %v8997 = vpop.f32.mrb[0].mxu0
  %v8998 = vpop.f32.mrb[0].mxu0
  %v8999 = vadd.f32 %v8639, %v8998
  %v9000 = vpop.f32.mrb[0].mxu0
  %9001 = vmatprep.mubr.bf16.mxu0 0
  %9002 = vmatmul.mubr.bf16.gmra.mrb[0].mxu0 %v8041
  %v9003 = vpop.f32.mrb[0].mxu0
  %v9004 = vadd.f32 %v8644, %v9003
  %v9005 = vpop.f32.mrb[0].mxu0
  %v9006 = vpop.f32.mrb[0].mxu0
  %v9007 = vadd.f32 %v8647, %v9006
  %v9008 = vpop.f32.mrb[0].mxu0
  %9009 = vmatprep.mubr.bf16.mxu0 0
  %9010 = vmatmul.mubr.bf16.gmra.mrb[0].mxu0 %v8047
  %v9011 = vpop.f32.mrb[0].mxu0
  %v9012 = vadd.f32 %v8652, %v9011
  %v9013 = vpop.f32.mrb[0].mxu0
  %v9014 = vpop.f32.mrb[0].mxu0
  %v9015 = vadd.f32 %v8655, %v9014
  %v9016 = vpop.f32.mrb[0].mxu0
  %9017 = vmatprep.mubr.bf16.mxu0 0
  %9018 = vmatmul.mubr.bf16.gmra.mrb[0].mxu0 %v8053
  %v9019 = vpop.f32.mrb[0].mxu0
  %v9020 = vadd.f32 %v8660, %v9019
  %v9021 = vpop.f32.mrb[0].mxu0
  %v9022 = vpop.f32.mrb[0].mxu0
  %v9023 = vadd.f32 %v8663, %v9022
  %v9024 = vpop.f32.mrb[0].mxu0
  %9025 = vmatprep.mubr.bf16.mxu0 0
  %9026 = vmatmul.mubr.bf16.gmra.mrb[0].mxu0 %v8059
  %v9027 = vpop.f32.mrb[0].mxu0
  %v9028 = vadd.f32 %v8668, %v9027
  %v9029 = vpop.f32.mrb[0].mxu0
  %v9030 = vpop.f32.mrb[0].mxu0
  %v9031 = vadd.f32 %v8671, %v9030
  %v9032 = vpop.f32.mrb[0].mxu0
  %9033 = vmatprep.mubr.bf16.mxu0 0
  %9034 = vmatmul.mubr.bf16.gmra.mrb[0].mxu0 %v8065
  %v9035 = vpop.f32.mrb[0].mxu0
  %v9036 = vadd.f32 %v8676, %v9035
  %v9037 = vpop.f32.mrb[0].mxu0
  %v9038 = vpop.f32.mrb[0].mxu0
  %v9039 = vadd.f32 %v8679, %v9038
  %v9040 = vpop.f32.mrb[0].mxu0
  %9041 = vmatprep.mubr.bf16.mxu0 0
  %9042 = vmatmul.mubr.bf16.gmra.mrb[0].mxu0 %v8071
  %v9043 = vpop.f32.mrb[0].mxu0
  %v9044 = vadd.f32 %v8684, %v9043
  %v9045 = vpop.f32.mrb[0].mxu0
  %v9046 = vpop.f32.mrb[0].mxu0
  %v9047 = vadd.f32 %v8687, %v9046
  %v9048 = vpop.f32.mrb[0].mxu0
  %9049 = vmatprep.mubr.bf16.mxu0 0
  %9050 = vmatmul.mubr.bf16.gmra.mrb[0].mxu0 %v8077
  %v9051 = vpop.f32.mrb[0].mxu0
  %v9052 = vadd.f32 %v8692, %v9051
  %v9053 = vpop.f32.mrb[0].mxu0
  %v9054 = vpop.f32.mrb[0].mxu0
  %v9055 = vadd.f32 %v8695, %v9054
  %v9056 = vpop.f32.mrb[0].mxu0
  %9057 = vmatprep.mubr.bf16.mxu0 0
  %9058 = vmatmul.mubr.bf16.gmra.mrb[0].mxu0 %v8076
  %v9059 = vpop.f32.mrb[0].mxu0
  %v9060 = vadd.f32 %v8700, %v9059
  %v9061 = vpop.f32.mrb[0].mxu0
  %v9062 = vpop.f32.mrb[0].mxu0
  %v9063 = vpop.f32.mrb[0].mxu0
  %9064 = vdwg.mxu0
  %v9065 = vadd.f32 %v7007, %v8740
  %v9066 = vadd.f32 %v7008, %v8743
  %v9067 = vadd.f32 %v7009, %v8748
  %v9068 = vadd.f32 %v7010, %v8751
  %v9069 = vadd.f32 %v7011, %v8756
  %v9070 = vadd.f32 %v7012, %v8759
  %v9071 = vadd.f32 %v7013, %v8764
  %v9072 = vadd.f32 %v7014, %v8767
  %v9073 = vadd.f32 %v7015, %v8772
  %v9074 = vadd.f32 %v7016, %v8775
  %v9075 = vadd.f32 %v7017, %v8780
  %v9076 = vadd.f32 %v7018, %v8783
  %v9077 = vadd.f32 %v7019, %v8788
  %v9078 = vadd.f32 %v7020, %v8791
  %v9079 = vadd.f32 %v7021, %v8796
  %v9080 = vadd.f32 %v7022, %v8799
  %v9081 = vadd.f32 %v7023, %v8804
  %v9082 = vadd.f32 %v7024, %v8807
  %v9083 = vadd.f32 %v7025, %v8812
  %v9084 = vadd.f32 %v7026, %v8815
  %v9085 = vadd.f32 %v7027, %v8820
  %v9086 = vadd.f32 %v7028, %v8823
  %v9087 = vadd.f32 %v7029, %v8828
  %v9088 = vadd.f32 %v7030, %v8831
  %v9089 = vadd.f32 %v7031, %v8836
  %v9090 = vadd.f32 %v7032, %v8839
  %v9091 = vadd.f32 %v7033, %v8844
  %v9092 = vadd.f32 %v7034, %v8847
  %v9093 = vadd.f32 %v7035, %v8852
  %v9094 = vadd.f32 %v7036, %v8855
  %v9095 = vadd.f32 %v7037, %v8860
  %v9096 = vadd.f32 %v7038, %v8863
  %v9097 = vadd.f32 %v7039, %v8868
  %v9098 = vadd.f32 %v7040, %v8871
  %v9099 = vadd.f32 %v7041, %v8876
  %v9100 = vadd.f32 %v7042, %v8879
  %v9101 = vadd.f32 %v7043, %v8884
  %v9102 = vadd.f32 %v7044, %v8887
  %v9103 = vadd.f32 %v7045, %v8892
  %v9104 = vadd.f32 %v7046, %v8895
  %v9105 = vadd.f32 %v7047, %v8900
  %v9106 = vadd.f32 %v7048, %v8903
  %v9107 = vadd.f32 %v7049, %v8908
  %v9108 = vadd.f32 %v7050, %v8911
  %v9109 = vadd.f32 %v7051, %v8916
  %v9110 = vadd.f32 %v7052, %v8919
  %v9111 = vadd.f32 %v7053, %v8924
  %v9112 = vadd.f32 %v7054, %v8927
  %v9113 = vadd.f32 %v7055, %v8932
  %v9114 = vadd.f32 %v7056, %v8935
  %v9115 = vadd.f32 %v7057, %v8940
  %v9116 = vadd.f32 %v7058, %v8943
  %v9117 = vadd.f32 %v7059, %v8948
  %v9118 = vadd.f32 %v7060, %v8951
  %v9119 = vadd.f32 %v7061, %v8956
  %v9120 = vadd.f32 %v7062, %v8959
  %v9121 = vadd.f32 %v7063, %v8964
  %v9122 = vadd.f32 %v7064, %v8967
  %v9123 = vadd.f32 %v7065, %v8972
  %v9124 = vadd.f32 %v7066, %v8975
  %v9125 = vadd.f32 %v7067, %v8980
  %v9126 = vadd.f32 %v7068, %v8983
  %v9127 = vadd.f32 %v7069, %v8988
  %v9128 = vadd.f32 %v7070, %v8991
  %v9129 = vadd.f32 %v7071, %v8996
  %v9130 = vadd.f32 %v7072, %v8999
  %v9131 = vadd.f32 %v7073, %v9004
  %v9132 = vadd.f32 %v7074, %v9007
  %v9133 = vadd.f32 %v7075, %v9012
  %v9134 = vadd.f32 %v7076, %v9015
  %v9135 = vadd.f32 %v7077, %v9020
  %v9136 = vadd.f32 %v7078, %v9023
  %v9137 = vadd.f32 %v7079, %v9028
  %v9138 = vadd.f32 %v7080, %v9031
  %v9139 = vadd.f32 %v7081, %v9036
  %v9140 = vadd.f32 %v7082, %v9039
  %v9141 = vadd.f32 %v7083, %v9044
  %v9142 = vadd.f32 %v7084, %v9047
  %v9143 = vadd.f32 %v7085, %v9052
  %v9144 = vadd.f32 %v7086, %v9055
  %v9145 = vadd.f32 %v7087, %v9060
  %9146 = vst [vmem:[#allocation3] sm:$0xff] %v9065
  %9147 = vst [vmem:[#allocation3 + $0x8] sm:$0xff] %v9066
  %9148 = vst [vmem:[#allocation3 + $0x10] sm:$0xff] %v9067
  %9149 = vst [vmem:[#allocation3 + $0x18] sm:$0xff] %v9068
  %9150 = vst [vmem:[#allocation3 + $0x20] sm:$0xff] %v9069
  %9151 = vst [vmem:[#allocation3 + $0x28] sm:$0xff] %v9070
  %9152 = vst [vmem:[#allocation3 + $0x30] sm:$0xff] %v9071
  %9153 = vst [vmem:[#allocation3 + $0x38] sm:$0xff] %v9072
  %9154 = vst [vmem:[#allocation3 + $0x40] sm:$0xff] %v9073
  %9155 = vst [vmem:[#allocation3 + $0x48] sm:$0xff] %v9074
  %9156 = vst [vmem:[#allocation3 + $0x50] sm:$0xff] %v9075
  %9157 = vst [vmem:[#allocation3 + $0x58] sm:$0xff] %v9076
  %9158 = vst [vmem:[#allocation3 + $0x60] sm:$0xff] %v9077
  %9159 = vst [vmem:[#allocation3 + $0x68] sm:$0xff] %v9078
  %9160 = vst [vmem:[#allocation3 + $0x70] sm:$0xff] %v9079
  %9161 = vst [vmem:[#allocation3 + $0x78] sm:$0xff] %v9080
  %9162 = vst [vmem:[#allocation3 + $0x80] sm:$0xff] %v9081
  %9163 = vst [vmem:[#allocation3 + $0x88] sm:$0xff] %v9082
  %9164 = vst [vmem:[#allocation3 + $0x90] sm:$0xff] %v9083
  %9165 = vst [vmem:[#allocation3 + $0x98] sm:$0xff] %v9084
  %9166 = vst [vmem:[#allocation3 + $0xa0] sm:$0xff] %v9085
  %9167 = vst [vmem:[#allocation3 + $0xa8] sm:$0xff] %v9086
  %9168 = vst [vmem:[#allocation3 + $0xb0] sm:$0xff] %v9087
  %9169 = vst [vmem:[#allocation3 + $0xb8] sm:$0xff] %v9088
  %9170 = vst [vmem:[#allocation3 + $0xc0] sm:$0xff] %v9089
  %9171 = vst [vmem:[#allocation3 + $0xc8] sm:$0xff] %v9090
  %9172 = vst [vmem:[#allocation3 + $0xd0] sm:$0xff] %v9091
  %9173 = vst [vmem:[#allocation3 + $0xd8] sm:$0xff] %v9092
  %9174 = vst [vmem:[#allocation3 + $0xe0] sm:$0xff] %v9093
  %9175 = vst [vmem:[#allocation3 + $0xe8] sm:$0xff] %v9094
  %9176 = vst [vmem:[#allocation3 + $0xf0] sm:$0xff] %v9095
  %9177 = vst [vmem:[#allocation3 + $0xf8] sm:$0xff] %v9096
  %9178 = vst [vmem:[#allocation3 + $0x100] sm:$0xff] %v9097
  %9179 = vst [vmem:[#allocation3 + $0x108] sm:$0xff] %v9098
  %9180 = vst [vmem:[#allocation3 + $0x110] sm:$0xff] %v9099
  %9181 = vst [vmem:[#allocation3 + $0x118] sm:$0xff] %v9100
  %9182 = vst [vmem:[#allocation3 + $0x120] sm:$0xff] %v9101
  %9183 = vst [vmem:[#allocation3 + $0x128] sm:$0xff] %v9102
  %9184 = vst [vmem:[#allocation3 + $0x130] sm:$0xff] %v9103
  %9185 = vst [vmem:[#allocation3 + $0x138] sm:$0xff] %v9104
  %9186 = vst [vmem:[#allocation3 + $0x140] sm:$0xff] %v9105
  %9187 = vst [vmem:[#allocation3 + $0x148] sm:$0xff] %v9106
  %9188 = vst [vmem:[#allocation3 + $0x150] sm:$0xff] %v9107
  %9189 = vst [vmem:[#allocation3 + $0x158] sm:$0xff] %v9108
  %9190 = vst [vmem:[#allocation3 + $0x160] sm:$0xff] %v9109
  %9191 = vst [vmem:[#allocation3 + $0x168] sm:$0xff] %v9110
  %9192 = vst [vmem:[#allocation3 + $0x170] sm:$0xff] %v9111
  %9193 = vst [vmem:[#allocation3 + $0x178] sm:$0xff] %v9112
  %9194 = vst [vmem:[#allocation3 + $0x180] sm:$0xff] %v9113
  %9195 = vst [vmem:[#allocation3 + $0x188] sm:$0xff] %v9114
  %9196 = vst [vmem:[#allocation3 + $0x190] sm:$0xff] %v9115
  %9197 = vst [vmem:[#allocation3 + $0x198] sm:$0xff] %v9116
  %9198 = vst [vmem:[#allocation3 + $0x1a0] sm:$0xff] %v9117
  %9199 = vst [vmem:[#allocation3 + $0x1a8] sm:$0xff] %v9118
  %9200 = vst [vmem:[#allocation3 + $0x1b0] sm:$0xff] %v9119
  %9201 = vst [vmem:[#allocation3 + $0x1b8] sm:$0xff] %v9120
  %9202 = vst [vmem:[#allocation3 + $0x1c0] sm:$0xff] %v9121
  %9203 = vst [vmem:[#allocation3 + $0x1c8] sm:$0xff] %v9122
  %9204 = vst [vmem:[#allocation3 + $0x1d0] sm:$0xff] %v9123
  %9205 = vst [vmem:[#allocation3 + $0x1d8] sm:$0xff] %v9124
  %9206 = vst [vmem:[#allocation3 + $0x1e0] sm:$0xff] %v9125
  %9207 = vst [vmem:[#allocation3 + $0x1e8] sm:$0xff] %v9126
  %9208 = vst [vmem:[#allocation3 + $0x1f0] sm:$0xff] %v9127
  %9209 = vst [vmem:[#allocation3 + $0x1f8] sm:$0xff] %v9128
  %9210 = vst [vmem:[#allocation3 + $0x200] sm:$0xff] %v9129
  %9211 = vst [vmem:[#allocation3 + $0x208] sm:$0xff] %v9130
  %9212 = vst [vmem:[#allocation3 + $0x210] sm:$0xff] %v9131
  %9213 = vst [vmem:[#allocation3 + $0x218] sm:$0xff] %v9132
  %9214 = vst [vmem:[#allocation3 + $0x220] sm:$0xff] %v9133
  %9215 = vst [vmem:[#allocation3 + $0x228] sm:$0xff] %v9134
  %9216 = vst [vmem:[#allocation3 + $0x230] sm:$0xff] %v9135
  %9217 = vst [vmem:[#allocation3 + $0x238] sm:$0xff] %v9136
  %9218 = vst [vmem:[#allocation3 + $0x240] sm:$0xff] %v9137
  %9219 = vst [vmem:[#allocation3 + $0x248] sm:$0xff] %v9138
  %9220 = vst [vmem:[#allocation3 + $0x250] sm:$0xff] %v9139
  %9221 = vst [vmem:[#allocation3 + $0x258] sm:$0xff] %v9140
  %9222 = vst [vmem:[#allocation3 + $0x260] sm:$0xff] %v9141
  %9223 = vst [vmem:[#allocation3 + $0x268] sm:$0xff] %v9142
  %9224 = vst [vmem:[#allocation3 + $0x270] sm:$0xff] %v9143
  %9225 = vst [vmem:[#allocation3 + $0x278] sm:$0xff] %v9144
  %9226 = vst [vmem:[#allocation3 + $0x280] sm:$0xff] %v9145
  %v9227 = vld [vmem:[#allocation3 + $0x13] sm:$0xff]
  %v9228 = vld [vmem:[#allocation3 + $0x1b] sm:$0xff]
  %v9229 = vld [vmem:[#allocation3 + $0x25] sm:$0xff]
  %v9230 = vld [vmem:[#allocation3 + $0x2d] sm:$0xff]
  %v9231 = vld [vmem:[#allocation3 + $0x37] sm:$0xff]
  %v9232 = vld [vmem:[#allocation3 + $0x3f] sm:$0xff]
  %v9233 = vld [vmem:[#allocation3 + $0x49] sm:$0xff]
  %v9234 = vld [vmem:[#allocation3 + $0x51] sm:$0xff]
  %v9235 = vld [vmem:[#allocation3 + $0x5b] sm:$0xff]
  %v9236 = vld [vmem:[#allocation3 + $0x63] sm:$0xff]
  %v9237 = vld [vmem:[#allocation3 + $0x6d] sm:$0xff]
  %v9238 = vld [vmem:[#allocation3 + $0x75] sm:$0xff]
  %v9239 = vld [vmem:[#allocation3 + $0x7f] sm:$0xff]
  %v9240 = vld [vmem:[#allocation3 + $0x87] sm:$0xff]
  %v9241 = vld [vmem:[#allocation3 + $0x91] sm:$0xff]
  %v9242 = vld [vmem:[#allocation3 + $0x99] sm:$0xff]
  %v9243 = vld [vmem:[#allocation3 + $0xa3] sm:$0xff]
  %v9244 = vld [vmem:[#allocation3 + $0xab] sm:$0xff]
  %v9245 = vld [vmem:[#allocation3 + $0xb5] sm:$0xff]
  %v9246 = vld [vmem:[#allocation3 + $0xbd] sm:$0xff]
  %v9247 = vld [vmem:[#allocation3 + $0xc7] sm:$0xff]
  %v9248 = vld [vmem:[#allocation3 + $0xcf] sm:$0xff]
  %v9249 = vld [vmem:[#allocation3 + $0xd9] sm:$0xff]
  %v9250 = vld [vmem:[#allocation3 + $0xe1] sm:$0xff]
  %v9251 = vld [vmem:[#allocation3 + $0xeb] sm:$0xff]
  %v9252 = vld [vmem:[#allocation3 + $0xf3] sm:$0xff]
  %v9253 = vld [vmem:[#allocation3 + $0xfd] sm:$0xff]
  %v9254 = vld [vmem:[#allocation3 + $0x105] sm:$0xff]
  %v9255 = vld [vmem:[#allocation3 + $0x10f] sm:$0xff]
  %v9256 = vld [vmem:[#allocation3 + $0x117] sm:$0xff]
  %v9257 = vld [vmem:[#allocation3 + $0x121] sm:$0xff]
  %v9258 = vld [vmem:[#allocation3 + $0x129] sm:$0xff]
  %v9259 = vld [vmem:[#allocation3 + $0x157] sm:$0xff]
  %v9260 = vld [vmem:[#allocation3 + $0x15f] sm:$0xff]
  %v9261 = vld [vmem:[#allocation3 + $0x169] sm:$0xff]
  %v9262 = vld [vmem:[#allocation3 + $0x171] sm:$0xff]
  %v9263 = vld [vmem:[#allocation3 + $0x17b] sm:$0xff]
  %v9264 = vld [vmem:[#allocation3 + $0x183] sm:$0xff]
  %v9265 = vld [vmem:[#allocation3 + $0x18d] sm:$0xff]
  %v9266 = vld [vmem:[#allocation3 + $0x195] sm:$0xff]
  %v9267 = vld [vmem:[#allocation3 + $0x19f] sm:$0xff]
  %v9268 = vld [vmem:[#allocation3 + $0x1a7] sm:$0xff]
  %v9269 = vld [vmem:[#allocation3 + $0x1b1] sm:$0xff]
  %v9270 = vld [vmem:[#allocation3 + $0x1b9] sm:$0xff]
  %v9271 = vld [vmem:[#allocation3 + $0x1c3] sm:$0xff]
  %v9272 = vld [vmem:[#allocation3 + $0x1cb] sm:$0xff]
  %v9273 = vld [vmem:[#allocation3 + $0x1d5] sm:$0xff]
  %v9274 = vld [vmem:[#allocation3 + $0x1dd] sm:$0xff]
  %v9275 = vld [vmem:[#allocation3 + $0x1e7] sm:$0xff]
  %v9276 = vld [vmem:[#allocation3 + $0x1ef] sm:$0xff]
  %v9277 = vld [vmem:[#allocation3 + $0x1f9] sm:$0xff]
  %v9278 = vld [vmem:[#allocation3 + $0x201] sm:$0xff]
  %v9279 = vld [vmem:[#allocation3 + $0x20b] sm:$0xff]
  %v9280 = vld [vmem:[#allocation3 + $0x213] sm:$0xff]
  %v9281 = vld [vmem:[#allocation3 + $0x21d] sm:$0xff]
  %v9282 = vld [vmem:[#allocation3 + $0x225] sm:$0xff]
  %v9283 = vld [vmem:[#allocation3 + $0x22f] sm:$0xff]
  %v9284 = vld [vmem:[#allocation3 + $0x237] sm:$0xff]
  %v9285 = vld [vmem:[#allocation3 + $0x241] sm:$0xff]
  %v9286 = vld [vmem:[#allocation3 + $0x249] sm:$0xff]
  %v9287 = vld [vmem:[#allocation3 + $0x253] sm:$0xff]
  %v9288 = vld [vmem:[#allocation3 + $0x25b] sm:$0xff]
  %v9289 = vld [vmem:[#allocation3 + $0x265] sm:$0xff]
  %v9290 = vld [vmem:[#allocation3 + $0x26d] sm:$0xff]
  %v9291 = vld [vmem:[%s8] sm:$0x1]
  %v9292 = vld [vmem:[%s9] sm:$0x1]
  %v9293 = vadd.f32 %v9227, %v9228
  %v9294 = vadd.f32 %v9293, %v9229
  %v9295 = vadd.f32 %v9294, %v9230
  %v9296 = vadd.f32 %v9295, %v9231
  %v9297 = vadd.f32 %v9296, %v9232
  %v9298 = vadd.f32 %v9297, %v9233
  %v9299 = vadd.f32 %v9298, %v9234
  %v9300 = vadd.f32 %v9299, %v9235
  %v9301 = vadd.f32 %v9300, %v9236
  %v9302 = vadd.f32 %v9301, %v9237
  %v9303 = vadd.f32 %v9302, %v9238
  %v9304 = vadd.f32 %v9303, %v9239
  %v9305 = vadd.f32 %v9304, %v9240
  %v9306 = vadd.f32 %v9305, %v9241
  %v9307 = vadd.f32 %v9306, %v9242
  %v9308 = vadd.f32 %v9307, %v9243
  %v9309 = vadd.f32 %v9308, %v9244
  %v9310 = vadd.f32 %v9309, %v9245
  %v9311 = vadd.f32 %v9310, %v9246
  %v9312 = vadd.f32 %v9311, %v9247
  %v9313 = vadd.f32 %v9312, %v9248
  %v9314 = vadd.f32 %v9313, %v9249
  %v9315 = vadd.f32 %v9314, %v9250
  %v9316 = vadd.f32 %v9315, %v9251
  %v9317 = vadd.f32 %v9316, %v9252
  %v9318 = vadd.f32 %v9317, %v9253
  %v9319 = vadd.f32 %v9318, %v9254
  %v9320 = vadd.f32 %v9319, %v9255
  %v9321 = vadd.f32 %v9320, %v9256
  %v9322 = vadd.f32 %v9321, %v9257
  %v9323 = vadd.f32 %v9322, %v9258
  %v9324 = vadd.f32 %v9323, %v9259
  %v9325 = vadd.f32 %v9324, %v9260
  %v9326 = vadd.f32 %v9325, %v9261
  %v9327 = vadd.f32 %v9326, %v9262
  %v9328 = vadd.f32 %v9327, %v9263
  %v9329 = vadd.f32 %v9328, %v9264
  %v9330 = vadd.f32 %v9329, %v9265
  %v9331 = vadd.f32 %v9330, %v9266
  %v9332 = vadd.f32 %v9331, %v9267
  %v9333 = vadd.f32 %v9332, %v9268
  %v9334 = vadd.f32 %v9333, %v9269
  %v9335 = vadd.f32 %v9334, %v9270
  %v9336 = vadd.f32 %v9335, %v9271
  %v9337 = vadd.f32 %v9336, %v9272
  %v9338 = vadd.f32 %v9337, %v9273
  %v9339 = vadd.f32 %v9338, %v9274
  %v9340 = vadd.f32 %v9339, %v9275
  %v9341 = vadd.f32 %v9340, %v9276
  %v9342 = vadd.f32 %v9341, %v9277
  %v9343 = vadd.f32 %v9342, %v9278
  %v9344 = vadd.f32 %v9343, %v9279
  %v9345 = vadd.f32 %v9344, %v9280
  %v9346 = vadd.f32 %v9345, %v9281
  %v9347 = vadd.f32 %v9346, %v9282
  %v9348 = vadd.f32 %v9347, %v9283
  %v9349 = vadd.f32 %v9348, %v9284
  %v9350 = vadd.f32 %v9349, %v9285
  %v9351 = vadd.f32 %v9350, %v9286
  %v9352 = vadd.f32 %v9351, %v9287
  %v9353 = vadd.f32 %v9352, %v9288
  %v9354 = vadd.f32 %v9353, %v9289
  %v9355 = vadd.f32 %v9354, %v9290
  %v9356 = vrot.slane %v9355, 4
  %v9357 = vadd.f32 %v9355, %v9356
  %v9358 = vrot.slane %v9357, 2
  %v9359 = vadd.f32 %v9357, %v9358
  %v9360 = vrot.slane %v9359, 1
  %v9361 = vadd.f32 %v9359, %v9360
  %v9362 = vmul.f32 %v9227, %v9227
  %v9363 = vmul.f32 %v9228, %v9228
  %v9364 = vmul.f32 %v9229, %v9229
  %v9365 = vmul.f32 %v9230, %v9230
  %v9366 = vmul.f32 %v9231, %v9231
  %v9367 = vmul.f32 %v9232, %v9232
  %v9368 = vmul.f32 %v9233, %v9233
  %v9369 = vmul.f32 %v9234, %v9234
  %v9370 = vmul.f32 %v9235, %v9235
  %v9371 = vmul.f32 %v9236, %v9236
  %v9372 = vmul.f32 %v9237, %v9237
  %v9373 = vmul.f32 %v9238, %v9238
  %v9374 = vmul.f32 %v9239, %v9239
  %v9375 = vmul.f32 %v9240, %v9240
  %v9376 = vmul.f32 %v9241, %v9241
  %v9377 = vmul.f32 %v9242, %v9242
  %v9378 = vmul.f32 %v9243, %v9243
  %v9379 = vmul.f32 %v9244, %v9244
  %v9380 = vmul.f32 %v9245, %v9245
  %v9381 = vmul.f32 %v9246, %v9246
  %v9382 = vmul.f32 %v9247, %v9247
  %v9383 = vmul.f32 %v9248, %v9248
  %v9384 = vmul.f32 %v9249, %v9249
  %v9385 = vmul.f32 %v9250, %v9250
  %v9386 = vmul.f32 %v9251, %v9251
  %v9387 = vmul.f32 %v9252, %v9252
  %v9388 = vmul.f32 %v9253, %v9253
  %v9389 = vmul.f32 %v9254, %v9254
  %v9390 = vmul.f32 %v9255, %v9255
  %v9391 = vmul.f32 %v9256, %v9256
  %v9392 = vmul.f32 %v9257, %v9257
  %v9393 = vmul.f32 %v9258, %v9258
  %v9394 = vmul.f32 %v9259, %v9259
  %v9395 = vmul.f32 %v9260, %v9260
  %v9396 = vmul.f32 %v9261, %v9261
  %v9397 = vmul.f32 %v9262, %v9262
  %v9398 = vmul.f32 %v9263, %v9263
  %v9399 = vmul.f32 %v9264, %v9264
  %v9400 = vmul.f32 %v9265, %v9265
  %v9401 = vmul.f32 %v9266, %v9266
  %v9402 = vmul.f32 %v9267, %v9267
  %v9403 = vmul.f32 %v9268, %v9268
  %v9404 = vmul.f32 %v9269, %v9269
  %v9405 = vmul.f32 %v9270, %v9270
  %v9406 = vmul.f32 %v9271, %v9271
  %v9407 = vmul.f32 %v9272, %v9272
  %v9408 = vmul.f32 %v9273, %v9273
  %v9409 = vmul.f32 %v9274, %v9274
  %v9410 = vmul.f32 %v9275, %v9275
  %v9411 = vmul.f32 %v9276, %v9276
  %v9412 = vmul.f32 %v9277, %v9277
  %v9413 = vmul.f32 %v9278, %v9278
  %v9414 = vmul.f32 %v9279, %v9279
  %v9415 = vmul.f32 %v9280, %v9280
  %v9416 = vmul.f32 %v9281, %v9281
  %v9417 = vmul.f32 %v9282, %v9282
  %v9418 = vmul.f32 %v9283, %v9283
  %v9419 = vmul.f32 %v9284, %v9284
  %v9420 = vmul.f32 %v9285, %v9285
  %v9421 = vmul.f32 %v9286, %v9286
  %v9422 = vmul.f32 %v9287, %v9287
  %v9423 = vmul.f32 %v9288, %v9288
  %v9424 = vmul.f32 %v9289, %v9289
  %v9425 = vmul.f32 %v9290, %v9290
  %v9426 = vadd.f32 %v9362, %v9363
  %v9427 = vadd.f32 %v9426, %v9364
  %v9428 = vadd.f32 %v9427, %v9365
  %v9429 = vadd.f32 %v9428, %v9366
  %v9430 = vadd.f32 %v9429, %v9367
  %v9431 = vadd.f32 %v9430, %v9368
  %v9432 = vadd.f32 %v9431, %v9369
  %v9433 = vadd.f32 %v9432, %v9370
  %v9434 = vadd.f32 %v9433, %v9371
  %v9435 = vadd.f32 %v9434, %v9372
  %v9436 = vadd.f32 %v9435, %v9373
  %v9437 = vadd.f32 %v9436, %v9374
  %v9438 = vadd.f32 %v9437, %v9375
  %v9439 = vadd.f32 %v9438, %v9376
  %v9440 = vadd.f32 %v9439, %v9377
  %v9441 = vadd.f32 %v9440, %v9378
  %v9442 = vadd.f32 %v9441, %v9379
  %v9443 = vadd.f32 %v9442, %v9380
  %v9444 = vadd.f32 %v9443, %v9381
  %v9445 = vadd.f32 %v9444, %v9382
  %v9446 = vadd.f32 %v9445, %v9383
  %v9447 = vadd.f32 %v9446, %v9384
  %v9448 = vadd.f32 %v9447, %v9385
  %v9449 = vadd.f32 %v9448, %v9386
  %v9450 = vadd.f32 %v9449, %v9387
  %v9451 = vadd.f32 %v9450, %v9388
  %v9452 = vadd.f32 %v9451, %v9389
  %v9453 = vadd.f32 %v9452, %v9390
  %v9454 = vadd.f32 %v9453, %v9391
  %v9455 = vadd.f32 %v9454, %v9392
  %v9456 = vadd.f32 %v9455, %v9393
  %v9457 = vadd.f32 %v9456, %v9394
  %v9458 = vadd.f32 %v9457, %v9395
  %v9459 = vadd.f32 %v9458, %v9396
  %v9460 = vadd.f32 %v9459, %v9397
  %v9461 = vadd.f32 %v9460, %v9398
  %v9462 = vadd.f32 %v9461, %v9399
  %v9463 = vadd.f32 %v9462, %v9400
  %v9464 = vadd.f32 %v9463, %v9401
  %v9465 = vadd.f32 %v9464, %v9402
  %v9466 = vadd.f32 %v9465, %v9403
  %v9467 = vadd.f32 %v9466, %v9404
  %v9468 = vadd.f32 %v9467, %v9405
  %v9469 = vadd.f32 %v9468, %v9406
  %v9470 = vadd.f32 %v9469, %v9407
  %v9471 = vadd.f32 %v9470, %v9408
  %v9472 = vadd.f32 %v9471, %v9409
  %v9473 = vadd.f32 %v9472, %v9410
  %v9474 = vadd.f32 %v9473, %v9411
  %v9475 = vadd.f32 %v9474, %v9412
  %v9476 = vadd.f32 %v9475, %v9413
  %v9477 = vadd.f32 %v9476, %v9414
  %v9478 = vadd.f32 %v9477, %v9415
  %v9479 = vadd.f32 %v9478, %v9416
  %v9480 = vadd.f32 %v9479, %v9417
  %v9481 = vadd.f32 %v9480, %v9418
  %v9482 = vadd.f32 %v9481, %v9419
  %v9483 = vadd.f32 %v9482, %v9420
  %v9484 = vadd.f32 %v9483, %v9421
  %v9485 = vadd.f32 %v9484, %v9422
  %v9486 = vadd.f32 %v9485, %v9423
  %v9487 = vadd.f32 %v9486, %v9424
  %v9488 = vadd.f32 %v9487, %v9425
  %v9489 = vrot.slane %v9488, 4
  %v9490 = vadd.f32 %v9488, %v9489
  %v9491 = vrot.slane %v9490, 2
  %v9492 = vadd.f32 %v9490, %v9491
  %v9493 = vrot.slane %v9492, 1
  %v9494 = vadd.f32 %v9492, %v9493
  %v9495 = vmul.f32 %v9361, 0.001953125
  %v9496 = vmul.f32 %v9494, 0.001953125
  %v9497 = vmul.f32 %v9495, %v9495
  %v9498 = vsub.f32 %v9496, %v9497
  %v9499 = vadd.f32 %v9498, 1e-05
  %v9500 = vrsqrt.pop %v9499
  %v9501 = vmul.f32 %v9291, %v9500
  %v9502 = vmul.f32 %v9495, %v9501
  %v9503 = vsub.f32 %v9292, %v9502
  %v9505 = vlaneseq
  %v9506 = vshrl.u32 %v9505, 7
  %v9507 = vsub.s32 0, %v9506
  %v9508 = vrot.slane %v9501, %v9507
  %v9510 = vmul.f32 %v9227, %v9508
  %v9511 = vmul.f32 %v9228, %v9508
  %v9512 = vmul.f32 %v9229, %v9508
  %v9513 = vmul.f32 %v9230, %v9508
  %v9514 = vmul.f32 %v9231, %v9508
  %v9515 = vmul.f32 %v9232, %v9508
  %v9516 = vmul.f32 %v9233, %v9508
  %v9517 = vmul.f32 %v9234, %v9508
  %v9518 = vmul.f32 %v9235, %v9508
  %v9519 = vmul.f32 %v9236, %v9508
  %v9520 = vmul.f32 %v9237, %v9508
  %v9521 = vmul.f32 %v9238, %v9508
  %v9522 = vmul.f32 %v9239, %v9508
  %v9523 = vmul.f32 %v9240, %v9508
  %v9524 = vmul.f32 %v9241, %v9508
  %v9525 = vmul.f32 %v9242, %v9508
  %v9526 = vmul.f32 %v9243, %v9508
  %v9527 = vmul.f32 %v9244, %v9508
  %v9528 = vmul.f32 %v9245, %v9508
  %v9529 = vmul.f32 %v9246, %v9508
  %v9530 = vmul.f32 %v9247, %v9508
  %v9531 = vmul.f32 %v9248, %v9508
  %v9532 = vmul.f32 %v9249, %v9508
  %v9533 = vmul.f32 %v9250, %v9508
  %v9534 = vmul.f32 %v9251, %v9508
  %v9535 = vmul.f32 %v9252, %v9508
  %v9536 = vmul.f32 %v9253, %v9508
  %v9537 = vmul.f32 %v9254, %v9508
  %v9538 = vmul.f32 %v9255, %v9508
  %v9539 = vmul.f32 %v9256, %v9508
  %v9540 = vmul.f32 %v9257, %v9508
  %v9541 = vmul.f32 %v9258, %v9508
  %v9542 = vmul.f32 %v9259, %v9508
  %v9543 = vmul.f32 %v9260, %v9508
  %v9544 = vmul.f32 %v9261, %v9508
  %v9545 = vmul.f32 %v9262, %v9508
  %v9546 = vmul.f32 %v9263, %v9508
  %v9547 = vmul.f32 %v9264, %v9508
  %v9548 = vmul.f32 %v9265, %v9508
  %v9549 = vmul.f32 %v9266, %v9508
  %v9550 = vmul.f32 %v9267, %v9508
  %v9551 = vmul.f32 %v9268, %v9508
  %v9552 = vmul.f32 %v9269, %v9508
  %v9553 = vmul.f32 %v9270, %v9508
  %v9554 = vmul.f32 %v9271, %v9508
  %v9555 = vmul.f32 %v9272, %v9508
  %v9556 = vmul.f32 %v9273, %v9508
  %v9557 = vmul.f32 %v9274, %v9508
  %v9558 = vmul.f32 %v9275, %v9508
  %v9559 = vmul.f32 %v9276, %v9508
  %v9560 = vmul.f32 %v9277, %v9508
  %v9561 = vmul.f32 %v9278, %v9508
  %v9562 = vmul.f32 %v9279, %v9508
  %v9563 = vmul.f32 %v9280, %v9508
  %v9564 = vmul.f32 %v9281, %v9508
  %v9565 = vmul.f32 %v9282, %v9508
  %v9566 = vmul.f32 %v9283, %v9508
  %v9567 = vmul.f32 %v9284, %v9508
  %v9568 = vmul.f32 %v9285, %v9508
  %v9569 = vmul.f32 %v9286, %v9508
  %v9570 = vmul.f32 %v9287, %v9508
  %v9571 = vmul.f32 %v9288, %v9508
  %v9572 = vmul.f32 %v9289, %v9508
  %v9573 = vmul.f32 %v9290, %v9508
  %v9575 = vlaneseq
  %v9576 = vshrl.u32 %v9575, 7
  %v9577 = vsub.s32 0, %v9576
  %v9578 = vrot.slane %v9503, %v9577
  %v9580 = vadd.f32 %v9510, %v9578
  %v9581 = vadd.f32 %v9511, %v9578
  %v9582 = vadd.f32 %v9512, %v9578
  %v9583 = vadd.f32 %v9513, %v9578
  %v9584 = vadd.f32 %v9514, %v9578
  %v9585 = vadd.f32 %v9515, %v9578
  %v9586 = vadd.f32 %v9516, %v9578
  %v9587 = vadd.f32 %v9517, %v9578
  %v9588 = vadd.f32 %v9518, %v9578
  %v9589 = vadd.f32 %v9519, %v9578
  %v9590 = vadd.f32 %v9520, %v9578
  %v9591 = vadd.f32 %v9521, %v9578
  %v9592 = vadd.f32 %v9522, %v9578
  %v9593 = vadd.f32 %v9523, %v9578
  %v9594 = vadd.f32 %v9524, %v9578
  %v9595 = vadd.f32 %v9525, %v9578
  %v9596 = vadd.f32 %v9526, %v9578
  %v9597 = vadd.f32 %v9527, %v9578
  %v9598 = vadd.f32 %v9528, %v9578
  %v9599 = vadd.f32 %v9529, %v9578
  %v9600 = vadd.f32 %v9530, %v9578
  %v9601 = vadd.f32 %v9531, %v9578
  %v9602 = vadd.f32 %v9532, %v9578
  %v9603 = vadd.f32 %v9533, %v9578
  %v9604 = vadd.f32 %v9534, %v9578
  %v9605 = vadd.f32 %v9535, %v9578
  %v9606 = vadd.f32 %v9536, %v9578
  %v9607 = vadd.f32 %v9537, %v9578
  %v9608 = vadd.f32 %v9538, %v9578
  %v9609 = vadd.f32 %v9539, %v9578
  %v9610 = vadd.f32 %v9540, %v9578
  %v9611 = vadd.f32 %v9541, %v9578
  %v9612 = vadd.f32 %v9542, %v9578
  %v9613 = vadd.f32 %v9543, %v9578
  %v9614 = vadd.f32 %v9544, %v9578
  %v9615 = vadd.f32 %v9545, %v9578
  %v9616 = vadd.f32 %v9546, %v9578
  %v9617 = vadd.f32 %v9547, %v9578
  %v9618 = vadd.f32 %v9548, %v9578
  %v9619 = vadd.f32 %v9549, %v9578
  %v9620 = vadd.f32 %v9550, %v9578
  %v9621 = vadd.f32 %v9551, %v9578
  %v9622 = vadd.f32 %v9552, %v9578
  %v9623 = vadd.f32 %v9553, %v9578
  %v9624 = vadd.f32 %v9554, %v9578
  %v9625 = vadd.f32 %v9555, %v9578
  %v9626 = vadd.f32 %v9556, %v9578
  %v9627 = vadd.f32 %v9557, %v9578
  %v9628 = vadd.f32 %v9558, %v9578
  %v9629 = vadd.f32 %v9559, %v9578
  %v9630 = vadd.f32 %v9560, %v9578
  %v9631 = vadd.f32 %v9561, %v9578
  %v9632 = vadd.f32 %v9562, %v9578
  %v9633 = vadd.f32 %v9563, %v9578
  %v9634 = vadd.f32 %v9564, %v9578
  %v9635 = vadd.f32 %v9565, %v9578
  %v9636 = vadd.f32 %v9566, %v9578
  %v9637 = vadd.f32 %v9567, %v9578
  %v9638 = vadd.f32 %v9568, %v9578
  %v9639 = vadd.f32 %v9569, %v9578
  %v9640 = vadd.f32 %v9570, %v9578
  %v9641 = vadd.f32 %v9571, %v9578
  %v9642 = vadd.f32 %v9572, %v9578
  %v9643 = vadd.f32 %v9573, %v9578
  %v9644 = vmax.f32 %v9580, 0.0
  %v9645 = vmax.f32 %v9581, 0.0
  %v9646 = vmax.f32 %v9582, 0.0
  %v9647 = vmax.f32 %v9583, 0.0
  %v9648 = vmax.f32 %v9584, 0.0
  %v9649 = vmax.f32 %v9585, 0.0
  %v9650 = vmax.f32 %v9586, 0.0
  %v9651 = vmax.f32 %v9587, 0.0
  %v9652 = vmax.f32 %v9588, 0.0
  %v9653 = vmax.f32 %v9589, 0.0
  %v9654 = vmax.f32 %v9590, 0.0
  %v9655 = vmax.f32 %v9591, 0.0
  %v9656 = vmax.f32 %v9592, 0.0
  %v9657 = vmax.f32 %v9593, 0.0
  %v9658 = vmax.f32 %v9594, 0.0
  %v9659 = vmax.f32 %v9595, 0.0
  %v9660 = vmax.f32 %v9596, 0.0
  %v9661 = vmax.f32 %v9597, 0.0
  %v9662 = vmax.f32 %v9598, 0.0
  %v9663 = vmax.f32 %v9599, 0.0
  %v9664 = vmax.f32 %v9600, 0.0
  %v9665 = vmax.f32 %v9601, 0.0
  %v9666 = vmax.f32 %v9602, 0.0
  %v9667 = vmax.f32 %v9603, 0.0
  %v9668 = vmax.f32 %v9604, 0.0
  %v9669 = vmax.f32 %v9605, 0.0
  %v9670 = vmax.f32 %v9606, 0.0
  %v9671 = vmax.f32 %v9607, 0.0
  %v9672 = vmax.f32 %v9608, 0.0
  %v9673 = vmax.f32 %v9609, 0.0
  %v9674 = vmax.f32 %v9610, 0.0
  %v9675 = vmax.f32 %v9611, 0.0
  %v9676 = vmax.f32 %v9612, 0.0
  %v9677 = vmax.f32 %v9613, 0.0
  %v9678 = vmax.f32 %v9614, 0.0
  %v9679 = vmax.f32 %v9615, 0.0
  %v9680 = vmax.f32 %v9616, 0.0
  %v9681 = vmax.f32 %v9617, 0.0
  %v9682 = vmax.f32 %v9618, 0.0
  %v9683 = vmax.f32 %v9619, 0.0
  %v9684 = vmax.f32 %v9620, 0.0
  %v9685 = vmax.f32 %v9621, 0.0
  %v9686 = vmax.f32 %v9622, 0.0
  %v9687 = vmax.f32 %v9623, 0.0
  %v9688 = vmax.f32 %v9624, 0.0
  %v9689 = vmax.f32 %v9625, 0.0
  %v9690 = vmax.f32 %v9626, 0.0
  %v9691 = vmax.f32 %v9627, 0.0
  %v9692 = vmax.f32 %v9628, 0.0
  %v9693 = vmax.f32 %v9629, 0.0
  %v9694 = vmax.f32 %v9630, 0.0
  %v9695 = vmax.f32 %v9631, 0.0
  %v9696 = vmax.f32 %v9632, 0.0
  %v9697 = vmax.f32 %v9633, 0.0
  %v9698 = vmax.f32 %v9634, 0.0
  %v9699 = vmax.f32 %v9635, 0.0
  %v9700 = vmax.f32 %v9636, 0.0
  %v9701 = vmax.f32 %v9637, 0.0
  %v9702 = vmax.f32 %v9638, 0.0
  %v9703 = vmax.f32 %v9639, 0.0
  %v9704 = vmax.f32 %v9640, 0.0
  %v9705 = vmax.f32 %v9641, 0.0
  %v9706 = vmax.f32 %v9642, 0.0
  %v9707 = vmax.f32 %v9643, 0.0
  %v9708 = vpack.c.bf16 %v9645, %v9644
  %v9709 = vpack.c.bf16 %v9647, %v9646
  %v9710 = vpack.c.bf16 %v9649, %v9648
  %v9711 = vpack.c.bf16 %v9651, %v9650
  %v9712 = vpack.c.bf16 %v9653, %v9652
  %v9713 = vpack.c.bf16 %v9655, %v9654
  %v9714 = vpack.c.bf16 %v9657, %v9656
  %v9715 = vpack.c.bf16 %v9659, %v9658
  %v9716 = vpack.c.bf16 %v9661, %v9660
  %v9717 = vpack.c.bf16 %v9663, %v9662
  %v9718 = vpack.c.bf16 %v9665, %v9664
  %v9719 = vpack.c.bf16 %v9667, %v9666
  %v9720 = vpack.c.bf16 %v9669, %v9668
  %v9721 = vpack.c.bf16 %v9671, %v9670
  %v9722 = vpack.c.bf16 %v9673, %v9672
  %v9723 = vpack.c.bf16 %v9675, %v9674
  %v9724 = vpack.c.bf16 %v9677, %v9676
  %v9725 = vpack.c.bf16 %v9679, %v9678
  %v9726 = vpack.c.bf16 %v9681, %v9680
  %v9727 = vpack.c.bf16 %v9683, %v9682
  %v9728 = vpack.c.bf16 %v9685, %v9684
  %v9729 = vpack.c.bf16 %v9687, %v9686
  %v9730 = vpack.c.bf16 %v9689, %v9688
  %v9731 = vpack.c.bf16 %v9691, %v9690
  %v9732 = vpack.c.bf16 %v9693, %v9692
  %v9733 = vpack.c.bf16 %v9695, %v9694
  %v9734 = vpack.c.bf16 %v9697, %v9696
  %v9735 = vpack.c.bf16 %v9699, %v9698
  %v9736 = vpack.c.bf16 %v9701, %v9700
  %v9737 = vpack.c.bf16 %v9703, %v9702
  %v9738 = vpack.c.bf16 %v9705, %v9704
  %v9739 = vpack.c.bf16 %v9707, %v9706
  %v9740 = vld [vmem:[%s4] sm:$0xf]
  %v9741 = vld [vmem:[%s4 + $0x4] sm:$0xf]
  %v9742 = vld [vmem:[%s4 + $0x8] sm:$0xf]
  %v9743 = vld [vmem:[%s4 + $0xc] sm:$0xf]
  %v9744 = vld [vmem:[%s4 + $0x10] sm:$0xf]
  %v9745 = vld [vmem:[%s4 + $0x14] sm:$0xf]
  %v9746 = vld [vmem:[%s4 + $0x18] sm:$0xf]
  %v9747 = vld [vmem:[%s4 + $0x1c] sm:$0xf]
  %v9748 = vld [vmem:[%s4 + $0x20] sm:$0xf]
  %v9749 = vld [vmem:[%s4 + $0x24] sm:$0xf]
  %v9750 = vld [vmem:[%s4 + $0x28] sm:$0xf]
  %v9751 = vld [vmem:[%s4 + $0x2c] sm:$0xf]
  %v9752 = vld [vmem:[%s4 + $0x30] sm:$0xf]
  %v9753 = vld [vmem:[%s4 + $0x34] sm:$0xf]
  %v9754 = vld [vmem:[%s4 + $0x38] sm:$0xf]
  %v9755 = vld [vmem:[%s4 + $0x3c] sm:$0xf]
  %v9772 = vunpack.c.l.b16 %v9740
  %v9773 = vunpack.c.l.b16 %v9741
  %v9774 = vunpack.c.l.b16 %v9742
  %v9775 = vunpack.c.l.b16 %v9743
  %v9776 = vunpack.c.l.b16 %v9744
  %v9777 = vunpack.c.l.b16 %v9745
  %v9778 = vunpack.c.l.b16 %v9746
  %v9779 = vunpack.c.l.b16 %v9747
  %v9780 = vunpack.c.l.b16 %v9748
  %v9781 = vunpack.c.l.b16 %v9749
  %v9782 = vunpack.c.l.b16 %v9750
  %v9783 = vunpack.c.l.b16 %v9751
  %v9784 = vunpack.c.l.b16 %v9752
  %v9785 = vunpack.c.l.b16 %v9753
  %v9786 = vunpack.c.l.b16 %v9754
  %v9787 = vunpack.c.l.b16 %v9755
  %v9788 = vpack.c.b16 %v9773, %v9772
  %v9789 = vpack.c.b16 %v9775, %v9774
  %v9790 = vpack.c.b16 %v9777, %v9776
  %v9791 = vpack.c.b16 %v9779, %v9778
  %v9792 = vpack.c.b16 %v9781, %v9780
  %v9793 = vpack.c.b16 %v9783, %v9782
  %v9794 = vpack.c.b16 %v9785, %v9784
  %v9795 = vpack.c.b16 %v9787, %v9786
  %9804 = vmatprep.subr.bf16.mxu0 0
  %9805 = vmatpush1.bf16.msra.mxu0 %v9788
  %9806 = vmatprep.subr.bf16.mxu0 0
  %9807 = vmatpush1.bf16.msra.mxu0 %v9789
  %9808 = vmatprep.subr.bf16.mxu0 0
  %9809 = vmatpush1.bf16.msra.mxu0 %v9790
  %9810 = vmatprep.subr.bf16.mxu0 0
  %9811 = vmatpush1.bf16.msra.mxu0 %v9791
  %9812 = vmatprep.subr.bf16.mxu0 0
  %9813 = vmatpush1.bf16.msra.mxu0 %v9792
  %9814 = vmatprep.subr.bf16.mxu0 0
  %9815 = vmatpush1.bf16.msra.mxu0 %v9793
  %9816 = vmatprep.subr.bf16.mxu0 0
  %9817 = vmatpush1.bf16.msra.mxu0 %v9794
  %9818 = vmatprep.subr.bf16.mxu0 0
  %9819 = vmatpush1.bf16.msra.mxu0 %v9795
  %9820 = vmatprep.subr.bf16.mxu0 0
  %9821 = vmatpush1.bf16.msra.mxu0 0
  %9822 = vmatprep.subr.bf16.mxu0 0
  %9823 = vmatpush1.bf16.msra.mxu0 0
  %9824 = vmatprep.subr.bf16.mxu0 0
  %9825 = vmatpush1.bf16.msra.mxu0 0
  %9826 = vmatprep.subr.bf16.mxu0 0
  %9827 = vmatpush1.bf16.msra.mxu0 0
  %9828 = vmatprep.subr.bf16.mxu0 0
  %9829 = vmatpush1.bf16.msra.mxu0 0
  %9830 = vmatprep.subr.bf16.mxu0 0
  %9831 = vmatpush1.bf16.msra.mxu0 0
  %9832 = vmatprep.subr.bf16.mxu0 0
  %9833 = vmatpush1.bf16.msra.mxu0 0
  %9834 = vmatprep.subr.bf16.mxu0 0
  %9835 = vmatpush1.bf16.msra.mxu0 0
  %9836 = vmatprep.mubr.bf16.mxu0 0
  %9837 = vmatmul.mubr.bf16.gmra.mrb[0].mxu0 %v9708
  %v9838 = vpop.f32.mrb[0].mxu0
  %v9839 = vadd.f32 0.0, %v9838
  %v9840 = vpop.f32.mrb[0].mxu0
  %v9841 = vpop.f32.mrb[0].mxu0
  %v9842 = vadd.f32 0.0, %v9841
  %v9843 = vpop.f32.mrb[0].mxu0
  %9844 = vmatprep.mubr.bf16.mxu0 0
  %9845 = vmatmul.mubr.bf16.gmra.mrb[0].mxu0 %v9709
  %v9846 = vpop.f32.mrb[0].mxu0
  %v9847 = vadd.f32 0.0, %v9846
  %v9848 = vpop.f32.mrb[0].mxu0
  %v9849 = vpop.f32.mrb[0].mxu0
  %v9850 = vadd.f32 0.0, %v9849
  %v9851 = vpop.f32.mrb[0].mxu0
  %9852 = vmatprep.mubr.bf16.mxu0 0
  %9853 = vmatmul.mubr.bf16.gmra.mrb[0].mxu0 %v9710
  %v9854 = vpop.f32.mrb[0].mxu0
  %v9855 = vadd.f32 0.0, %v9854
  %v9856 = vpop.f32.mrb[0].mxu0
  %v9857 = vpop.f32.mrb[0].mxu0
  %v9858 = vadd.f32 0.0, %v9857
  %v9859 = vpop.f32.mrb[0].mxu0
  %9860 = vmatprep.mubr.bf16.mxu0 0
  %9861 = vmatmul.mubr.bf16.gmra.mrb[0].mxu0 %v9711
  %v9862 = vpop.f32.mrb[0].mxu0
  %v9863 = vadd.f32 0.0, %v9862
  %v9864 = vpop.f32.mrb[0].mxu0
  %v9865 = vpop.f32.mrb[0].mxu0
  %v9866 = vadd.f32 0.0, %v9865
  %v9867 = vpop.f32.mrb[0].mxu0
  %9868 = vmatprep.mubr.bf16.mxu0 0
  %9869 = vmatmul.mubr.bf16.gmra.mrb[0].mxu0 %v9712
  %v9870 = vpop.f32.mrb[0].mxu0
  %v9871 = vadd.f32 0.0, %v9870
  %v9872 = vpop.f32.mrb[0].mxu0
  %v9873 = vpop.f32.mrb[0].mxu0
  %v9874 = vadd.f32 0.0, %v9873
  %v9875 = vpop.f32.mrb[0].mxu0
  %9876 = vmatprep.mubr.bf16.mxu0 0
  %9877 = vmatmul.mubr.bf16.gmra.mrb[0].mxu0 %v9713
  %v9878 = vpop.f32.mrb[0].mxu0
  %v9879 = vadd.f32 0.0, %v9878
  %v9880 = vpop.f32.mrb[0].mxu0
  %v9881 = vpop.f32.mrb[0].mxu0
  %v9882 = vadd.f32 0.0, %v9881
  %v9883 = vpop.f32.mrb[0].mxu0
  %9884 = vmatprep.mubr.bf16.mxu0 0
  %9885 = vmatmul.mubr.bf16.gmra.mrb[0].mxu0 %v9714
  %v9886 = vpop.f32.mrb[0].mxu0
  %v9887 = vadd.f32 0.0, %v9886
  %v9888 = vpop.f32.mrb[0].mxu0
  %v9889 = vpop.f32.mrb[0].mxu0
  %v9890 = vadd.f32 0.0, %v9889
  %v9891 = vpop.f32.mrb[0].mxu0
  %9892 = vmatprep.mubr.bf16.mxu0 0
  %9893 = vmatmul.mubr.bf16.gmra.mrb[0].mxu0 %v9715
  %v9894 = vpop.f32.mrb[0].mxu0
  %v9895 = vadd.f32 0.0, %v9894
  %v9896 = vpop.f32.mrb[0].mxu0
  %v9897 = vpop.f32.mrb[0].mxu0
  %v9898 = vadd.f32 0.0, %v9897
  %v9899 = vpop.f32.mrb[0].mxu0
  %9900 = vmatprep.mubr.bf16.mxu0 0
  %9901 = vmatmul.mubr.bf16.gmra.mrb[0].mxu0 %v9716
  %v9902 = vpop.f32.mrb[0].mxu0
  %v9903 = vadd.f32 0.0, %v9902
  %v9904 = vpop.f32.mrb[0].mxu0
  %v9905 = vpop.f32.mrb[0].mxu0
  %v9906 = vadd.f32 0.0, %v9905
  %v9907 = vpop.f32.mrb[0].mxu0
  %9908 = vmatprep.mubr.bf16.mxu0 0
  %9909 = vmatmul.mubr.bf16.gmra.mrb[0].mxu0 %v9717
  %v9910 = vpop.f32.mrb[0].mxu0
  %v9911 = vadd.f32 0.0, %v9910
  %v9912 = vpop.f32.mrb[0].mxu0
  %v9913 = vpop.f32.mrb[0].mxu0
  %v9914 = vadd.f32 0.0, %v9913
  %v9915 = vpop.f32.mrb[0].mxu0
  %9916 = vmatprep.mubr.bf16.mxu0 0
  %9917 = vmatmul.mubr.bf16.gmra.mrb[0].mxu0 %v9718
  %v9918 = vpop.f32.mrb[0].mxu0
  %v9919 = vadd.f32 0.0, %v9918
  %v9920 = vpop.f32.mrb[0].mxu0
  %v9921 = vpop.f32.mrb[0].mxu0
  %v9922 = vadd.f32 0.0, %v9921
  %v9923 = vpop.f32.mrb[0].mxu0
  %9924 = vmatprep.mubr.bf16.mxu0 0
  %9925 = vmatmul.mubr.bf16.gmra.mrb[0].mxu0 %v9719
  %v9926 = vpop.f32.mrb[0].mxu0
  %v9927 = vadd.f32 0.0, %v9926
  %v9928 = vpop.f32.mrb[0].mxu0
  %v9929 = vpop.f32.mrb[0].mxu0
  %v9930 = vadd.f32 0.0, %v9929
  %v9931 = vpop.f32.mrb[0].mxu0
  %9932 = vmatprep.mubr.bf16.mxu0 0
  %9933 = vmatmul.mubr.bf16.gmra.mrb[0].mxu0 %v9720
  %v9934 = vpop.f32.mrb[0].mxu0
  %v9935 = vadd.f32 0.0, %v9934
  %v9936 = vpop.f32.mrb[0].mxu0
  %v9937 = vpop.f32.mrb[0].mxu0
  %v9938 = vadd.f32 0.0, %v9937
  %v9939 = vpop.f32.mrb[0].mxu0
  %9940 = vmatprep.mubr.bf16.mxu0 0
  %9941 = vmatmul.mubr.bf16.gmra.mrb[0].mxu0 %v9721
  %v9942 = vpop.f32.mrb[0].mxu0
  %v9943 = vadd.f32 0.0, %v9942
  %v9944 = vpop.f32.mrb[0].mxu0
  %v9945 = vpop.f32.mrb[0].mxu0
  %v9946 = vadd.f32 0.0, %v9945
  %v9947 = vpop.f32.mrb[0].mxu0
  %9948 = vmatprep.mubr.bf16.mxu0 0
  %9949 = vmatmul.mubr.bf16.gmra.mrb[0].mxu0 %v9722
  %v9950 = vpop.f32.mrb[0].mxu0
  %v9951 = vadd.f32 0.0, %v9950
  %v9952 = vpop.f32.mrb[0].mxu0
  %v9953 = vpop.f32.mrb[0].mxu0
  %v9954 = vadd.f32 0.0, %v9953
  %v9955 = vpop.f32.mrb[0].mxu0
  %9956 = vmatprep.mubr.bf16.mxu0 0
  %9957 = vmatmul.mubr.bf16.gmra.mrb[0].mxu0 %v9723
  %v9958 = vpop.f32.mrb[0].mxu0
  %v9959 = vadd.f32 0.0, %v9958
  %v9960 = vpop.f32.mrb[0].mxu0
  %v9961 = vpop.f32.mrb[0].mxu0
  %v9962 = vadd.f32 0.0, %v9961
  %v9963 = vpop.f32.mrb[0].mxu0
  %9964 = vmatprep.mubr.bf16.mxu0 0
  %9965 = vmatmul.mubr.bf16.gmra.mrb[0].mxu0 %v9724
  %v9966 = vpop.f32.mrb[0].mxu0
  %v9967 = vadd.f32 0.0, %v9966
  %v9968 = vpop.f32.mrb[0].mxu0
  %v9969 = vpop.f32.mrb[0].mxu0
  %v9970 = vadd.f32 0.0, %v9969
  %v9971 = vpop.f32.mrb[0].mxu0
  %9972 = vmatprep.mubr.bf16.mxu0 0
  %9973 = vmatmul.mubr.bf16.gmra.mrb[0].mxu0 %v9725
  %v9974 = vpop.f32.mrb[0].mxu0
  %v9975 = vadd.f32 0.0, %v9974
  %v9976 = vpop.f32.mrb[0].mxu0
  %v9977 = vpop.f32.mrb[0].mxu0
  %v9978 = vadd.f32 0.0, %v9977
  %v9979 = vpop.f32.mrb[0].mxu0
  %9980 = vmatprep.mubr.bf16.mxu0 0
  %9981 = vmatmul.mubr.bf16.gmra.mrb[0].mxu0 %v9726
  %v9982 = vpop.f32.mrb[0].mxu0
  %v9983 = vadd.f32 0.0, %v9982
  %v9984 = vpop.f32.mrb[0].mxu0
  %v9985 = vpop.f32.mrb[0].mxu0
  %v9986 = vadd.f32 0.0, %v9985
  %v9987 = vpop.f32.mrb[0].mxu0
  %9988 = vmatprep.mubr.bf16.mxu0 0
  %9989 = vmatmul.mubr.bf16.gmra.mrb[0].mxu0 %v9727
  %v9990 = vpop.f32.mrb[0].mxu0
  %v9991 = vadd.f32 0.0, %v9990
  %v9992 = vpop.f32.mrb[0].mxu0
  %v9993 = vpop.f32.mrb[0].mxu0
  %v9994 = vadd.f32 0.0, %v9993
  %v9995 = vpop.f32.mrb[0].mxu0
  %9996 = vmatprep.mubr.bf16.mxu0 0
  %9997 = vmatmul.mubr.bf16.gmra.mrb[0].mxu0 %v9728
  %v9998 = vpop.f32.mrb[0].mxu0
  %v9999 = vadd.f32 0.0, %v9998
  %v10000 = vpop.f32.mrb[0].mxu0
  %v10001 = vpop.f32.mrb[0].mxu0
  %v10002 = vadd.f32 0.0, %v10001
  %v10003 = vpop.f32.mrb[0].mxu0
  %10004 = vmatprep.mubr.bf16.mxu0 0
  %10005 = vmatmul.mubr.bf16.gmra.mrb[0].mxu0 %v9729
  %v10006 = vpop.f32.mrb[0].mxu0
  %v10007 = vadd.f32 0.0, %v10006
  %v10008 = vpop.f32.mrb[0].mxu0
  %v10009 = vpop.f32.mrb[0].mxu0
  %v10010 = vadd.f32 0.0, %v10009
  %v10011 = vpop.f32.mrb[0].mxu0
  %10012 = vmatprep.mubr.bf16.mxu0 0
  %10013 = vmatmul.mubr.bf16.gmra.mrb[0].mxu0 %v9730
  %v10014 = vpop.f32.mrb[0].mxu0
  %v10015 = vadd.f32 0.0, %v10014
  %v10016 = vpop.f32.mrb[0].mxu0
  %v10017 = vpop.f32.mrb[0].mxu0
  %v10018 = vadd.f32 0.0, %v10017
  %v10019 = vpop.f32.mrb[0].mxu0
  %10020 = vmatprep.mubr.bf16.mxu0 0
  %10021 = vmatmul.mubr.bf16.gmra.mrb[0].mxu0 %v9731
  %v10022 = vpop.f32.mrb[0].mxu0
  %v10023 = vadd.f32 0.0, %v10022
  %v10024 = vpop.f32.mrb[0].mxu0
  %v10025 = vpop.f32.mrb[0].mxu0
  %v10026 = vadd.f32 0.0, %v10025
  %v10027 = vpop.f32.mrb[0].mxu0
  %10028 = vmatprep.mubr.bf16.mxu0 0
  %10029 = vmatmul.mubr.bf16.gmra.mrb[0].mxu0 %v9732
  %v10030 = vpop.f32.mrb[0].mxu0
  %v10031 = vadd.f32 0.0, %v10030
  %v10032 = vpop.f32.mrb[0].mxu0
  %v10033 = vpop.f32.mrb[0].mxu0
  %v10034 = vadd.f32 0.0, %v10033
  %v10035 = vpop.f32.mrb[0].mxu0
  %10036 = vmatprep.mubr.bf16.mxu0 0
  %10037 = vmatmul.mubr.bf16.gmra.mrb[0].mxu0 %v9733
  %v10038 = vpop.f32.mrb[0].mxu0
  %v10039 = vadd.f32 0.0, %v10038
  %v10040 = vpop.f32.mrb[0].mxu0
  %v10041 = vpop.f32.mrb[0].mxu0
  %v10042 = vadd.f32 0.0, %v10041
  %v10043 = vpop.f32.mrb[0].mxu0
  %10044 = vmatprep.mubr.bf16.mxu0 0
  %10045 = vmatmul.mubr.bf16.gmra.mrb[0].mxu0 %v9734
  %v10046 = vpop.f32.mrb[0].mxu0
  %v10047 = vadd.f32 0.0, %v10046
  %v10048 = vpop.f32.mrb[0].mxu0
  %v10049 = vpop.f32.mrb[0].mxu0
  %v10050 = vadd.f32 0.0, %v10049
  %v10051 = vpop.f32.mrb[0].mxu0
  %10052 = vmatprep.mubr.bf16.mxu0 0
  %10053 = vmatmul.mubr.bf16.gmra.mrb[0].mxu0 %v9735
  %v10054 = vpop.f32.mrb[0].mxu0
  %v10055 = vadd.f32 0.0, %v10054
  %v10056 = vpop.f32.mrb[0].mxu0
  %v10057 = vpop.f32.mrb[0].mxu0
  %v10058 = vadd.f32 0.0, %v10057
  %v10059 = vpop.f32.mrb[0].mxu0
  %10060 = vmatprep.mubr.bf16.mxu0 0
  %10061 = vmatmul.mubr.bf16.gmra.mrb[0].mxu0 %v9736
  %v10062 = vpop.f32.mrb[0].mxu0
  %v10063 = vadd.f32 0.0, %v10062
  %v10064 = vpop.f32.mrb[0].mxu0
  %v10065 = vpop.f32.mrb[0].mxu0
  %v10066 = vadd.f32 0.0, %v10065
  %v10067 = vpop.f32.mrb[0].mxu0
  %10068 = vmatprep.mubr.bf16.mxu0 0
  %10069 = vmatmul.mubr.bf16.gmra.mrb[0].mxu0 %v9737
  %v10070 = vpop.f32.mrb[0].mxu0
  %v10071 = vadd.f32 0.0, %v10070
  %v10072 = vpop.f32.mrb[0].mxu0
  %v10073 = vpop.f32.mrb[0].mxu0
  %v10074 = vadd.f32 0.0, %v10073
  %v10075 = vpop.f32.mrb[0].mxu0
  %10076 = vmatprep.mubr.bf16.mxu0 0
  %10077 = vmatmul.mubr.bf16.gmra.mrb[0].mxu0 %v9738
  %v10078 = vpop.f32.mrb[0].mxu0
  %v10079 = vadd.f32 0.0, %v10078
  %v10080 = vpop.f32.mrb[0].mxu0
  %v10081 = vpop.f32.mrb[0].mxu0
  %v10082 = vadd.f32 0.0, %v10081
  %v10083 = vpop.f32.mrb[0].mxu0
  %10084 = vmatprep.mubr.bf16.mxu0 0
  %10085 = vmatmul.mubr.bf16.gmra.mrb[0].mxu0 %v9739
  %v10086 = vpop.f32.mrb[0].mxu0
  %v10087 = vadd.f32 0.0, %v10086
  %v10088 = vpop.f32.mrb[0].mxu0
  %v10089 = vpop.f32.mrb[0].mxu0
  %v10090 = vadd.f32 0.0, %v10089
  %v10091 = vpop.f32.mrb[0].mxu0
  %10092 = vdwg.mxu0
  %v10093 = vld [vmem:[%s10] sm:$0x1]
  %v10094 = vld [vmem:[%s11] sm:$0x1]
  %v10095 = vadd.f32 %v9839, %v9842
  %v10096 = vadd.f32 %v10095, %v9847
  %v10097 = vadd.f32 %v10096, %v9850
  %v10098 = vadd.f32 %v10097, %v9855
  %v10099 = vadd.f32 %v10098, %v9858
  %v10100 = vadd.f32 %v10099, %v9863
  %v10101 = vadd.f32 %v10100, %v9866
  %v10102 = vadd.f32 %v10101, %v9871
  %v10103 = vadd.f32 %v10102, %v9874
  %v10104 = vadd.f32 %v10103, %v9879
  %v10105 = vadd.f32 %v10104, %v9882
  %v10106 = vadd.f32 %v10105, %v9887
  %v10107 = vadd.f32 %v10106, %v9890
  %v10108 = vadd.f32 %v10107, %v9895
  %v10109 = vadd.f32 %v10108, %v9898
  %v10110 = vadd.f32 %v10109, %v9903
  %v10111 = vadd.f32 %v10110, %v9906
  %v10112 = vadd.f32 %v10111, %v9911
  %v10113 = vadd.f32 %v10112, %v9914
  %v10114 = vadd.f32 %v10113, %v9919
  %v10115 = vadd.f32 %v10114, %v9922
  %v10116 = vadd.f32 %v10115, %v9927
  %v10117 = vadd.f32 %v10116, %v9930
  %v10118 = vadd.f32 %v10117, %v9935
  %v10119 = vadd.f32 %v10118, %v9938
  %v10120 = vadd.f32 %v10119, %v9943
  %v10121 = vadd.f32 %v10120, %v9946
  %v10122 = vadd.f32 %v10121, %v9951
  %v10123 = vadd.f32 %v10122, %v9954
  %v10124 = vadd.f32 %v10123, %v9959
  %v10125 = vadd.f32 %v10124, %v9962
  %v10126 = vadd.f32 %v10125, %v9967
  %v10127 = vadd.f32 %v10126, %v9970
  %v10128 = vadd.f32 %v10127, %v9975
  %v10129 = vadd.f32 %v10128, %v9978
  %v10130 = vadd.f32 %v10129, %v9983
  %v10131 = vadd.f32 %v10130, %v9986
  %v10132 = vadd.f32 %v10131, %v9991
  %v10133 = vadd.f32 %v10132, %v9994
  %v10134 = vadd.f32 %v10133, %v9999
  %v10135 = vadd.f32 %v10134, %v10002
  %v10136 = vadd.f32 %v10135, %v10007
  %v10137 = vadd.f32 %v10136, %v10010
  %v10138 = vadd.f32 %v10137, %v10015
  %v10139 = vadd.f32 %v10138, %v10018
  %v10140 = vadd.f32 %v10139, %v10023
  %v10141 = vadd.f32 %v10140, %v10026
  %v10142 = vadd.f32 %v10141, %v10031
  %v10143 = vadd.f32 %v10142, %v10034
  %v10144 = vadd.f32 %v10143, %v10039
  %v10145 = vadd.f32 %v10144, %v10042
  %v10146 = vadd.f32 %v10145, %v10047
  %v10147 = vadd.f32 %v10146, %v10050
  %v10148 = vadd.f32 %v10147, %v10055
  %v10149 = vadd.f32 %v10148, %v10058
  %v10150 = vadd.f32 %v10149, %v10063
  %v10151 = vadd.f32 %v10150, %v10066
  %v10152 = vadd.f32 %v10151, %v10071
  %v10153 = vadd.f32 %v10152, %v10074
  %v10154 = vadd.f32 %v10153, %v10079
  %v10155 = vadd.f32 %v10154, %v10082
  %v10156 = vadd.f32 %v10155, %v10087
  %v10157 = vadd.f32 %v10156, %v10090
  %v10158 = vrot.slane %v10157, 4
  %v10159 = vadd.f32 %v10157, %v10158
  %v10160 = vrot.slane %v10159, 2
  %v10161 = vadd.f32 %v10159, %v10160
  %v10162 = vrot.slane %v10161, 1
  %v10163 = vadd.f32 %v10161, %v10162
  %v10164 = vmul.f32 %v9839, %v9839
  %v10165 = vmul.f32 %v9842, %v9842
  %v10166 = vmul.f32 %v9847, %v9847
  %v10167 = vmul.f32 %v9850, %v9850
  %v10168 = vmul.f32 %v9855, %v9855
  %v10169 = vmul.f32 %v9858, %v9858
  %v10170 = vmul.f32 %v9863, %v9863
  %v10171 = vmul.f32 %v9866, %v9866
  %v10172 = vmul.f32 %v9871, %v9871
  %v10173 = vmul.f32 %v9874, %v9874
  %v10174 = vmul.f32 %v9879, %v9879
  %v10175 = vmul.f32 %v9882, %v9882
  %v10176 = vmul.f32 %v9887, %v9887
  %v10177 = vmul.f32 %v9890, %v9890
  %v10178 = vmul.f32 %v9895, %v9895
  %v10179 = vmul.f32 %v9898, %v9898
  %v10180 = vmul.f32 %v9903, %v9903
  %v10181 = vmul.f32 %v9906, %v9906
  %v10182 = vmul.f32 %v9911, %v9911
  %v10183 = vmul.f32 %v9914, %v9914
  %v10184 = vmul.f32 %v9919, %v9919
  %v10185 = vmul.f32 %v9922, %v9922
  %v10186 = vmul.f32 %v9927, %v9927
  %v10187 = vmul.f32 %v9930, %v9930
  %v10188 = vmul.f32 %v9935, %v9935
  %v10189 = vmul.f32 %v9938, %v9938
  %v10190 = vmul.f32 %v9943, %v9943
  %v10191 = vmul.f32 %v9946, %v9946
  %v10192 = vmul.f32 %v9951, %v9951
  %v10193 = vmul.f32 %v9954, %v9954
  %v10194 = vmul.f32 %v9959, %v9959
  %v10195 = vmul.f32 %v9962, %v9962
  %v10196 = vmul.f32 %v9967, %v9967
  %v10197 = vmul.f32 %v9970, %v9970
  %v10198 = vmul.f32 %v9975, %v9975
  %v10199 = vmul.f32 %v9978, %v9978
  %v10200 = vmul.f32 %v9983, %v9983
  %v10201 = vmul.f32 %v9986, %v9986
  %v10202 = vmul.f32 %v9991, %v9991
  %v10203 = vmul.f32 %v9994, %v9994
  %v10204 = vmul.f32 %v9999, %v9999
  %v10205 = vmul.f32 %v10002, %v10002
  %v10206 = vmul.f32 %v10007, %v10007
  %v10207 = vmul.f32 %v10010, %v10010
  %v10208 = vmul.f32 %v10015, %v10015
  %v10209 = vmul.f32 %v10018, %v10018
  %v10210 = vmul.f32 %v10023, %v10023
  %v10211 = vmul.f32 %v10026, %v10026
  %v10212 = vmul.f32 %v10031, %v10031
  %v10213 = vmul.f32 %v10034, %v10034
  %v10214 = vmul.f32 %v10039, %v10039
  %v10215 = vmul.f32 %v10042, %v10042
  %v10216 = vmul.f32 %v10047, %v10047
  %v10217 = vmul.f32 %v10050, %v10050
  %v10218 = vmul.f32 %v10055, %v10055
  %v10219 = vmul.f32 %v10058, %v10058
  %v10220 = vmul.f32 %v10063, %v10063
  %v10221 = vmul.f32 %v10066, %v10066
  %v10222 = vmul.f32 %v10071, %v10071
  %v10223 = vmul.f32 %v10074, %v10074
  %v10224 = vmul.f32 %v10079, %v10079
  %v10225 = vmul.f32 %v10082, %v10082
  %v10226 = vmul.f32 %v10087, %v10087
  %v10227 = vmul.f32 %v10090, %v10090
  %v10228 = vadd.f32 %v10164, %v10165
  %v10229 = vadd.f32 %v10228, %v10166
  %v10230 = vadd.f32 %v10229, %v10167
  %v10231 = vadd.f32 %v10230, %v10168
  %v10232 = vadd.f32 %v10231, %v10169
  %v10233 = vadd.f32 %v10232, %v10170
  %v10234 = vadd.f32 %v10233, %v10171
  %v10235 = vadd.f32 %v10234, %v10172
  %v10236 = vadd.f32 %v10235, %v10173
  %v10237 = vadd.f32 %v10236, %v10174
  %v10238 = vadd.f32 %v10237, %v10175
  %v10239 = vadd.f32 %v10238, %v10176
  %v10240 = vadd.f32 %v10239, %v10177
  %v10241 = vadd.f32 %v10240, %v10178
  %v10242 = vadd.f32 %v10241, %v10179
  %v10243 = vadd.f32 %v10242, %v10180
  %v10244 = vadd.f32 %v10243, %v10181
  %v10245 = vadd.f32 %v10244, %v10182
  %v10246 = vadd.f32 %v10245, %v10183
  %v10247 = vadd.f32 %v10246, %v10184
  %v10248 = vadd.f32 %v10247, %v10185
  %v10249 = vadd.f32 %v10248, %v10186
  %v10250 = vadd.f32 %v10249, %v10187
  %v10251 = vadd.f32 %v10250, %v10188
  %v10252 = vadd.f32 %v10251, %v10189
  %v10253 = vadd.f32 %v10252, %v10190
  %v10254 = vadd.f32 %v10253, %v10191
  %v10255 = vadd.f32 %v10254, %v10192
  %v10256 = vadd.f32 %v10255, %v10193
  %v10257 = vadd.f32 %v10256, %v10194
  %v10258 = vadd.f32 %v10257, %v10195
  %v10259 = vadd.f32 %v10258, %v10196
  %v10260 = vadd.f32 %v10259, %v10197
  %v10261 = vadd.f32 %v10260, %v10198
  %v10262 = vadd.f32 %v10261, %v10199
  %v10263 = vadd.f32 %v10262, %v10200
  %v10264 = vadd.f32 %v10263, %v10201
  %v10265 = vadd.f32 %v10264, %v10202
  %v10266 = vadd.f32 %v10265, %v10203
  %v10267 = vadd.f32 %v10266, %v10204
  %v10268 = vadd.f32 %v10267, %v10205
  %v10269 = vadd.f32 %v10268, %v10206
  %v10270 = vadd.f32 %v10269, %v10207
  %v10271 = vadd.f32 %v10270, %v10208
  %v10272 = vadd.f32 %v10271, %v10209
  %v10273 = vadd.f32 %v10272, %v10210
  %v10274 = vadd.f32 %v10273, %v10211
  %v10275 = vadd.f32 %v10274, %v10212
  %v10276 = vadd.f32 %v10275, %v10213
  %v10277 = vadd.f32 %v10276, %v10214
  %v10278 = vadd.f32 %v10277, %v10215
  %v10279 = vadd.f32 %v10278, %v10216
  %v10280 = vadd.f32 %v10279, %v10217
  %v10281 = vadd.f32 %v10280, %v10218
  %v10282 = vadd.f32 %v10281, %v10219
  %v10283 = vadd.f32 %v10282, %v10220
  %v10284 = vadd.f32 %v10283, %v10221
  %v10285 = vadd.f32 %v10284, %v10222
  %v10286 = vadd.f32 %v10285, %v10223
  %v10287 = vadd.f32 %v10286, %v10224
  %v10288 = vadd.f32 %v10287, %v10225
  %v10289 = vadd.f32 %v10288, %v10226
  %v10290 = vadd.f32 %v10289, %v10227
  %v10291 = vrot.slane %v10290, 4
  %v10292 = vadd.f32 %v10290, %v10291
  %v10293 = vrot.slane %v10292, 2
  %v10294 = vadd.f32 %v10292, %v10293
  %v10295 = vrot.slane %v10294, 1
  %v10296 = vadd.f32 %v10294, %v10295
  %v10297 = vmul.f32 %v10163, 0.001953125
  %v10298 = vmul.f32 %v10296, 0.001953125
  %v10299 = vmul.f32 %v10297, %v10297
  %v10300 = vsub.f32 %v10298, %v10299
  %v10301 = vadd.f32 %v10300, 1e-05
  %v10302 = vrsqrt.pop %v10301
  %v10303 = vmul.f32 %v10093, %v10302
  %v10304 = vmul.f32 %v10297, %v10303
  %v10305 = vsub.f32 %v10094, %v10304
  %v10307 = vlaneseq
  %v10308 = vshrl.u32 %v10307, 7
  %v10309 = vsub.s32 0, %v10308
  %v10310 = vrot.slane %v10303, %v10309
  %v10312 = vmul.f32 %v9839, %v10310
  %v10313 = vmul.f32 %v9842, %v10310
  %v10314 = vmul.f32 %v9847, %v10310
  %v10315 = vmul.f32 %v9850, %v10310
  %v10316 = vmul.f32 %v9855, %v10310
  %v10317 = vmul.f32 %v9858, %v10310
  %v10318 = vmul.f32 %v9863, %v10310
  %v10319 = vmul.f32 %v9866, %v10310
  %v10320 = vmul.f32 %v9871, %v10310
  %v10321 = vmul.f32 %v9874, %v10310
  %v10322 = vmul.f32 %v9879, %v10310
  %v10323 = vmul.f32 %v9882, %v10310
  %v10324 = vmul.f32 %v9887, %v10310
  %v10325 = vmul.f32 %v9890, %v10310
  %v10326 = vmul.f32 %v9895, %v10310
  %v10327 = vmul.f32 %v9898, %v10310
  %v10328 = vmul.f32 %v9903, %v10310
  %v10329 = vmul.f32 %v9906, %v10310
  %v10330 = vmul.f32 %v9911, %v10310
  %v10331 = vmul.f32 %v9914, %v10310
  %v10332 = vmul.f32 %v9919, %v10310
  %v10333 = vmul.f32 %v9922, %v10310
  %v10334 = vmul.f32 %v9927, %v10310
  %v10335 = vmul.f32 %v9930, %v10310
  %v10336 = vmul.f32 %v9935, %v10310
  %v10337 = vmul.f32 %v9938, %v10310
  %v10338 = vmul.f32 %v9943, %v10310
  %v10339 = vmul.f32 %v9946, %v10310
  %v10340 = vmul.f32 %v9951, %v10310
  %v10341 = vmul.f32 %v9954, %v10310
  %v10342 = vmul.f32 %v9959, %v10310
  %v10343 = vmul.f32 %v9962, %v10310
  %v10344 = vmul.f32 %v9967, %v10310
  %v10345 = vmul.f32 %v9970, %v10310
  %v10346 = vmul.f32 %v9975, %v10310
  %v10347 = vmul.f32 %v9978, %v10310
  %v10348 = vmul.f32 %v9983, %v10310
  %v10349 = vmul.f32 %v9986, %v10310
  %v10350 = vmul.f32 %v9991, %v10310
  %v10351 = vmul.f32 %v9994, %v10310
  %v10352 = vmul.f32 %v9999, %v10310
  %v10353 = vmul.f32 %v10002, %v10310
  %v10354 = vmul.f32 %v10007, %v10310
  %v10355 = vmul.f32 %v10010, %v10310
  %v10356 = vmul.f32 %v10015, %v10310
  %v10357 = vmul.f32 %v10018, %v10310
  %v10358 = vmul.f32 %v10023, %v10310
  %v10359 = vmul.f32 %v10026, %v10310
  %v10360 = vmul.f32 %v10031, %v10310
  %v10361 = vmul.f32 %v10034, %v10310
  %v10362 = vmul.f32 %v10039, %v10310
  %v10363 = vmul.f32 %v10042, %v10310
  %v10364 = vmul.f32 %v10047, %v10310
  %v10365 = vmul.f32 %v10050, %v10310
  %v10366 = vmul.f32 %v10055, %v10310
  %v10367 = vmul.f32 %v10058, %v10310
  %v10368 = vmul.f32 %v10063, %v10310
  %v10369 = vmul.f32 %v10066, %v10310
  %v10370 = vmul.f32 %v10071, %v10310
  %v10371 = vmul.f32 %v10074, %v10310
  %v10372 = vmul.f32 %v10079, %v10310
  %v10373 = vmul.f32 %v10082, %v10310
  %v10374 = vmul.f32 %v10087, %v10310
  %v10375 = vmul.f32 %v10090, %v10310
  %v10377 = vlaneseq
  %v10378 = vshrl.u32 %v10377, 7
  %v10379 = vsub.s32 0, %v10378
  %v10380 = vrot.slane %v10305, %v10379
  %v10382 = vadd.f32 %v10312, %v10380
  %v10383 = vadd.f32 %v10313, %v10380
  %v10384 = vadd.f32 %v10314, %v10380
  %v10385 = vadd.f32 %v10315, %v10380
  %v10386 = vadd.f32 %v10316, %v10380
  %v10387 = vadd.f32 %v10317, %v10380
  %v10388 = vadd.f32 %v10318, %v10380
  %v10389 = vadd.f32 %v10319, %v10380
  %v10390 = vadd.f32 %v10320, %v10380
  %v10391 = vadd.f32 %v10321, %v10380
  %v10392 = vadd.f32 %v10322, %v10380
  %v10393 = vadd.f32 %v10323, %v10380
  %v10394 = vadd.f32 %v10324, %v10380
  %v10395 = vadd.f32 %v10325, %v10380
  %v10396 = vadd.f32 %v10326, %v10380
  %v10397 = vadd.f32 %v10327, %v10380
  %v10398 = vadd.f32 %v10328, %v10380
  %v10399 = vadd.f32 %v10329, %v10380
  %v10400 = vadd.f32 %v10330, %v10380
  %v10401 = vadd.f32 %v10331, %v10380
  %v10402 = vadd.f32 %v10332, %v10380
  %v10403 = vadd.f32 %v10333, %v10380
  %v10404 = vadd.f32 %v10334, %v10380
  %v10405 = vadd.f32 %v10335, %v10380
  %v10406 = vadd.f32 %v10336, %v10380
  %v10407 = vadd.f32 %v10337, %v10380
  %v10408 = vadd.f32 %v10338, %v10380
  %v10409 = vadd.f32 %v10339, %v10380
  %v10410 = vadd.f32 %v10340, %v10380
  %v10411 = vadd.f32 %v10341, %v10380
  %v10412 = vadd.f32 %v10342, %v10380
  %v10413 = vadd.f32 %v10343, %v10380
  %v10414 = vadd.f32 %v10344, %v10380
  %v10415 = vadd.f32 %v10345, %v10380
  %v10416 = vadd.f32 %v10346, %v10380
  %v10417 = vadd.f32 %v10347, %v10380
  %v10418 = vadd.f32 %v10348, %v10380
  %v10419 = vadd.f32 %v10349, %v10380
  %v10420 = vadd.f32 %v10350, %v10380
  %v10421 = vadd.f32 %v10351, %v10380
  %v10422 = vadd.f32 %v10352, %v10380
  %v10423 = vadd.f32 %v10353, %v10380
  %v10424 = vadd.f32 %v10354, %v10380
  %v10425 = vadd.f32 %v10355, %v10380
  %v10426 = vadd.f32 %v10356, %v10380
  %v10427 = vadd.f32 %v10357, %v10380
  %v10428 = vadd.f32 %v10358, %v10380
  %v10429 = vadd.f32 %v10359, %v10380
  %v10430 = vadd.f32 %v10360, %v10380
  %v10431 = vadd.f32 %v10361, %v10380
  %v10432 = vadd.f32 %v10362, %v10380
  %v10433 = vadd.f32 %v10363, %v10380
  %v10434 = vadd.f32 %v10364, %v10380
  %v10435 = vadd.f32 %v10365, %v10380
  %v10436 = vadd.f32 %v10366, %v10380
  %v10437 = vadd.f32 %v10367, %v10380
  %v10438 = vadd.f32 %v10368, %v10380
  %v10439 = vadd.f32 %v10369, %v10380
  %v10440 = vadd.f32 %v10370, %v10380
  %v10441 = vadd.f32 %v10371, %v10380
  %v10442 = vadd.f32 %v10372, %v10380
  %v10443 = vadd.f32 %v10373, %v10380
  %v10444 = vadd.f32 %v10374, %v10380
  %v10445 = vadd.f32 %v10375, %v10380
  %v10446 = vld [vmem:[%s1] sm:$0xf]
  %v10447 = vld [vmem:[%s1 + $0x4] sm:$0xf]
  %v10448 = vld [vmem:[%s1 + $0x8] sm:$0xf]
  %v10449 = vld [vmem:[%s1 + $0xc] sm:$0xf]
  %v10450 = vld [vmem:[%s1 + $0x10] sm:$0xf]
  %v10451 = vld [vmem:[%s1 + $0x14] sm:$0xf]
  %v10452 = vld [vmem:[%s1 + $0x18] sm:$0xf]
  %v10453 = vld [vmem:[%s1 + $0x1c] sm:$0xf]
  %v10454 = vld [vmem:[%s1 + $0x20] sm:$0xf]
  %v10455 = vld [vmem:[%s1 + $0x24] sm:$0xf]
  %v10456 = vld [vmem:[%s1 + $0x28] sm:$0xf]
  %v10457 = vld [vmem:[%s1 + $0x2c] sm:$0xf]
  %v10458 = vld [vmem:[%s1 + $0x30] sm:$0xf]
  %v10459 = vld [vmem:[%s1 + $0x34] sm:$0xf]
  %v10460 = vld [vmem:[%s1 + $0x38] sm:$0xf]
  %v10461 = vld [vmem:[%s1 + $0x3c] sm:$0xf]
  %v10462 = vld [vmem:[%s1 + $0x40] sm:$0xf]
  %v10463 = vld [vmem:[%s1 + $0x44] sm:$0xf]
  %v10464 = vld [vmem:[%s1 + $0x48] sm:$0xf]
  %v10465 = vld [vmem:[%s1 + $0x4c] sm:$0xf]
  %v10466 = vld [vmem:[%s1 + $0x50] sm:$0xf]
  %v10467 = vld [vmem:[%s1 + $0x54] sm:$0xf]
  %v10468 = vld [vmem:[%s1 + $0x58] sm:$0xf]
  %v10469 = vld [vmem:[%s1 + $0x5c] sm:$0xf]
  %v10470 = vld [vmem:[%s1 + $0x60] sm:$0xf]
  %v10471 = vld [vmem:[%s1 + $0x64] sm:$0xf]
  %v10472 = vld [vmem:[%s1 + $0x68] sm:$0xf]
  %v10473 = vld [vmem:[%s1 + $0x6c] sm:$0xf]
  %v10474 = vld [vmem:[%s1 + $0x70] sm:$0xf]
  %v10475 = vld [vmem:[%s1 + $0x74] sm:$0xf]
  %v10476 = vld [vmem:[%s1 + $0x78] sm:$0xf]
  %v10477 = vld [vmem:[%s1 + $0x7c] sm:$0xf]
  %v10478 = vld [vmem:[%s1 + $0x80] sm:$0xf]
  %v10479 = vld [vmem:[%s1 + $0x84] sm:$0xf]
  %v10480 = vld [vmem:[%s1 + $0x88] sm:$0xf]
  %v10481 = vld [vmem:[%s1 + $0x8c] sm:$0xf]
  %v10482 = vld [vmem:[%s1 + $0x90] sm:$0xf]
  %v10483 = vld [vmem:[%s1 + $0x94] sm:$0xf]
  %v10484 = vld [vmem:[%s1 + $0x98] sm:$0xf]
  %v10485 = vld [vmem:[%s1 + $0x9c] sm:$0xf]
  %v10486 = vld [vmem:[%s1 + $0xa0] sm:$0xf]
  %v10487 = vld [vmem:[%s1 + $0xa4] sm:$0xf]
  %v10488 = vld [vmem:[%s1 + $0xa8] sm:$0xf]
  %v10489 = vld [vmem:[%s1 + $0xac] sm:$0xf]
  %v10490 = vld [vmem:[%s1 + $0xb0] sm:$0xf]
  %v10491 = vld [vmem:[%s1 + $0xb4] sm:$0xf]
  %v10492 = vld [vmem:[%s1 + $0xb8] sm:$0xf]
  %v10493 = vld [vmem:[%s1 + $0xbc] sm:$0xf]
  %v10494 = vld [vmem:[%s1 + $0xc0] sm:$0xf]
  %v10495 = vld [vmem:[%s1 + $0xc4] sm:$0xf]
  %v10496 = vld [vmem:[%s1 + $0xc8] sm:$0xf]
  %v10497 = vld [vmem:[%s1 + $0xcc] sm:$0xf]
  %v10498 = vld [vmem:[%s1 + $0xd0] sm:$0xf]
  %v10499 = vld [vmem:[%s1 + $0xd4] sm:$0xf]
  %v10500 = vld [vmem:[%s1 + $0xd8] sm:$0xf]
  %v10501 = vld [vmem:[%s1 + $0xdc] sm:$0xf]
  %v10502 = vld [vmem:[%s1 + $0xe0] sm:$0xf]
  %v10503 = vld [vmem:[%s1 + $0xe4] sm:$0xf]
  %v10504 = vld [vmem:[%s1 + $0xe8] sm:$0xf]
  %v10505 = vld [vmem:[%s1 + $0xec] sm:$0xf]
  %v10506 = vld [vmem:[%s1 + $0xf0] sm:$0xf]
  %v10507 = vld [vmem:[%s1 + $0xf4] sm:$0xf]
  %v10508 = vld [vmem:[%s1 + $0xf8] sm:$0xf]
  %v10509 = vld [vmem:[%s1 + $0xfc] sm:$0xf]
  %v10510 = vld [vmem:[%s5] sm:$0xf]
  %v10511 = vld [vmem:[%s5 + $0x4] sm:$0xf]
  %v10512 = vld [vmem:[%s5 + $0x8] sm:$0xf]
  %v10513 = vld [vmem:[%s5 + $0xc] sm:$0xf]
  %v10514 = vld [vmem:[%s5 + $0x10] sm:$0xf]
  %v10515 = vld [vmem:[%s5 + $0x14] sm:$0xf]
  %v10516 = vld [vmem:[%s5 + $0x18] sm:$0xf]
  %v10517 = vld [vmem:[%s5 + $0x1c] sm:$0xf]
  %v10518 = vld [vmem:[%s5 + $0x20] sm:$0xf]
  %v10519 = vld [vmem:[%s5 + $0x24] sm:$0xf]
  %v10520 = vld [vmem:[%s5 + $0x28] sm:$0xf]
  %v10521 = vld [vmem:[%s5 + $0x2c] sm:$0xf]
  %v10522 = vld [vmem:[%s5 + $0x30] sm:$0xf]
  %v10523 = vld [vmem:[%s5 + $0x34] sm:$0xf]
  %v10524 = vld [vmem:[%s5 + $0x38] sm:$0xf]
  %v10525 = vld [vmem:[%s5 + $0x3c] sm:$0xf]
  %v10590 = vunpack.c.l.b16 %v10446
  %v10591 = vunpack.c.l.b16 %v10447
  %v10592 = vunpack.c.l.b16 %v10448
  %v10593 = vunpack.c.l.b16 %v10449
  %v10594 = vunpack.c.l.b16 %v10450
  %v10595 = vunpack.c.l.b16 %v10451
  %v10596 = vunpack.c.l.b16 %v10452
  %v10597 = vunpack.c.l.b16 %v10453
  %v10598 = vunpack.c.l.b16 %v10454
  %v10599 = vunpack.c.l.b16 %v10455
  %v10600 = vunpack.c.l.b16 %v10456
  %v10601 = vunpack.c.l.b16 %v10457
  %v10602 = vunpack.c.l.b16 %v10458
  %v10603 = vunpack.c.l.b16 %v10459
  %v10604 = vunpack.c.l.b16 %v10460
  %v10605 = vunpack.c.l.b16 %v10461
  %v10606 = vunpack.c.l.b16 %v10462
  %v10607 = vunpack.c.l.b16 %v10463
  %v10608 = vunpack.c.l.b16 %v10464
  %v10609 = vunpack.c.l.b16 %v10465
  %v10610 = vunpack.c.l.b16 %v10466
  %v10611 = vunpack.c.l.b16 %v10467
  %v10612 = vunpack.c.l.b16 %v10468
  %v10613 = vunpack.c.l.b16 %v10469
  %v10614 = vunpack.c.l.b16 %v10470
  %v10615 = vunpack.c.l.b16 %v10471
  %v10616 = vunpack.c.l.b16 %v10472
  %v10617 = vunpack.c.l.b16 %v10473
  %v10618 = vunpack.c.l.b16 %v10474
  %v10619 = vunpack.c.l.b16 %v10475
  %v10620 = vunpack.c.l.b16 %v10476
  %v10621 = vunpack.c.l.b16 %v10477
  %v10622 = vunpack.c.l.b16 %v10478
  %v10623 = vunpack.c.l.b16 %v10479
  %v10624 = vunpack.c.l.b16 %v10480
  %v10625 = vunpack.c.l.b16 %v10481
  %v10626 = vunpack.c.l.b16 %v10482
  %v10627 = vunpack.c.l.b16 %v10483
  %v10628 = vunpack.c.l.b16 %v10484
  %v10629 = vunpack.c.l.b16 %v10485
  %v10630 = vunpack.c.l.b16 %v10486
  %v10631 = vunpack.c.l.b16 %v10487
  %v10632 = vunpack.c.l.b16 %v10488
  %v10633 = vunpack.c.l.b16 %v10489
  %v10634 = vunpack.c.l.b16 %v10490
  %v10635 = vunpack.c.l.b16 %v10491
  %v10636 = vunpack.c.l.b16 %v10492
  %v10637 = vunpack.c.l.b16 %v10493
  %v10638 = vunpack.c.l.b16 %v10494
  %v10639 = vunpack.c.l.b16 %v10495
  %v10640 = vunpack.c.l.b16 %v10496
  %v10641 = vunpack.c.l.b16 %v10497
  %v10642 = vunpack.c.l.b16 %v10498
  %v10643 = vunpack.c.l.b16 %v10499
  %v10644 = vunpack.c.l.b16 %v10500
  %v10645 = vunpack.c.l.b16 %v10501
  %v10646 = vunpack.c.l.b16 %v10502
  %v10647 = vunpack.c.l.b16 %v10503
  %v10648 = vunpack.c.l.b16 %v10504
  %v10649 = vunpack.c.l.b16 %v10505
  %v10650 = vunpack.c.l.b16 %v10506
  %v10651 = vunpack.c.l.b16 %v10507
  %v10652 = vunpack.c.l.b16 %v10508
  %v10653 = vunpack.c.l.b16 %v10509
  %v10654 = vpack.c.b16 %v10591, %v10590
  %v10655 = vpack.c.b16 %v10593, %v10592
  %v10656 = vpack.c.b16 %v10595, %v10594
  %v10657 = vpack.c.b16 %v10597, %v10596
  %v10658 = vpack.c.b16 %v10599, %v10598
  %v10659 = vpack.c.b16 %v10601, %v10600
  %v10660 = vpack.c.b16 %v10603, %v10602
  %v10661 = vpack.c.b16 %v10605, %v10604
  %v10662 = vpack.c.b16 %v10607, %v10606
  %v10663 = vpack.c.b16 %v10609, %v10608
  %v10664 = vpack.c.b16 %v10611, %v10610
  %v10665 = vpack.c.b16 %v10613, %v10612
  %v10666 = vpack.c.b16 %v10615, %v10614
  %v10667 = vpack.c.b16 %v10617, %v10616
  %v10668 = vpack.c.b16 %v10619, %v10618
  %v10669 = vpack.c.b16 %v10621, %v10620
  %v10670 = vpack.c.b16 %v10623, %v10622
  %v10671 = vpack.c.b16 %v10625, %v10624
  %v10672 = vpack.c.b16 %v10627, %v10626
  %v10673 = vpack.c.b16 %v10629, %v10628
  %v10674 = vpack.c.b16 %v10631, %v10630
  %v10675 = vpack.c.b16 %v10633, %v10632
  %v10676 = vpack.c.b16 %v10635, %v10634
  %v10677 = vpack.c.b16 %v10637, %v10636
  %v10678 = vpack.c.b16 %v10639, %v10638
  %v10679 = vpack.c.b16 %v10641, %v10640
  %v10680 = vpack.c.b16 %v10643, %v10642
  %v10681 = vpack.c.b16 %v10645, %v10644
  %v10682 = vpack.c.b16 %v10647, %v10646
  %v10683 = vpack.c.b16 %v10649, %v10648
  %v10684 = vpack.c.b16 %v10651, %v10650
  %v10685 = vpack.c.b16 %v10653, %v10652
  %v10734 = vunpack.c.l.b16 %v10510
  %v10735 = vunpack.c.l.b16 %v10511
  %v10736 = vunpack.c.l.b16 %v10512
  %v10737 = vunpack.c.l.b16 %v10513
  %v10738 = vunpack.c.l.b16 %v10514
  %v10739 = vunpack.c.l.b16 %v10515
  %v10740 = vunpack.c.l.b16 %v10516
  %v10741 = vunpack.c.l.b16 %v10517
  %v10742 = vunpack.c.l.b16 %v10518
  %v10743 = vunpack.c.l.b16 %v10519
  %v10744 = vunpack.c.l.b16 %v10520
  %v10745 = vunpack.c.l.b16 %v10521
  %v10746 = vunpack.c.l.b16 %v10522
  %v10747 = vunpack.c.l.b16 %v10523
  %v10748 = vunpack.c.l.b16 %v10524
  %v10749 = vunpack.c.l.b16 %v10525
  %v10750 = vpack.c.b16 %v10735, %v10734
  %v10751 = vpack.c.b16 %v10737, %v10736
  %v10752 = vpack.c.b16 %v10739, %v10738
  %v10753 = vpack.c.b16 %v10741, %v10740
  %v10754 = vpack.c.b16 %v10743, %v10742
  %v10755 = vpack.c.b16 %v10745, %v10744
  %v10756 = vpack.c.b16 %v10747, %v10746
  %v10757 = vpack.c.b16 %v10749, %v10748
  %10766 = vmatprep.subr.bf16.mxu0 0
  %10767 = vmatpush1.bf16.msra.mxu0 %v10750
  %10768 = vmatprep.subr.bf16.mxu0 0
  %10769 = vmatpush1.bf16.msra.mxu0 %v10751
  %10770 = vmatprep.subr.bf16.mxu0 0
  %10771 = vmatpush1.bf16.msra.mxu0 %v10752
  %10772 = vmatprep.subr.bf16.mxu0 0
  %10773 = vmatpush1.bf16.msra.mxu0 %v10753
  %10774 = vmatprep.subr.bf16.mxu0 0
  %10775 = vmatpush1.bf16.msra.mxu0 %v10754
  %10776 = vmatprep.subr.bf16.mxu0 0
  %10777 = vmatpush1.bf16.msra.mxu0 %v10755
  %10778 = vmatprep.subr.bf16.mxu0 0
  %10779 = vmatpush1.bf16.msra.mxu0 %v10756
  %10780 = vmatprep.subr.bf16.mxu0 0
  %10781 = vmatpush1.bf16.msra.mxu0 %v10757
  %10782 = vmatprep.subr.bf16.mxu0 0
  %10783 = vmatpush1.bf16.msra.mxu0 0
  %10784 = vmatprep.subr.bf16.mxu0 0
  %10785 = vmatpush1.bf16.msra.mxu0 0
  %10786 = vmatprep.subr.bf16.mxu0 0
  %10787 = vmatpush1.bf16.msra.mxu0 0
  %10788 = vmatprep.subr.bf16.mxu0 0
  %10789 = vmatpush1.bf16.msra.mxu0 0
  %10790 = vmatprep.subr.bf16.mxu0 0
  %10791 = vmatpush1.bf16.msra.mxu0 0
  %10792 = vmatprep.subr.bf16.mxu0 0
  %10793 = vmatpush1.bf16.msra.mxu0 0
  %10794 = vmatprep.subr.bf16.mxu0 0
  %10795 = vmatpush1.bf16.msra.mxu0 0
  %10796 = vmatprep.subr.bf16.mxu0 0
  %10797 = vmatpush1.bf16.msra.mxu0 0
  %10798 = vmatprep.mubr.bf16.mxu0 0
  %10799 = vmatmul.mubr.bf16.gmra.mrb[0].mxu0 %v10654
  %v10800 = vpop.f32.mrb[0].mxu0
  %v10801 = vadd.f32 0.0, %v10800
  %v10802 = vpop.f32.mrb[0].mxu0
  %v10803 = vpop.f32.mrb[0].mxu0
  %v10804 = vadd.f32 0.0, %v10803
  %v10805 = vpop.f32.mrb[0].mxu0
  %10806 = vmatprep.mubr.bf16.mxu0 0
  %10807 = vmatmul.mubr.bf16.gmra.mrb[0].mxu0 %v10655
  %v10808 = vpop.f32.mrb[0].mxu0
  %v10809 = vadd.f32 0.0, %v10808
  %v10810 = vpop.f32.mrb[0].mxu0
  %v10811 = vpop.f32.mrb[0].mxu0
  %v10812 = vadd.f32 0.0, %v10811
  %v10813 = vpop.f32.mrb[0].mxu0
  %10814 = vmatprep.mubr.bf16.mxu0 0
  %10815 = vmatmul.mubr.bf16.gmra.mrb[0].mxu0 %v10656
  %v10816 = vpop.f32.mrb[0].mxu0
  %v10817 = vadd.f32 0.0, %v10816
  %v10818 = vpop.f32.mrb[0].mxu0
  %v10819 = vpop.f32.mrb[0].mxu0
  %v10820 = vadd.f32 0.0, %v10819
  %v10821 = vpop.f32.mrb[0].mxu0
  %10822 = vmatprep.mubr.bf16.mxu0 0
  %10823 = vmatmul.mubr.bf16.gmra.mrb[0].mxu0 %v10657
  %v10824 = vpop.f32.mrb[0].mxu0
  %v10825 = vadd.f32 0.0, %v10824
  %v10826 = vpop.f32.mrb[0].mxu0
  %v10827 = vpop.f32.mrb[0].mxu0
  %v10828 = vadd.f32 0.0, %v10827
  %v10829 = vpop.f32.mrb[0].mxu0
  %10830 = vmatprep.mubr.bf16.mxu0 0
  %10831 = vmatmul.mubr.bf16.gmra.mrb[0].mxu0 %v10658
  %v10832 = vpop.f32.mrb[0].mxu0
  %v10833 = vadd.f32 0.0, %v10832
  %v10834 = vpop.f32.mrb[0].mxu0
  %v10835 = vpop.f32.mrb[0].mxu0
  %v10836 = vadd.f32 0.0, %v10835
  %v10837 = vpop.f32.mrb[0].mxu0
  %10838 = vmatprep.mubr.bf16.mxu0 0
  %10839 = vmatmul.mubr.bf16.gmra.mrb[0].mxu0 %v10659
  %v10840 = vpop.f32.mrb[0].mxu0
  %v10841 = vadd.f32 0.0, %v10840
  %v10842 = vpop.f32.mrb[0].mxu0
  %v10843 = vpop.f32.mrb[0].mxu0
  %v10844 = vadd.f32 0.0, %v10843
  %v10845 = vpop.f32.mrb[0].mxu0
  %10846 = vmatprep.mubr.bf16.mxu0 0
  %10847 = vmatmul.mubr.bf16.gmra.mrb[0].mxu0 %v10660
  %v10848 = vpop.f32.mrb[0].mxu0
  %v10849 = vadd.f32 0.0, %v10848
  %v10850 = vpop.f32.mrb[0].mxu0
  %v10851 = vpop.f32.mrb[0].mxu0
  %v10852 = vadd.f32 0.0, %v10851
  %v10853 = vpop.f32.mrb[0].mxu0
  %10854 = vmatprep.mubr.bf16.mxu0 0
  %10855 = vmatmul.mubr.bf16.gmra.mrb[0].mxu0 %v10661
  %v10856 = vpop.f32.mrb[0].mxu0
  %v10857 = vadd.f32 0.0, %v10856
  %v10858 = vpop.f32.mrb[0].mxu0
  %v10859 = vpop.f32.mrb[0].mxu0
  %v10860 = vadd.f32 0.0, %v10859
  %v10861 = vpop.f32.mrb[0].mxu0
  %10862 = vmatprep.mubr.bf16.mxu0 0
  %10863 = vmatmul.mubr.bf16.gmra.mrb[0].mxu0 %v10662
  %v10864 = vpop.f32.mrb[0].mxu0
  %v10865 = vadd.f32 0.0, %v10864
  %v10866 = vpop.f32.mrb[0].mxu0
  %v10867 = vpop.f32.mrb[0].mxu0
  %v10868 = vadd.f32 0.0, %v10867
  %v10869 = vpop.f32.mrb[0].mxu0
  %10870 = vmatprep.mubr.bf16.mxu0 0
  %10871 = vmatmul.mubr.bf16.gmra.mrb[0].mxu0 %v10663
  %v10872 = vpop.f32.mrb[0].mxu0
  %v10873 = vadd.f32 0.0, %v10872
  %v10874 = vpop.f32.mrb[0].mxu0
  %v10875 = vpop.f32.mrb[0].mxu0
  %v10876 = vadd.f32 0.0, %v10875
  %v10877 = vpop.f32.mrb[0].mxu0
  %10878 = vmatprep.mubr.bf16.mxu0 0
  %10879 = vmatmul.mubr.bf16.gmra.mrb[0].mxu0 %v10664
  %v10880 = vpop.f32.mrb[0].mxu0
  %v10881 = vadd.f32 0.0, %v10880
  %v10882 = vpop.f32.mrb[0].mxu0
  %v10883 = vpop.f32.mrb[0].mxu0
  %v10884 = vadd.f32 0.0, %v10883
  %v10885 = vpop.f32.mrb[0].mxu0
  %10886 = vmatprep.mubr.bf16.mxu0 0
  %10887 = vmatmul.mubr.bf16.gmra.mrb[0].mxu0 %v10665
  %v10888 = vpop.f32.mrb[0].mxu0
  %v10889 = vadd.f32 0.0, %v10888
  %v10890 = vpop.f32.mrb[0].mxu0
  %v10891 = vpop.f32.mrb[0].mxu0
  %v10892 = vadd.f32 0.0, %v10891
  %v10893 = vpop.f32.mrb[0].mxu0
  %10894 = vmatprep.mubr.bf16.mxu0 0
  %10895 = vmatmul.mubr.bf16.gmra.mrb[0].mxu0 %v10666
  %v10896 = vpop.f32.mrb[0].mxu0
  %v10897 = vadd.f32 0.0, %v10896
  %v10898 = vpop.f32.mrb[0].mxu0
  %v10899 = vpop.f32.mrb[0].mxu0
  %v10900 = vadd.f32 0.0, %v10899
  %v10901 = vpop.f32.mrb[0].mxu0
  %10902 = vmatprep.mubr.bf16.mxu0 0
  %10903 = vmatmul.mubr.bf16.gmra.mrb[0].mxu0 %v10667
  %v10904 = vpop.f32.mrb[0].mxu0
  %v10905 = vadd.f32 0.0, %v10904
  %v10906 = vpop.f32.mrb[0].mxu0
  %v10907 = vpop.f32.mrb[0].mxu0
  %v10908 = vadd.f32 0.0, %v10907
  %v10909 = vpop.f32.mrb[0].mxu0
  %10910 = vmatprep.mubr.bf16.mxu0 0
  %10911 = vmatmul.mubr.bf16.gmra.mrb[0].mxu0 %v10668
  %v10912 = vpop.f32.mrb[0].mxu0
  %v10913 = vadd.f32 0.0, %v10912
  %v10914 = vpop.f32.mrb[0].mxu0
  %v10915 = vpop.f32.mrb[0].mxu0
  %v10916 = vadd.f32 0.0, %v10915
  %v10917 = vpop.f32.mrb[0].mxu0
  %10918 = vmatprep.mubr.bf16.mxu0 0
  %10919 = vmatmul.mubr.bf16.gmra.mrb[0].mxu0 %v10669
  %v10920 = vpop.f32.mrb[0].mxu0
  %v10921 = vadd.f32 0.0, %v10920
  %v10922 = vpop.f32.mrb[0].mxu0
  %v10923 = vpop.f32.mrb[0].mxu0
  %v10924 = vadd.f32 0.0, %v10923
  %v10925 = vpop.f32.mrb[0].mxu0
  %10926 = vmatprep.mubr.bf16.mxu0 0
  %10927 = vmatmul.mubr.bf16.gmra.mrb[0].mxu0 %v10670
  %v10928 = vpop.f32.mrb[0].mxu0
  %v10929 = vadd.f32 0.0, %v10928
  %v10930 = vpop.f32.mrb[0].mxu0
  %v10931 = vpop.f32.mrb[0].mxu0
  %v10932 = vadd.f32 0.0, %v10931
  %v10933 = vpop.f32.mrb[0].mxu0
  %10934 = vmatprep.mubr.bf16.mxu0 0
  %10935 = vmatmul.mubr.bf16.gmra.mrb[0].mxu0 %v10671
  %v10936 = vpop.f32.mrb[0].mxu0
  %v10937 = vadd.f32 0.0, %v10936
  %v10938 = vpop.f32.mrb[0].mxu0
  %v10939 = vpop.f32.mrb[0].mxu0
  %v10940 = vadd.f32 0.0, %v10939
  %v10941 = vpop.f32.mrb[0].mxu0
  %10942 = vmatprep.mubr.bf16.mxu0 0
  %10943 = vmatmul.mubr.bf16.gmra.mrb[0].mxu0 %v10672
  %v10944 = vpop.f32.mrb[0].mxu0
  %v10945 = vadd.f32 0.0, %v10944
  %v10946 = vpop.f32.mrb[0].mxu0
  %v10947 = vpop.f32.mrb[0].mxu0
  %v10948 = vadd.f32 0.0, %v10947
  %v10949 = vpop.f32.mrb[0].mxu0
  %10950 = vmatprep.mubr.bf16.mxu0 0
  %10951 = vmatmul.mubr.bf16.gmra.mrb[0].mxu0 %v10673
  %v10952 = vpop.f32.mrb[0].mxu0
  %v10953 = vadd.f32 0.0, %v10952
  %v10954 = vpop.f32.mrb[0].mxu0
  %v10955 = vpop.f32.mrb[0].mxu0
  %v10956 = vadd.f32 0.0, %v10955
  %v10957 = vpop.f32.mrb[0].mxu0
  %10958 = vmatprep.mubr.bf16.mxu0 0
  %10959 = vmatmul.mubr.bf16.gmra.mrb[0].mxu0 %v10674
  %v10960 = vpop.f32.mrb[0].mxu0
  %v10961 = vadd.f32 0.0, %v10960
  %v10962 = vpop.f32.mrb[0].mxu0
  %v10963 = vpop.f32.mrb[0].mxu0
  %v10964 = vadd.f32 0.0, %v10963
  %v10965 = vpop.f32.mrb[0].mxu0
  %10966 = vmatprep.mubr.bf16.mxu0 0
  %10967 = vmatmul.mubr.bf16.gmra.mrb[0].mxu0 %v10675
  %v10968 = vpop.f32.mrb[0].mxu0
  %v10969 = vadd.f32 0.0, %v10968
  %v10970 = vpop.f32.mrb[0].mxu0
  %v10971 = vpop.f32.mrb[0].mxu0
  %v10972 = vadd.f32 0.0, %v10971
  %v10973 = vpop.f32.mrb[0].mxu0
  %10974 = vmatprep.mubr.bf16.mxu0 0
  %10975 = vmatmul.mubr.bf16.gmra.mrb[0].mxu0 %v10676
  %v10976 = vpop.f32.mrb[0].mxu0
  %v10977 = vadd.f32 0.0, %v10976
  %v10978 = vpop.f32.mrb[0].mxu0
  %v10979 = vpop.f32.mrb[0].mxu0
  %v10980 = vadd.f32 0.0, %v10979
  %v10981 = vpop.f32.mrb[0].mxu0
  %10982 = vmatprep.mubr.bf16.mxu0 0
  %10983 = vmatmul.mubr.bf16.gmra.mrb[0].mxu0 %v10677
  %v10984 = vpop.f32.mrb[0].mxu0
  %v10985 = vadd.f32 0.0, %v10984
  %v10986 = vpop.f32.mrb[0].mxu0
  %v10987 = vpop.f32.mrb[0].mxu0
  %v10988 = vadd.f32 0.0, %v10987
  %v10989 = vpop.f32.mrb[0].mxu0
  %10990 = vmatprep.mubr.bf16.mxu0 0
  %10991 = vmatmul.mubr.bf16.gmra.mrb[0].mxu0 %v10678
  %v10992 = vpop.f32.mrb[0].mxu0
  %v10993 = vadd.f32 0.0, %v10992
  %v10994 = vpop.f32.mrb[0].mxu0
  %v10995 = vpop.f32.mrb[0].mxu0
  %v10996 = vadd.f32 0.0, %v10995
  %v10997 = vpop.f32.mrb[0].mxu0
  %10998 = vmatprep.mubr.bf16.mxu0 0
  %10999 = vmatmul.mubr.bf16.gmra.mrb[0].mxu0 %v10679
  %v11000 = vpop.f32.mrb[0].mxu0
  %v11001 = vadd.f32 0.0, %v11000
  %v11002 = vpop.f32.mrb[0].mxu0
  %v11003 = vpop.f32.mrb[0].mxu0
  %v11004 = vadd.f32 0.0, %v11003
  %v11005 = vpop.f32.mrb[0].mxu0
  %11006 = vmatprep.mubr.bf16.mxu0 0
  %11007 = vmatmul.mubr.bf16.gmra.mrb[0].mxu0 %v10680
  %v11008 = vpop.f32.mrb[0].mxu0
  %v11009 = vadd.f32 0.0, %v11008
  %v11010 = vpop.f32.mrb[0].mxu0
  %v11011 = vpop.f32.mrb[0].mxu0
  %v11012 = vadd.f32 0.0, %v11011
  %v11013 = vpop.f32.mrb[0].mxu0
  %11014 = vmatprep.mubr.bf16.mxu0 0
  %11015 = vmatmul.mubr.bf16.gmra.mrb[0].mxu0 %v10681
  %v11016 = vpop.f32.mrb[0].mxu0
  %v11017 = vadd.f32 0.0, %v11016
  %v11018 = vpop.f32.mrb[0].mxu0
  %v11019 = vpop.f32.mrb[0].mxu0
  %v11020 = vadd.f32 0.0, %v11019
  %v11021 = vpop.f32.mrb[0].mxu0
  %11022 = vmatprep.mubr.bf16.mxu0 0
  %11023 = vmatmul.mubr.bf16.gmra.mrb[0].mxu0 %v10682
  %v11024 = vpop.f32.mrb[0].mxu0
  %v11025 = vadd.f32 0.0, %v11024
  %v11026 = vpop.f32.mrb[0].mxu0
  %v11027 = vpop.f32.mrb[0].mxu0
  %v11028 = vadd.f32 0.0, %v11027
  %v11029 = vpop.f32.mrb[0].mxu0
  %11030 = vmatprep.mubr.bf16.mxu0 0
  %11031 = vmatmul.mubr.bf16.gmra.mrb[0].mxu0 %v10683
  %v11032 = vpop.f32.mrb[0].mxu0
  %v11033 = vadd.f32 0.0, %v11032
  %v11034 = vpop.f32.mrb[0].mxu0
  %v11035 = vpop.f32.mrb[0].mxu0
  %v11036 = vadd.f32 0.0, %v11035
  %v11037 = vpop.f32.mrb[0].mxu0
  %11038 = vmatprep.mubr.bf16.mxu0 0
  %11039 = vmatmul.mubr.bf16.gmra.mrb[0].mxu0 %v10684
  %v11040 = vpop.f32.mrb[0].mxu0
  %v11041 = vadd.f32 0.0, %v11040
  %v11042 = vpop.f32.mrb[0].mxu0
  %v11043 = vpop.f32.mrb[0].mxu0
  %v11044 = vadd.f32 0.0, %v11043
  %v11045 = vpop.f32.mrb[0].mxu0
  %11046 = vmatprep.mubr.bf16.mxu0 0
  %11047 = vmatmul.mubr.bf16.gmra.mrb[0].mxu0 %v10685
  %v11048 = vpop.f32.mrb[0].mxu0
  %v11049 = vadd.f32 0.0, %v11048
  %v11050 = vpop.f32.mrb[0].mxu0
  %v11051 = vpop.f32.mrb[0].mxu0
  %v11052 = vadd.f32 0.0, %v11051
  %v11053 = vpop.f32.mrb[0].mxu0
  %11054 = vdwg.mxu0
  %v11055 = vld [vmem:[%s12] sm:$0x1]
  %v11056 = vld [vmem:[%s13] sm:$0x1]
  %v11057 = vadd.f32 %v10801, %v10804
  %v11058 = vadd.f32 %v11057, %v10809
  %v11059 = vadd.f32 %v11058, %v10812
  %v11060 = vadd.f32 %v11059, %v10817
  %v11061 = vadd.f32 %v11060, %v10820
  %v11062 = vadd.f32 %v11061, %v10825
  %v11063 = vadd.f32 %v11062, %v10828
  %v11064 = vadd.f32 %v11063, %v10833
  %v11065 = vadd.f32 %v11064, %v10836
  %v11066 = vadd.f32 %v11065, %v10841
  %v11067 = vadd.f32 %v11066, %v10844
  %v11068 = vadd.f32 %v11067, %v10849
  %v11069 = vadd.f32 %v11068, %v10852
  %v11070 = vadd.f32 %v11069, %v10857
  %v11071 = vadd.f32 %v11070, %v10860
  %v11072 = vadd.f32 %v11071, %v10865
  %v11073 = vadd.f32 %v11072, %v10868
  %v11074 = vadd.f32 %v11073, %v10873
  %v11075 = vadd.f32 %v11074, %v10876
  %v11076 = vadd.f32 %v11075, %v10881
  %v11077 = vadd.f32 %v11076, %v10884
  %v11078 = vadd.f32 %v11077, %v10889
  %v11079 = vadd.f32 %v11078, %v10892
  %v11080 = vadd.f32 %v11079, %v10897
  %v11081 = vadd.f32 %v11080, %v10900
  %v11082 = vadd.f32 %v11081, %v10905
  %v11083 = vadd.f32 %v11082, %v10908
  %v11084 = vadd.f32 %v11083, %v10913
  %v11085 = vadd.f32 %v11084, %v10916
  %v11086 = vadd.f32 %v11085, %v10921
  %v11087 = vadd.f32 %v11086, %v10924
  %v11088 = vadd.f32 %v11087, %v10929
  %v11089 = vadd.f32 %v11088, %v10932
  %v11090 = vadd.f32 %v11089, %v10937
  %v11091 = vadd.f32 %v11090, %v10940
  %v11092 = vadd.f32 %v11091, %v10945
  %v11093 = vadd.f32 %v11092, %v10948
  %v11094 = vadd.f32 %v11093, %v10953
  %v11095 = vadd.f32 %v11094, %v10956
  %v11096 = vadd.f32 %v11095, %v10961
  %v11097 = vadd.f32 %v11096, %v10964
  %v11098 = vadd.f32 %v11097, %v10969
  %v11099 = vadd.f32 %v11098, %v10972
  %v11100 = vadd.f32 %v11099, %v10977
  %v11101 = vadd.f32 %v11100, %v10980
  %v11102 = vadd.f32 %v11101, %v10985
  %v11103 = vadd.f32 %v11102, %v10988
  %v11104 = vadd.f32 %v11103, %v10993
  %v11105 = vadd.f32 %v11104, %v10996
  %v11106 = vadd.f32 %v11105, %v11001
  %v11107 = vadd.f32 %v11106, %v11004
  %v11108 = vadd.f32 %v11107, %v11009
  %v11109 = vadd.f32 %v11108, %v11012
  %v11110 = vadd.f32 %v11109, %v11017
  %v11111 = vadd.f32 %v11110, %v11020
  %v11112 = vadd.f32 %v11111, %v11025
  %v11113 = vadd.f32 %v11112, %v11028
  %v11114 = vadd.f32 %v11113, %v11033
  %v11115 = vadd.f32 %v11114, %v11036
  %v11116 = vadd.f32 %v11115, %v11041
  %v11117 = vadd.f32 %v11116, %v11044
  %v11118 = vadd.f32 %v11117, %v11049
  %v11119 = vadd.f32 %v11118, %v11052
  %v11120 = vrot.slane %v11119, 4
  %v11121 = vadd.f32 %v11119, %v11120
  %v11122 = vrot.slane %v11121, 2
  %v11123 = vadd.f32 %v11121, %v11122
  %v11124 = vrot.slane %v11123, 1
  %v11125 = vadd.f32 %v11123, %v11124
  %v11126 = vmul.f32 %v10801, %v10801
  %v11127 = vmul.f32 %v10804, %v10804
  %v11128 = vmul.f32 %v10809, %v10809
  %v11129 = vmul.f32 %v10812, %v10812
  %v11130 = vmul.f32 %v10817, %v10817
  %v11131 = vmul.f32 %v10820, %v10820
  %v11132 = vmul.f32 %v10825, %v10825
  %v11133 = vmul.f32 %v10828, %v10828
  %v11134 = vmul.f32 %v10833, %v10833
  %v11135 = vmul.f32 %v10836, %v10836
  %v11136 = vmul.f32 %v10841, %v10841
  %v11137 = vmul.f32 %v10844, %v10844
  %v11138 = vmul.f32 %v10849, %v10849
  %v11139 = vmul.f32 %v10852, %v10852
  %v11140 = vmul.f32 %v10857, %v10857
  %v11141 = vmul.f32 %v10860, %v10860
  %v11142 = vmul.f32 %v10865, %v10865
  %v11143 = vmul.f32 %v10868, %v10868
  %v11144 = vmul.f32 %v10873, %v10873
  %v11145 = vmul.f32 %v10876, %v10876
  %v11146 = vmul.f32 %v10881, %v10881
  %v11147 = vmul.f32 %v10884, %v10884
  %v11148 = vmul.f32 %v10889, %v10889
  %v11149 = vmul.f32 %v10892, %v10892
  %v11150 = vmul.f32 %v10897, %v10897
  %v11151 = vmul.f32 %v10900, %v10900
  %v11152 = vmul.f32 %v10905, %v10905
  %v11153 = vmul.f32 %v10908, %v10908
  %v11154 = vmul.f32 %v10913, %v10913
  %v11155 = vmul.f32 %v10916, %v10916
  %v11156 = vmul.f32 %v10921, %v10921
  %v11157 = vmul.f32 %v10924, %v10924
  %v11158 = vmul.f32 %v10929, %v10929
  %v11159 = vmul.f32 %v10932, %v10932
  %v11160 = vmul.f32 %v10937, %v10937
  %v11161 = vmul.f32 %v10940, %v10940
  %v11162 = vmul.f32 %v10945, %v10945
  %v11163 = vmul.f32 %v10948, %v10948
  %v11164 = vmul.f32 %v10953, %v10953
  %v11165 = vmul.f32 %v10956, %v10956
  %v11166 = vmul.f32 %v10961, %v10961
  %v11167 = vmul.f32 %v10964, %v10964
  %v11168 = vmul.f32 %v10969, %v10969
  %v11169 = vmul.f32 %v10972, %v10972
  %v11170 = vmul.f32 %v10977, %v10977
  %v11171 = vmul.f32 %v10980, %v10980
  %v11172 = vmul.f32 %v10985, %v10985
  %v11173 = vmul.f32 %v10988, %v10988
  %v11174 = vmul.f32 %v10993, %v10993
  %v11175 = vmul.f32 %v10996, %v10996
  %v11176 = vmul.f32 %v11001, %v11001
  %v11177 = vmul.f32 %v11004, %v11004
  %v11178 = vmul.f32 %v11009, %v11009
  %v11179 = vmul.f32 %v11012, %v11012
  %v11180 = vmul.f32 %v11017, %v11017
  %v11181 = vmul.f32 %v11020, %v11020
  %v11182 = vmul.f32 %v11025, %v11025
  %v11183 = vmul.f32 %v11028, %v11028
  %v11184 = vmul.f32 %v11033, %v11033
  %v11185 = vmul.f32 %v11036, %v11036
  %v11186 = vmul.f32 %v11041, %v11041
  %v11187 = vmul.f32 %v11044, %v11044
  %v11188 = vmul.f32 %v11049, %v11049
  %v11189 = vmul.f32 %v11052, %v11052
  %v11190 = vadd.f32 %v11126, %v11127
  %v11191 = vadd.f32 %v11190, %v11128
  %v11192 = vadd.f32 %v11191, %v11129
  %v11193 = vadd.f32 %v11192, %v11130
  %v11194 = vadd.f32 %v11193, %v11131
  %v11195 = vadd.f32 %v11194, %v11132
  %v11196 = vadd.f32 %v11195, %v11133
  %v11197 = vadd.f32 %v11196, %v11134
  %v11198 = vadd.f32 %v11197, %v11135
  %v11199 = vadd.f32 %v11198, %v11136
  %v11200 = vadd.f32 %v11199, %v11137
  %v11201 = vadd.f32 %v11200, %v11138
  %v11202 = vadd.f32 %v11201, %v11139
  %v11203 = vadd.f32 %v11202, %v11140
  %v11204 = vadd.f32 %v11203, %v11141
  %v11205 = vadd.f32 %v11204, %v11142
  %v11206 = vadd.f32 %v11205, %v11143
  %v11207 = vadd.f32 %v11206, %v11144
  %v11208 = vadd.f32 %v11207, %v11145
  %v11209 = vadd.f32 %v11208, %v11146
  %v11210 = vadd.f32 %v11209, %v11147
  %v11211 = vadd.f32 %v11210, %v11148
  %v11212 = vadd.f32 %v11211, %v11149
  %v11213 = vadd.f32 %v11212, %v11150
  %v11214 = vadd.f32 %v11213, %v11151
  %v11215 = vadd.f32 %v11214, %v11152
  %v11216 = vadd.f32 %v11215, %v11153
  %v11217 = vadd.f32 %v11216, %v11154
  %v11218 = vadd.f32 %v11217, %v11155
  %v11219 = vadd.f32 %v11218, %v11156
  %v11220 = vadd.f32 %v11219, %v11157
  %v11221 = vadd.f32 %v11220, %v11158
  %v11222 = vadd.f32 %v11221, %v11159
  %v11223 = vadd.f32 %v11222, %v11160
  %v11224 = vadd.f32 %v11223, %v11161
  %v11225 = vadd.f32 %v11224, %v11162
  %v11226 = vadd.f32 %v11225, %v11163
  %v11227 = vadd.f32 %v11226, %v11164
  %v11228 = vadd.f32 %v11227, %v11165
  %v11229 = vadd.f32 %v11228, %v11166
  %v11230 = vadd.f32 %v11229, %v11167
  %v11231 = vadd.f32 %v11230, %v11168
  %v11232 = vadd.f32 %v11231, %v11169
  %v11233 = vadd.f32 %v11232, %v11170
  %v11234 = vadd.f32 %v11233, %v11171
  %v11235 = vadd.f32 %v11234, %v11172
  %v11236 = vadd.f32 %v11235, %v11173
  %v11237 = vadd.f32 %v11236, %v11174
  %v11238 = vadd.f32 %v11237, %v11175
  %v11239 = vadd.f32 %v11238, %v11176
  %v11240 = vadd.f32 %v11239, %v11177
  %v11241 = vadd.f32 %v11240, %v11178
  %v11242 = vadd.f32 %v11241, %v11179
  %v11243 = vadd.f32 %v11242, %v11180
  %v11244 = vadd.f32 %v11243, %v11181
  %v11245 = vadd.f32 %v11244, %v11182
  %v11246 = vadd.f32 %v11245, %v11183
  %v11247 = vadd.f32 %v11246, %v11184
  %v11248 = vadd.f32 %v11247, %v11185
  %v11249 = vadd.f32 %v11248, %v11186
  %v11250 = vadd.f32 %v11249, %v11187
  %v11251 = vadd.f32 %v11250, %v11188
  %v11252 = vadd.f32 %v11251, %v11189
  %v11253 = vrot.slane %v11252, 4
  %v11254 = vadd.f32 %v11252, %v11253
  %v11255 = vrot.slane %v11254, 2
  %v11256 = vadd.f32 %v11254, %v11255
  %v11257 = vrot.slane %v11256, 1
  %v11258 = vadd.f32 %v11256, %v11257
  %v11259 = vmul.f32 %v11125, 0.001953125
  %v11260 = vmul.f32 %v11258, 0.001953125
  %v11261 = vmul.f32 %v11259, %v11259
  %v11262 = vsub.f32 %v11260, %v11261
  %v11263 = vadd.f32 %v11262, 1e-05
  %v11264 = vrsqrt.pop %v11263
  %v11265 = vmul.f32 %v11055, %v11264
  %v11266 = vmul.f32 %v11259, %v11265
  %v11267 = vsub.f32 %v11056, %v11266
  %v11269 = vlaneseq
  %v11270 = vshrl.u32 %v11269, 7
  %v11271 = vsub.s32 0, %v11270
  %v11272 = vrot.slane %v11265, %v11271
  %v11274 = vmul.f32 %v10801, %v11272
  %v11275 = vmul.f32 %v10804, %v11272
  %v11276 = vmul.f32 %v10809, %v11272
  %v11277 = vmul.f32 %v10812, %v11272
  %v11278 = vmul.f32 %v10817, %v11272
  %v11279 = vmul.f32 %v10820, %v11272
  %v11280 = vmul.f32 %v10825, %v11272
  %v11281 = vmul.f32 %v10828, %v11272
  %v11282 = vmul.f32 %v10833, %v11272
  %v11283 = vmul.f32 %v10836, %v11272
  %v11284 = vmul.f32 %v10841, %v11272
  %v11285 = vmul.f32 %v10844, %v11272
  %v11286 = vmul.f32 %v10849, %v11272
  %v11287 = vmul.f32 %v10852, %v11272
  %v11288 = vmul.f32 %v10857, %v11272
  %v11289 = vmul.f32 %v10860, %v11272
  %v11290 = vmul.f32 %v10865, %v11272
  %v11291 = vmul.f32 %v10868, %v11272
  %v11292 = vmul.f32 %v10873, %v11272
  %v11293 = vmul.f32 %v10876, %v11272
  %v11294 = vmul.f32 %v10881, %v11272
  %v11295 = vmul.f32 %v10884, %v11272
  %v11296 = vmul.f32 %v10889, %v11272
  %v11297 = vmul.f32 %v10892, %v11272
  %v11298 = vmul.f32 %v10897, %v11272
  %v11299 = vmul.f32 %v10900, %v11272
  %v11300 = vmul.f32 %v10905, %v11272
  %v11301 = vmul.f32 %v10908, %v11272
  %v11302 = vmul.f32 %v10913, %v11272
  %v11303 = vmul.f32 %v10916, %v11272
  %v11304 = vmul.f32 %v10921, %v11272
  %v11305 = vmul.f32 %v10924, %v11272
  %v11306 = vmul.f32 %v10929, %v11272
  %v11307 = vmul.f32 %v10932, %v11272
  %v11308 = vmul.f32 %v10937, %v11272
  %v11309 = vmul.f32 %v10940, %v11272
  %v11310 = vmul.f32 %v10945, %v11272
  %v11311 = vmul.f32 %v10948, %v11272
  %v11312 = vmul.f32 %v10953, %v11272
  %v11313 = vmul.f32 %v10956, %v11272
  %v11314 = vmul.f32 %v10961, %v11272
  %v11315 = vmul.f32 %v10964, %v11272
  %v11316 = vmul.f32 %v10969, %v11272
  %v11317 = vmul.f32 %v10972, %v11272
  %v11318 = vmul.f32 %v10977, %v11272
  %v11319 = vmul.f32 %v10980, %v11272
  %v11320 = vmul.f32 %v10985, %v11272
  %v11321 = vmul.f32 %v10988, %v11272
  %v11322 = vmul.f32 %v10993, %v11272
  %v11323 = vmul.f32 %v10996, %v11272
  %v11324 = vmul.f32 %v11001, %v11272
  %v11325 = vmul.f32 %v11004, %v11272
  %v11326 = vmul.f32 %v11009, %v11272
  %v11327 = vmul.f32 %v11012, %v11272
  %v11328 = vmul.f32 %v11017, %v11272
  %v11329 = vmul.f32 %v11020, %v11272
  %v11330 = vmul.f32 %v11025, %v11272
  %v11331 = vmul.f32 %v11028, %v11272
  %v11332 = vmul.f32 %v11033, %v11272
  %v11333 = vmul.f32 %v11036, %v11272
  %v11334 = vmul.f32 %v11041, %v11272
  %v11335 = vmul.f32 %v11044, %v11272
  %v11336 = vmul.f32 %v11049, %v11272
  %v11337 = vmul.f32 %v11052, %v11272
  %v11339 = vlaneseq
  %v11340 = vshrl.u32 %v11339, 7
  %v11341 = vsub.s32 0, %v11340
  %v11342 = vrot.slane %v11267, %v11341
  %v11344 = vadd.f32 %v11274, %v11342
  %v11345 = vadd.f32 %v11275, %v11342
  %v11346 = vadd.f32 %v11276, %v11342
  %v11347 = vadd.f32 %v11277, %v11342
  %v11348 = vadd.f32 %v11278, %v11342
  %v11349 = vadd.f32 %v11279, %v11342
  %v11350 = vadd.f32 %v11280, %v11342
  %v11351 = vadd.f32 %v11281, %v11342
  %v11352 = vadd.f32 %v11282, %v11342
  %v11353 = vadd.f32 %v11283, %v11342
  %v11354 = vadd.f32 %v11284, %v11342
  %v11355 = vadd.f32 %v11285, %v11342
  %v11356 = vadd.f32 %v11286, %v11342
  %v11357 = vadd.f32 %v11287, %v11342
  %v11358 = vadd.f32 %v11288, %v11342
  %v11359 = vadd.f32 %v11289, %v11342
  %v11360 = vadd.f32 %v11290, %v11342
  %v11361 = vadd.f32 %v11291, %v11342
  %v11362 = vadd.f32 %v11292, %v11342
  %v11363 = vadd.f32 %v11293, %v11342
  %v11364 = vadd.f32 %v11294, %v11342
  %v11365 = vadd.f32 %v11295, %v11342
  %v11366 = vadd.f32 %v11296, %v11342
  %v11367 = vadd.f32 %v11297, %v11342
  %v11368 = vadd.f32 %v11298, %v11342
  %v11369 = vadd.f32 %v11299, %v11342
  %v11370 = vadd.f32 %v11300, %v11342
  %v11371 = vadd.f32 %v11301, %v11342
  %v11372 = vadd.f32 %v11302, %v11342
  %v11373 = vadd.f32 %v11303, %v11342
  %v11374 = vadd.f32 %v11304, %v11342
  %v11375 = vadd.f32 %v11305, %v11342
  %v11376 = vadd.f32 %v11306, %v11342
  %v11377 = vadd.f32 %v11307, %v11342
  %v11378 = vadd.f32 %v11308, %v11342
  %v11379 = vadd.f32 %v11309, %v11342
  %v11380 = vadd.f32 %v11310, %v11342
  %v11381 = vadd.f32 %v11311, %v11342
  %v11382 = vadd.f32 %v11312, %v11342
  %v11383 = vadd.f32 %v11313, %v11342
  %v11384 = vadd.f32 %v11314, %v11342
  %v11385 = vadd.f32 %v11315, %v11342
  %v11386 = vadd.f32 %v11316, %v11342
  %v11387 = vadd.f32 %v11317, %v11342
  %v11388 = vadd.f32 %v11318, %v11342
  %v11389 = vadd.f32 %v11319, %v11342
  %v11390 = vadd.f32 %v11320, %v11342
  %v11391 = vadd.f32 %v11321, %v11342
  %v11392 = vadd.f32 %v11322, %v11342
  %v11393 = vadd.f32 %v11323, %v11342
  %v11394 = vadd.f32 %v11324, %v11342
  %v11395 = vadd.f32 %v11325, %v11342
  %v11396 = vadd.f32 %v11326, %v11342
  %v11397 = vadd.f32 %v11327, %v11342
  %v11398 = vadd.f32 %v11328, %v11342
  %v11399 = vadd.f32 %v11329, %v11342
  %v11400 = vadd.f32 %v11330, %v11342
  %v11401 = vadd.f32 %v11331, %v11342
  %v11402 = vadd.f32 %v11332, %v11342
  %v11403 = vadd.f32 %v11333, %v11342
  %v11404 = vadd.f32 %v11334, %v11342
  %v11405 = vadd.f32 %v11335, %v11342
  %v11406 = vadd.f32 %v11336, %v11342
  %v11407 = vadd.f32 %v11337, %v11342
  %v11408 = vadd.f32 %v10382, %v11344
  %v11409 = vadd.f32 %v10383, %v11345
  %v11410 = vadd.f32 %v10384, %v11346
  %v11411 = vadd.f32 %v10385, %v11347
  %v11412 = vadd.f32 %v10386, %v11348
  %v11413 = vadd.f32 %v10387, %v11349
  %v11414 = vadd.f32 %v10388, %v11350
  %v11415 = vadd.f32 %v10389, %v11351
  %v11416 = vadd.f32 %v10390, %v11352
  %v11417 = vadd.f32 %v10391, %v11353
  %v11418 = vadd.f32 %v10392, %v11354
  %v11419 = vadd.f32 %v10393, %v11355
  %v11420 = vadd.f32 %v10394, %v11356
  %v11421 = vadd.f32 %v10395, %v11357
  %v11422 = vadd.f32 %v10396, %v11358
  %v11423 = vadd.f32 %v10397, %v11359
  %v11424 = vadd.f32 %v10398, %v11360
  %v11425 = vadd.f32 %v10399, %v11361
  %v11426 = vadd.f32 %v10400, %v11362
  %v11427 = vadd.f32 %v10401, %v11363
  %v11428 = vadd.f32 %v10402, %v11364
  %v11429 = vadd.f32 %v10403, %v11365
  %v11430 = vadd.f32 %v10404, %v11366
  %v11431 = vadd.f32 %v10405, %v11367
  %v11432 = vadd.f32 %v10406, %v11368
  %v11433 = vadd.f32 %v10407, %v11369
  %v11434 = vadd.f32 %v10408, %v11370
  %v11435 = vadd.f32 %v10409, %v11371
  %v11436 = vadd.f32 %v10410, %v11372
  %v11437 = vadd.f32 %v10411, %v11373
  %v11438 = vadd.f32 %v10412, %v11374
  %v11439 = vadd.f32 %v10413, %v11375
  %v11440 = vadd.f32 %v10414, %v11376
  %v11441 = vadd.f32 %v10415, %v11377
  %v11442 = vadd.f32 %v10416, %v11378
  %v11443 = vadd.f32 %v10417, %v11379
  %v11444 = vadd.f32 %v10418, %v11380
  %v11445 = vadd.f32 %v10419, %v11381
  %v11446 = vadd.f32 %v10420, %v11382
  %v11447 = vadd.f32 %v10421, %v11383
  %v11448 = vadd.f32 %v10422, %v11384
  %v11449 = vadd.f32 %v10423, %v11385
  %v11450 = vadd.f32 %v10424, %v11386
  %v11451 = vadd.f32 %v10425, %v11387
  %v11452 = vadd.f32 %v10426, %v11388
  %v11453 = vadd.f32 %v10427, %v11389
  %v11454 = vadd.f32 %v10428, %v11390
  %v11455 = vadd.f32 %v10429, %v11391
  %v11456 = vadd.f32 %v10430, %v11392
  %v11457 = vadd.f32 %v10431, %v11393
  %v11458 = vadd.f32 %v10432, %v11394
  %v11459 = vadd.f32 %v10433, %v11395
  %v11460 = vadd.f32 %v10434, %v11396
  %v11461 = vadd.f32 %v10435, %v11397
  %v11462 = vadd.f32 %v10436, %v11398
  %v11463 = vadd.f32 %v10437, %v11399
  %v11464 = vadd.f32 %v10438, %v11400
  %v11465 = vadd.f32 %v10439, %v11401
  %v11466 = vadd.f32 %v10440, %v11402
  %v11467 = vadd.f32 %v10441, %v11403
  %v11468 = vadd.f32 %v10442, %v11404
  %v11469 = vadd.f32 %v10443, %v11405
  %v11470 = vadd.f32 %v10444, %v11406
  %v11471 = vadd.f32 %v10445, %v11407
  %v11472 = vmax.f32 %v11408, 0.0
  %v11473 = vmax.f32 %v11409, 0.0
  %v11474 = vmax.f32 %v11410, 0.0
  %v11475 = vmax.f32 %v11411, 0.0
  %v11476 = vmax.f32 %v11412, 0.0
  %v11477 = vmax.f32 %v11413, 0.0
  %v11478 = vmax.f32 %v11414, 0.0
  %v11479 = vmax.f32 %v11415, 0.0
  %v11480 = vmax.f32 %v11416, 0.0
  %v11481 = vmax.f32 %v11417, 0.0
  %v11482 = vmax.f32 %v11418, 0.0
  %v11483 = vmax.f32 %v11419, 0.0
  %v11484 = vmax.f32 %v11420, 0.0
  %v11485 = vmax.f32 %v11421, 0.0
  %v11486 = vmax.f32 %v11422, 0.0
  %v11487 = vmax.f32 %v11423, 0.0
  %v11488 = vmax.f32 %v11424, 0.0
  %v11489 = vmax.f32 %v11425, 0.0
  %v11490 = vmax.f32 %v11426, 0.0
  %v11491 = vmax.f32 %v11427, 0.0
  %v11492 = vmax.f32 %v11428, 0.0
  %v11493 = vmax.f32 %v11429, 0.0
  %v11494 = vmax.f32 %v11430, 0.0
  %v11495 = vmax.f32 %v11431, 0.0
  %v11496 = vmax.f32 %v11432, 0.0
  %v11497 = vmax.f32 %v11433, 0.0
  %v11498 = vmax.f32 %v11434, 0.0
  %v11499 = vmax.f32 %v11435, 0.0
  %v11500 = vmax.f32 %v11436, 0.0
  %v11501 = vmax.f32 %v11437, 0.0
  %v11502 = vmax.f32 %v11438, 0.0
  %v11503 = vmax.f32 %v11439, 0.0
  %v11504 = vmax.f32 %v11440, 0.0
  %v11505 = vmax.f32 %v11441, 0.0
  %v11506 = vmax.f32 %v11442, 0.0
  %v11507 = vmax.f32 %v11443, 0.0
  %v11508 = vmax.f32 %v11444, 0.0
  %v11509 = vmax.f32 %v11445, 0.0
  %v11510 = vmax.f32 %v11446, 0.0
  %v11511 = vmax.f32 %v11447, 0.0
  %v11512 = vmax.f32 %v11448, 0.0
  %v11513 = vmax.f32 %v11449, 0.0
  %v11514 = vmax.f32 %v11450, 0.0
  %v11515 = vmax.f32 %v11451, 0.0
  %v11516 = vmax.f32 %v11452, 0.0
  %v11517 = vmax.f32 %v11453, 0.0
  %v11518 = vmax.f32 %v11454, 0.0
  %v11519 = vmax.f32 %v11455, 0.0
  %v11520 = vmax.f32 %v11456, 0.0
  %v11521 = vmax.f32 %v11457, 0.0
  %v11522 = vmax.f32 %v11458, 0.0
  %v11523 = vmax.f32 %v11459, 0.0
  %v11524 = vmax.f32 %v11460, 0.0
  %v11525 = vmax.f32 %v11461, 0.0
  %v11526 = vmax.f32 %v11462, 0.0
  %v11527 = vmax.f32 %v11463, 0.0
  %v11528 = vmax.f32 %v11464, 0.0
  %v11529 = vmax.f32 %v11465, 0.0
  %v11530 = vmax.f32 %v11466, 0.0
  %v11531 = vmax.f32 %v11467, 0.0
  %v11532 = vmax.f32 %v11468, 0.0
  %v11533 = vmax.f32 %v11469, 0.0
  %v11534 = vmax.f32 %v11470, 0.0
  %v11535 = vmax.f32 %v11471, 0.0
  %11536 = vst [vmem:[%s14] sm:$0xff] %v11472
  %11537 = vst [vmem:[%s14 + $0x8] sm:$0xff] %v11473
  %11538 = vst [vmem:[%s14 + $0x10] sm:$0xff] %v11474
  %11539 = vst [vmem:[%s14 + $0x18] sm:$0xff] %v11475
  %11540 = vst [vmem:[%s14 + $0x20] sm:$0xff] %v11476
  %11541 = vst [vmem:[%s14 + $0x28] sm:$0xff] %v11477
  %11542 = vst [vmem:[%s14 + $0x30] sm:$0xff] %v11478
  %11543 = vst [vmem:[%s14 + $0x38] sm:$0xff] %v11479
  %11544 = vst [vmem:[%s14 + $0x40] sm:$0xff] %v11480
  %11545 = vst [vmem:[%s14 + $0x48] sm:$0xff] %v11481
  %11546 = vst [vmem:[%s14 + $0x50] sm:$0xff] %v11482
  %11547 = vst [vmem:[%s14 + $0x58] sm:$0xff] %v11483
  %11548 = vst [vmem:[%s14 + $0x60] sm:$0xff] %v11484
  %11549 = vst [vmem:[%s14 + $0x68] sm:$0xff] %v11485
  %11550 = vst [vmem:[%s14 + $0x70] sm:$0xff] %v11486
  %11551 = vst [vmem:[%s14 + $0x78] sm:$0xff] %v11487
  %11552 = vst [vmem:[%s14 + $0x80] sm:$0xff] %v11488
  %11553 = vst [vmem:[%s14 + $0x88] sm:$0xff] %v11489
  %11554 = vst [vmem:[%s14 + $0x90] sm:$0xff] %v11490
  %11555 = vst [vmem:[%s14 + $0x98] sm:$0xff] %v11491
  %11556 = vst [vmem:[%s14 + $0xa0] sm:$0xff] %v11492
  %11557 = vst [vmem:[%s14 + $0xa8] sm:$0xff] %v11493
  %11558 = vst [vmem:[%s14 + $0xb0] sm:$0xff] %v11494
  %11559 = vst [vmem:[%s14 + $0xb8] sm:$0xff] %v11495
  %11560 = vst [vmem:[%s14 + $0xc0] sm:$0xff] %v11496
  %11561 = vst [vmem:[%s14 + $0xc8] sm:$0xff] %v11497
  %11562 = vst [vmem:[%s14 + $0xd0] sm:$0xff] %v11498
  %11563 = vst [vmem:[%s14 + $0xd8] sm:$0xff] %v11499
  %11564 = vst [vmem:[%s14 + $0xe0] sm:$0xff] %v11500
  %11565 = vst [vmem:[%s14 + $0xe8] sm:$0xff] %v11501
  %11566 = vst [vmem:[%s14 + $0xf0] sm:$0xff] %v11502
  %11567 = vst [vmem:[%s14 + $0xf8] sm:$0xff] %v11503
  %11568 = vst [vmem:[%s14 + $0x100] sm:$0xff] %v11504
  %11569 = vst [vmem:[%s14 + $0x108] sm:$0xff] %v11505
  %11570 = vst [vmem:[%s14 + $0x110] sm:$0xff] %v11506
  %11571 = vst [vmem:[%s14 + $0x118] sm:$0xff] %v11507
  %11572 = vst [vmem:[%s14 + $0x120] sm:$0xff] %v11508
  %11573 = vst [vmem:[%s14 + $0x128] sm:$0xff] %v11509
  %11574 = vst [vmem:[%s14 + $0x130] sm:$0xff] %v11510
  %11575 = vst [vmem:[%s14 + $0x138] sm:$0xff] %v11511
  %11576 = vst [vmem:[%s14 + $0x140] sm:$0xff] %v11512
  %11577 = vst [vmem:[%s14 + $0x148] sm:$0xff] %v11513
  %11578 = vst [vmem:[%s14 + $0x150] sm:$0xff] %v11514
  %11579 = vst [vmem:[%s14 + $0x158] sm:$0xff] %v11515
  %11580 = vst [vmem:[%s14 + $0x160] sm:$0xff] %v11516
  %11581 = vst [vmem:[%s14 + $0x168] sm:$0xff] %v11517
  %11582 = vst [vmem:[%s14 + $0x170] sm:$0xff] %v11518
  %11583 = vst [vmem:[%s14 + $0x178] sm:$0xff] %v11519
  %11584 = vst [vmem:[%s14 + $0x180] sm:$0xff] %v11520
  %11585 = vst [vmem:[%s14 + $0x188] sm:$0xff] %v11521
  %11586 = vst [vmem:[%s14 + $0x190] sm:$0xff] %v11522
  %11587 = vst [vmem:[%s14 + $0x198] sm:$0xff] %v11523
  %11588 = vst [vmem:[%s14 + $0x1a0] sm:$0xff] %v11524
  %11589 = vst [vmem:[%s14 + $0x1a8] sm:$0xff] %v11525
  %11590 = vst [vmem:[%s14 + $0x1b0] sm:$0xff] %v11526
  %11591 = vst [vmem:[%s14 + $0x1b8] sm:$0xff] %v11527
  %11592 = vst [vmem:[%s14 + $0x1c0] sm:$0xff] %v11528
  %11593 = vst [vmem:[%s14 + $0x1c8] sm:$0xff] %v11529
  %11594 = vst [vmem:[%s14 + $0x1d0] sm:$0xff] %v11530
  %11595 = vst [vmem:[%s14 + $0x1d8] sm:$0xff] %v11531
  %11596 = vst [vmem:[%s14 + $0x1e0] sm:$0xff] %v11532
  %11597 = vst [vmem:[%s14 + $0x1e8] sm:$0xff] %v11533
  %11598 = vst [vmem:[%s14 + $0x1f0] sm:$0xff] %v11534
  %11599 = vst [vmem:[%s14 + $0x1f8] sm:$0xff] %v11535
  // Predicated region
  $region58: #{bottleneck_forward.1} parent=0 // pred_check
    _
  $region59: #{bottleneck_forward.1} parent=0 // pred_check_branch
    %11601 = sbr.rel (0) target = $region61
  $region60: #{bottleneck_forward.1} parent=0 // pred_region
    _
  $region61: #{bottleneck_forward.1} parent=0 // pred_fallthru
    _
  // Predicated region
  $region62: #{bottleneck_forward.1} parent=0 // pred_check
    _
  $region63: #{bottleneck_forward.1} parent=0 // pred_check_branch
    %11603 = sbr.rel (0) target = $region65
  $region64: #{bottleneck_forward.1} parent=0 // pred_region
    _
  $region65: #{bottleneck_forward.1} parent=0 // pred_fallthru
    _

</llo_original>
